<compile_context>
chip_gen: v5e
topology: v5e:2x2
jax: 0.10.0
libtpu: 0.0.40
codegen_flags: <defaults>
</compile_context>

<pallas_src>
import jax
import jax.numpy as jnp
from jax.experimental import pallas as pl
from jax.experimental.pallas import tpu as pltpu

# ---------------------------------------------------------------------------
# Model hyper-parameters implied by the module's __init__
# ---------------------------------------------------------------------------
EMBED_DIM = 1024          # MultiheadAttention embed dim
NUM_HEADS = 4
HEAD_DIM = EMBED_DIM // NUM_HEADS
FEAT_H, FEAT_W = 48, 24   # Linear layers are built for 48 * 24 features
FEATURE_DIM = FEAT_H * FEAT_W  # 1152


# ---------------------------------------------------------------------------
# Generation-aware VMEM budget / tile candidates
# ---------------------------------------------------------------------------
def _vmem_budget():
    """Scoped-VMEM cap (bytes) and whether large row tiles are allowed."""
    try:
        cap = int(getattr(pltpu.get_tpu_info(), "vmem_capacity_bytes", 0))
    except Exception:   # query unavailable -> conservative cap (safe on v7x)
        cap = 0
    if cap >= 96 * 1024 * 1024:           # v5e / v6e: 128 MiB physical VMEM
        return 100 * 1024 * 1024, True
    return 40 * 1024 * 1024, False        # v7x (64 MiB physical) or unknown


_VMEM_LIMIT_BYTES, _LARGE_VMEM = _vmem_budget()
# Row tiles for the projection matmuls (bigger tiles on v5e/v6e, capped on v7x).
_ROW_TILES = (1024, 512, 256, 128) if _LARGE_VMEM else (512, 256, 128)
# Q projection keeps tm <= 512 so C=1024 still yields >=2 row blocks (v7x TCs).
_Q_ROW_TILES = (512, 256, 128)
_ROW_ALIGN = 128


def _compiler_params(dim_semantics):
    return pltpu.CompilerParams(dimension_semantics=dim_semantics,
                                vmem_limit_bytes=_VMEM_LIMIT_BYTES)


def _pick_tile(dim, candidates):
    """Largest candidate tile dividing `dim`; whole dim if none divides."""
    for c in candidates:
        if dim % c == 0:
            return c
    return dim


# ---------------------------------------------------------------------------
# Tiled linear: o = x @ w + b   (bf16 MXU matmul, f32 accumulate, bias add)
# ---------------------------------------------------------------------------
def _linear_kernel(x_ref, w_ref, b_ref, o_ref):
    # Activations arrive in their HBM dtype (f32) and are cast to bf16 in VMEM,
    # so no separate XLA cast pass ever touches the activation in HBM.
    x = x_ref[...].astype(jnp.bfloat16)
    acc = jnp.dot(x, w_ref[...], preferred_element_type=jnp.float32)
    o_ref[...] = (acc + b_ref[...]).astype(o_ref.dtype)


def pallas_linear(x, w, b, out_dtype=jnp.bfloat16):
    """x: (M, K) float, w: (K, N), b: (N,) -> (M, N) in out_dtype."""
    M, K = x.shape
    Kw, N = w.shape
    assert K == Kw
    m_pad = ((M + _ROW_ALIGN - 1) // _ROW_ALIGN) * _ROW_ALIGN
    if m_pad != M:      # pad ragged M instead of one giant (M, K) block
        x = jnp.pad(x, ((0, m_pad - M), (0, 0)))
    tm = _pick_tile(m_pad, _ROW_TILES)
    out = pl.pallas_call(
        _linear_kernel,
        out_shape=jax.ShapeDtypeStruct((m_pad, N), out_dtype),
        grid=(m_pad // tm,),
        in_specs=[
            pl.BlockSpec((tm, K), lambda i: (i, 0)),   # row tile, pipelined
            # TODO(synk): mark w/b with pipeline_mode=pl.Buffered(1) once the
            # single-buffer resident-operand mode is confirmed on this JAX
            # build; left at default buffering to guarantee a clean compile.
            pl.BlockSpec((K, N), lambda i: (0, 0)),    # weight stays resident
            pl.BlockSpec((1, N), lambda i: (0, 0)),    # bias stays resident
        ],
        out_specs=pl.BlockSpec((tm, N), lambda i: (i, 0)),
        compiler_params=_compiler_params(("parallel",)),
    )(x, w.astype(jnp.bfloat16), b.reshape(1, N).astype(jnp.float32))
    return out[:M] if m_pad != M else out


def pallas_linear_frames(feats_flat, w, b, *, batch, seq_l, channels,
                         out_dtype=jnp.bfloat16):
    """Project only the image-frame rows of the flat (N*C, F) feature view.

    feats_flat: (batch*(seq_l+1)*channels, F).  The strided frame selection
    (features_tensor[SEQ_L::SEQ_L+1] in PyTorch) is done by the index_map, so
    no gather/copy of the activation is ever materialized in HBM.
    Returns (batch*channels, N).
    """
    total, K = feats_flat.shape
    Kw, N = w.shape
    assert K == Kw and total == batch * (seq_l + 1) * channels
    tm = _pick_tile(channels, _Q_ROW_TILES)
    nb = channels // tm
    stride = (seq_l + 1) * nb      # row-blocks per batch sample in feats_flat
    return pl.pallas_call(
        _linear_kernel,
        out_shape=jax.ShapeDtypeStruct((batch * channels, N), out_dtype),
        grid=(batch, nb),
        in_specs=[
            pl.BlockSpec((tm, K),
                         lambda bi, i: (bi * stride + seq_l * nb + i, 0)),
            pl.BlockSpec((K, N), lambda bi, i: (0, 0)),
            pl.BlockSpec((1, N), lambda bi, i: (0, 0)),
        ],
        out_specs=pl.BlockSpec((tm, N), lambda bi, i: (bi * nb + i, 0)),
        compiler_params=_compiler_params(("parallel", "parallel")),
    )(feats_flat, w.astype(jnp.bfloat16), b.reshape(1, N).astype(jnp.float32))


# ---------------------------------------------------------------------------
# Flash-style multi-head attention (online softmax, Lk-tiled, head in grid)
#   q:  (B, Lq, E)   bf16, 1/sqrt(Dh) already folded into the projection
#   kv: (B, Lk, 2E)  bf16, K in lanes [0, E), V in lanes [E, 2E)
# ---------------------------------------------------------------------------
def _flash_mha_kernel(q_ref, k_ref, v_ref, o_ref, m_sc, l_sc, acc_sc):
    kk = pl.program_id(3)

    @pl.when(kk == 0)
    def _():
        m_sc[...] = jnp.full(m_sc.shape, -jnp.inf, dtype=m_sc.dtype)
        l_sc[...] = jnp.zeros(l_sc.shape, dtype=l_sc.dtype)
        acc_sc[...] = jnp.zeros(acc_sc.shape, dtype=acc_sc.dtype)

    # Scores for this (q-tile, k-tile).  No `* scale` here: the 1/sqrt(Dh)
    # factor is folded into the fused Wq/bq at fuse time.
    s = jax.lax.dot_general(q_ref[...], k_ref[...], (((1,), (1,)), ((), ())),
                            preferred_element_type=jnp.float32)       # (tq, tk)
    m_prev = m_sc[...]
    m_new = jnp.maximum(m_prev, jnp.max(s, axis=-1, keepdims=True))
    alpha = jnp.exp(m_prev - m_new)
    p = jnp.exp(s - m_new)                        # un-normalized attn weights
    l_sc[...] = alpha * l_sc[...] + jnp.sum(p, axis=-1, keepdims=True)
    acc_sc[...] = alpha * acc_sc[...] + jnp.dot(
        p.astype(v_ref.dtype), v_ref[...], preferred_element_type=jnp.float32)
    m_sc[...] = m_new

    @pl.when(kk == pl.num_programs(3) - 1)
    def _():
        # Deferred normalization: one approx reciprocal per row after all Lk
        # tiles (EUP slot, ~free) instead of scaling every (Lq, Lk) weight.
        o_ref[...] = (acc_sc[...] * pl.reciprocal(l_sc[...], approx=True)
                      ).astype(o_ref.dtype)


def pallas_flash_mha(q, kv, num_heads, head_dim):
    """q: (B, Lq, E), kv: (B, Lk, 2E) -> (B, Lq, E) bf16."""
    B, Lq, E = q.shape
    _, Lk, E2 = kv.shape
    assert E == num_heads * head_dim and E2 == 2 * E
    tq = _pick_tile(Lq, (256, 128))
    tk = _pick_tile(Lk, (512, 256, 128))
    grid = (B, num_heads, Lq // tq, Lk // tk)
    return pl.pallas_call(
        _flash_mha_kernel,
        out_shape=jax.ShapeDtypeStruct((B, Lq, E), jnp.bfloat16),
        grid=grid,
        in_specs=[
            # Q head slice: lanes [h*Dh, (h+1)*Dh)
            pl.BlockSpec((None, tq, head_dim), lambda b, h, i, k: (b, i, h)),
            # K head slice from the fused KV tensor: lanes [h*Dh, (h+1)*Dh)
            pl.BlockSpec((None, tk, head_dim), lambda b, h, i, k: (b, k, h)),
            # V head slice from the fused KV tensor: lanes [E + h*Dh, ...)
            pl.BlockSpec((None, tk, head_dim),
                         lambda b, h, i, k: (b, k, num_heads + h)),
        ],
        out_specs=pl.BlockSpec((None, tq, head_dim),
                               lambda b, h, i, k: (b, i, h)),
        scratch_shapes=[
            pltpu.VMEM((tq, 1), jnp.float32),          # running max
            pltpu.VMEM((tq, 1), jnp.float32),          # running denominator
            pltpu.VMEM((tq, head_dim), jnp.float32),   # un-normalized output
        ],
        compiler_params=_compiler_params(
            ("parallel", "parallel", "parallel", "arbitrary")),
    )(q, kv, kv)


# ---------------------------------------------------------------------------
# Offline weight folding (exact algebraic fusion of chained Linear layers)
# ---------------------------------------------------------------------------
def fuse_params(params):
    """Fold Linear->in_proj and out_proj->attn_out pairs; fuse K/V; fold scale."""
    f32 = jnp.float32
    scale = 1.0 / float(HEAD_DIM) ** 0.5   # PyTorch MHA pre-scales q by 1/sqrt(Dh)
    Wq_f = (params["Wq"].astype(f32) @ params["Wq_in"].astype(f32)) * scale
    bq_f = (params["bq"].astype(f32) @ params["Wq_in"].astype(f32)
            + params["bq_in"]) * scale
    Wk_f = params["Wk"].astype(f32) @ params["Wk_in"].astype(f32)
    bk_f = params["bk"].astype(f32) @ params["Wk_in"].astype(f32) + params["bk_in"]
    Wv_f = params["Wv"].astype(f32) @ params["Wv_in"].astype(f32)
    bv_f = params["bv"].astype(f32) @ params["Wv_in"].astype(f32) + params["bv_in"]
    Wo_f = params["W_outproj"].astype(f32) @ params["W_attnout"].astype(f32)
    bo_f = (params["b_outproj"].astype(f32) @ params["W_attnout"].astype(f32)
            + params["b_attnout"])
    return {
        "Wq": Wq_f.astype(jnp.bfloat16), "bq": bq_f.astype(f32),
        "Wkv": jnp.concatenate([Wk_f, Wv_f], axis=1).astype(jnp.bfloat16),
        "bkv": jnp.concatenate([bk_f, bv_f], axis=0).astype(f32),
        "Wo": Wo_f.astype(jnp.bfloat16), "bo": bo_f.astype(f32),
    }


# ---------------------------------------------------------------------------
# Forward pass of the inserted channel self-attention block
# ---------------------------------------------------------------------------
def channel_self_attention_forward(res4, fused, batch_size, seq_l,
                                   out_dtype=jnp.float32):
    """res4: (N, C, H, W), N == batch_size*(seq_l+1), H*W == 1152.

    Returns the new 'res4' feature of shape (batch_size, C, H, W), matching
    torch.reshape(attn_output, features['res4'][:BATCH_SIZE].shape).
    """
    N, C, H, W = res4.shape
    F = H * W
    assert F == FEATURE_DIM
    assert N == batch_size * (seq_l + 1)

    Lq = C
    Lk = (seq_l + 1) * C
    E = EMBED_DIM

    # Zero-copy flat view of res4.  No wrapper-level bf16 cast and no strided
    # Q gather in HBM: kernels cast in VMEM, Q frame selection is in index_map.
    feats_flat = res4.reshape(N * C, F)

    # Fused query Linear + MHA q in_proj (+ 1/sqrt(Dh) scale), image frames only.
    q = pallas_linear_frames(feats_flat, fused["Wq"], fused["bq"],
                             batch=batch_size, seq_l=seq_l, channels=C,
                             out_dtype=jnp.bfloat16).reshape(batch_size, Lq, E)

    # Fused K+V projection: context read once, one (F, 2E) matmul.
    kv = pallas_linear(feats_flat, fused["Wkv"], fused["bkv"],
                       out_dtype=jnp.bfloat16).reshape(batch_size, Lk, 2 * E)

    # Flash-style attention core (attn weights are discarded by the module,
    # so the full (Lq, Lk) softmax matrix is never materialized).
    o = pallas_flash_mha(q, kv, NUM_HEADS, HEAD_DIM)        # (B, Lq, E) bf16

    # Fused MHA out_proj + attn_out Linear (1024 -> 1024 -> 1152 folded).
    # out_dtype=f32 matches the torch module; pass bf16 if downstream
    # RPN / ROI heads tolerate it (halves the writeback DMA).
    out = pallas_linear(o.reshape(batch_size * Lq, E), fused["Wo"], fused["bo"],
                        out_dtype=out_dtype)                 # (B*Lq, F)
    return out.reshape(batch_size, C, H, W)


# ---------------------------------------------------------------------------
# Pure-JAX full-precision reference (unfused) for correctness checking
# ---------------------------------------------------------------------------
def reference_forward(res4, params, batch_size, seq_l):
    N, C, H, W = res4.shape
    F = H * W
    feats = res4.reshape(N, C, F)
    img = feats[seq_l :: seq_l + 1]
    ctx = feats.reshape(batch_size, (seq_l + 1) * C, F)
    q = img @ params["Wq"] + params["bq"]
    k = ctx @ params["Wk"] + params["bk"]
    v = ctx @ params["Wv"] + params["bv"]
    qp = q @ params["Wq_in"] + params["bq_in"]
    kp = k @ params["Wk_in"] + params["bk_in"]
    vp = v @ params["Wv_in"] + params["bv_in"]
    Lq, Lk = C, (seq_l + 1) * C
    qh = qp.reshape(batch_size, Lq, NUM_HEADS, HEAD_DIM).transpose(0, 2, 1, 3)
    kh = kp.reshape(batch_size, Lk, NUM_HEADS, HEAD_DIM).transpose(0, 2, 1, 3)
    vh = vp.reshape(batch_size, Lk, NUM_HEADS, HEAD_DIM).transpose(0, 2, 1, 3)
    s = jnp.einsum("bhqd,bhkd->bhqk", qh, kh) / jnp.sqrt(jnp.float32(HEAD_DIM))
    p = jax.nn.softmax(s, axis=-1)
    oh = jnp.einsum("bhqk,bhkd->bhqd", p, vh)
    o = oh.transpose(0, 2, 1, 3).reshape(batch_size, Lq, EMBED_DIM)
    o = o @ params["W_outproj"] + params["b_outproj"]
    o = o @ params["W_attnout"] + params["b_attnout"]
    return o.reshape(batch_size, C, H, W)


# ---------------------------------------------------------------------------
# Deterministic parameter construction (weights stored as (in, out))
# ---------------------------------------------------------------------------
def make_params(key):
    keys = jax.random.split(key, 16)

    def w(k, shape):
        return jax.random.normal(k, shape, dtype=jnp.float32) * 0.02

    E, F = EMBED_DIM, FEATURE_DIM
    return {
        "Wq": w(keys[0], (F, E)),       "bq": w(keys[1], (E,)),
        "Wk": w(keys[2], (F, E)),       "bk": w(keys[3], (E,)),
        "Wv": w(keys[4], (F, E)),       "bv": w(keys[5], (E,)),
        "Wq_in": w(keys[6], (E, E)),    "bq_in": w(keys[7], (E,)),
        "Wk_in": w(keys[8], (E, E)),    "bk_in": w(keys[9], (E,)),
        "Wv_in": w(keys[10], (E, E)),   "bv_in": w(keys[11], (E,)),
        "W_outproj": w(keys[12], (E, E)), "b_outproj": jnp.zeros((E,), jnp.float32),
        "W_attnout": w(keys[13], (E, F)), "b_attnout": w(keys[14], (F,)),
    }


if __name__ == "__main__":
    BATCH_SIZE = 2
    SEQ_L = 2              # number of context frames per sample
    # res4 channel count; 128 keeps the test small but lane-aligned so the
    # tiled flash path (Lq=128, Lk=384 -> 3 Lk tiles) is actually exercised.
    # TODO(synk): also validate at production shapes (C~1024, seq_l=2).
    CHANNELS = 128

    key = jax.random.PRNGKey(0)
    k_feat, k_params = jax.random.split(key)

    # synthetic backbone output 'res4': NCHW, N = BATCH * (SEQ_L + 1)
    res4 = jax.random.normal(
        k_feat,
        (BATCH_SIZE * (SEQ_L + 1), CHANNELS, FEAT_H, FEAT_W),
        dtype=jnp.float32,
    )
    params = make_params(k_params)
    fused = fuse_params(params)

    out = channel_self_attention_forward(res4, fused, BATCH_SIZE, SEQ_L)
    out = jax.block_until_ready(out)

    ref = reference_forward(res4, params, BATCH_SIZE, SEQ_L)
    assert out.shape == (BATCH_SIZE, CHANNELS, FEAT_H, FEAT_W)
    # bf16 matmuls + approx reciprocal -> loosened tolerance vs f32 reference.
    assert jnp.allclose(out.astype(jnp.float32), ref, rtol=2e-2, atol=1e-2), \
        "mismatch vs reference"

    print("KERNEL_OK")
</pallas_src>

<mosaic_0001>
module attributes {stable_mosaic.version = 11 : i64} {
  func.func @_linear_kernel(%arg0: i32, %arg1: i32, %arg2: memref<128x1152xf32, #tpu.memory_space<vmem>>, %arg3: memref<1152x1024xbf16, #tpu.memory_space<vmem>>, %arg4: memref<1x1024xf32, #tpu.memory_space<vmem>>, %arg5: memref<128x1024xbf16, #tpu.memory_space<vmem>>) attributes {dimension_semantics = [#tpu.dimension_semantics<parallel>, #tpu.dimension_semantics<parallel>], iteration_bounds = array<i64: 2, 1>, scalar_prefetch = 0 : i64, scratch_operands = 0 : i64, tpu.core_type = #tpu.core_type<tc>, window_params = [{transform_indices = @transform_0, window_bounds = array<i64: 128, 1152>}, {pipeline_mode = #tpu.pipeline_mode<synchronous>, transform_indices = @transform_1, window_bounds = array<i64: 1152, 1024>}, {pipeline_mode = #tpu.pipeline_mode<synchronous>, transform_indices = @transform_2, window_bounds = array<i64: 1, 1024>}, {transform_indices = @transform_3, window_bounds = array<i64: 128, 1024>}]} {
    %c0 = arith.constant 0 : index
    %c0_0 = arith.constant 0 : index
    %0 = vector.load %arg2[%c0, %c0_0] : memref<128x1152xf32, #tpu.memory_space<vmem>>, vector<128x1152xf32>
    %1 = arith.truncf %0 : vector<128x1152xf32> to vector<128x1152xbf16>
    %c0_1 = arith.constant 0 : index
    %c0_2 = arith.constant 0 : index
    %2 = vector.load %arg3[%c0_1, %c0_2] : memref<1152x1024xbf16, #tpu.memory_space<vmem>>, vector<1152x1024xbf16>
    %cst = arith.constant dense<0.000000e+00> : vector<128x1024xf32>
    %3 = tpu.matmul %1, %2, %cst {dimension_numbers = #tpu.dot_dimension_numbers<[1], [0], [0], [1], [0, 0, 1, 1], [], []>} : vector<128x1152xbf16>, vector<1152x1024xbf16>, vector<128x1024xf32> -> vector<128x1024xf32>
    %c0_3 = arith.constant 0 : index
    %c0_4 = arith.constant 0 : index
    %4 = vector.load %arg4[%c0_3, %c0_4] : memref<1x1024xf32, #tpu.memory_space<vmem>>, vector<1x1024xf32>
    %5 = vector.broadcast %4 : vector<1x1024xf32> to vector<128x1024xf32>
    %6 = arith.addf %3, %5 : vector<128x1024xf32>
    %7 = arith.truncf %6 : vector<128x1024xf32> to vector<128x1024xbf16>
    %c0_5 = arith.constant 0 : index
    %c0_6 = arith.constant 0 : index
    %8 = vector.load %arg5[%c0_5, %c0_6] : memref<128x1024xbf16, #tpu.memory_space<vmem>>, vector<128x1024xbf16>
    tpu.vector_store %arg5[%c0_5, %c0_6], %7 {strides = array<i32>} : memref<128x1024xbf16, #tpu.memory_space<vmem>>, vector<128x1024xbf16>,
    return
  }
  func.func @transform_0(%arg0: i32, %arg1: i32) -> (i32, i32) {
    %c3_i32 = arith.constant 3 : i32
    %0 = arith.muli %arg0, %c3_i32 : i32
    %c2_i32 = arith.constant 2 : i32
    %1 = arith.addi %0, %c2_i32 : i32
    %2 = arith.addi %1, %arg1 : i32
    %c0_i32 = arith.constant 0 : i32
    %c0_i32_0 = arith.constant 0 : i32
    return %2, %c0_i32 : i32, i32
  }
  func.func @transform_1(%arg0: i32, %arg1: i32) -> (i32, i32) {
    %c0_i32 = arith.constant 0 : i32
    %c0_i32_0 = arith.constant 0 : i32
    %c0_i32_1 = arith.constant 0 : i32
    return %c0_i32, %c0_i32_0 : i32, i32
  }
  func.func @transform_2(%arg0: i32, %arg1: i32) -> (i32, i32) {
    %c0_i32 = arith.constant 0 : i32
    %c0_i32_0 = arith.constant 0 : i32
    %c0_i32_1 = arith.constant 0 : i32
    return %c0_i32, %c0_i32_0 : i32, i32
  }
  func.func @transform_3(%arg0: i32, %arg1: i32) -> (i32, i32) {
    %c1_i32 = arith.constant 1 : i32
    %0 = arith.muli %arg0, %c1_i32 : i32
    %1 = arith.addi %0, %arg1 : i32
    %c0_i32 = arith.constant 0 : i32
    %c0_i32_0 = arith.constant 0 : i32
    return %1, %c0_i32 : i32, i32
  }
}

</mosaic_0001>

<llo_original>
// kernel: tpu_custom_call.1
$region0: #{tpu_custom_call.1}
  #allocation0 [shape = 'u32[]', space=smem, size = 0x4, offset = 0x4, fixed_abs, tag = 'smem constant byte address 0x4 - core index']
  #allocation1 [shape = 'u32[72,128]{1,0:T(1,128)}', space=vmem, size = 0x9000, scoped, tag = 'internal scratch']
  %s0 = inlined_call_operand.hbm [shape: f32[768,1152], index: 0, kind: input, shape index: {}]
  %s1 = inlined_call_operand.hbm [shape: bf16[1152,1024], index: 1, kind: input, shape index: {}]
  %s2 = inlined_call_operand.hbm [shape: f32[1,1024], index: 2, kind: input, shape index: {}]
  %s3 = inlined_call_operand.hbm [shape: bf16[256,1024], index: 3, kind: output, shape index: {}]
  %s4 = sld [smem:[#allocation0]]
  $region57: #{tpu_custom_call.1} parent=0
    _
  %s6 = ssub.s32 1, %s4
  %s7 = scalar_select 0, %s6, %s4
  $region1: #{tpu_custom_call.1} parent=0
    #allocation2 [shape = 'u8[1179648]{0}', space=vmem, size = 0x120000, scoped, tag = 'input window, operand 0']
    #allocation3 [shape = 's32[2]{0}', space=sflag, size = 0x8, scoped, tag = 'scoped memory for tpu_custom_call.1']
    #allocation4 [shape = 's32[2]{0}', space=sflag, size = 0x8, scoped, tag = 'scoped memory for tpu_custom_call.1']
    #allocation5 [shape = 'u8[2359296]{0}', space=vmem, size = 0x240000, scoped, tag = 'input window, operand 1, single buffered']
    #allocation6 [shape = 's32[1]{0}', space=sflag, size = 0x4, scoped, tag = 'scoped memory for tpu_custom_call.1']
    #allocation7 [shape = 'u8[4096]{0}', space=vmem, size = 0x1000, scoped, tag = 'input window, operand 2, single buffered']
    #allocation8 [shape = 'u8[524288]{0}', space=vmem, size = 0x80000, scoped, tag = 'output window, operand 0']
    %8 = vsyncpa [#allocation3], 0
    %s9 = scalar_lea.sflag [#allocation3], 1
    %10 = vsyncpa %s9, 0
    %11 = vsyncpa [#allocation6], 0
    %12 = vsyncpa [#allocation4], 0
    %s13 = scalar_lea.sflag [#allocation4], 1
    %14 = vsyncpa %s13, 0
    loop: start=0, step=1, limit=4
    $region2: #{tpu_custom_call.1} parent=1 // loop_pre_header
      _
    $region3: #{tpu_custom_call.1} parent=1 // loop_header
      %s16 = sphi 0, %s20
      %p17 = scmp.ge.s32.totalorder %s16, 4
      %s23 = sphi 0, %s35
      %s24 = sphi 0, %s31
      %s25 = sphi 0, %s23
      %s26 = sphi 0, %s24
      %s27 = sphi 0, %s25
      %s28 = sphi 0, %s26
      %s44 = sphi 0, %s46
      %s47 = sphi 0, %s44
      %s48 = sphi 0, %s47
      %s64 = sphi 0, %s48
      %s68 = sphi 0, %s68
      %s70 = sphi 0, %s68
      %s71 = sphi 0, %s70
      %s85 = sphi 0, %s71
      %s89 = sphi 0, %s89
      %s91 = sphi 0, %s89
      %s92 = sphi 0, %s91
      %s106 = sphi 0, %s92
      %s114 = sphi 0, %s116
      %s117 = sphi 0, %s114
      %s118 = sphi 0, %s117
      %s134 = sphi 0, %s118
    $region4: #{tpu_custom_call.1} parent=1 // loop_header_branch
      %19 = sbr.rel (%p17) target = $region8
    $region5: #{tpu_custom_call.1} parent=1 // loop_body
      %s21 = ssub.s32 %s16, 1
      %s22 = ssub.s32 %s16, 2
      %s29 = sadd.s32 1, %s24
      %p30 = scmp.ge.s32.totalorder %s29, 1
      %s31 = scalar_select %p30, 0, %s29
      %s32 = sadd.s32 1, %s23
      %s33 = scalar_select %p30, %s32, %s23
      %p34 = scmp.ge.s32.totalorder %s33, 2
      %s35 = scalar_select %p34, 0, %s33
      %s36 = smul.u32 %s23, 3
      %s37 = sadd.s32 %s36, 2
      %s38 = sadd.s32 %s37, %s24
      %s39 = smul.u32 %s35, 3
      %s40 = sadd.s32 %s39, 2
      %s41 = sadd.s32 %s40, %s31
      %s42 = ssub.s32 %s38, %s41
      %p43 = scmp.eq.s32.totalorder %s42, 0
      %s45 = sadd.s32 %s44, 1
      %s46 = scalar_select %p43, %s44, %s45
      %p49 = pneg %p43
      %p50 = scmp.eq.s32.totalorder %s16, 1
      %p51 = por %p49, %p50
      %p52 = scmp.ne.s32.totalorder %s44, %s47
      %p53 = scmp.eq.s32.totalorder %s16, 0
      %p54 = por %p52, %p53
      %p55 = scmp.ne.s32.totalorder %s44, %s47
      %p56 = scmp.eq.s32.totalorder %s21, 1
      %p57 = por %p55, %p56
      %p58 = scmp.ne.s32.totalorder %s47, %s48
      %p59 = scmp.eq.s32.totalorder %s21, 0
      %p60 = por %p58, %p59
      %p61 = scmp.ne.s32.totalorder %s47, %s48
      %p62 = scmp.eq.s32.totalorder %s22, 1
      %p63 = por %p61, %p62
      %p65 = scmp.ne.s32.totalorder %s48, %s64
      %p66 = scmp.eq.s32.totalorder %s22, 0
      %p67 = por %p65, %p66
      %s69 = sadd.s32 %s68, 1
      %p72 = scmp.eq.s32.totalorder %s16, 1
      %p73 = scmp.ne.s32.totalorder %s68, %s70
      %p74 = scmp.eq.s32.totalorder %s16, 0
      %p75 = por %p73, %p74
      %p76 = scmp.ne.s32.totalorder %s68, %s70
      %p77 = scmp.eq.s32.totalorder %s21, 1
      %p78 = por %p76, %p77
      %p79 = scmp.ne.s32.totalorder %s70, %s71
      %p80 = scmp.eq.s32.totalorder %s21, 0
      %p81 = por %p79, %p80
      %p82 = scmp.ne.s32.totalorder %s70, %s71
      %p83 = scmp.eq.s32.totalorder %s22, 1
      %p84 = por %p82, %p83
      %p86 = scmp.ne.s32.totalorder %s71, %s85
      %p87 = scmp.eq.s32.totalorder %s22, 0
      %p88 = por %p86, %p87
      %s90 = sadd.s32 %s89, 1
      %p93 = scmp.eq.s32.totalorder %s16, 1
      %p94 = scmp.ne.s32.totalorder %s89, %s91
      %p95 = scmp.eq.s32.totalorder %s16, 0
      %p96 = por %p94, %p95
      %p97 = scmp.ne.s32.totalorder %s89, %s91
      %p98 = scmp.eq.s32.totalorder %s21, 1
      %p99 = por %p97, %p98
      %p100 = scmp.ne.s32.totalorder %s91, %s92
      %p101 = scmp.eq.s32.totalorder %s21, 0
      %p102 = por %p100, %p101
      %p103 = scmp.ne.s32.totalorder %s91, %s92
      %p104 = scmp.eq.s32.totalorder %s22, 1
      %p105 = por %p103, %p104
      %p107 = scmp.ne.s32.totalorder %s92, %s106
      %p108 = scmp.eq.s32.totalorder %s22, 0
      %p109 = por %p107, %p108
      %s110 = sadd.s32 %s23, %s24
      %s111 = sadd.s32 %s35, %s31
      %s112 = ssub.s32 %s110, %s111
      %p113 = scmp.eq.s32.totalorder %s112, 0
      %s115 = sadd.s32 %s114, 1
      %s116 = scalar_select %p113, %s114, %s115
      %p119 = pneg %p113
      %p120 = scmp.eq.s32.totalorder %s16, 1
      %p121 = por %p119, %p120
      %p122 = scmp.ne.s32.totalorder %s114, %s117
      %p123 = scmp.eq.s32.totalorder %s16, 0
      %p124 = por %p122, %p123
      %p125 = scmp.ne.s32.totalorder %s114, %s117
      %p126 = scmp.eq.s32.totalorder %s21, 1
      %p127 = por %p125, %p126
      %p128 = scmp.ne.s32.totalorder %s117, %s118
      %p129 = scmp.eq.s32.totalorder %s21, 0
      %p130 = por %p128, %p129
      %p131 = scmp.ne.s32.totalorder %s117, %s118
      %p132 = scmp.eq.s32.totalorder %s22, 1
      %p133 = por %p131, %p132
      %p135 = scmp.ne.s32.totalorder %s118, %s134
      %p136 = scmp.eq.s32.totalorder %s22, 0
      %p137 = por %p135, %p136
      %p138 = scmp.le.s32.totalorder 1, %s16
      %p139 = scmp.lt.s32.totalorder %s16, 3
      %p140 = pnand %p138, %p139
      %p141 = pneg %p140
      // Predicated region
      $region9: #{tpu_custom_call.1} parent=5 // pred_check
        _
      $region10: #{tpu_custom_call.1} parent=5 // pred_check_branch
        %143 = sbr.rel (%p140) target = $region12
      $region11: #{tpu_custom_call.1} parent=5 // pred_region
        %s144 = ssub.s32 %s16, 1
        // Predicated region
        $region13: #{tpu_custom_call.1} parent=11 // pred_check
          %p145 = pneg %p81
        $region14: #{tpu_custom_call.1} parent=11 // pred_check_branch
          %147 = sbr.rel (%p145) target = $region16
        $region15: #{tpu_custom_call.1} parent=11 // pred_region
          %149 = vsyncadd [#allocation6], 0
          %s150 = sshll.u32 %s1, 4
          %s151 = int_to_ptr.hbm [resolvable:$true] %s150
          %s152 = sshll.u32 [#allocation5], 4
          %s153 = int_to_ptr.vmem [resolvable:$true] %s152
          %158 = dma.hbm_to_vmem [thread:$0]  %s151, 73728, %s153, [#allocation6], 512, 512, 32
        $region16: #{tpu_custom_call.1} parent=11 // pred_fallthru
          _
        // Predicated region
        $region17: #{tpu_custom_call.1} parent=11 // pred_check
          %p159 = pneg %p102
        $region18: #{tpu_custom_call.1} parent=11 // pred_check_branch
          %161 = sbr.rel (%p159) target = $region20
        $region19: #{tpu_custom_call.1} parent=11 // pred_region
          %163 = vsyncadd [#allocation6], 0
          %s165 = sshll.u32 %s2, 4
          %s166 = int_to_ptr.hbm [resolvable:$true] %s165
          %s167 = sshll.u32 [#allocation7], 4
          %s168 = int_to_ptr.vmem [resolvable:$true] %s167
          %170 = dma.hbm_to_vmem [thread:$0]  %s166, 128, %s168, [#allocation6]
        $region20: #{tpu_custom_call.1} parent=11 // pred_fallthru
          _
      $region12: #{tpu_custom_call.1} parent=5 // pred_fallthru
        _
      %p171 = scmp.lt.s32.totalorder %s16, 2
      // Predicated region
      $region21: #{tpu_custom_call.1} parent=5 // pred_check
        %p172 = pneg %p171
      $region22: #{tpu_custom_call.1} parent=5 // pred_check_branch
        %174 = sbr.rel (%p172) target = $region24
      $region23: #{tpu_custom_call.1} parent=5 // pred_region
        // Predicated region
        $region25: #{tpu_custom_call.1} parent=23 // pred_check
          %p175 = pneg %p54
        $region26: #{tpu_custom_call.1} parent=23 // pred_check_branch
          %177 = sbr.rel (%p175) target = $region28
        $region27: #{tpu_custom_call.1} parent=23 // pred_region
          %s178 = sand.u32 %s44, 1
          %s179 = scalar_lea.sflag [#allocation3], %s178
          %s180 = sand.u32 %s44, 1
          %s181 = smul.addr %s180, 1152
          %s182 = scalar_lea.vmem [#allocation2], %s181
          %s183 = smul.u32 %s23, 3
          %s184 = sadd.s32 %s183, 2
          %s185 = sadd.s32 %s184, %s24
          %s186 = smul.u32 16, %s185
          %188 = vsyncadd %s179, 0
          %s189 = smul.addr %s186, 9
          %s190 = smul.addr %s189, 8
          %s191 = scalar_lea.hbm %s0, %s190
          %s192 = sshll.u32 %s191, 4
          %s193 = int_to_ptr.hbm [resolvable:$true] %s192
          %s194 = sshll.u32 %s182, 4
          %s195 = int_to_ptr.vmem [resolvable:$true] %s194
          %200 = dma.hbm_to_vmem [thread:$0]  %s193, 18432, %s195, %s179, 1152, 1152, 72
        $region28: #{tpu_custom_call.1} parent=23 // pred_fallthru
          _
      $region24: #{tpu_custom_call.1} parent=5 // pred_fallthru
        _
      %p201 = scmp.le.s32.totalorder 1, %s16
      %p202 = scmp.lt.s32.totalorder %s16, 3
      %p203 = pnand %p201, %p202
      %p204 = pneg %p203
      // Predicated region
      $region29: #{tpu_custom_call.1} parent=5 // pred_check
        _
      $region30: #{tpu_custom_call.1} parent=5 // pred_check_branch
        %206 = sbr.rel (%p203) target = $region32
      $region31: #{tpu_custom_call.1} parent=5 // pred_region
        %s207 = ssub.s32 %s16, 1
        %s208 = sand.u32 %s47, 1
        %s209 = scalar_lea.sflag [#allocation3], %s208
        %s210 = sand.u32 %s47, 1
        %s211 = smul.addr %s210, 1152
        %s212 = scalar_lea.vmem [#allocation2], %s211
        // Predicated region
        $region33: #{tpu_custom_call.1} parent=31 // pred_check
          %p213 = pneg %p60
        $region34: #{tpu_custom_call.1} parent=31 // pred_check_branch
          %215 = sbr.rel (%p213) target = $region36
        $region35: #{tpu_custom_call.1} parent=31 // pred_region
          %217 = dma.done %s209, 18432
        $region36: #{tpu_custom_call.1} parent=31 // pred_fallthru
          _
        // Predicated region
        $region37: #{tpu_custom_call.1} parent=31 // pred_check
          %p218 = pneg %p81
        $region38: #{tpu_custom_call.1} parent=31 // pred_check_branch
          %220 = sbr.rel (%p218) target = $region40
        $region39: #{tpu_custom_call.1} parent=31 // pred_region
          %222 = dma.done [#allocation6], 73728
        $region40: #{tpu_custom_call.1} parent=31 // pred_fallthru
          _
        // Predicated region
        $region41: #{tpu_custom_call.1} parent=31 // pred_check
          %p223 = pneg %p102
        $region42: #{tpu_custom_call.1} parent=31 // pred_check_branch
          %225 = sbr.rel (%p223) target = $region44
        $region43: #{tpu_custom_call.1} parent=31 // pred_region
          %227 = dma.done [#allocation6], 128
        $region44: #{tpu_custom_call.1} parent=31 // pred_fallthru
          _
        %s228 = sand.u32 %s47, 1
        %s229 = scalar_lea.sflag [#allocation3], %s228
        %s230 = sand.u32 %s47, 1
        %s231 = smul.addr %s230, 1152
        %s232 = scalar_lea.vmem [#allocation2], %s231
        %p233 = pneg %p60
        %p234 = pneg %p57
        %p235 = pneg %p81
        %p236 = pneg %p78
        %p237 = pneg %p102
        %p238 = pneg %p99
        %p239 = pneg %p130
        %p240 = pneg %p127
        %s241 = sand.u32 %s117, 1
        %s242 = scalar_lea.sflag [#allocation4], %s241
        %s243 = sand.u32 %s117, 1
        %s244 = smul.addr %s243, 512
        %s245 = scalar_lea.vmem [#allocation8], %s244
        %s246 = smul.u32 %s25, 3
        %s247 = sadd.s32 %s246, 2
        %s248 = sadd.s32 %s247, %s26
        %s249 = smul.u32 16, %s248
        %s250 = sadd.s32 %s25, %s26
        %s251 = smul.u32 16, %s250
        %v252 = vld [vmem:[%s212] sm:$0xff]
        %v253 = vld [vmem:[%s212 + $0x8] sm:$0xff]
        %v254 = vld [vmem:[%s212 + $0x10] sm:$0xff]
        %v255 = vld [vmem:[%s212 + $0x18] sm:$0xff]
        %v256 = vld [vmem:[%s212 + $0x20] sm:$0xff]
        %v257 = vld [vmem:[%s212 + $0x28] sm:$0xff]
        %v258 = vld [vmem:[%s212 + $0x30] sm:$0xff]
        %v259 = vld [vmem:[%s212 + $0x38] sm:$0xff]
        %v260 = vld [vmem:[%s212 + $0x40] sm:$0xff]
        %v261 = vld [vmem:[%s212 + $0x48] sm:$0xff]
        %v262 = vld [vmem:[%s212 + $0x50] sm:$0xff]
        %v263 = vld [vmem:[%s212 + $0x58] sm:$0xff]
        %v264 = vld [vmem:[%s212 + $0x60] sm:$0xff]
        %v265 = vld [vmem:[%s212 + $0x68] sm:$0xff]
        %v266 = vld [vmem:[%s212 + $0x70] sm:$0xff]
        %v267 = vld [vmem:[%s212 + $0x78] sm:$0xff]
        %v268 = vld [vmem:[%s212 + $0x80] sm:$0xff]
        %v269 = vld [vmem:[%s212 + $0x88] sm:$0xff]
        %v270 = vld [vmem:[%s212 + $0x90] sm:$0xff]
        %v271 = vld [vmem:[%s212 + $0x98] sm:$0xff]
        %v272 = vld [vmem:[%s212 + $0xa0] sm:$0xff]
        %v273 = vld [vmem:[%s212 + $0xa8] sm:$0xff]
        %v274 = vld [vmem:[%s212 + $0xb0] sm:$0xff]
        %v275 = vld [vmem:[%s212 + $0xb8] sm:$0xff]
        %v276 = vld [vmem:[%s212 + $0xc0] sm:$0xff]
        %v277 = vld [vmem:[%s212 + $0xc8] sm:$0xff]
        %v278 = vld [vmem:[%s212 + $0xd0] sm:$0xff]
        %v279 = vld [vmem:[%s212 + $0xd8] sm:$0xff]
        %v280 = vld [vmem:[%s212 + $0xe0] sm:$0xff]
        %v281 = vld [vmem:[%s212 + $0xe8] sm:$0xff]
        %v282 = vld [vmem:[%s212 + $0xf0] sm:$0xff]
        %v283 = vld [vmem:[%s212 + $0xf8] sm:$0xff]
        %v284 = vld [vmem:[%s212 + $0x100] sm:$0xff]
        %v285 = vld [vmem:[%s212 + $0x108] sm:$0xff]
        %v286 = vld [vmem:[%s212 + $0x110] sm:$0xff]
        %v287 = vld [vmem:[%s212 + $0x118] sm:$0xff]
        %v288 = vld [vmem:[%s212 + $0x120] sm:$0xff]
        %v289 = vld [vmem:[%s212 + $0x128] sm:$0xff]
        %v290 = vld [vmem:[%s212 + $0x130] sm:$0xff]
        %v291 = vld [vmem:[%s212 + $0x138] sm:$0xff]
        %v292 = vld [vmem:[%s212 + $0x140] sm:$0xff]
        %v293 = vld [vmem:[%s212 + $0x148] sm:$0xff]
        %v294 = vld [vmem:[%s212 + $0x150] sm:$0xff]
        %v295 = vld [vmem:[%s212 + $0x158] sm:$0xff]
        %v296 = vld [vmem:[%s212 + $0x160] sm:$0xff]
        %v297 = vld [vmem:[%s212 + $0x168] sm:$0xff]
        %v298 = vld [vmem:[%s212 + $0x170] sm:$0xff]
        %v299 = vld [vmem:[%s212 + $0x178] sm:$0xff]
        %v300 = vld [vmem:[%s212 + $0x180] sm:$0xff]
        %v301 = vld [vmem:[%s212 + $0x188] sm:$0xff]
        %v302 = vld [vmem:[%s212 + $0x190] sm:$0xff]
        %v303 = vld [vmem:[%s212 + $0x198] sm:$0xff]
        %v304 = vld [vmem:[%s212 + $0x1a0] sm:$0xff]
        %v305 = vld [vmem:[%s212 + $0x1a8] sm:$0xff]
        %v306 = vld [vmem:[%s212 + $0x1b0] sm:$0xff]
        %v307 = vld [vmem:[%s212 + $0x1b8] sm:$0xff]
        %v308 = vld [vmem:[%s212 + $0x1c0] sm:$0xff]
        %v309 = vld [vmem:[%s212 + $0x1c8] sm:$0xff]
        %v310 = vld [vmem:[%s212 + $0x1d0] sm:$0xff]
        %v311 = vld [vmem:[%s212 + $0x1d8] sm:$0xff]
        %v312 = vld [vmem:[%s212 + $0x1e0] sm:$0xff]
        %v313 = vld [vmem:[%s212 + $0x1e8] sm:$0xff]
        %v314 = vld [vmem:[%s212 + $0x1f0] sm:$0xff]
        %v315 = vld [vmem:[%s212 + $0x1f8] sm:$0xff]
        %v316 = vld [vmem:[%s212 + $0x200] sm:$0xff]
        %v317 = vld [vmem:[%s212 + $0x208] sm:$0xff]
        %v318 = vld [vmem:[%s212 + $0x210] sm:$0xff]
        %v319 = vld [vmem:[%s212 + $0x218] sm:$0xff]
        %v320 = vld [vmem:[%s212 + $0x220] sm:$0xff]
        %v321 = vld [vmem:[%s212 + $0x228] sm:$0xff]
        %v322 = vld [vmem:[%s212 + $0x230] sm:$0xff]
        %v323 = vld [vmem:[%s212 + $0x238] sm:$0xff]
        %v324 = vld [vmem:[%s212 + $0x240] sm:$0xff]
        %v325 = vld [vmem:[%s212 + $0x248] sm:$0xff]
        %v326 = vld [vmem:[%s212 + $0x250] sm:$0xff]
        %v327 = vld [vmem:[%s212 + $0x258] sm:$0xff]
        %v328 = vld [vmem:[%s212 + $0x260] sm:$0xff]
        %v329 = vld [vmem:[%s212 + $0x268] sm:$0xff]
        %v330 = vld [vmem:[%s212 + $0x270] sm:$0xff]
        %v331 = vld [vmem:[%s212 + $0x278] sm:$0xff]
        %v332 = vld [vmem:[%s212 + $0x280] sm:$0xff]
        %v333 = vld [vmem:[%s212 + $0x288] sm:$0xff]
        %v334 = vld [vmem:[%s212 + $0x290] sm:$0xff]
        %v335 = vld [vmem:[%s212 + $0x298] sm:$0xff]
        %v336 = vld [vmem:[%s212 + $0x2a0] sm:$0xff]
        %v337 = vld [vmem:[%s212 + $0x2a8] sm:$0xff]
        %v338 = vld [vmem:[%s212 + $0x2b0] sm:$0xff]
        %v339 = vld [vmem:[%s212 + $0x2b8] sm:$0xff]
        %v340 = vld [vmem:[%s212 + $0x2c0] sm:$0xff]
        %v341 = vld [vmem:[%s212 + $0x2c8] sm:$0xff]
        %v342 = vld [vmem:[%s212 + $0x2d0] sm:$0xff]
        %v343 = vld [vmem:[%s212 + $0x2d8] sm:$0xff]
        %v344 = vld [vmem:[%s212 + $0x2e0] sm:$0xff]
        %v345 = vld [vmem:[%s212 + $0x2e8] sm:$0xff]
        %v346 = vld [vmem:[%s212 + $0x2f0] sm:$0xff]
        %v347 = vld [vmem:[%s212 + $0x2f8] sm:$0xff]
        %v348 = vld [vmem:[%s212 + $0x300] sm:$0xff]
        %v349 = vld [vmem:[%s212 + $0x308] sm:$0xff]
        %v350 = vld [vmem:[%s212 + $0x310] sm:$0xff]
        %v351 = vld [vmem:[%s212 + $0x318] sm:$0xff]
        %v352 = vld [vmem:[%s212 + $0x320] sm:$0xff]
        %v353 = vld [vmem:[%s212 + $0x328] sm:$0xff]
        %v354 = vld [vmem:[%s212 + $0x330] sm:$0xff]
        %v355 = vld [vmem:[%s212 + $0x338] sm:$0xff]
        %v356 = vld [vmem:[%s212 + $0x340] sm:$0xff]
        %v357 = vld [vmem:[%s212 + $0x348] sm:$0xff]
        %v358 = vld [vmem:[%s212 + $0x350] sm:$0xff]
        %v359 = vld [vmem:[%s212 + $0x358] sm:$0xff]
        %v360 = vld [vmem:[%s212 + $0x360] sm:$0xff]
        %v361 = vld [vmem:[%s212 + $0x368] sm:$0xff]
        %v362 = vld [vmem:[%s212 + $0x370] sm:$0xff]
        %v363 = vld [vmem:[%s212 + $0x378] sm:$0xff]
        %v364 = vld [vmem:[%s212 + $0x380] sm:$0xff]
        %v365 = vld [vmem:[%s212 + $0x388] sm:$0xff]
        %v366 = vld [vmem:[%s212 + $0x390] sm:$0xff]
        %v367 = vld [vmem:[%s212 + $0x398] sm:$0xff]
        %v368 = vld [vmem:[%s212 + $0x3a0] sm:$0xff]
        %v369 = vld [vmem:[%s212 + $0x3a8] sm:$0xff]
        %v370 = vld [vmem:[%s212 + $0x3b0] sm:$0xff]
        %v371 = vld [vmem:[%s212 + $0x3b8] sm:$0xff]
        %v372 = vld [vmem:[%s212 + $0x3c0] sm:$0xff]
        %v373 = vld [vmem:[%s212 + $0x3c8] sm:$0xff]
        %v374 = vld [vmem:[%s212 + $0x3d0] sm:$0xff]
        %v375 = vld [vmem:[%s212 + $0x3d8] sm:$0xff]
        %v376 = vld [vmem:[%s212 + $0x3e0] sm:$0xff]
        %v377 = vld [vmem:[%s212 + $0x3e8] sm:$0xff]
        %v378 = vld [vmem:[%s212 + $0x3f0] sm:$0xff]
        %v379 = vld [vmem:[%s212 + $0x3f8] sm:$0xff]
        %v380 = vld [vmem:[%s212 + $0x400] sm:$0xff]
        %v381 = vld [vmem:[%s212 + $0x408] sm:$0xff]
        %v382 = vld [vmem:[%s212 + $0x410] sm:$0xff]
        %v383 = vld [vmem:[%s212 + $0x418] sm:$0xff]
        %v384 = vld [vmem:[%s212 + $0x420] sm:$0xff]
        %v385 = vld [vmem:[%s212 + $0x428] sm:$0xff]
        %v386 = vld [vmem:[%s212 + $0x430] sm:$0xff]
        %v387 = vld [vmem:[%s212 + $0x438] sm:$0xff]
        %v388 = vld [vmem:[%s212 + $0x440] sm:$0xff]
        %v389 = vld [vmem:[%s212 + $0x448] sm:$0xff]
        %v390 = vld [vmem:[%s212 + $0x450] sm:$0xff]
        %v391 = vld [vmem:[%s212 + $0x458] sm:$0xff]
        %v392 = vld [vmem:[%s212 + $0x460] sm:$0xff]
        %v393 = vld [vmem:[%s212 + $0x468] sm:$0xff]
        %v394 = vld [vmem:[%s212 + $0x470] sm:$0xff]
        %v395 = vld [vmem:[%s212 + $0x478] sm:$0xff]
        %v396 = vpack.c.bf16 %v261, %v252
        %v397 = vpack.c.bf16 %v262, %v253
        %v398 = vpack.c.bf16 %v263, %v254
        %v399 = vpack.c.bf16 %v264, %v255
        %v400 = vpack.c.bf16 %v265, %v256
        %v401 = vpack.c.bf16 %v266, %v257
        %v402 = vpack.c.bf16 %v267, %v258
        %v403 = vpack.c.bf16 %v268, %v259
        %v404 = vpack.c.bf16 %v269, %v260
        %v405 = vpack.c.bf16 %v279, %v270
        %v406 = vpack.c.bf16 %v280, %v271
        %v407 = vpack.c.bf16 %v281, %v272
        %v408 = vpack.c.bf16 %v282, %v273
        %v409 = vpack.c.bf16 %v283, %v274
        %v410 = vpack.c.bf16 %v284, %v275
        %v411 = vpack.c.bf16 %v285, %v276
        %v412 = vpack.c.bf16 %v286, %v277
        %v413 = vpack.c.bf16 %v287, %v278
        %v414 = vpack.c.bf16 %v297, %v288
        %v415 = vpack.c.bf16 %v298, %v289
        %v416 = vpack.c.bf16 %v299, %v290
        %v417 = vpack.c.bf16 %v300, %v291
        %v418 = vpack.c.bf16 %v301, %v292
        %v419 = vpack.c.bf16 %v302, %v293
        %v420 = vpack.c.bf16 %v303, %v294
        %v421 = vpack.c.bf16 %v304, %v295
        %v422 = vpack.c.bf16 %v305, %v296
        %v423 = vpack.c.bf16 %v315, %v306
        %v424 = vpack.c.bf16 %v316, %v307
        %v425 = vpack.c.bf16 %v317, %v308
        %v426 = vpack.c.bf16 %v318, %v309
        %v427 = vpack.c.bf16 %v319, %v310
        %v428 = vpack.c.bf16 %v320, %v311
        %v429 = vpack.c.bf16 %v321, %v312
        %v430 = vpack.c.bf16 %v322, %v313
        %v431 = vpack.c.bf16 %v323, %v314
        %v432 = vpack.c.bf16 %v333, %v324
        %v433 = vpack.c.bf16 %v334, %v325
        %v434 = vpack.c.bf16 %v335, %v326
        %v435 = vpack.c.bf16 %v336, %v327
        %v436 = vpack.c.bf16 %v337, %v328
        %v437 = vpack.c.bf16 %v338, %v329
        %v438 = vpack.c.bf16 %v339, %v330
        %v439 = vpack.c.bf16 %v340, %v331
        %v440 = vpack.c.bf16 %v341, %v332
        %v441 = vpack.c.bf16 %v351, %v342
        %v442 = vpack.c.bf16 %v352, %v343
        %v443 = vpack.c.bf16 %v353, %v344
        %v444 = vpack.c.bf16 %v354, %v345
        %v445 = vpack.c.bf16 %v355, %v346
        %v446 = vpack.c.bf16 %v356, %v347
        %v447 = vpack.c.bf16 %v357, %v348
        %v448 = vpack.c.bf16 %v358, %v349
        %v449 = vpack.c.bf16 %v359, %v350
        %v450 = vpack.c.bf16 %v369, %v360
        %v451 = vpack.c.bf16 %v370, %v361
        %v452 = vpack.c.bf16 %v371, %v362
        %v453 = vpack.c.bf16 %v372, %v363
        %v454 = vpack.c.bf16 %v373, %v364
        %v455 = vpack.c.bf16 %v374, %v365
        %v456 = vpack.c.bf16 %v375, %v366
        %v457 = vpack.c.bf16 %v376, %v367
        %v458 = vpack.c.bf16 %v377, %v368
        %v459 = vpack.c.bf16 %v387, %v378
        %v460 = vpack.c.bf16 %v388, %v379
        %v461 = vpack.c.bf16 %v389, %v380
        %v462 = vpack.c.bf16 %v390, %v381
        %v463 = vpack.c.bf16 %v391, %v382
        %v464 = vpack.c.bf16 %v392, %v383
        %v465 = vpack.c.bf16 %v393, %v384
        %v466 = vpack.c.bf16 %v394, %v385
        %v467 = vpack.c.bf16 %v395, %v386
        %v468 = vld [vmem:[#allocation5] sm:$0xff]
        %v469 = vld [vmem:[#allocation5 + $0x8] sm:$0xff]
        %v470 = vld [vmem:[#allocation5 + $0x10] sm:$0xff]
        %v471 = vld [vmem:[#allocation5 + $0x18] sm:$0xff]
        %v472 = vld [vmem:[#allocation5 + $0x20] sm:$0xff]
        %v473 = vld [vmem:[#allocation5 + $0x28] sm:$0xff]
        %v474 = vld [vmem:[#allocation5 + $0x30] sm:$0xff]
        %v475 = vld [vmem:[#allocation5 + $0x38] sm:$0xff]
        %v476 = vld [vmem:[#allocation5 + $0x40] sm:$0xff]
        %v477 = vld [vmem:[#allocation5 + $0x48] sm:$0xff]
        %v478 = vld [vmem:[#allocation5 + $0x50] sm:$0xff]
        %v479 = vld [vmem:[#allocation5 + $0x58] sm:$0xff]
        %v480 = vld [vmem:[#allocation5 + $0x60] sm:$0xff]
        %v481 = vld [vmem:[#allocation5 + $0x68] sm:$0xff]
        %v482 = vld [vmem:[#allocation5 + $0x70] sm:$0xff]
        %v483 = vld [vmem:[#allocation5 + $0x78] sm:$0xff]
        %v484 = vld [vmem:[#allocation5 + $0x80] sm:$0xff]
        %v485 = vld [vmem:[#allocation5 + $0x88] sm:$0xff]
        %v486 = vld [vmem:[#allocation5 + $0x90] sm:$0xff]
        %v487 = vld [vmem:[#allocation5 + $0x98] sm:$0xff]
        %v488 = vld [vmem:[#allocation5 + $0xa0] sm:$0xff]
        %v489 = vld [vmem:[#allocation5 + $0xa8] sm:$0xff]
        %v490 = vld [vmem:[#allocation5 + $0xb0] sm:$0xff]
        %v491 = vld [vmem:[#allocation5 + $0xb8] sm:$0xff]
        %v492 = vld [vmem:[#allocation5 + $0xc0] sm:$0xff]
        %v493 = vld [vmem:[#allocation5 + $0xc8] sm:$0xff]
        %v494 = vld [vmem:[#allocation5 + $0xd0] sm:$0xff]
        %v495 = vld [vmem:[#allocation5 + $0xd8] sm:$0xff]
        %v496 = vld [vmem:[#allocation5 + $0xe0] sm:$0xff]
        %v497 = vld [vmem:[#allocation5 + $0xe8] sm:$0xff]
        %v498 = vld [vmem:[#allocation5 + $0xf0] sm:$0xff]
        %v499 = vld [vmem:[#allocation5 + $0xf8] sm:$0xff]
        %v500 = vld [vmem:[#allocation5 + $0x100] sm:$0xff]
        %v501 = vld [vmem:[#allocation5 + $0x108] sm:$0xff]
        %v502 = vld [vmem:[#allocation5 + $0x110] sm:$0xff]
        %v503 = vld [vmem:[#allocation5 + $0x118] sm:$0xff]
        %v504 = vld [vmem:[#allocation5 + $0x120] sm:$0xff]
        %v505 = vld [vmem:[#allocation5 + $0x128] sm:$0xff]
        %v506 = vld [vmem:[#allocation5 + $0x130] sm:$0xff]
        %v507 = vld [vmem:[#allocation5 + $0x138] sm:$0xff]
        %v508 = vld [vmem:[#allocation5 + $0x140] sm:$0xff]
        %v509 = vld [vmem:[#allocation5 + $0x148] sm:$0xff]
        %v510 = vld [vmem:[#allocation5 + $0x150] sm:$0xff]
        %v511 = vld [vmem:[#allocation5 + $0x158] sm:$0xff]
        %v512 = vld [vmem:[#allocation5 + $0x160] sm:$0xff]
        %v513 = vld [vmem:[#allocation5 + $0x168] sm:$0xff]
        %v514 = vld [vmem:[#allocation5 + $0x170] sm:$0xff]
        %v515 = vld [vmem:[#allocation5 + $0x178] sm:$0xff]
        %v516 = vld [vmem:[#allocation5 + $0x180] sm:$0xff]
        %v517 = vld [vmem:[#allocation5 + $0x188] sm:$0xff]
        %v518 = vld [vmem:[#allocation5 + $0x190] sm:$0xff]
        %v519 = vld [vmem:[#allocation5 + $0x198] sm:$0xff]
        %v520 = vld [vmem:[#allocation5 + $0x1a0] sm:$0xff]
        %v521 = vld [vmem:[#allocation5 + $0x1a8] sm:$0xff]
        %v522 = vld [vmem:[#allocation5 + $0x1b0] sm:$0xff]
        %v523 = vld [vmem:[#allocation5 + $0x1b8] sm:$0xff]
        %v524 = vld [vmem:[#allocation5 + $0x1c0] sm:$0xff]
        %v525 = vld [vmem:[#allocation5 + $0x1c8] sm:$0xff]
        %v526 = vld [vmem:[#allocation5 + $0x1d0] sm:$0xff]
        %v527 = vld [vmem:[#allocation5 + $0x1d8] sm:$0xff]
        %v528 = vld [vmem:[#allocation5 + $0x1e0] sm:$0xff]
        %v529 = vld [vmem:[#allocation5 + $0x1e8] sm:$0xff]
        %v530 = vld [vmem:[#allocation5 + $0x1f0] sm:$0xff]
        %v531 = vld [vmem:[#allocation5 + $0x1f8] sm:$0xff]
        %v532 = vld [vmem:[#allocation5 + $0x200] sm:$0xff]
        %v533 = vld [vmem:[#allocation5 + $0x208] sm:$0xff]
        %v534 = vld [vmem:[#allocation5 + $0x210] sm:$0xff]
        %v535 = vld [vmem:[#allocation5 + $0x218] sm:$0xff]
        %v536 = vld [vmem:[#allocation5 + $0x220] sm:$0xff]
        %v537 = vld [vmem:[#allocation5 + $0x228] sm:$0xff]
        %v538 = vld [vmem:[#allocation5 + $0x230] sm:$0xff]
        %v539 = vld [vmem:[#allocation5 + $0x238] sm:$0xff]
        %v540 = vld [vmem:[#allocation5 + $0x240] sm:$0xff]
        %v541 = vld [vmem:[#allocation5 + $0x248] sm:$0xff]
        %v542 = vld [vmem:[#allocation5 + $0x250] sm:$0xff]
        %v543 = vld [vmem:[#allocation5 + $0x258] sm:$0xff]
        %v544 = vld [vmem:[#allocation5 + $0x260] sm:$0xff]
        %v545 = vld [vmem:[#allocation5 + $0x268] sm:$0xff]
        %v546 = vld [vmem:[#allocation5 + $0x270] sm:$0xff]
        %v547 = vld [vmem:[#allocation5 + $0x278] sm:$0xff]
        %v548 = vld [vmem:[#allocation5 + $0x280] sm:$0xff]
        %v549 = vld [vmem:[#allocation5 + $0x288] sm:$0xff]
        %v550 = vld [vmem:[#allocation5 + $0x290] sm:$0xff]
        %v551 = vld [vmem:[#allocation5 + $0x298] sm:$0xff]
        %v552 = vld [vmem:[#allocation5 + $0x2a0] sm:$0xff]
        %v553 = vld [vmem:[#allocation5 + $0x2a8] sm:$0xff]
        %v554 = vld [vmem:[#allocation5 + $0x2b0] sm:$0xff]
        %v555 = vld [vmem:[#allocation5 + $0x2b8] sm:$0xff]
        %v556 = vld [vmem:[#allocation5 + $0x2c0] sm:$0xff]
        %v557 = vld [vmem:[#allocation5 + $0x2c8] sm:$0xff]
        %v558 = vld [vmem:[#allocation5 + $0x2d0] sm:$0xff]
        %v559 = vld [vmem:[#allocation5 + $0x2d8] sm:$0xff]
        %v560 = vld [vmem:[#allocation5 + $0x2e0] sm:$0xff]
        %v561 = vld [vmem:[#allocation5 + $0x2e8] sm:$0xff]
        %v562 = vld [vmem:[#allocation5 + $0x2f0] sm:$0xff]
        %v563 = vld [vmem:[#allocation5 + $0x2f8] sm:$0xff]
        %v564 = vld [vmem:[#allocation5 + $0x300] sm:$0xff]
        %v565 = vld [vmem:[#allocation5 + $0x308] sm:$0xff]
        %v566 = vld [vmem:[#allocation5 + $0x310] sm:$0xff]
        %v567 = vld [vmem:[#allocation5 + $0x318] sm:$0xff]
        %v568 = vld [vmem:[#allocation5 + $0x320] sm:$0xff]
        %v569 = vld [vmem:[#allocation5 + $0x328] sm:$0xff]
        %v570 = vld [vmem:[#allocation5 + $0x330] sm:$0xff]
        %v571 = vld [vmem:[#allocation5 + $0x338] sm:$0xff]
        %v572 = vld [vmem:[#allocation5 + $0x340] sm:$0xff]
        %v573 = vld [vmem:[#allocation5 + $0x348] sm:$0xff]
        %v574 = vld [vmem:[#allocation5 + $0x350] sm:$0xff]
        %v575 = vld [vmem:[#allocation5 + $0x358] sm:$0xff]
        %v576 = vld [vmem:[#allocation5 + $0x360] sm:$0xff]
        %v577 = vld [vmem:[#allocation5 + $0x368] sm:$0xff]
        %v578 = vld [vmem:[#allocation5 + $0x370] sm:$0xff]
        %v579 = vld [vmem:[#allocation5 + $0x378] sm:$0xff]
        %v580 = vld [vmem:[#allocation5 + $0x380] sm:$0xff]
        %v581 = vld [vmem:[#allocation5 + $0x388] sm:$0xff]
        %v582 = vld [vmem:[#allocation5 + $0x390] sm:$0xff]
        %v583 = vld [vmem:[#allocation5 + $0x398] sm:$0xff]
        %v584 = vld [vmem:[#allocation5 + $0x3a0] sm:$0xff]
        %v585 = vld [vmem:[#allocation5 + $0x3a8] sm:$0xff]
        %v586 = vld [vmem:[#allocation5 + $0x3b0] sm:$0xff]
        %v587 = vld [vmem:[#allocation5 + $0x3b8] sm:$0xff]
        %v588 = vld [vmem:[#allocation5 + $0x3c0] sm:$0xff]
        %v589 = vld [vmem:[#allocation5 + $0x3c8] sm:$0xff]
        %v590 = vld [vmem:[#allocation5 + $0x3d0] sm:$0xff]
        %v591 = vld [vmem:[#allocation5 + $0x3d8] sm:$0xff]
        %v592 = vld [vmem:[#allocation5 + $0x3e0] sm:$0xff]
        %v593 = vld [vmem:[#allocation5 + $0x3e8] sm:$0xff]
        %v594 = vld [vmem:[#allocation5 + $0x3f0] sm:$0xff]
        %v595 = vld [vmem:[#allocation5 + $0x3f8] sm:$0xff]
        %v596 = vld [vmem:[#allocation5 + $0x400] sm:$0xff]
        %v597 = vld [vmem:[#allocation5 + $0x408] sm:$0xff]
        %v598 = vld [vmem:[#allocation5 + $0x410] sm:$0xff]
        %v599 = vld [vmem:[#allocation5 + $0x418] sm:$0xff]
        %v600 = vld [vmem:[#allocation5 + $0x420] sm:$0xff]
        %v601 = vld [vmem:[#allocation5 + $0x428] sm:$0xff]
        %v602 = vld [vmem:[#allocation5 + $0x430] sm:$0xff]
        %v603 = vld [vmem:[#allocation5 + $0x438] sm:$0xff]
        %v604 = vld [vmem:[#allocation5 + $0x440] sm:$0xff]
        %v605 = vld [vmem:[#allocation5 + $0x448] sm:$0xff]
        %v606 = vld [vmem:[#allocation5 + $0x450] sm:$0xff]
        %v607 = vld [vmem:[#allocation5 + $0x458] sm:$0xff]
        %v608 = vld [vmem:[#allocation5 + $0x460] sm:$0xff]
        %v609 = vld [vmem:[#allocation5 + $0x468] sm:$0xff]
        %v610 = vld [vmem:[#allocation5 + $0x470] sm:$0xff]
        %v611 = vld [vmem:[#allocation5 + $0x478] sm:$0xff]
        %v612 = vld [vmem:[#allocation5 + $0x480] sm:$0xff]
        %v613 = vld [vmem:[#allocation5 + $0x488] sm:$0xff]
        %v614 = vld [vmem:[#allocation5 + $0x490] sm:$0xff]
        %v615 = vld [vmem:[#allocation5 + $0x498] sm:$0xff]
        %v616 = vld [vmem:[#allocation5 + $0x4a0] sm:$0xff]
        %v617 = vld [vmem:[#allocation5 + $0x4a8] sm:$0xff]
        %v618 = vld [vmem:[#allocation5 + $0x4b0] sm:$0xff]
        %v619 = vld [vmem:[#allocation5 + $0x4b8] sm:$0xff]
        %v620 = vld [vmem:[#allocation5 + $0x4c0] sm:$0xff]
        %v621 = vld [vmem:[#allocation5 + $0x4c8] sm:$0xff]
        %v622 = vld [vmem:[#allocation5 + $0x4d0] sm:$0xff]
        %v623 = vld [vmem:[#allocation5 + $0x4d8] sm:$0xff]
        %v624 = vld [vmem:[#allocation5 + $0x4e0] sm:$0xff]
        %v625 = vld [vmem:[#allocation5 + $0x4e8] sm:$0xff]
        %v626 = vld [vmem:[#allocation5 + $0x4f0] sm:$0xff]
        %v627 = vld [vmem:[#allocation5 + $0x4f8] sm:$0xff]
        %v628 = vld [vmem:[#allocation5 + $0x500] sm:$0xff]
        %v629 = vld [vmem:[#allocation5 + $0x508] sm:$0xff]
        %v630 = vld [vmem:[#allocation5 + $0x510] sm:$0xff]
        %v631 = vld [vmem:[#allocation5 + $0x518] sm:$0xff]
        %v632 = vld [vmem:[#allocation5 + $0x520] sm:$0xff]
        %v633 = vld [vmem:[#allocation5 + $0x528] sm:$0xff]
        %v634 = vld [vmem:[#allocation5 + $0x530] sm:$0xff]
        %v635 = vld [vmem:[#allocation5 + $0x538] sm:$0xff]
        %v636 = vld [vmem:[#allocation5 + $0x540] sm:$0xff]
        %v637 = vld [vmem:[#allocation5 + $0x548] sm:$0xff]
        %v638 = vld [vmem:[#allocation5 + $0x550] sm:$0xff]
        %v639 = vld [vmem:[#allocation5 + $0x558] sm:$0xff]
        %v640 = vld [vmem:[#allocation5 + $0x560] sm:$0xff]
        %v641 = vld [vmem:[#allocation5 + $0x568] sm:$0xff]
        %v642 = vld [vmem:[#allocation5 + $0x570] sm:$0xff]
        %v643 = vld [vmem:[#allocation5 + $0x578] sm:$0xff]
        %v644 = vld [vmem:[#allocation5 + $0x580] sm:$0xff]
        %v645 = vld [vmem:[#allocation5 + $0x588] sm:$0xff]
        %v646 = vld [vmem:[#allocation5 + $0x590] sm:$0xff]
        %v647 = vld [vmem:[#allocation5 + $0x598] sm:$0xff]
        %v648 = vld [vmem:[#allocation5 + $0x5a0] sm:$0xff]
        %v649 = vld [vmem:[#allocation5 + $0x5a8] sm:$0xff]
        %v650 = vld [vmem:[#allocation5 + $0x5b0] sm:$0xff]
        %v651 = vld [vmem:[#allocation5 + $0x5b8] sm:$0xff]
        %v652 = vld [vmem:[#allocation5 + $0x5c0] sm:$0xff]
        %v653 = vld [vmem:[#allocation5 + $0x5c8] sm:$0xff]
        %v654 = vld [vmem:[#allocation5 + $0x5d0] sm:$0xff]
        %v655 = vld [vmem:[#allocation5 + $0x5d8] sm:$0xff]
        %v656 = vld [vmem:[#allocation5 + $0x5e0] sm:$0xff]
        %v657 = vld [vmem:[#allocation5 + $0x5e8] sm:$0xff]
        %v658 = vld [vmem:[#allocation5 + $0x5f0] sm:$0xff]
        %v659 = vld [vmem:[#allocation5 + $0x5f8] sm:$0xff]
        %v660 = vld [vmem:[#allocation5 + $0x600] sm:$0xff]
        %v661 = vld [vmem:[#allocation5 + $0x608] sm:$0xff]
        %v662 = vld [vmem:[#allocation5 + $0x610] sm:$0xff]
        %v663 = vld [vmem:[#allocation5 + $0x618] sm:$0xff]
        %v664 = vld [vmem:[#allocation5 + $0x620] sm:$0xff]
        %v665 = vld [vmem:[#allocation5 + $0x628] sm:$0xff]
        %v666 = vld [vmem:[#allocation5 + $0x630] sm:$0xff]
        %v667 = vld [vmem:[#allocation5 + $0x638] sm:$0xff]
        %v668 = vld [vmem:[#allocation5 + $0x640] sm:$0xff]
        %v669 = vld [vmem:[#allocation5 + $0x648] sm:$0xff]
        %v670 = vld [vmem:[#allocation5 + $0x650] sm:$0xff]
        %v671 = vld [vmem:[#allocation5 + $0x658] sm:$0xff]
        %v672 = vld [vmem:[#allocation5 + $0x660] sm:$0xff]
        %v673 = vld [vmem:[#allocation5 + $0x668] sm:$0xff]
        %v674 = vld [vmem:[#allocation5 + $0x670] sm:$0xff]
        %v675 = vld [vmem:[#allocation5 + $0x678] sm:$0xff]
        %v676 = vld [vmem:[#allocation5 + $0x680] sm:$0xff]
        %v677 = vld [vmem:[#allocation5 + $0x688] sm:$0xff]
        %v678 = vld [vmem:[#allocation5 + $0x690] sm:$0xff]
        %v679 = vld [vmem:[#allocation5 + $0x698] sm:$0xff]
        %v680 = vld [vmem:[#allocation5 + $0x6a0] sm:$0xff]
        %v681 = vld [vmem:[#allocation5 + $0x6a8] sm:$0xff]
        %v682 = vld [vmem:[#allocation5 + $0x6b0] sm:$0xff]
        %v683 = vld [vmem:[#allocation5 + $0x6b8] sm:$0xff]
        %v684 = vld [vmem:[#allocation5 + $0x6c0] sm:$0xff]
        %v685 = vld [vmem:[#allocation5 + $0x6c8] sm:$0xff]
        %v686 = vld [vmem:[#allocation5 + $0x6d0] sm:$0xff]
        %v687 = vld [vmem:[#allocation5 + $0x6d8] sm:$0xff]
        %v688 = vld [vmem:[#allocation5 + $0x6e0] sm:$0xff]
        %v689 = vld [vmem:[#allocation5 + $0x6e8] sm:$0xff]
        %v690 = vld [vmem:[#allocation5 + $0x6f0] sm:$0xff]
        %v691 = vld [vmem:[#allocation5 + $0x6f8] sm:$0xff]
        %v692 = vld [vmem:[#allocation5 + $0x700] sm:$0xff]
        %v693 = vld [vmem:[#allocation5 + $0x708] sm:$0xff]
        %v694 = vld [vmem:[#allocation5 + $0x710] sm:$0xff]
        %v695 = vld [vmem:[#allocation5 + $0x718] sm:$0xff]
        %v696 = vld [vmem:[#allocation5 + $0x720] sm:$0xff]
        %v697 = vld [vmem:[#allocation5 + $0x728] sm:$0xff]
        %v698 = vld [vmem:[#allocation5 + $0x730] sm:$0xff]
        %v699 = vld [vmem:[#allocation5 + $0x738] sm:$0xff]
        %v700 = vld [vmem:[#allocation5 + $0x740] sm:$0xff]
        %v701 = vld [vmem:[#allocation5 + $0x748] sm:$0xff]
        %v702 = vld [vmem:[#allocation5 + $0x750] sm:$0xff]
        %v703 = vld [vmem:[#allocation5 + $0x758] sm:$0xff]
        %v704 = vld [vmem:[#allocation5 + $0x760] sm:$0xff]
        %v705 = vld [vmem:[#allocation5 + $0x768] sm:$0xff]
        %v706 = vld [vmem:[#allocation5 + $0x770] sm:$0xff]
        %v707 = vld [vmem:[#allocation5 + $0x778] sm:$0xff]
        %v708 = vld [vmem:[#allocation5 + $0x780] sm:$0xff]
        %v709 = vld [vmem:[#allocation5 + $0x788] sm:$0xff]
        %v710 = vld [vmem:[#allocation5 + $0x790] sm:$0xff]
        %v711 = vld [vmem:[#allocation5 + $0x798] sm:$0xff]
        %v712 = vld [vmem:[#allocation5 + $0x7a0] sm:$0xff]
        %v713 = vld [vmem:[#allocation5 + $0x7a8] sm:$0xff]
        %v714 = vld [vmem:[#allocation5 + $0x7b0] sm:$0xff]
        %v715 = vld [vmem:[#allocation5 + $0x7b8] sm:$0xff]
        %v716 = vld [vmem:[#allocation5 + $0x7c0] sm:$0xff]
        %v717 = vld [vmem:[#allocation5 + $0x7c8] sm:$0xff]
        %v718 = vld [vmem:[#allocation5 + $0x7d0] sm:$0xff]
        %v719 = vld [vmem:[#allocation5 + $0x7d8] sm:$0xff]
        %v720 = vld [vmem:[#allocation5 + $0x7e0] sm:$0xff]
        %v721 = vld [vmem:[#allocation5 + $0x7e8] sm:$0xff]
        %v722 = vld [vmem:[#allocation5 + $0x7f0] sm:$0xff]
        %v723 = vld [vmem:[#allocation5 + $0x7f8] sm:$0xff]
        %v724 = vld [vmem:[#allocation5 + $0x800] sm:$0xff]
        %v725 = vld [vmem:[#allocation5 + $0x808] sm:$0xff]
        %v726 = vld [vmem:[#allocation5 + $0x810] sm:$0xff]
        %v727 = vld [vmem:[#allocation5 + $0x818] sm:$0xff]
        %v728 = vld [vmem:[#allocation5 + $0x820] sm:$0xff]
        %v729 = vld [vmem:[#allocation5 + $0x828] sm:$0xff]
        %v730 = vld [vmem:[#allocation5 + $0x830] sm:$0xff]
        %v731 = vld [vmem:[#allocation5 + $0x838] sm:$0xff]
        %v732 = vld [vmem:[#allocation5 + $0x840] sm:$0xff]
        %v733 = vld [vmem:[#allocation5 + $0x848] sm:$0xff]
        %v734 = vld [vmem:[#allocation5 + $0x850] sm:$0xff]
        %v735 = vld [vmem:[#allocation5 + $0x858] sm:$0xff]
        %v736 = vld [vmem:[#allocation5 + $0x860] sm:$0xff]
        %v737 = vld [vmem:[#allocation5 + $0x868] sm:$0xff]
        %v738 = vld [vmem:[#allocation5 + $0x870] sm:$0xff]
        %v739 = vld [vmem:[#allocation5 + $0x878] sm:$0xff]
        %v740 = vld [vmem:[#allocation5 + $0x880] sm:$0xff]
        %v741 = vld [vmem:[#allocation5 + $0x888] sm:$0xff]
        %v742 = vld [vmem:[#allocation5 + $0x890] sm:$0xff]
        %v743 = vld [vmem:[#allocation5 + $0x898] sm:$0xff]
        %v744 = vld [vmem:[#allocation5 + $0x8a0] sm:$0xff]
        %v745 = vld [vmem:[#allocation5 + $0x8a8] sm:$0xff]
        %v746 = vld [vmem:[#allocation5 + $0x8b0] sm:$0xff]
        %v747 = vld [vmem:[#allocation5 + $0x8b8] sm:$0xff]
        %v748 = vld [vmem:[#allocation5 + $0x8c0] sm:$0xff]
        %v749 = vld [vmem:[#allocation5 + $0x8c8] sm:$0xff]
        %v750 = vld [vmem:[#allocation5 + $0x8d0] sm:$0xff]
        %v751 = vld [vmem:[#allocation5 + $0x8d8] sm:$0xff]
        %v752 = vld [vmem:[#allocation5 + $0x8e0] sm:$0xff]
        %v753 = vld [vmem:[#allocation5 + $0x8e8] sm:$0xff]
        %v754 = vld [vmem:[#allocation5 + $0x8f0] sm:$0xff]
        %v755 = vld [vmem:[#allocation5 + $0x8f8] sm:$0xff]
        %v756 = vld [vmem:[#allocation5 + $0x900] sm:$0xff]
        %v757 = vld [vmem:[#allocation5 + $0x908] sm:$0xff]
        %v758 = vld [vmem:[#allocation5 + $0x910] sm:$0xff]
        %v759 = vld [vmem:[#allocation5 + $0x918] sm:$0xff]
        %v760 = vld [vmem:[#allocation5 + $0x920] sm:$0xff]
        %v761 = vld [vmem:[#allocation5 + $0x928] sm:$0xff]
        %v762 = vld [vmem:[#allocation5 + $0x930] sm:$0xff]
        %v763 = vld [vmem:[#allocation5 + $0x938] sm:$0xff]
        %v764 = vld [vmem:[#allocation5 + $0x940] sm:$0xff]
        %v765 = vld [vmem:[#allocation5 + $0x948] sm:$0xff]
        %v766 = vld [vmem:[#allocation5 + $0x950] sm:$0xff]
        %v767 = vld [vmem:[#allocation5 + $0x958] sm:$0xff]
        %v768 = vld [vmem:[#allocation5 + $0x960] sm:$0xff]
        %v769 = vld [vmem:[#allocation5 + $0x968] sm:$0xff]
        %v770 = vld [vmem:[#allocation5 + $0x970] sm:$0xff]
        %v771 = vld [vmem:[#allocation5 + $0x978] sm:$0xff]
        %v772 = vld [vmem:[#allocation5 + $0x980] sm:$0xff]
        %v773 = vld [vmem:[#allocation5 + $0x988] sm:$0xff]
        %v774 = vld [vmem:[#allocation5 + $0x990] sm:$0xff]
        %v775 = vld [vmem:[#allocation5 + $0x998] sm:$0xff]
        %v776 = vld [vmem:[#allocation5 + $0x9a0] sm:$0xff]
        %v777 = vld [vmem:[#allocation5 + $0x9a8] sm:$0xff]
        %v778 = vld [vmem:[#allocation5 + $0x9b0] sm:$0xff]
        %v779 = vld [vmem:[#allocation5 + $0x9b8] sm:$0xff]
        %v780 = vld [vmem:[#allocation5 + $0x9c0] sm:$0xff]
        %v781 = vld [vmem:[#allocation5 + $0x9c8] sm:$0xff]
        %v782 = vld [vmem:[#allocation5 + $0x9d0] sm:$0xff]
        %v783 = vld [vmem:[#allocation5 + $0x9d8] sm:$0xff]
        %v784 = vld [vmem:[#allocation5 + $0x9e0] sm:$0xff]
        %v785 = vld [vmem:[#allocation5 + $0x9e8] sm:$0xff]
        %v786 = vld [vmem:[#allocation5 + $0x9f0] sm:$0xff]
        %v787 = vld [vmem:[#allocation5 + $0x9f8] sm:$0xff]
        %v788 = vld [vmem:[#allocation5 + $0xa00] sm:$0xff]
        %v789 = vld [vmem:[#allocation5 + $0xa08] sm:$0xff]
        %v790 = vld [vmem:[#allocation5 + $0xa10] sm:$0xff]
        %v791 = vld [vmem:[#allocation5 + $0xa18] sm:$0xff]
        %v792 = vld [vmem:[#allocation5 + $0xa20] sm:$0xff]
        %v793 = vld [vmem:[#allocation5 + $0xa28] sm:$0xff]
        %v794 = vld [vmem:[#allocation5 + $0xa30] sm:$0xff]
        %v795 = vld [vmem:[#allocation5 + $0xa38] sm:$0xff]
        %v796 = vld [vmem:[#allocation5 + $0xa40] sm:$0xff]
        %v797 = vld [vmem:[#allocation5 + $0xa48] sm:$0xff]
        %v798 = vld [vmem:[#allocation5 + $0xa50] sm:$0xff]
        %v799 = vld [vmem:[#allocation5 + $0xa58] sm:$0xff]
        %v800 = vld [vmem:[#allocation5 + $0xa60] sm:$0xff]
        %v801 = vld [vmem:[#allocation5 + $0xa68] sm:$0xff]
        %v802 = vld [vmem:[#allocation5 + $0xa70] sm:$0xff]
        %v803 = vld [vmem:[#allocation5 + $0xa78] sm:$0xff]
        %v804 = vld [vmem:[#allocation5 + $0xa80] sm:$0xff]
        %v805 = vld [vmem:[#allocation5 + $0xa88] sm:$0xff]
        %v806 = vld [vmem:[#allocation5 + $0xa90] sm:$0xff]
        %v807 = vld [vmem:[#allocation5 + $0xa98] sm:$0xff]
        %v808 = vld [vmem:[#allocation5 + $0xaa0] sm:$0xff]
        %v809 = vld [vmem:[#allocation5 + $0xaa8] sm:$0xff]
        %v810 = vld [vmem:[#allocation5 + $0xab0] sm:$0xff]
        %v811 = vld [vmem:[#allocation5 + $0xab8] sm:$0xff]
        %v812 = vld [vmem:[#allocation5 + $0xac0] sm:$0xff]
        %v813 = vld [vmem:[#allocation5 + $0xac8] sm:$0xff]
        %v814 = vld [vmem:[#allocation5 + $0xad0] sm:$0xff]
        %v815 = vld [vmem:[#allocation5 + $0xad8] sm:$0xff]
        %v816 = vld [vmem:[#allocation5 + $0xae0] sm:$0xff]
        %v817 = vld [vmem:[#allocation5 + $0xae8] sm:$0xff]
        %v818 = vld [vmem:[#allocation5 + $0xaf0] sm:$0xff]
        %v819 = vld [vmem:[#allocation5 + $0xaf8] sm:$0xff]
        %v820 = vld [vmem:[#allocation5 + $0xb00] sm:$0xff]
        %v821 = vld [vmem:[#allocation5 + $0xb08] sm:$0xff]
        %v822 = vld [vmem:[#allocation5 + $0xb10] sm:$0xff]
        %v823 = vld [vmem:[#allocation5 + $0xb18] sm:$0xff]
        %v824 = vld [vmem:[#allocation5 + $0xb20] sm:$0xff]
        %v825 = vld [vmem:[#allocation5 + $0xb28] sm:$0xff]
        %v826 = vld [vmem:[#allocation5 + $0xb30] sm:$0xff]
        %v827 = vld [vmem:[#allocation5 + $0xb38] sm:$0xff]
        %v828 = vld [vmem:[#allocation5 + $0xb40] sm:$0xff]
        %v829 = vld [vmem:[#allocation5 + $0xb48] sm:$0xff]
        %v830 = vld [vmem:[#allocation5 + $0xb50] sm:$0xff]
        %v831 = vld [vmem:[#allocation5 + $0xb58] sm:$0xff]
        %v832 = vld [vmem:[#allocation5 + $0xb60] sm:$0xff]
        %v833 = vld [vmem:[#allocation5 + $0xb68] sm:$0xff]
        %v834 = vld [vmem:[#allocation5 + $0xb70] sm:$0xff]
        %v835 = vld [vmem:[#allocation5 + $0xb78] sm:$0xff]
        %v836 = vld [vmem:[#allocation5 + $0xb80] sm:$0xff]
        %v837 = vld [vmem:[#allocation5 + $0xb88] sm:$0xff]
        %v838 = vld [vmem:[#allocation5 + $0xb90] sm:$0xff]
        %v839 = vld [vmem:[#allocation5 + $0xb98] sm:$0xff]
        %v840 = vld [vmem:[#allocation5 + $0xba0] sm:$0xff]
        %v841 = vld [vmem:[#allocation5 + $0xba8] sm:$0xff]
        %v842 = vld [vmem:[#allocation5 + $0xbb0] sm:$0xff]
        %v843 = vld [vmem:[#allocation5 + $0xbb8] sm:$0xff]
        %v844 = vld [vmem:[#allocation5 + $0xbc0] sm:$0xff]
        %v845 = vld [vmem:[#allocation5 + $0xbc8] sm:$0xff]
        %v846 = vld [vmem:[#allocation5 + $0xbd0] sm:$0xff]
        %v847 = vld [vmem:[#allocation5 + $0xbd8] sm:$0xff]
        %v848 = vld [vmem:[#allocation5 + $0xbe0] sm:$0xff]
        %v849 = vld [vmem:[#allocation5 + $0xbe8] sm:$0xff]
        %v850 = vld [vmem:[#allocation5 + $0xbf0] sm:$0xff]
        %v851 = vld [vmem:[#allocation5 + $0xbf8] sm:$0xff]
        %v852 = vld [vmem:[#allocation5 + $0xc00] sm:$0xff]
        %v853 = vld [vmem:[#allocation5 + $0xc08] sm:$0xff]
        %v854 = vld [vmem:[#allocation5 + $0xc10] sm:$0xff]
        %v855 = vld [vmem:[#allocation5 + $0xc18] sm:$0xff]
        %v856 = vld [vmem:[#allocation5 + $0xc20] sm:$0xff]
        %v857 = vld [vmem:[#allocation5 + $0xc28] sm:$0xff]
        %v858 = vld [vmem:[#allocation5 + $0xc30] sm:$0xff]
        %v859 = vld [vmem:[#allocation5 + $0xc38] sm:$0xff]
        %v860 = vld [vmem:[#allocation5 + $0xc40] sm:$0xff]
        %v861 = vld [vmem:[#allocation5 + $0xc48] sm:$0xff]
        %v862 = vld [vmem:[#allocation5 + $0xc50] sm:$0xff]
        %v863 = vld [vmem:[#allocation5 + $0xc58] sm:$0xff]
        %v864 = vld [vmem:[#allocation5 + $0xc60] sm:$0xff]
        %v865 = vld [vmem:[#allocation5 + $0xc68] sm:$0xff]
        %v866 = vld [vmem:[#allocation5 + $0xc70] sm:$0xff]
        %v867 = vld [vmem:[#allocation5 + $0xc78] sm:$0xff]
        %v868 = vld [vmem:[#allocation5 + $0xc80] sm:$0xff]
        %v869 = vld [vmem:[#allocation5 + $0xc88] sm:$0xff]
        %v870 = vld [vmem:[#allocation5 + $0xc90] sm:$0xff]
        %v871 = vld [vmem:[#allocation5 + $0xc98] sm:$0xff]
        %v872 = vld [vmem:[#allocation5 + $0xca0] sm:$0xff]
        %v873 = vld [vmem:[#allocation5 + $0xca8] sm:$0xff]
        %v874 = vld [vmem:[#allocation5 + $0xcb0] sm:$0xff]
        %v875 = vld [vmem:[#allocation5 + $0xcb8] sm:$0xff]
        %v876 = vld [vmem:[#allocation5 + $0xcc0] sm:$0xff]
        %v877 = vld [vmem:[#allocation5 + $0xcc8] sm:$0xff]
        %v878 = vld [vmem:[#allocation5 + $0xcd0] sm:$0xff]
        %v879 = vld [vmem:[#allocation5 + $0xcd8] sm:$0xff]
        %v880 = vld [vmem:[#allocation5 + $0xce0] sm:$0xff]
        %v881 = vld [vmem:[#allocation5 + $0xce8] sm:$0xff]
        %v882 = vld [vmem:[#allocation5 + $0xcf0] sm:$0xff]
        %v883 = vld [vmem:[#allocation5 + $0xcf8] sm:$0xff]
        %v884 = vld [vmem:[#allocation5 + $0xd00] sm:$0xff]
        %v885 = vld [vmem:[#allocation5 + $0xd08] sm:$0xff]
        %v886 = vld [vmem:[#allocation5 + $0xd10] sm:$0xff]
        %v887 = vld [vmem:[#allocation5 + $0xd18] sm:$0xff]
        %v888 = vld [vmem:[#allocation5 + $0xd20] sm:$0xff]
        %v889 = vld [vmem:[#allocation5 + $0xd28] sm:$0xff]
        %v890 = vld [vmem:[#allocation5 + $0xd30] sm:$0xff]
        %v891 = vld [vmem:[#allocation5 + $0xd38] sm:$0xff]
        %v892 = vld [vmem:[#allocation5 + $0xd40] sm:$0xff]
        %v893 = vld [vmem:[#allocation5 + $0xd48] sm:$0xff]
        %v894 = vld [vmem:[#allocation5 + $0xd50] sm:$0xff]
        %v895 = vld [vmem:[#allocation5 + $0xd58] sm:$0xff]
        %v896 = vld [vmem:[#allocation5 + $0xd60] sm:$0xff]
        %v897 = vld [vmem:[#allocation5 + $0xd68] sm:$0xff]
        %v898 = vld [vmem:[#allocation5 + $0xd70] sm:$0xff]
        %v899 = vld [vmem:[#allocation5 + $0xd78] sm:$0xff]
        %v900 = vld [vmem:[#allocation5 + $0xd80] sm:$0xff]
        %v901 = vld [vmem:[#allocation5 + $0xd88] sm:$0xff]
        %v902 = vld [vmem:[#allocation5 + $0xd90] sm:$0xff]
        %v903 = vld [vmem:[#allocation5 + $0xd98] sm:$0xff]
        %v904 = vld [vmem:[#allocation5 + $0xda0] sm:$0xff]
        %v905 = vld [vmem:[#allocation5 + $0xda8] sm:$0xff]
        %v906 = vld [vmem:[#allocation5 + $0xdb0] sm:$0xff]
        %v907 = vld [vmem:[#allocation5 + $0xdb8] sm:$0xff]
        %v908 = vld [vmem:[#allocation5 + $0xdc0] sm:$0xff]
        %v909 = vld [vmem:[#allocation5 + $0xdc8] sm:$0xff]
        %v910 = vld [vmem:[#allocation5 + $0xdd0] sm:$0xff]
        %v911 = vld [vmem:[#allocation5 + $0xdd8] sm:$0xff]
        %v912 = vld [vmem:[#allocation5 + $0xde0] sm:$0xff]
        %v913 = vld [vmem:[#allocation5 + $0xde8] sm:$0xff]
        %v914 = vld [vmem:[#allocation5 + $0xdf0] sm:$0xff]
        %v915 = vld [vmem:[#allocation5 + $0xdf8] sm:$0xff]
        %v916 = vld [vmem:[#allocation5 + $0xe00] sm:$0xff]
        %v917 = vld [vmem:[#allocation5 + $0xe08] sm:$0xff]
        %v918 = vld [vmem:[#allocation5 + $0xe10] sm:$0xff]
        %v919 = vld [vmem:[#allocation5 + $0xe18] sm:$0xff]
        %v920 = vld [vmem:[#allocation5 + $0xe20] sm:$0xff]
        %v921 = vld [vmem:[#allocation5 + $0xe28] sm:$0xff]
        %v922 = vld [vmem:[#allocation5 + $0xe30] sm:$0xff]
        %v923 = vld [vmem:[#allocation5 + $0xe38] sm:$0xff]
        %v924 = vld [vmem:[#allocation5 + $0xe40] sm:$0xff]
        %v925 = vld [vmem:[#allocation5 + $0xe48] sm:$0xff]
        %v926 = vld [vmem:[#allocation5 + $0xe50] sm:$0xff]
        %v927 = vld [vmem:[#allocation5 + $0xe58] sm:$0xff]
        %v928 = vld [vmem:[#allocation5 + $0xe60] sm:$0xff]
        %v929 = vld [vmem:[#allocation5 + $0xe68] sm:$0xff]
        %v930 = vld [vmem:[#allocation5 + $0xe70] sm:$0xff]
        %v931 = vld [vmem:[#allocation5 + $0xe78] sm:$0xff]
        %v932 = vld [vmem:[#allocation5 + $0xe80] sm:$0xff]
        %v933 = vld [vmem:[#allocation5 + $0xe88] sm:$0xff]
        %v934 = vld [vmem:[#allocation5 + $0xe90] sm:$0xff]
        %v935 = vld [vmem:[#allocation5 + $0xe98] sm:$0xff]
        %v936 = vld [vmem:[#allocation5 + $0xea0] sm:$0xff]
        %v937 = vld [vmem:[#allocation5 + $0xea8] sm:$0xff]
        %v938 = vld [vmem:[#allocation5 + $0xeb0] sm:$0xff]
        %v939 = vld [vmem:[#allocation5 + $0xeb8] sm:$0xff]
        %v940 = vld [vmem:[#allocation5 + $0xec0] sm:$0xff]
        %v941 = vld [vmem:[#allocation5 + $0xec8] sm:$0xff]
        %v942 = vld [vmem:[#allocation5 + $0xed0] sm:$0xff]
        %v943 = vld [vmem:[#allocation5 + $0xed8] sm:$0xff]
        %v944 = vld [vmem:[#allocation5 + $0xee0] sm:$0xff]
        %v945 = vld [vmem:[#allocation5 + $0xee8] sm:$0xff]
        %v946 = vld [vmem:[#allocation5 + $0xef0] sm:$0xff]
        %v947 = vld [vmem:[#allocation5 + $0xef8] sm:$0xff]
        %v948 = vld [vmem:[#allocation5 + $0xf00] sm:$0xff]
        %v949 = vld [vmem:[#allocation5 + $0xf08] sm:$0xff]
        %v950 = vld [vmem:[#allocation5 + $0xf10] sm:$0xff]
        %v951 = vld [vmem:[#allocation5 + $0xf18] sm:$0xff]
        %v952 = vld [vmem:[#allocation5 + $0xf20] sm:$0xff]
        %v953 = vld [vmem:[#allocation5 + $0xf28] sm:$0xff]
        %v954 = vld [vmem:[#allocation5 + $0xf30] sm:$0xff]
        %v955 = vld [vmem:[#allocation5 + $0xf38] sm:$0xff]
        %v956 = vld [vmem:[#allocation5 + $0xf40] sm:$0xff]
        %v957 = vld [vmem:[#allocation5 + $0xf48] sm:$0xff]
        %v958 = vld [vmem:[#allocation5 + $0xf50] sm:$0xff]
        %v959 = vld [vmem:[#allocation5 + $0xf58] sm:$0xff]
        %v960 = vld [vmem:[#allocation5 + $0xf60] sm:$0xff]
        %v961 = vld [vmem:[#allocation5 + $0xf68] sm:$0xff]
        %v962 = vld [vmem:[#allocation5 + $0xf70] sm:$0xff]
        %v963 = vld [vmem:[#allocation5 + $0xf78] sm:$0xff]
        %v964 = vld [vmem:[#allocation5 + $0xf80] sm:$0xff]
        %v965 = vld [vmem:[#allocation5 + $0xf88] sm:$0xff]
        %v966 = vld [vmem:[#allocation5 + $0xf90] sm:$0xff]
        %v967 = vld [vmem:[#allocation5 + $0xf98] sm:$0xff]
        %v968 = vld [vmem:[#allocation5 + $0xfa0] sm:$0xff]
        %v969 = vld [vmem:[#allocation5 + $0xfa8] sm:$0xff]
        %v970 = vld [vmem:[#allocation5 + $0xfb0] sm:$0xff]
        %v971 = vld [vmem:[#allocation5 + $0xfb8] sm:$0xff]
        %v972 = vld [vmem:[#allocation5 + $0xfc0] sm:$0xff]
        %v973 = vld [vmem:[#allocation5 + $0xfc8] sm:$0xff]
        %v974 = vld [vmem:[#allocation5 + $0xfd0] sm:$0xff]
        %v975 = vld [vmem:[#allocation5 + $0xfd8] sm:$0xff]
        %v976 = vld [vmem:[#allocation5 + $0xfe0] sm:$0xff]
        %v977 = vld [vmem:[#allocation5 + $0xfe8] sm:$0xff]
        %v978 = vld [vmem:[#allocation5 + $0xff0] sm:$0xff]
        %v979 = vld [vmem:[#allocation5 + $0xff8] sm:$0xff]
        %v980 = vld [vmem:[#allocation5 + $0x1000] sm:$0xff]
        %v981 = vld [vmem:[#allocation5 + $0x1008] sm:$0xff]
        %v982 = vld [vmem:[#allocation5 + $0x1010] sm:$0xff]
        %v983 = vld [vmem:[#allocation5 + $0x1018] sm:$0xff]
        %v984 = vld [vmem:[#allocation5 + $0x1020] sm:$0xff]
        %v985 = vld [vmem:[#allocation5 + $0x1028] sm:$0xff]
        %v986 = vld [vmem:[#allocation5 + $0x1030] sm:$0xff]
        %v987 = vld [vmem:[#allocation5 + $0x1038] sm:$0xff]
        %v988 = vld [vmem:[#allocation5 + $0x1040] sm:$0xff]
        %v989 = vld [vmem:[#allocation5 + $0x1048] sm:$0xff]
        %v990 = vld [vmem:[#allocation5 + $0x1050] sm:$0xff]
        %v991 = vld [vmem:[#allocation5 + $0x1058] sm:$0xff]
        %v992 = vld [vmem:[#allocation5 + $0x1060] sm:$0xff]
        %v993 = vld [vmem:[#allocation5 + $0x1068] sm:$0xff]
        %v994 = vld [vmem:[#allocation5 + $0x1070] sm:$0xff]
        %v995 = vld [vmem:[#allocation5 + $0x1078] sm:$0xff]
        %v996 = vld [vmem:[#allocation5 + $0x1080] sm:$0xff]
        %v997 = vld [vmem:[#allocation5 + $0x1088] sm:$0xff]
        %v998 = vld [vmem:[#allocation5 + $0x1090] sm:$0xff]
        %v999 = vld [vmem:[#allocation5 + $0x1098] sm:$0xff]
        %v1000 = vld [vmem:[#allocation5 + $0x10a0] sm:$0xff]
        %v1001 = vld [vmem:[#allocation5 + $0x10a8] sm:$0xff]
        %v1002 = vld [vmem:[#allocation5 + $0x10b0] sm:$0xff]
        %v1003 = vld [vmem:[#allocation5 + $0x10b8] sm:$0xff]
        %v1004 = vld [vmem:[#allocation5 + $0x10c0] sm:$0xff]
        %v1005 = vld [vmem:[#allocation5 + $0x10c8] sm:$0xff]
        %v1006 = vld [vmem:[#allocation5 + $0x10d0] sm:$0xff]
        %v1007 = vld [vmem:[#allocation5 + $0x10d8] sm:$0xff]
        %v1008 = vld [vmem:[#allocation5 + $0x10e0] sm:$0xff]
        %v1009 = vld [vmem:[#allocation5 + $0x10e8] sm:$0xff]
        %v1010 = vld [vmem:[#allocation5 + $0x10f0] sm:$0xff]
        %v1011 = vld [vmem:[#allocation5 + $0x10f8] sm:$0xff]
        %v1012 = vld [vmem:[#allocation5 + $0x1100] sm:$0xff]
        %v1013 = vld [vmem:[#allocation5 + $0x1108] sm:$0xff]
        %v1014 = vld [vmem:[#allocation5 + $0x1110] sm:$0xff]
        %v1015 = vld [vmem:[#allocation5 + $0x1118] sm:$0xff]
        %v1016 = vld [vmem:[#allocation5 + $0x1120] sm:$0xff]
        %v1017 = vld [vmem:[#allocation5 + $0x1128] sm:$0xff]
        %v1018 = vld [vmem:[#allocation5 + $0x1130] sm:$0xff]
        %v1019 = vld [vmem:[#allocation5 + $0x1138] sm:$0xff]
        %v1020 = vld [vmem:[#allocation5 + $0x1140] sm:$0xff]
        %v1021 = vld [vmem:[#allocation5 + $0x1148] sm:$0xff]
        %v1022 = vld [vmem:[#allocation5 + $0x1150] sm:$0xff]
        %v1023 = vld [vmem:[#allocation5 + $0x1158] sm:$0xff]
        %v1024 = vld [vmem:[#allocation5 + $0x1160] sm:$0xff]
        %v1025 = vld [vmem:[#allocation5 + $0x1168] sm:$0xff]
        %v1026 = vld [vmem:[#allocation5 + $0x1170] sm:$0xff]
        %v1027 = vld [vmem:[#allocation5 + $0x1178] sm:$0xff]
        %v1028 = vld [vmem:[#allocation5 + $0x1180] sm:$0xff]
        %v1029 = vld [vmem:[#allocation5 + $0x1188] sm:$0xff]
        %v1030 = vld [vmem:[#allocation5 + $0x1190] sm:$0xff]
        %v1031 = vld [vmem:[#allocation5 + $0x1198] sm:$0xff]
        %v1032 = vld [vmem:[#allocation5 + $0x11a0] sm:$0xff]
        %v1033 = vld [vmem:[#allocation5 + $0x11a8] sm:$0xff]
        %v1034 = vld [vmem:[#allocation5 + $0x11b0] sm:$0xff]
        %v1035 = vld [vmem:[#allocation5 + $0x11b8] sm:$0xff]
        %v1036 = vld [vmem:[#allocation5 + $0x11c0] sm:$0xff]
        %v1037 = vld [vmem:[#allocation5 + $0x11c8] sm:$0xff]
        %v1038 = vld [vmem:[#allocation5 + $0x11d0] sm:$0xff]
        %v1039 = vld [vmem:[#allocation5 + $0x11d8] sm:$0xff]
        %v1040 = vld [vmem:[#allocation5 + $0x11e0] sm:$0xff]
        %v1041 = vld [vmem:[#allocation5 + $0x11e8] sm:$0xff]
        %v1042 = vld [vmem:[#allocation5 + $0x11f0] sm:$0xff]
        %v1043 = vld [vmem:[#allocation5 + $0x11f8] sm:$0xff]
        %v1044 = vld [vmem:[#allocation7] sm:$0xff]
        %v1046 = vperm.slane %v1044, 0
        %v1047 = vperm.slane %v1044, 1
        %v1048 = vperm.slane %v1044, 2
        %v1049 = vperm.slane %v1044, 3
        %v1050 = vperm.slane %v1044, 4
        %v1051 = vperm.slane %v1044, 5
        %v1052 = vperm.slane %v1044, 6
        %v1053 = vperm.slane %v1044, 7
        %v1638 = vunpack.c.l.b16 %v468
        %v1639 = vunpack.c.h.b16 %v468
        %v1640 = vunpack.c.l.b16 %v469
        %v1641 = vunpack.c.h.b16 %v469
        %v1642 = vunpack.c.l.b16 %v470
        %v1643 = vunpack.c.h.b16 %v470
        %v1644 = vunpack.c.l.b16 %v471
        %v1645 = vunpack.c.h.b16 %v471
        %v1646 = vunpack.c.l.b16 %v472
        %v1647 = vunpack.c.h.b16 %v472
        %v1648 = vunpack.c.l.b16 %v473
        %v1649 = vunpack.c.h.b16 %v473
        %v1650 = vunpack.c.l.b16 %v474
        %v1651 = vunpack.c.h.b16 %v474
        %v1652 = vunpack.c.l.b16 %v475
        %v1653 = vunpack.c.h.b16 %v475
        %v1654 = vunpack.c.l.b16 %v476
        %v1655 = vunpack.c.h.b16 %v476
        %v1656 = vunpack.c.l.b16 %v477
        %v1657 = vunpack.c.h.b16 %v477
        %v1658 = vunpack.c.l.b16 %v478
        %v1659 = vunpack.c.h.b16 %v478
        %v1660 = vunpack.c.l.b16 %v479
        %v1661 = vunpack.c.h.b16 %v479
        %v1662 = vunpack.c.l.b16 %v480
        %v1663 = vunpack.c.h.b16 %v480
        %v1664 = vunpack.c.l.b16 %v481
        %v1665 = vunpack.c.h.b16 %v481
        %v1666 = vunpack.c.l.b16 %v482
        %v1667 = vunpack.c.h.b16 %v482
        %v1668 = vunpack.c.l.b16 %v483
        %v1669 = vunpack.c.h.b16 %v483
        %v1670 = vunpack.c.l.b16 %v484
        %v1671 = vunpack.c.h.b16 %v484
        %v1672 = vunpack.c.l.b16 %v485
        %v1673 = vunpack.c.h.b16 %v485
        %v1674 = vunpack.c.l.b16 %v486
        %v1675 = vunpack.c.h.b16 %v486
        %v1676 = vunpack.c.l.b16 %v487
        %v1677 = vunpack.c.h.b16 %v487
        %v1678 = vunpack.c.l.b16 %v488
        %v1679 = vunpack.c.h.b16 %v488
        %v1680 = vunpack.c.l.b16 %v489
        %v1681 = vunpack.c.h.b16 %v489
        %v1682 = vunpack.c.l.b16 %v490
        %v1683 = vunpack.c.h.b16 %v490
        %v1684 = vunpack.c.l.b16 %v491
        %v1685 = vunpack.c.h.b16 %v491
        %v1686 = vunpack.c.l.b16 %v492
        %v1687 = vunpack.c.h.b16 %v492
        %v1688 = vunpack.c.l.b16 %v493
        %v1689 = vunpack.c.h.b16 %v493
        %v1690 = vunpack.c.l.b16 %v494
        %v1691 = vunpack.c.h.b16 %v494
        %v1692 = vunpack.c.l.b16 %v495
        %v1693 = vunpack.c.h.b16 %v495
        %v1694 = vunpack.c.l.b16 %v496
        %v1695 = vunpack.c.h.b16 %v496
        %v1696 = vunpack.c.l.b16 %v497
        %v1697 = vunpack.c.h.b16 %v497
        %v1698 = vunpack.c.l.b16 %v498
        %v1699 = vunpack.c.h.b16 %v498
        %v1700 = vunpack.c.l.b16 %v499
        %v1701 = vunpack.c.h.b16 %v499
        %v1702 = vunpack.c.l.b16 %v500
        %v1703 = vunpack.c.h.b16 %v500
        %v1704 = vunpack.c.l.b16 %v501
        %v1705 = vunpack.c.h.b16 %v501
        %v1706 = vunpack.c.l.b16 %v502
        %v1707 = vunpack.c.h.b16 %v502
        %v1708 = vunpack.c.l.b16 %v503
        %v1709 = vunpack.c.h.b16 %v503
        %v1710 = vunpack.c.l.b16 %v504
        %v1711 = vunpack.c.h.b16 %v504
        %v1712 = vunpack.c.l.b16 %v505
        %v1713 = vunpack.c.h.b16 %v505
        %v1714 = vunpack.c.l.b16 %v506
        %v1715 = vunpack.c.h.b16 %v506
        %v1716 = vunpack.c.l.b16 %v507
        %v1717 = vunpack.c.h.b16 %v507
        %v1718 = vunpack.c.l.b16 %v508
        %v1719 = vunpack.c.h.b16 %v508
        %v1720 = vunpack.c.l.b16 %v509
        %v1721 = vunpack.c.h.b16 %v509
        %v1722 = vunpack.c.l.b16 %v510
        %v1723 = vunpack.c.h.b16 %v510
        %v1724 = vunpack.c.l.b16 %v511
        %v1725 = vunpack.c.h.b16 %v511
        %v1726 = vunpack.c.l.b16 %v512
        %v1727 = vunpack.c.h.b16 %v512
        %v1728 = vunpack.c.l.b16 %v513
        %v1729 = vunpack.c.h.b16 %v513
        %v1730 = vunpack.c.l.b16 %v514
        %v1731 = vunpack.c.h.b16 %v514
        %v1732 = vunpack.c.l.b16 %v515
        %v1733 = vunpack.c.h.b16 %v515
        %v1734 = vunpack.c.l.b16 %v516
        %v1735 = vunpack.c.h.b16 %v516
        %v1736 = vunpack.c.l.b16 %v517
        %v1737 = vunpack.c.h.b16 %v517
        %v1738 = vunpack.c.l.b16 %v518
        %v1739 = vunpack.c.h.b16 %v518
        %v1740 = vunpack.c.l.b16 %v519
        %v1741 = vunpack.c.h.b16 %v519
        %v1742 = vunpack.c.l.b16 %v520
        %v1743 = vunpack.c.h.b16 %v520
        %v1744 = vunpack.c.l.b16 %v521
        %v1745 = vunpack.c.h.b16 %v521
        %v1746 = vunpack.c.l.b16 %v522
        %v1747 = vunpack.c.h.b16 %v522
        %v1748 = vunpack.c.l.b16 %v523
        %v1749 = vunpack.c.h.b16 %v523
        %v1750 = vunpack.c.l.b16 %v524
        %v1751 = vunpack.c.h.b16 %v524
        %v1752 = vunpack.c.l.b16 %v525
        %v1753 = vunpack.c.h.b16 %v525
        %v1754 = vunpack.c.l.b16 %v526
        %v1755 = vunpack.c.h.b16 %v526
        %v1756 = vunpack.c.l.b16 %v527
        %v1757 = vunpack.c.h.b16 %v527
        %v1758 = vunpack.c.l.b16 %v528
        %v1759 = vunpack.c.h.b16 %v528
        %v1760 = vunpack.c.l.b16 %v529
        %v1761 = vunpack.c.h.b16 %v529
        %v1762 = vunpack.c.l.b16 %v530
        %v1763 = vunpack.c.h.b16 %v530
        %v1764 = vunpack.c.l.b16 %v531
        %v1765 = vunpack.c.h.b16 %v531
        %v1766 = vunpack.c.l.b16 %v532
        %v1767 = vunpack.c.h.b16 %v532
        %v1768 = vunpack.c.l.b16 %v533
        %v1769 = vunpack.c.h.b16 %v533
        %v1770 = vunpack.c.l.b16 %v534
        %v1771 = vunpack.c.h.b16 %v534
        %v1772 = vunpack.c.l.b16 %v535
        %v1773 = vunpack.c.h.b16 %v535
        %v1774 = vunpack.c.l.b16 %v536
        %v1775 = vunpack.c.h.b16 %v536
        %v1776 = vunpack.c.l.b16 %v537
        %v1777 = vunpack.c.h.b16 %v537
        %v1778 = vunpack.c.l.b16 %v538
        %v1779 = vunpack.c.h.b16 %v538
        %v1780 = vunpack.c.l.b16 %v539
        %v1781 = vunpack.c.h.b16 %v539
        %v1782 = vunpack.c.l.b16 %v540
        %v1783 = vunpack.c.h.b16 %v540
        %v1784 = vunpack.c.l.b16 %v541
        %v1785 = vunpack.c.h.b16 %v541
        %v1786 = vunpack.c.l.b16 %v542
        %v1787 = vunpack.c.h.b16 %v542
        %v1788 = vunpack.c.l.b16 %v543
        %v1789 = vunpack.c.h.b16 %v543
        %v1790 = vunpack.c.l.b16 %v544
        %v1791 = vunpack.c.h.b16 %v544
        %v1792 = vunpack.c.l.b16 %v545
        %v1793 = vunpack.c.h.b16 %v545
        %v1794 = vunpack.c.l.b16 %v546
        %v1795 = vunpack.c.h.b16 %v546
        %v1796 = vunpack.c.l.b16 %v547
        %v1797 = vunpack.c.h.b16 %v547
        %v1798 = vunpack.c.l.b16 %v548
        %v1799 = vunpack.c.h.b16 %v548
        %v1800 = vunpack.c.l.b16 %v549
        %v1801 = vunpack.c.h.b16 %v549
        %v1802 = vunpack.c.l.b16 %v550
        %v1803 = vunpack.c.h.b16 %v550
        %v1804 = vunpack.c.l.b16 %v551
        %v1805 = vunpack.c.h.b16 %v551
        %v1806 = vunpack.c.l.b16 %v552
        %v1807 = vunpack.c.h.b16 %v552
        %v1808 = vunpack.c.l.b16 %v553
        %v1809 = vunpack.c.h.b16 %v553
        %v1810 = vunpack.c.l.b16 %v554
        %v1811 = vunpack.c.h.b16 %v554
        %v1812 = vunpack.c.l.b16 %v555
        %v1813 = vunpack.c.h.b16 %v555
        %v1814 = vunpack.c.l.b16 %v556
        %v1815 = vunpack.c.h.b16 %v556
        %v1816 = vunpack.c.l.b16 %v557
        %v1817 = vunpack.c.h.b16 %v557
        %v1818 = vunpack.c.l.b16 %v558
        %v1819 = vunpack.c.h.b16 %v558
        %v1820 = vunpack.c.l.b16 %v559
        %v1821 = vunpack.c.h.b16 %v559
        %v1822 = vunpack.c.l.b16 %v560
        %v1823 = vunpack.c.h.b16 %v560
        %v1824 = vunpack.c.l.b16 %v561
        %v1825 = vunpack.c.h.b16 %v561
        %v1826 = vunpack.c.l.b16 %v562
        %v1827 = vunpack.c.h.b16 %v562
        %v1828 = vunpack.c.l.b16 %v563
        %v1829 = vunpack.c.h.b16 %v563
        %v1830 = vunpack.c.l.b16 %v564
        %v1831 = vunpack.c.h.b16 %v564
        %v1832 = vunpack.c.l.b16 %v565
        %v1833 = vunpack.c.h.b16 %v565
        %v1834 = vunpack.c.l.b16 %v566
        %v1835 = vunpack.c.h.b16 %v566
        %v1836 = vunpack.c.l.b16 %v567
        %v1837 = vunpack.c.h.b16 %v567
        %v1838 = vunpack.c.l.b16 %v568
        %v1839 = vunpack.c.h.b16 %v568
        %v1840 = vunpack.c.l.b16 %v569
        %v1841 = vunpack.c.h.b16 %v569
        %v1842 = vunpack.c.l.b16 %v570
        %v1843 = vunpack.c.h.b16 %v570
        %v1844 = vunpack.c.l.b16 %v571
        %v1845 = vunpack.c.h.b16 %v571
        %v1846 = vunpack.c.l.b16 %v572
        %v1847 = vunpack.c.h.b16 %v572
        %v1848 = vunpack.c.l.b16 %v573
        %v1849 = vunpack.c.h.b16 %v573
        %v1850 = vunpack.c.l.b16 %v574
        %v1851 = vunpack.c.h.b16 %v574
        %v1852 = vunpack.c.l.b16 %v575
        %v1853 = vunpack.c.h.b16 %v575
        %v1854 = vunpack.c.l.b16 %v576
        %v1855 = vunpack.c.h.b16 %v576
        %v1856 = vunpack.c.l.b16 %v577
        %v1857 = vunpack.c.h.b16 %v577
        %v1858 = vunpack.c.l.b16 %v578
        %v1859 = vunpack.c.h.b16 %v578
        %v1860 = vunpack.c.l.b16 %v579
        %v1861 = vunpack.c.h.b16 %v579
        %v1862 = vunpack.c.l.b16 %v580
        %v1863 = vunpack.c.h.b16 %v580
        %v1864 = vunpack.c.l.b16 %v581
        %v1865 = vunpack.c.h.b16 %v581
        %v1866 = vunpack.c.l.b16 %v582
        %v1867 = vunpack.c.h.b16 %v582
        %v1868 = vunpack.c.l.b16 %v583
        %v1869 = vunpack.c.h.b16 %v583
        %v1870 = vunpack.c.l.b16 %v584
        %v1871 = vunpack.c.h.b16 %v584
        %v1872 = vunpack.c.l.b16 %v585
        %v1873 = vunpack.c.h.b16 %v585
        %v1874 = vunpack.c.l.b16 %v586
        %v1875 = vunpack.c.h.b16 %v586
        %v1876 = vunpack.c.l.b16 %v587
        %v1877 = vunpack.c.h.b16 %v587
        %v1878 = vunpack.c.l.b16 %v588
        %v1879 = vunpack.c.h.b16 %v588
        %v1880 = vunpack.c.l.b16 %v589
        %v1881 = vunpack.c.h.b16 %v589
        %v1882 = vunpack.c.l.b16 %v590
        %v1883 = vunpack.c.h.b16 %v590
        %v1884 = vunpack.c.l.b16 %v591
        %v1885 = vunpack.c.h.b16 %v591
        %v1886 = vunpack.c.l.b16 %v592
        %v1887 = vunpack.c.h.b16 %v592
        %v1888 = vunpack.c.l.b16 %v593
        %v1889 = vunpack.c.h.b16 %v593
        %v1890 = vunpack.c.l.b16 %v594
        %v1891 = vunpack.c.h.b16 %v594
        %v1892 = vunpack.c.l.b16 %v595
        %v1893 = vunpack.c.h.b16 %v595
        %v1894 = vunpack.c.l.b16 %v596
        %v1895 = vunpack.c.h.b16 %v596
        %v1896 = vunpack.c.l.b16 %v597
        %v1897 = vunpack.c.h.b16 %v597
        %v1898 = vunpack.c.l.b16 %v598
        %v1899 = vunpack.c.h.b16 %v598
        %v1900 = vunpack.c.l.b16 %v599
        %v1901 = vunpack.c.h.b16 %v599
        %v1902 = vunpack.c.l.b16 %v600
        %v1903 = vunpack.c.h.b16 %v600
        %v1904 = vunpack.c.l.b16 %v601
        %v1905 = vunpack.c.h.b16 %v601
        %v1906 = vunpack.c.l.b16 %v602
        %v1907 = vunpack.c.h.b16 %v602
        %v1908 = vunpack.c.l.b16 %v603
        %v1909 = vunpack.c.h.b16 %v603
        %v1910 = vunpack.c.l.b16 %v604
        %v1911 = vunpack.c.h.b16 %v604
        %v1912 = vunpack.c.l.b16 %v605
        %v1913 = vunpack.c.h.b16 %v605
        %v1914 = vunpack.c.l.b16 %v606
        %v1915 = vunpack.c.h.b16 %v606
        %v1916 = vunpack.c.l.b16 %v607
        %v1917 = vunpack.c.h.b16 %v607
        %v1918 = vunpack.c.l.b16 %v608
        %v1919 = vunpack.c.h.b16 %v608
        %v1920 = vunpack.c.l.b16 %v609
        %v1921 = vunpack.c.h.b16 %v609
        %v1922 = vunpack.c.l.b16 %v610
        %v1923 = vunpack.c.h.b16 %v610
        %v1924 = vunpack.c.l.b16 %v611
        %v1925 = vunpack.c.h.b16 %v611
        %v1926 = vunpack.c.l.b16 %v612
        %v1927 = vunpack.c.h.b16 %v612
        %v1928 = vunpack.c.l.b16 %v613
        %v1929 = vunpack.c.h.b16 %v613
        %v1930 = vunpack.c.l.b16 %v614
        %v1931 = vunpack.c.h.b16 %v614
        %v1932 = vunpack.c.l.b16 %v615
        %v1933 = vunpack.c.h.b16 %v615
        %v1934 = vunpack.c.l.b16 %v616
        %v1935 = vunpack.c.h.b16 %v616
        %v1936 = vunpack.c.l.b16 %v617
        %v1937 = vunpack.c.h.b16 %v617
        %v1938 = vunpack.c.l.b16 %v618
        %v1939 = vunpack.c.h.b16 %v618
        %v1940 = vunpack.c.l.b16 %v619
        %v1941 = vunpack.c.h.b16 %v619
        %v1942 = vunpack.c.l.b16 %v620
        %v1943 = vunpack.c.h.b16 %v620
        %v1944 = vunpack.c.l.b16 %v621
        %v1945 = vunpack.c.h.b16 %v621
        %v1946 = vunpack.c.l.b16 %v622
        %v1947 = vunpack.c.h.b16 %v622
        %v1948 = vunpack.c.l.b16 %v623
        %v1949 = vunpack.c.h.b16 %v623
        %v1950 = vunpack.c.l.b16 %v624
        %v1951 = vunpack.c.h.b16 %v624
        %v1952 = vunpack.c.l.b16 %v625
        %v1953 = vunpack.c.h.b16 %v625
        %v1954 = vunpack.c.l.b16 %v626
        %v1955 = vunpack.c.h.b16 %v626
        %v1956 = vunpack.c.l.b16 %v627
        %v1957 = vunpack.c.h.b16 %v627
        %v1958 = vunpack.c.l.b16 %v628
        %v1959 = vunpack.c.h.b16 %v628
        %v1960 = vunpack.c.l.b16 %v629
        %v1961 = vunpack.c.h.b16 %v629
        %v1962 = vunpack.c.l.b16 %v630
        %v1963 = vunpack.c.h.b16 %v630
        %v1964 = vunpack.c.l.b16 %v631
        %v1965 = vunpack.c.h.b16 %v631
        %v1966 = vunpack.c.l.b16 %v632
        %v1967 = vunpack.c.h.b16 %v632
        %v1968 = vunpack.c.l.b16 %v633
        %v1969 = vunpack.c.h.b16 %v633
        %v1970 = vunpack.c.l.b16 %v634
        %v1971 = vunpack.c.h.b16 %v634
        %v1972 = vunpack.c.l.b16 %v635
        %v1973 = vunpack.c.h.b16 %v635
        %v1974 = vunpack.c.l.b16 %v636
        %v1975 = vunpack.c.h.b16 %v636
        %v1976 = vunpack.c.l.b16 %v637
        %v1977 = vunpack.c.h.b16 %v637
        %v1978 = vunpack.c.l.b16 %v638
        %v1979 = vunpack.c.h.b16 %v638
        %v1980 = vunpack.c.l.b16 %v639
        %v1981 = vunpack.c.h.b16 %v639
        %v1982 = vunpack.c.l.b16 %v640
        %v1983 = vunpack.c.h.b16 %v640
        %v1984 = vunpack.c.l.b16 %v641
        %v1985 = vunpack.c.h.b16 %v641
        %v1986 = vunpack.c.l.b16 %v642
        %v1987 = vunpack.c.h.b16 %v642
        %v1988 = vunpack.c.l.b16 %v643
        %v1989 = vunpack.c.h.b16 %v643
        %v1990 = vunpack.c.l.b16 %v644
        %v1991 = vunpack.c.h.b16 %v644
        %v1992 = vunpack.c.l.b16 %v645
        %v1993 = vunpack.c.h.b16 %v645
        %v1994 = vunpack.c.l.b16 %v646
        %v1995 = vunpack.c.h.b16 %v646
        %v1996 = vunpack.c.l.b16 %v647
        %v1997 = vunpack.c.h.b16 %v647
        %v1998 = vunpack.c.l.b16 %v648
        %v1999 = vunpack.c.h.b16 %v648
        %v2000 = vunpack.c.l.b16 %v649
        %v2001 = vunpack.c.h.b16 %v649
        %v2002 = vunpack.c.l.b16 %v650
        %v2003 = vunpack.c.h.b16 %v650
        %v2004 = vunpack.c.l.b16 %v651
        %v2005 = vunpack.c.h.b16 %v651
        %v2006 = vunpack.c.l.b16 %v652
        %v2007 = vunpack.c.h.b16 %v652
        %v2008 = vunpack.c.l.b16 %v653
        %v2009 = vunpack.c.h.b16 %v653
        %v2010 = vunpack.c.l.b16 %v654
        %v2011 = vunpack.c.h.b16 %v654
        %v2012 = vunpack.c.l.b16 %v655
        %v2013 = vunpack.c.h.b16 %v655
        %v2014 = vunpack.c.l.b16 %v656
        %v2015 = vunpack.c.h.b16 %v656
        %v2016 = vunpack.c.l.b16 %v657
        %v2017 = vunpack.c.h.b16 %v657
        %v2018 = vunpack.c.l.b16 %v658
        %v2019 = vunpack.c.h.b16 %v658
        %v2020 = vunpack.c.l.b16 %v659
        %v2021 = vunpack.c.h.b16 %v659
        %v2022 = vunpack.c.l.b16 %v660
        %v2023 = vunpack.c.h.b16 %v660
        %v2024 = vunpack.c.l.b16 %v661
        %v2025 = vunpack.c.h.b16 %v661
        %v2026 = vunpack.c.l.b16 %v662
        %v2027 = vunpack.c.h.b16 %v662
        %v2028 = vunpack.c.l.b16 %v663
        %v2029 = vunpack.c.h.b16 %v663
        %v2030 = vunpack.c.l.b16 %v664
        %v2031 = vunpack.c.h.b16 %v664
        %v2032 = vunpack.c.l.b16 %v665
        %v2033 = vunpack.c.h.b16 %v665
        %v2034 = vunpack.c.l.b16 %v666
        %v2035 = vunpack.c.h.b16 %v666
        %v2036 = vunpack.c.l.b16 %v667
        %v2037 = vunpack.c.h.b16 %v667
        %v2038 = vunpack.c.l.b16 %v668
        %v2039 = vunpack.c.h.b16 %v668
        %v2040 = vunpack.c.l.b16 %v669
        %v2041 = vunpack.c.h.b16 %v669
        %v2042 = vunpack.c.l.b16 %v670
        %v2043 = vunpack.c.h.b16 %v670
        %v2044 = vunpack.c.l.b16 %v671
        %v2045 = vunpack.c.h.b16 %v671
        %v2046 = vunpack.c.l.b16 %v672
        %v2047 = vunpack.c.h.b16 %v672
        %v2048 = vunpack.c.l.b16 %v673
        %v2049 = vunpack.c.h.b16 %v673
        %v2050 = vunpack.c.l.b16 %v674
        %v2051 = vunpack.c.h.b16 %v674
        %v2052 = vunpack.c.l.b16 %v675
        %v2053 = vunpack.c.h.b16 %v675
        %v2054 = vunpack.c.l.b16 %v676
        %v2055 = vunpack.c.h.b16 %v676
        %v2056 = vunpack.c.l.b16 %v677
        %v2057 = vunpack.c.h.b16 %v677
        %v2058 = vunpack.c.l.b16 %v678
        %v2059 = vunpack.c.h.b16 %v678
        %v2060 = vunpack.c.l.b16 %v679
        %v2061 = vunpack.c.h.b16 %v679
        %v2062 = vunpack.c.l.b16 %v680
        %v2063 = vunpack.c.h.b16 %v680
        %v2064 = vunpack.c.l.b16 %v681
        %v2065 = vunpack.c.h.b16 %v681
        %v2066 = vunpack.c.l.b16 %v682
        %v2067 = vunpack.c.h.b16 %v682
        %v2068 = vunpack.c.l.b16 %v683
        %v2069 = vunpack.c.h.b16 %v683
        %v2070 = vunpack.c.l.b16 %v684
        %v2071 = vunpack.c.h.b16 %v684
        %v2072 = vunpack.c.l.b16 %v685
        %v2073 = vunpack.c.h.b16 %v685
        %v2074 = vunpack.c.l.b16 %v686
        %v2075 = vunpack.c.h.b16 %v686
        %v2076 = vunpack.c.l.b16 %v687
        %v2077 = vunpack.c.h.b16 %v687
        %v2078 = vunpack.c.l.b16 %v688
        %v2079 = vunpack.c.h.b16 %v688
        %v2080 = vunpack.c.l.b16 %v689
        %v2081 = vunpack.c.h.b16 %v689
        %v2082 = vunpack.c.l.b16 %v690
        %v2083 = vunpack.c.h.b16 %v690
        %v2084 = vunpack.c.l.b16 %v691
        %v2085 = vunpack.c.h.b16 %v691
        %v2086 = vunpack.c.l.b16 %v692
        %v2087 = vunpack.c.h.b16 %v692
        %v2088 = vunpack.c.l.b16 %v693
        %v2089 = vunpack.c.h.b16 %v693
        %v2090 = vunpack.c.l.b16 %v694
        %v2091 = vunpack.c.h.b16 %v694
        %v2092 = vunpack.c.l.b16 %v695
        %v2093 = vunpack.c.h.b16 %v695
        %v2094 = vunpack.c.l.b16 %v696
        %v2095 = vunpack.c.h.b16 %v696
        %v2096 = vunpack.c.l.b16 %v697
        %v2097 = vunpack.c.h.b16 %v697
        %v2098 = vunpack.c.l.b16 %v698
        %v2099 = vunpack.c.h.b16 %v698
        %v2100 = vunpack.c.l.b16 %v699
        %v2101 = vunpack.c.h.b16 %v699
        %v2102 = vunpack.c.l.b16 %v700
        %v2103 = vunpack.c.h.b16 %v700
        %v2104 = vunpack.c.l.b16 %v701
        %v2105 = vunpack.c.h.b16 %v701
        %v2106 = vunpack.c.l.b16 %v702
        %v2107 = vunpack.c.h.b16 %v702
        %v2108 = vunpack.c.l.b16 %v703
        %v2109 = vunpack.c.h.b16 %v703
        %v2110 = vunpack.c.l.b16 %v704
        %v2111 = vunpack.c.h.b16 %v704
        %v2112 = vunpack.c.l.b16 %v705
        %v2113 = vunpack.c.h.b16 %v705
        %v2114 = vunpack.c.l.b16 %v706
        %v2115 = vunpack.c.h.b16 %v706
        %v2116 = vunpack.c.l.b16 %v707
        %v2117 = vunpack.c.h.b16 %v707
        %v2118 = vunpack.c.l.b16 %v708
        %v2119 = vunpack.c.h.b16 %v708
        %v2120 = vunpack.c.l.b16 %v709
        %v2121 = vunpack.c.h.b16 %v709
        %v2122 = vunpack.c.l.b16 %v710
        %v2123 = vunpack.c.h.b16 %v710
        %v2124 = vunpack.c.l.b16 %v711
        %v2125 = vunpack.c.h.b16 %v711
        %v2126 = vunpack.c.l.b16 %v712
        %v2127 = vunpack.c.h.b16 %v712
        %v2128 = vunpack.c.l.b16 %v713
        %v2129 = vunpack.c.h.b16 %v713
        %v2130 = vunpack.c.l.b16 %v714
        %v2131 = vunpack.c.h.b16 %v714
        %v2132 = vunpack.c.l.b16 %v715
        %v2133 = vunpack.c.h.b16 %v715
        %v2134 = vunpack.c.l.b16 %v716
        %v2135 = vunpack.c.h.b16 %v716
        %v2136 = vunpack.c.l.b16 %v717
        %v2137 = vunpack.c.h.b16 %v717
        %v2138 = vunpack.c.l.b16 %v718
        %v2139 = vunpack.c.h.b16 %v718
        %v2140 = vunpack.c.l.b16 %v719
        %v2141 = vunpack.c.h.b16 %v719
        %v2142 = vunpack.c.l.b16 %v720
        %v2143 = vunpack.c.h.b16 %v720
        %v2144 = vunpack.c.l.b16 %v721
        %v2145 = vunpack.c.h.b16 %v721
        %v2146 = vunpack.c.l.b16 %v722
        %v2147 = vunpack.c.h.b16 %v722
        %v2148 = vunpack.c.l.b16 %v723
        %v2149 = vunpack.c.h.b16 %v723
        %v2150 = vunpack.c.l.b16 %v724
        %v2151 = vunpack.c.h.b16 %v724
        %v2152 = vunpack.c.l.b16 %v725
        %v2153 = vunpack.c.h.b16 %v725
        %v2154 = vunpack.c.l.b16 %v726
        %v2155 = vunpack.c.h.b16 %v726
        %v2156 = vunpack.c.l.b16 %v727
        %v2157 = vunpack.c.h.b16 %v727
        %v2158 = vunpack.c.l.b16 %v728
        %v2159 = vunpack.c.h.b16 %v728
        %v2160 = vunpack.c.l.b16 %v729
        %v2161 = vunpack.c.h.b16 %v729
        %v2162 = vunpack.c.l.b16 %v730
        %v2163 = vunpack.c.h.b16 %v730
        %v2164 = vunpack.c.l.b16 %v731
        %v2165 = vunpack.c.h.b16 %v731
        %v2166 = vunpack.c.l.b16 %v732
        %v2167 = vunpack.c.h.b16 %v732
        %v2168 = vunpack.c.l.b16 %v733
        %v2169 = vunpack.c.h.b16 %v733
        %v2170 = vunpack.c.l.b16 %v734
        %v2171 = vunpack.c.h.b16 %v734
        %v2172 = vunpack.c.l.b16 %v735
        %v2173 = vunpack.c.h.b16 %v735
        %v2174 = vunpack.c.l.b16 %v736
        %v2175 = vunpack.c.h.b16 %v736
        %v2176 = vunpack.c.l.b16 %v737
        %v2177 = vunpack.c.h.b16 %v737
        %v2178 = vunpack.c.l.b16 %v738
        %v2179 = vunpack.c.h.b16 %v738
        %v2180 = vunpack.c.l.b16 %v739
        %v2181 = vunpack.c.h.b16 %v739
        %v2182 = vunpack.c.l.b16 %v740
        %v2183 = vunpack.c.h.b16 %v740
        %v2184 = vunpack.c.l.b16 %v741
        %v2185 = vunpack.c.h.b16 %v741
        %v2186 = vunpack.c.l.b16 %v742
        %v2187 = vunpack.c.h.b16 %v742
        %v2188 = vunpack.c.l.b16 %v743
        %v2189 = vunpack.c.h.b16 %v743
        %v2190 = vunpack.c.l.b16 %v744
        %v2191 = vunpack.c.h.b16 %v744
        %v2192 = vunpack.c.l.b16 %v745
        %v2193 = vunpack.c.h.b16 %v745
        %v2194 = vunpack.c.l.b16 %v746
        %v2195 = vunpack.c.h.b16 %v746
        %v2196 = vunpack.c.l.b16 %v747
        %v2197 = vunpack.c.h.b16 %v747
        %v2198 = vunpack.c.l.b16 %v748
        %v2199 = vunpack.c.h.b16 %v748
        %v2200 = vunpack.c.l.b16 %v749
        %v2201 = vunpack.c.h.b16 %v749
        %v2202 = vunpack.c.l.b16 %v750
        %v2203 = vunpack.c.h.b16 %v750
        %v2204 = vunpack.c.l.b16 %v751
        %v2205 = vunpack.c.h.b16 %v751
        %v2206 = vunpack.c.l.b16 %v752
        %v2207 = vunpack.c.h.b16 %v752
        %v2208 = vunpack.c.l.b16 %v753
        %v2209 = vunpack.c.h.b16 %v753
        %v2210 = vunpack.c.l.b16 %v754
        %v2211 = vunpack.c.h.b16 %v754
        %v2212 = vunpack.c.l.b16 %v755
        %v2213 = vunpack.c.h.b16 %v755
        %v2214 = vunpack.c.l.b16 %v756
        %v2215 = vunpack.c.h.b16 %v756
        %v2216 = vunpack.c.l.b16 %v757
        %v2217 = vunpack.c.h.b16 %v757
        %v2218 = vunpack.c.l.b16 %v758
        %v2219 = vunpack.c.h.b16 %v758
        %v2220 = vunpack.c.l.b16 %v759
        %v2221 = vunpack.c.h.b16 %v759
        %v2222 = vunpack.c.l.b16 %v760
        %v2223 = vunpack.c.h.b16 %v760
        %v2224 = vunpack.c.l.b16 %v761
        %v2225 = vunpack.c.h.b16 %v761
        %v2226 = vunpack.c.l.b16 %v762
        %v2227 = vunpack.c.h.b16 %v762
        %v2228 = vunpack.c.l.b16 %v763
        %v2229 = vunpack.c.h.b16 %v763
        %v2230 = vunpack.c.l.b16 %v764
        %v2231 = vunpack.c.h.b16 %v764
        %v2232 = vunpack.c.l.b16 %v765
        %v2233 = vunpack.c.h.b16 %v765
        %v2234 = vunpack.c.l.b16 %v766
        %v2235 = vunpack.c.h.b16 %v766
        %v2236 = vunpack.c.l.b16 %v767
        %v2237 = vunpack.c.h.b16 %v767
        %v2238 = vunpack.c.l.b16 %v768
        %v2239 = vunpack.c.h.b16 %v768
        %v2240 = vunpack.c.l.b16 %v769
        %v2241 = vunpack.c.h.b16 %v769
        %v2242 = vunpack.c.l.b16 %v770
        %v2243 = vunpack.c.h.b16 %v770
        %v2244 = vunpack.c.l.b16 %v771
        %v2245 = vunpack.c.h.b16 %v771
        %v2246 = vunpack.c.l.b16 %v772
        %v2247 = vunpack.c.h.b16 %v772
        %v2248 = vunpack.c.l.b16 %v773
        %v2249 = vunpack.c.h.b16 %v773
        %v2250 = vunpack.c.l.b16 %v774
        %v2251 = vunpack.c.h.b16 %v774
        %v2252 = vunpack.c.l.b16 %v775
        %v2253 = vunpack.c.h.b16 %v775
        %v2254 = vunpack.c.l.b16 %v776
        %v2255 = vunpack.c.h.b16 %v776
        %v2256 = vunpack.c.l.b16 %v777
        %v2257 = vunpack.c.h.b16 %v777
        %v2258 = vunpack.c.l.b16 %v778
        %v2259 = vunpack.c.h.b16 %v778
        %v2260 = vunpack.c.l.b16 %v779
        %v2261 = vunpack.c.h.b16 %v779
        %v2262 = vunpack.c.l.b16 %v780
        %v2263 = vunpack.c.h.b16 %v780
        %v2264 = vunpack.c.l.b16 %v781
        %v2265 = vunpack.c.h.b16 %v781
        %v2266 = vunpack.c.l.b16 %v782
        %v2267 = vunpack.c.h.b16 %v782
        %v2268 = vunpack.c.l.b16 %v783
        %v2269 = vunpack.c.h.b16 %v783
        %v2270 = vunpack.c.l.b16 %v784
        %v2271 = vunpack.c.h.b16 %v784
        %v2272 = vunpack.c.l.b16 %v785
        %v2273 = vunpack.c.h.b16 %v785
        %v2274 = vunpack.c.l.b16 %v786
        %v2275 = vunpack.c.h.b16 %v786
        %v2276 = vunpack.c.l.b16 %v787
        %v2277 = vunpack.c.h.b16 %v787
        %v2278 = vunpack.c.l.b16 %v788
        %v2279 = vunpack.c.h.b16 %v788
        %v2280 = vunpack.c.l.b16 %v789
        %v2281 = vunpack.c.h.b16 %v789
        %v2282 = vunpack.c.l.b16 %v790
        %v2283 = vunpack.c.h.b16 %v790
        %v2284 = vunpack.c.l.b16 %v791
        %v2285 = vunpack.c.h.b16 %v791
        %v2286 = vunpack.c.l.b16 %v792
        %v2287 = vunpack.c.h.b16 %v792
        %v2288 = vunpack.c.l.b16 %v793
        %v2289 = vunpack.c.h.b16 %v793
        %v2290 = vunpack.c.l.b16 %v794
        %v2291 = vunpack.c.h.b16 %v794
        %v2292 = vunpack.c.l.b16 %v795
        %v2293 = vunpack.c.h.b16 %v795
        %v2294 = vunpack.c.l.b16 %v796
        %v2295 = vunpack.c.h.b16 %v796
        %v2296 = vunpack.c.l.b16 %v797
        %v2297 = vunpack.c.h.b16 %v797
        %v2298 = vunpack.c.l.b16 %v798
        %v2299 = vunpack.c.h.b16 %v798
        %v2300 = vunpack.c.l.b16 %v799
        %v2301 = vunpack.c.h.b16 %v799
        %v2302 = vunpack.c.l.b16 %v800
        %v2303 = vunpack.c.h.b16 %v800
        %v2304 = vunpack.c.l.b16 %v801
        %v2305 = vunpack.c.h.b16 %v801
        %v2306 = vunpack.c.l.b16 %v802
        %v2307 = vunpack.c.h.b16 %v802
        %v2308 = vunpack.c.l.b16 %v803
        %v2309 = vunpack.c.h.b16 %v803
        %v2310 = vunpack.c.l.b16 %v804
        %v2311 = vunpack.c.h.b16 %v804
        %v2312 = vunpack.c.l.b16 %v805
        %v2313 = vunpack.c.h.b16 %v805
        %v2314 = vunpack.c.l.b16 %v806
        %v2315 = vunpack.c.h.b16 %v806
        %v2316 = vunpack.c.l.b16 %v807
        %v2317 = vunpack.c.h.b16 %v807
        %v2318 = vunpack.c.l.b16 %v808
        %v2319 = vunpack.c.h.b16 %v808
        %v2320 = vunpack.c.l.b16 %v809
        %v2321 = vunpack.c.h.b16 %v809
        %v2322 = vunpack.c.l.b16 %v810
        %v2323 = vunpack.c.h.b16 %v810
        %v2324 = vunpack.c.l.b16 %v811
        %v2325 = vunpack.c.h.b16 %v811
        %v2326 = vunpack.c.l.b16 %v812
        %v2327 = vunpack.c.h.b16 %v812
        %v2328 = vunpack.c.l.b16 %v813
        %v2329 = vunpack.c.h.b16 %v813
        %v2330 = vunpack.c.l.b16 %v814
        %v2331 = vunpack.c.h.b16 %v814
        %v2332 = vunpack.c.l.b16 %v815
        %v2333 = vunpack.c.h.b16 %v815
        %v2334 = vunpack.c.l.b16 %v816
        %v2335 = vunpack.c.h.b16 %v816
        %v2336 = vunpack.c.l.b16 %v817
        %v2337 = vunpack.c.h.b16 %v817
        %v2338 = vunpack.c.l.b16 %v818
        %v2339 = vunpack.c.h.b16 %v818
        %v2340 = vunpack.c.l.b16 %v819
        %v2341 = vunpack.c.h.b16 %v819
        %v2342 = vunpack.c.l.b16 %v820
        %v2343 = vunpack.c.h.b16 %v820
        %v2344 = vunpack.c.l.b16 %v821
        %v2345 = vunpack.c.h.b16 %v821
        %v2346 = vunpack.c.l.b16 %v822
        %v2347 = vunpack.c.h.b16 %v822
        %v2348 = vunpack.c.l.b16 %v823
        %v2349 = vunpack.c.h.b16 %v823
        %v2350 = vunpack.c.l.b16 %v824
        %v2351 = vunpack.c.h.b16 %v824
        %v2352 = vunpack.c.l.b16 %v825
        %v2353 = vunpack.c.h.b16 %v825
        %v2354 = vunpack.c.l.b16 %v826
        %v2355 = vunpack.c.h.b16 %v826
        %v2356 = vunpack.c.l.b16 %v827
        %v2357 = vunpack.c.h.b16 %v827
        %v2358 = vunpack.c.l.b16 %v828
        %v2359 = vunpack.c.h.b16 %v828
        %v2360 = vunpack.c.l.b16 %v829
        %v2361 = vunpack.c.h.b16 %v829
        %v2362 = vunpack.c.l.b16 %v830
        %v2363 = vunpack.c.h.b16 %v830
        %v2364 = vunpack.c.l.b16 %v831
        %v2365 = vunpack.c.h.b16 %v831
        %v2366 = vunpack.c.l.b16 %v832
        %v2367 = vunpack.c.h.b16 %v832
        %v2368 = vunpack.c.l.b16 %v833
        %v2369 = vunpack.c.h.b16 %v833
        %v2370 = vunpack.c.l.b16 %v834
        %v2371 = vunpack.c.h.b16 %v834
        %v2372 = vunpack.c.l.b16 %v835
        %v2373 = vunpack.c.h.b16 %v835
        %v2374 = vunpack.c.l.b16 %v836
        %v2375 = vunpack.c.h.b16 %v836
        %v2376 = vunpack.c.l.b16 %v837
        %v2377 = vunpack.c.h.b16 %v837
        %v2378 = vunpack.c.l.b16 %v838
        %v2379 = vunpack.c.h.b16 %v838
        %v2380 = vunpack.c.l.b16 %v839
        %v2381 = vunpack.c.h.b16 %v839
        %v2382 = vunpack.c.l.b16 %v840
        %v2383 = vunpack.c.h.b16 %v840
        %v2384 = vunpack.c.l.b16 %v841
        %v2385 = vunpack.c.h.b16 %v841
        %v2386 = vunpack.c.l.b16 %v842
        %v2387 = vunpack.c.h.b16 %v842
        %v2388 = vunpack.c.l.b16 %v843
        %v2389 = vunpack.c.h.b16 %v843
        %v2390 = vunpack.c.l.b16 %v844
        %v2391 = vunpack.c.h.b16 %v844
        %v2392 = vunpack.c.l.b16 %v845
        %v2393 = vunpack.c.h.b16 %v845
        %v2394 = vunpack.c.l.b16 %v846
        %v2395 = vunpack.c.h.b16 %v846
        %v2396 = vunpack.c.l.b16 %v847
        %v2397 = vunpack.c.h.b16 %v847
        %v2398 = vunpack.c.l.b16 %v848
        %v2399 = vunpack.c.h.b16 %v848
        %v2400 = vunpack.c.l.b16 %v849
        %v2401 = vunpack.c.h.b16 %v849
        %v2402 = vunpack.c.l.b16 %v850
        %v2403 = vunpack.c.h.b16 %v850
        %v2404 = vunpack.c.l.b16 %v851
        %v2405 = vunpack.c.h.b16 %v851
        %v2406 = vunpack.c.l.b16 %v852
        %v2407 = vunpack.c.h.b16 %v852
        %v2408 = vunpack.c.l.b16 %v853
        %v2409 = vunpack.c.h.b16 %v853
        %v2410 = vunpack.c.l.b16 %v854
        %v2411 = vunpack.c.h.b16 %v854
        %v2412 = vunpack.c.l.b16 %v855
        %v2413 = vunpack.c.h.b16 %v855
        %v2414 = vunpack.c.l.b16 %v856
        %v2415 = vunpack.c.h.b16 %v856
        %v2416 = vunpack.c.l.b16 %v857
        %v2417 = vunpack.c.h.b16 %v857
        %v2418 = vunpack.c.l.b16 %v858
        %v2419 = vunpack.c.h.b16 %v858
        %v2420 = vunpack.c.l.b16 %v859
        %v2421 = vunpack.c.h.b16 %v859
        %v2422 = vunpack.c.l.b16 %v860
        %v2423 = vunpack.c.h.b16 %v860
        %v2424 = vunpack.c.l.b16 %v861
        %v2425 = vunpack.c.h.b16 %v861
        %v2426 = vunpack.c.l.b16 %v862
        %v2427 = vunpack.c.h.b16 %v862
        %v2428 = vunpack.c.l.b16 %v863
        %v2429 = vunpack.c.h.b16 %v863
        %v2430 = vunpack.c.l.b16 %v864
        %v2431 = vunpack.c.h.b16 %v864
        %v2432 = vunpack.c.l.b16 %v865
        %v2433 = vunpack.c.h.b16 %v865
        %v2434 = vunpack.c.l.b16 %v866
        %v2435 = vunpack.c.h.b16 %v866
        %v2436 = vunpack.c.l.b16 %v867
        %v2437 = vunpack.c.h.b16 %v867
        %v2438 = vunpack.c.l.b16 %v868
        %v2439 = vunpack.c.h.b16 %v868
        %v2440 = vunpack.c.l.b16 %v869
        %v2441 = vunpack.c.h.b16 %v869
        %v2442 = vunpack.c.l.b16 %v870
        %v2443 = vunpack.c.h.b16 %v870
        %v2444 = vunpack.c.l.b16 %v871
        %v2445 = vunpack.c.h.b16 %v871
        %v2446 = vunpack.c.l.b16 %v872
        %v2447 = vunpack.c.h.b16 %v872
        %v2448 = vunpack.c.l.b16 %v873
        %v2449 = vunpack.c.h.b16 %v873
        %v2450 = vunpack.c.l.b16 %v874
        %v2451 = vunpack.c.h.b16 %v874
        %v2452 = vunpack.c.l.b16 %v875
        %v2453 = vunpack.c.h.b16 %v875
        %v2454 = vunpack.c.l.b16 %v876
        %v2455 = vunpack.c.h.b16 %v876
        %v2456 = vunpack.c.l.b16 %v877
        %v2457 = vunpack.c.h.b16 %v877
        %v2458 = vunpack.c.l.b16 %v878
        %v2459 = vunpack.c.h.b16 %v878
        %v2460 = vunpack.c.l.b16 %v879
        %v2461 = vunpack.c.h.b16 %v879
        %v2462 = vunpack.c.l.b16 %v880
        %v2463 = vunpack.c.h.b16 %v880
        %v2464 = vunpack.c.l.b16 %v881
        %v2465 = vunpack.c.h.b16 %v881
        %v2466 = vunpack.c.l.b16 %v882
        %v2467 = vunpack.c.h.b16 %v882
        %v2468 = vunpack.c.l.b16 %v883
        %v2469 = vunpack.c.h.b16 %v883
        %v2470 = vunpack.c.l.b16 %v884
        %v2471 = vunpack.c.h.b16 %v884
        %v2472 = vunpack.c.l.b16 %v885
        %v2473 = vunpack.c.h.b16 %v885
        %v2474 = vunpack.c.l.b16 %v886
        %v2475 = vunpack.c.h.b16 %v886
        %v2476 = vunpack.c.l.b16 %v887
        %v2477 = vunpack.c.h.b16 %v887
        %v2478 = vunpack.c.l.b16 %v888
        %v2479 = vunpack.c.h.b16 %v888
        %v2480 = vunpack.c.l.b16 %v889
        %v2481 = vunpack.c.h.b16 %v889
        %v2482 = vunpack.c.l.b16 %v890
        %v2483 = vunpack.c.h.b16 %v890
        %v2484 = vunpack.c.l.b16 %v891
        %v2485 = vunpack.c.h.b16 %v891
        %v2486 = vunpack.c.l.b16 %v892
        %v2487 = vunpack.c.h.b16 %v892
        %v2488 = vunpack.c.l.b16 %v893
        %v2489 = vunpack.c.h.b16 %v893
        %v2490 = vunpack.c.l.b16 %v894
        %v2491 = vunpack.c.h.b16 %v894
        %v2492 = vunpack.c.l.b16 %v895
        %v2493 = vunpack.c.h.b16 %v895
        %v2494 = vunpack.c.l.b16 %v896
        %v2495 = vunpack.c.h.b16 %v896
        %v2496 = vunpack.c.l.b16 %v897
        %v2497 = vunpack.c.h.b16 %v897
        %v2498 = vunpack.c.l.b16 %v898
        %v2499 = vunpack.c.h.b16 %v898
        %v2500 = vunpack.c.l.b16 %v899
        %v2501 = vunpack.c.h.b16 %v899
        %v2502 = vunpack.c.l.b16 %v900
        %v2503 = vunpack.c.h.b16 %v900
        %v2504 = vunpack.c.l.b16 %v901
        %v2505 = vunpack.c.h.b16 %v901
        %v2506 = vunpack.c.l.b16 %v902
        %v2507 = vunpack.c.h.b16 %v902
        %v2508 = vunpack.c.l.b16 %v903
        %v2509 = vunpack.c.h.b16 %v903
        %v2510 = vunpack.c.l.b16 %v904
        %v2511 = vunpack.c.h.b16 %v904
        %v2512 = vunpack.c.l.b16 %v905
        %v2513 = vunpack.c.h.b16 %v905
        %v2514 = vunpack.c.l.b16 %v906
        %v2515 = vunpack.c.h.b16 %v906
        %v2516 = vunpack.c.l.b16 %v907
        %v2517 = vunpack.c.h.b16 %v907
        %v2518 = vunpack.c.l.b16 %v908
        %v2519 = vunpack.c.h.b16 %v908
        %v2520 = vunpack.c.l.b16 %v909
        %v2521 = vunpack.c.h.b16 %v909
        %v2522 = vunpack.c.l.b16 %v910
        %v2523 = vunpack.c.h.b16 %v910
        %v2524 = vunpack.c.l.b16 %v911
        %v2525 = vunpack.c.h.b16 %v911
        %v2526 = vunpack.c.l.b16 %v912
        %v2527 = vunpack.c.h.b16 %v912
        %v2528 = vunpack.c.l.b16 %v913
        %v2529 = vunpack.c.h.b16 %v913
        %v2530 = vunpack.c.l.b16 %v914
        %v2531 = vunpack.c.h.b16 %v914
        %v2532 = vunpack.c.l.b16 %v915
        %v2533 = vunpack.c.h.b16 %v915
        %v2534 = vunpack.c.l.b16 %v916
        %v2535 = vunpack.c.h.b16 %v916
        %v2536 = vunpack.c.l.b16 %v917
        %v2537 = vunpack.c.h.b16 %v917
        %v2538 = vunpack.c.l.b16 %v918
        %v2539 = vunpack.c.h.b16 %v918
        %v2540 = vunpack.c.l.b16 %v919
        %v2541 = vunpack.c.h.b16 %v919
        %v2542 = vunpack.c.l.b16 %v920
        %v2543 = vunpack.c.h.b16 %v920
        %v2544 = vunpack.c.l.b16 %v921
        %v2545 = vunpack.c.h.b16 %v921
        %v2546 = vunpack.c.l.b16 %v922
        %v2547 = vunpack.c.h.b16 %v922
        %v2548 = vunpack.c.l.b16 %v923
        %v2549 = vunpack.c.h.b16 %v923
        %v2550 = vunpack.c.l.b16 %v924
        %v2551 = vunpack.c.h.b16 %v924
        %v2552 = vunpack.c.l.b16 %v925
        %v2553 = vunpack.c.h.b16 %v925
        %v2554 = vunpack.c.l.b16 %v926
        %v2555 = vunpack.c.h.b16 %v926
        %v2556 = vunpack.c.l.b16 %v927
        %v2557 = vunpack.c.h.b16 %v927
        %v2558 = vunpack.c.l.b16 %v928
        %v2559 = vunpack.c.h.b16 %v928
        %v2560 = vunpack.c.l.b16 %v929
        %v2561 = vunpack.c.h.b16 %v929
        %v2562 = vunpack.c.l.b16 %v930
        %v2563 = vunpack.c.h.b16 %v930
        %v2564 = vunpack.c.l.b16 %v931
        %v2565 = vunpack.c.h.b16 %v931
        %v2566 = vunpack.c.l.b16 %v932
        %v2567 = vunpack.c.h.b16 %v932
        %v2568 = vunpack.c.l.b16 %v933
        %v2569 = vunpack.c.h.b16 %v933
        %v2570 = vunpack.c.l.b16 %v934
        %v2571 = vunpack.c.h.b16 %v934
        %v2572 = vunpack.c.l.b16 %v935
        %v2573 = vunpack.c.h.b16 %v935
        %v2574 = vunpack.c.l.b16 %v936
        %v2575 = vunpack.c.h.b16 %v936
        %v2576 = vunpack.c.l.b16 %v937
        %v2577 = vunpack.c.h.b16 %v937
        %v2578 = vunpack.c.l.b16 %v938
        %v2579 = vunpack.c.h.b16 %v938
        %v2580 = vunpack.c.l.b16 %v939
        %v2581 = vunpack.c.h.b16 %v939
        %v2582 = vunpack.c.l.b16 %v940
        %v2583 = vunpack.c.h.b16 %v940
        %v2584 = vunpack.c.l.b16 %v941
        %v2585 = vunpack.c.h.b16 %v941
        %v2586 = vunpack.c.l.b16 %v942
        %v2587 = vunpack.c.h.b16 %v942
        %v2588 = vunpack.c.l.b16 %v943
        %v2589 = vunpack.c.h.b16 %v943
        %v2590 = vunpack.c.l.b16 %v944
        %v2591 = vunpack.c.h.b16 %v944
        %v2592 = vunpack.c.l.b16 %v945
        %v2593 = vunpack.c.h.b16 %v945
        %v2594 = vunpack.c.l.b16 %v946
        %v2595 = vunpack.c.h.b16 %v946
        %v2596 = vunpack.c.l.b16 %v947
        %v2597 = vunpack.c.h.b16 %v947
        %v2598 = vunpack.c.l.b16 %v948
        %v2599 = vunpack.c.h.b16 %v948
        %v2600 = vunpack.c.l.b16 %v949
        %v2601 = vunpack.c.h.b16 %v949
        %v2602 = vunpack.c.l.b16 %v950
        %v2603 = vunpack.c.h.b16 %v950
        %v2604 = vunpack.c.l.b16 %v951
        %v2605 = vunpack.c.h.b16 %v951
        %v2606 = vunpack.c.l.b16 %v952
        %v2607 = vunpack.c.h.b16 %v952
        %v2608 = vunpack.c.l.b16 %v953
        %v2609 = vunpack.c.h.b16 %v953
        %v2610 = vunpack.c.l.b16 %v954
        %v2611 = vunpack.c.h.b16 %v954
        %v2612 = vunpack.c.l.b16 %v955
        %v2613 = vunpack.c.h.b16 %v955
        %v2614 = vunpack.c.l.b16 %v956
        %v2615 = vunpack.c.h.b16 %v956
        %v2616 = vunpack.c.l.b16 %v957
        %v2617 = vunpack.c.h.b16 %v957
        %v2618 = vunpack.c.l.b16 %v958
        %v2619 = vunpack.c.h.b16 %v958
        %v2620 = vunpack.c.l.b16 %v959
        %v2621 = vunpack.c.h.b16 %v959
        %v2622 = vunpack.c.l.b16 %v960
        %v2623 = vunpack.c.h.b16 %v960
        %v2624 = vunpack.c.l.b16 %v961
        %v2625 = vunpack.c.h.b16 %v961
        %v2626 = vunpack.c.l.b16 %v962
        %v2627 = vunpack.c.h.b16 %v962
        %v2628 = vunpack.c.l.b16 %v963
        %v2629 = vunpack.c.h.b16 %v963
        %v2630 = vunpack.c.l.b16 %v964
        %v2631 = vunpack.c.h.b16 %v964
        %v2632 = vunpack.c.l.b16 %v965
        %v2633 = vunpack.c.h.b16 %v965
        %v2634 = vunpack.c.l.b16 %v966
        %v2635 = vunpack.c.h.b16 %v966
        %v2636 = vunpack.c.l.b16 %v967
        %v2637 = vunpack.c.h.b16 %v967
        %v2638 = vunpack.c.l.b16 %v968
        %v2639 = vunpack.c.h.b16 %v968
        %v2640 = vunpack.c.l.b16 %v969
        %v2641 = vunpack.c.h.b16 %v969
        %v2642 = vunpack.c.l.b16 %v970
        %v2643 = vunpack.c.h.b16 %v970
        %v2644 = vunpack.c.l.b16 %v971
        %v2645 = vunpack.c.h.b16 %v971
        %v2646 = vunpack.c.l.b16 %v972
        %v2647 = vunpack.c.h.b16 %v972
        %v2648 = vunpack.c.l.b16 %v973
        %v2649 = vunpack.c.h.b16 %v973
        %v2650 = vunpack.c.l.b16 %v974
        %v2651 = vunpack.c.h.b16 %v974
        %v2652 = vunpack.c.l.b16 %v975
        %v2653 = vunpack.c.h.b16 %v975
        %v2654 = vunpack.c.l.b16 %v976
        %v2655 = vunpack.c.h.b16 %v976
        %v2656 = vunpack.c.l.b16 %v977
        %v2657 = vunpack.c.h.b16 %v977
        %v2658 = vunpack.c.l.b16 %v978
        %v2659 = vunpack.c.h.b16 %v978
        %v2660 = vunpack.c.l.b16 %v979
        %v2661 = vunpack.c.h.b16 %v979
        %v2662 = vunpack.c.l.b16 %v980
        %v2663 = vunpack.c.h.b16 %v980
        %v2664 = vunpack.c.l.b16 %v981
        %v2665 = vunpack.c.h.b16 %v981
        %v2666 = vunpack.c.l.b16 %v982
        %v2667 = vunpack.c.h.b16 %v982
        %v2668 = vunpack.c.l.b16 %v983
        %v2669 = vunpack.c.h.b16 %v983
        %v2670 = vunpack.c.l.b16 %v984
        %v2671 = vunpack.c.h.b16 %v984
        %v2672 = vunpack.c.l.b16 %v985
        %v2673 = vunpack.c.h.b16 %v985
        %v2674 = vunpack.c.l.b16 %v986
        %v2675 = vunpack.c.h.b16 %v986
        %v2676 = vunpack.c.l.b16 %v987
        %v2677 = vunpack.c.h.b16 %v987
        %v2678 = vunpack.c.l.b16 %v988
        %v2679 = vunpack.c.h.b16 %v988
        %v2680 = vunpack.c.l.b16 %v989
        %v2681 = vunpack.c.h.b16 %v989
        %v2682 = vunpack.c.l.b16 %v990
        %v2683 = vunpack.c.h.b16 %v990
        %v2684 = vunpack.c.l.b16 %v991
        %v2685 = vunpack.c.h.b16 %v991
        %v2686 = vunpack.c.l.b16 %v992
        %v2687 = vunpack.c.h.b16 %v992
        %v2688 = vunpack.c.l.b16 %v993
        %v2689 = vunpack.c.h.b16 %v993
        %v2690 = vunpack.c.l.b16 %v994
        %v2691 = vunpack.c.h.b16 %v994
        %v2692 = vunpack.c.l.b16 %v995
        %v2693 = vunpack.c.h.b16 %v995
        %v2694 = vunpack.c.l.b16 %v996
        %v2695 = vunpack.c.h.b16 %v996
        %v2696 = vunpack.c.l.b16 %v997
        %v2697 = vunpack.c.h.b16 %v997
        %v2698 = vunpack.c.l.b16 %v998
        %v2699 = vunpack.c.h.b16 %v998
        %v2700 = vunpack.c.l.b16 %v999
        %v2701 = vunpack.c.h.b16 %v999
        %v2702 = vunpack.c.l.b16 %v1000
        %v2703 = vunpack.c.h.b16 %v1000
        %v2704 = vunpack.c.l.b16 %v1001
        %v2705 = vunpack.c.h.b16 %v1001
        %v2706 = vunpack.c.l.b16 %v1002
        %v2707 = vunpack.c.h.b16 %v1002
        %v2708 = vunpack.c.l.b16 %v1003
        %v2709 = vunpack.c.h.b16 %v1003
        %v2710 = vunpack.c.l.b16 %v1004
        %v2711 = vunpack.c.h.b16 %v1004
        %v2712 = vunpack.c.l.b16 %v1005
        %v2713 = vunpack.c.h.b16 %v1005
        %v2714 = vunpack.c.l.b16 %v1006
        %v2715 = vunpack.c.h.b16 %v1006
        %v2716 = vunpack.c.l.b16 %v1007
        %v2717 = vunpack.c.h.b16 %v1007
        %v2718 = vunpack.c.l.b16 %v1008
        %v2719 = vunpack.c.h.b16 %v1008
        %v2720 = vunpack.c.l.b16 %v1009
        %v2721 = vunpack.c.h.b16 %v1009
        %v2722 = vunpack.c.l.b16 %v1010
        %v2723 = vunpack.c.h.b16 %v1010
        %v2724 = vunpack.c.l.b16 %v1011
        %v2725 = vunpack.c.h.b16 %v1011
        %v2726 = vunpack.c.l.b16 %v1012
        %v2727 = vunpack.c.h.b16 %v1012
        %v2728 = vunpack.c.l.b16 %v1013
        %v2729 = vunpack.c.h.b16 %v1013
        %v2730 = vunpack.c.l.b16 %v1014
        %v2731 = vunpack.c.h.b16 %v1014
        %v2732 = vunpack.c.l.b16 %v1015
        %v2733 = vunpack.c.h.b16 %v1015
        %v2734 = vunpack.c.l.b16 %v1016
        %v2735 = vunpack.c.h.b16 %v1016
        %v2736 = vunpack.c.l.b16 %v1017
        %v2737 = vunpack.c.h.b16 %v1017
        %v2738 = vunpack.c.l.b16 %v1018
        %v2739 = vunpack.c.h.b16 %v1018
        %v2740 = vunpack.c.l.b16 %v1019
        %v2741 = vunpack.c.h.b16 %v1019
        %v2742 = vunpack.c.l.b16 %v1020
        %v2743 = vunpack.c.h.b16 %v1020
        %v2744 = vunpack.c.l.b16 %v1021
        %v2745 = vunpack.c.h.b16 %v1021
        %v2746 = vunpack.c.l.b16 %v1022
        %v2747 = vunpack.c.h.b16 %v1022
        %v2748 = vunpack.c.l.b16 %v1023
        %v2749 = vunpack.c.h.b16 %v1023
        %v2750 = vunpack.c.l.b16 %v1024
        %v2751 = vunpack.c.h.b16 %v1024
        %v2752 = vunpack.c.l.b16 %v1025
        %v2753 = vunpack.c.h.b16 %v1025
        %v2754 = vunpack.c.l.b16 %v1026
        %v2755 = vunpack.c.h.b16 %v1026
        %v2756 = vunpack.c.l.b16 %v1027
        %v2757 = vunpack.c.h.b16 %v1027
        %v2758 = vunpack.c.l.b16 %v1028
        %v2759 = vunpack.c.h.b16 %v1028
        %v2760 = vunpack.c.l.b16 %v1029
        %v2761 = vunpack.c.h.b16 %v1029
        %v2762 = vunpack.c.l.b16 %v1030
        %v2763 = vunpack.c.h.b16 %v1030
        %v2764 = vunpack.c.l.b16 %v1031
        %v2765 = vunpack.c.h.b16 %v1031
        %v2766 = vunpack.c.l.b16 %v1032
        %v2767 = vunpack.c.h.b16 %v1032
        %v2768 = vunpack.c.l.b16 %v1033
        %v2769 = vunpack.c.h.b16 %v1033
        %v2770 = vunpack.c.l.b16 %v1034
        %v2771 = vunpack.c.h.b16 %v1034
        %v2772 = vunpack.c.l.b16 %v1035
        %v2773 = vunpack.c.h.b16 %v1035
        %v2774 = vunpack.c.l.b16 %v1036
        %v2775 = vunpack.c.h.b16 %v1036
        %v2776 = vunpack.c.l.b16 %v1037
        %v2777 = vunpack.c.h.b16 %v1037
        %v2778 = vunpack.c.l.b16 %v1038
        %v2779 = vunpack.c.h.b16 %v1038
        %v2780 = vunpack.c.l.b16 %v1039
        %v2781 = vunpack.c.h.b16 %v1039
        %v2782 = vunpack.c.l.b16 %v1040
        %v2783 = vunpack.c.h.b16 %v1040
        %v2784 = vunpack.c.l.b16 %v1041
        %v2785 = vunpack.c.h.b16 %v1041
        %v2786 = vunpack.c.l.b16 %v1042
        %v2787 = vunpack.c.h.b16 %v1042
        %v2788 = vunpack.c.l.b16 %v1043
        %v2789 = vunpack.c.h.b16 %v1043
        %v2790 = vpack.c.b16 %v1646, %v1638
        %v2791 = vpack.c.b16 %v1647, %v1639
        %v2792 = vpack.c.b16 %v1648, %v1640
        %v2793 = vpack.c.b16 %v1649, %v1641
        %v2794 = vpack.c.b16 %v1650, %v1642
        %v2795 = vpack.c.b16 %v1651, %v1643
        %v2796 = vpack.c.b16 %v1652, %v1644
        %v2797 = vpack.c.b16 %v1653, %v1645
        %v2798 = vpack.c.b16 %v1662, %v1654
        %v2799 = vpack.c.b16 %v1663, %v1655
        %v2800 = vpack.c.b16 %v1664, %v1656
        %v2801 = vpack.c.b16 %v1665, %v1657
        %v2802 = vpack.c.b16 %v1666, %v1658
        %v2803 = vpack.c.b16 %v1667, %v1659
        %v2804 = vpack.c.b16 %v1668, %v1660
        %v2805 = vpack.c.b16 %v1669, %v1661
        %v2806 = vpack.c.b16 %v1678, %v1670
        %v2807 = vpack.c.b16 %v1679, %v1671
        %v2808 = vpack.c.b16 %v1680, %v1672
        %v2809 = vpack.c.b16 %v1681, %v1673
        %v2810 = vpack.c.b16 %v1682, %v1674
        %v2811 = vpack.c.b16 %v1683, %v1675
        %v2812 = vpack.c.b16 %v1684, %v1676
        %v2813 = vpack.c.b16 %v1685, %v1677
        %v2814 = vpack.c.b16 %v1694, %v1686
        %v2815 = vpack.c.b16 %v1695, %v1687
        %v2816 = vpack.c.b16 %v1696, %v1688
        %v2817 = vpack.c.b16 %v1697, %v1689
        %v2818 = vpack.c.b16 %v1698, %v1690
        %v2819 = vpack.c.b16 %v1699, %v1691
        %v2820 = vpack.c.b16 %v1700, %v1692
        %v2821 = vpack.c.b16 %v1701, %v1693
        %v2822 = vpack.c.b16 %v1710, %v1702
        %v2823 = vpack.c.b16 %v1711, %v1703
        %v2824 = vpack.c.b16 %v1712, %v1704
        %v2825 = vpack.c.b16 %v1713, %v1705
        %v2826 = vpack.c.b16 %v1714, %v1706
        %v2827 = vpack.c.b16 %v1715, %v1707
        %v2828 = vpack.c.b16 %v1716, %v1708
        %v2829 = vpack.c.b16 %v1717, %v1709
        %v2830 = vpack.c.b16 %v1726, %v1718
        %v2831 = vpack.c.b16 %v1727, %v1719
        %v2832 = vpack.c.b16 %v1728, %v1720
        %v2833 = vpack.c.b16 %v1729, %v1721
        %v2834 = vpack.c.b16 %v1730, %v1722
        %v2835 = vpack.c.b16 %v1731, %v1723
        %v2836 = vpack.c.b16 %v1732, %v1724
        %v2837 = vpack.c.b16 %v1733, %v1725
        %v2838 = vpack.c.b16 %v1742, %v1734
        %v2839 = vpack.c.b16 %v1743, %v1735
        %v2840 = vpack.c.b16 %v1744, %v1736
        %v2841 = vpack.c.b16 %v1745, %v1737
        %v2842 = vpack.c.b16 %v1746, %v1738
        %v2843 = vpack.c.b16 %v1747, %v1739
        %v2844 = vpack.c.b16 %v1748, %v1740
        %v2845 = vpack.c.b16 %v1749, %v1741
        %v2846 = vpack.c.b16 %v1758, %v1750
        %v2847 = vpack.c.b16 %v1759, %v1751
        %v2848 = vpack.c.b16 %v1760, %v1752
        %v2849 = vpack.c.b16 %v1761, %v1753
        %v2850 = vpack.c.b16 %v1762, %v1754
        %v2851 = vpack.c.b16 %v1763, %v1755
        %v2852 = vpack.c.b16 %v1764, %v1756
        %v2853 = vpack.c.b16 %v1765, %v1757
        %v2854 = vpack.c.b16 %v1774, %v1766
        %v2855 = vpack.c.b16 %v1775, %v1767
        %v2856 = vpack.c.b16 %v1776, %v1768
        %v2857 = vpack.c.b16 %v1777, %v1769
        %v2858 = vpack.c.b16 %v1778, %v1770
        %v2859 = vpack.c.b16 %v1779, %v1771
        %v2860 = vpack.c.b16 %v1780, %v1772
        %v2861 = vpack.c.b16 %v1781, %v1773
        %v2862 = vpack.c.b16 %v1790, %v1782
        %v2863 = vpack.c.b16 %v1791, %v1783
        %v2864 = vpack.c.b16 %v1792, %v1784
        %v2865 = vpack.c.b16 %v1793, %v1785
        %v2866 = vpack.c.b16 %v1794, %v1786
        %v2867 = vpack.c.b16 %v1795, %v1787
        %v2868 = vpack.c.b16 %v1796, %v1788
        %v2869 = vpack.c.b16 %v1797, %v1789
        %v2870 = vpack.c.b16 %v1806, %v1798
        %v2871 = vpack.c.b16 %v1807, %v1799
        %v2872 = vpack.c.b16 %v1808, %v1800
        %v2873 = vpack.c.b16 %v1809, %v1801
        %v2874 = vpack.c.b16 %v1810, %v1802
        %v2875 = vpack.c.b16 %v1811, %v1803
        %v2876 = vpack.c.b16 %v1812, %v1804
        %v2877 = vpack.c.b16 %v1813, %v1805
        %v2878 = vpack.c.b16 %v1822, %v1814
        %v2879 = vpack.c.b16 %v1823, %v1815
        %v2880 = vpack.c.b16 %v1824, %v1816
        %v2881 = vpack.c.b16 %v1825, %v1817
        %v2882 = vpack.c.b16 %v1826, %v1818
        %v2883 = vpack.c.b16 %v1827, %v1819
        %v2884 = vpack.c.b16 %v1828, %v1820
        %v2885 = vpack.c.b16 %v1829, %v1821
        %v2886 = vpack.c.b16 %v1838, %v1830
        %v2887 = vpack.c.b16 %v1839, %v1831
        %v2888 = vpack.c.b16 %v1840, %v1832
        %v2889 = vpack.c.b16 %v1841, %v1833
        %v2890 = vpack.c.b16 %v1842, %v1834
        %v2891 = vpack.c.b16 %v1843, %v1835
        %v2892 = vpack.c.b16 %v1844, %v1836
        %v2893 = vpack.c.b16 %v1845, %v1837
        %v2894 = vpack.c.b16 %v1854, %v1846
        %v2895 = vpack.c.b16 %v1855, %v1847
        %v2896 = vpack.c.b16 %v1856, %v1848
        %v2897 = vpack.c.b16 %v1857, %v1849
        %v2898 = vpack.c.b16 %v1858, %v1850
        %v2899 = vpack.c.b16 %v1859, %v1851
        %v2900 = vpack.c.b16 %v1860, %v1852
        %v2901 = vpack.c.b16 %v1861, %v1853
        %v2902 = vpack.c.b16 %v1870, %v1862
        %v2903 = vpack.c.b16 %v1871, %v1863
        %v2904 = vpack.c.b16 %v1872, %v1864
        %v2905 = vpack.c.b16 %v1873, %v1865
        %v2906 = vpack.c.b16 %v1874, %v1866
        %v2907 = vpack.c.b16 %v1875, %v1867
        %v2908 = vpack.c.b16 %v1876, %v1868
        %v2909 = vpack.c.b16 %v1877, %v1869
        %v2910 = vpack.c.b16 %v1886, %v1878
        %v2911 = vpack.c.b16 %v1887, %v1879
        %v2912 = vpack.c.b16 %v1888, %v1880
        %v2913 = vpack.c.b16 %v1889, %v1881
        %v2914 = vpack.c.b16 %v1890, %v1882
        %v2915 = vpack.c.b16 %v1891, %v1883
        %v2916 = vpack.c.b16 %v1892, %v1884
        %v2917 = vpack.c.b16 %v1893, %v1885
        %v2918 = vpack.c.b16 %v1902, %v1894
        %v2919 = vpack.c.b16 %v1903, %v1895
        %v2920 = vpack.c.b16 %v1904, %v1896
        %v2921 = vpack.c.b16 %v1905, %v1897
        %v2922 = vpack.c.b16 %v1906, %v1898
        %v2923 = vpack.c.b16 %v1907, %v1899
        %v2924 = vpack.c.b16 %v1908, %v1900
        %v2925 = vpack.c.b16 %v1909, %v1901
        %v2926 = vpack.c.b16 %v1918, %v1910
        %v2927 = vpack.c.b16 %v1919, %v1911
        %v2928 = vpack.c.b16 %v1920, %v1912
        %v2929 = vpack.c.b16 %v1921, %v1913
        %v2930 = vpack.c.b16 %v1922, %v1914
        %v2931 = vpack.c.b16 %v1923, %v1915
        %v2932 = vpack.c.b16 %v1924, %v1916
        %v2933 = vpack.c.b16 %v1925, %v1917
        %v2934 = vpack.c.b16 %v1934, %v1926
        %v2935 = vpack.c.b16 %v1935, %v1927
        %v2936 = vpack.c.b16 %v1936, %v1928
        %v2937 = vpack.c.b16 %v1937, %v1929
        %v2938 = vpack.c.b16 %v1938, %v1930
        %v2939 = vpack.c.b16 %v1939, %v1931
        %v2940 = vpack.c.b16 %v1940, %v1932
        %v2941 = vpack.c.b16 %v1941, %v1933
        %v2942 = vpack.c.b16 %v1950, %v1942
        %v2943 = vpack.c.b16 %v1951, %v1943
        %v2944 = vpack.c.b16 %v1952, %v1944
        %v2945 = vpack.c.b16 %v1953, %v1945
        %v2946 = vpack.c.b16 %v1954, %v1946
        %v2947 = vpack.c.b16 %v1955, %v1947
        %v2948 = vpack.c.b16 %v1956, %v1948
        %v2949 = vpack.c.b16 %v1957, %v1949
        %v2950 = vpack.c.b16 %v1966, %v1958
        %v2951 = vpack.c.b16 %v1967, %v1959
        %v2952 = vpack.c.b16 %v1968, %v1960
        %v2953 = vpack.c.b16 %v1969, %v1961
        %v2954 = vpack.c.b16 %v1970, %v1962
        %v2955 = vpack.c.b16 %v1971, %v1963
        %v2956 = vpack.c.b16 %v1972, %v1964
        %v2957 = vpack.c.b16 %v1973, %v1965
        %v2958 = vpack.c.b16 %v1982, %v1974
        %v2959 = vpack.c.b16 %v1983, %v1975
        %v2960 = vpack.c.b16 %v1984, %v1976
        %v2961 = vpack.c.b16 %v1985, %v1977
        %v2962 = vpack.c.b16 %v1986, %v1978
        %v2963 = vpack.c.b16 %v1987, %v1979
        %v2964 = vpack.c.b16 %v1988, %v1980
        %v2965 = vpack.c.b16 %v1989, %v1981
        %v2966 = vpack.c.b16 %v1998, %v1990
        %v2967 = vpack.c.b16 %v1999, %v1991
        %v2968 = vpack.c.b16 %v2000, %v1992
        %v2969 = vpack.c.b16 %v2001, %v1993
        %v2970 = vpack.c.b16 %v2002, %v1994
        %v2971 = vpack.c.b16 %v2003, %v1995
        %v2972 = vpack.c.b16 %v2004, %v1996
        %v2973 = vpack.c.b16 %v2005, %v1997
        %v2974 = vpack.c.b16 %v2014, %v2006
        %v2975 = vpack.c.b16 %v2015, %v2007
        %v2976 = vpack.c.b16 %v2016, %v2008
        %v2977 = vpack.c.b16 %v2017, %v2009
        %v2978 = vpack.c.b16 %v2018, %v2010
        %v2979 = vpack.c.b16 %v2019, %v2011
        %v2980 = vpack.c.b16 %v2020, %v2012
        %v2981 = vpack.c.b16 %v2021, %v2013
        %v2982 = vpack.c.b16 %v2030, %v2022
        %v2983 = vpack.c.b16 %v2031, %v2023
        %v2984 = vpack.c.b16 %v2032, %v2024
        %v2985 = vpack.c.b16 %v2033, %v2025
        %v2986 = vpack.c.b16 %v2034, %v2026
        %v2987 = vpack.c.b16 %v2035, %v2027
        %v2988 = vpack.c.b16 %v2036, %v2028
        %v2989 = vpack.c.b16 %v2037, %v2029
        %v2990 = vpack.c.b16 %v2046, %v2038
        %v2991 = vpack.c.b16 %v2047, %v2039
        %v2992 = vpack.c.b16 %v2048, %v2040
        %v2993 = vpack.c.b16 %v2049, %v2041
        %v2994 = vpack.c.b16 %v2050, %v2042
        %v2995 = vpack.c.b16 %v2051, %v2043
        %v2996 = vpack.c.b16 %v2052, %v2044
        %v2997 = vpack.c.b16 %v2053, %v2045
        %v2998 = vpack.c.b16 %v2062, %v2054
        %v2999 = vpack.c.b16 %v2063, %v2055
        %v3000 = vpack.c.b16 %v2064, %v2056
        %v3001 = vpack.c.b16 %v2065, %v2057
        %v3002 = vpack.c.b16 %v2066, %v2058
        %v3003 = vpack.c.b16 %v2067, %v2059
        %v3004 = vpack.c.b16 %v2068, %v2060
        %v3005 = vpack.c.b16 %v2069, %v2061
        %v3006 = vpack.c.b16 %v2078, %v2070
        %v3007 = vpack.c.b16 %v2079, %v2071
        %v3008 = vpack.c.b16 %v2080, %v2072
        %v3009 = vpack.c.b16 %v2081, %v2073
        %v3010 = vpack.c.b16 %v2082, %v2074
        %v3011 = vpack.c.b16 %v2083, %v2075
        %v3012 = vpack.c.b16 %v2084, %v2076
        %v3013 = vpack.c.b16 %v2085, %v2077
        %v3014 = vpack.c.b16 %v2094, %v2086
        %v3015 = vpack.c.b16 %v2095, %v2087
        %v3016 = vpack.c.b16 %v2096, %v2088
        %v3017 = vpack.c.b16 %v2097, %v2089
        %v3018 = vpack.c.b16 %v2098, %v2090
        %v3019 = vpack.c.b16 %v2099, %v2091
        %v3020 = vpack.c.b16 %v2100, %v2092
        %v3021 = vpack.c.b16 %v2101, %v2093
        %v3022 = vpack.c.b16 %v2110, %v2102
        %v3023 = vpack.c.b16 %v2111, %v2103
        %v3024 = vpack.c.b16 %v2112, %v2104
        %v3025 = vpack.c.b16 %v2113, %v2105
        %v3026 = vpack.c.b16 %v2114, %v2106
        %v3027 = vpack.c.b16 %v2115, %v2107
        %v3028 = vpack.c.b16 %v2116, %v2108
        %v3029 = vpack.c.b16 %v2117, %v2109
        %v3030 = vpack.c.b16 %v2126, %v2118
        %v3031 = vpack.c.b16 %v2127, %v2119
        %v3032 = vpack.c.b16 %v2128, %v2120
        %v3033 = vpack.c.b16 %v2129, %v2121
        %v3034 = vpack.c.b16 %v2130, %v2122
        %v3035 = vpack.c.b16 %v2131, %v2123
        %v3036 = vpack.c.b16 %v2132, %v2124
        %v3037 = vpack.c.b16 %v2133, %v2125
        %v3038 = vpack.c.b16 %v2142, %v2134
        %v3039 = vpack.c.b16 %v2143, %v2135
        %v3040 = vpack.c.b16 %v2144, %v2136
        %v3041 = vpack.c.b16 %v2145, %v2137
        %v3042 = vpack.c.b16 %v2146, %v2138
        %v3043 = vpack.c.b16 %v2147, %v2139
        %v3044 = vpack.c.b16 %v2148, %v2140
        %v3045 = vpack.c.b16 %v2149, %v2141
        %v3046 = vpack.c.b16 %v2158, %v2150
        %v3047 = vpack.c.b16 %v2159, %v2151
        %v3048 = vpack.c.b16 %v2160, %v2152
        %v3049 = vpack.c.b16 %v2161, %v2153
        %v3050 = vpack.c.b16 %v2162, %v2154
        %v3051 = vpack.c.b16 %v2163, %v2155
        %v3052 = vpack.c.b16 %v2164, %v2156
        %v3053 = vpack.c.b16 %v2165, %v2157
        %v3054 = vpack.c.b16 %v2174, %v2166
        %v3055 = vpack.c.b16 %v2175, %v2167
        %v3056 = vpack.c.b16 %v2176, %v2168
        %v3057 = vpack.c.b16 %v2177, %v2169
        %v3058 = vpack.c.b16 %v2178, %v2170
        %v3059 = vpack.c.b16 %v2179, %v2171
        %v3060 = vpack.c.b16 %v2180, %v2172
        %v3061 = vpack.c.b16 %v2181, %v2173
        %v3062 = vpack.c.b16 %v2190, %v2182
        %v3063 = vpack.c.b16 %v2191, %v2183
        %v3064 = vpack.c.b16 %v2192, %v2184
        %v3065 = vpack.c.b16 %v2193, %v2185
        %v3066 = vpack.c.b16 %v2194, %v2186
        %v3067 = vpack.c.b16 %v2195, %v2187
        %v3068 = vpack.c.b16 %v2196, %v2188
        %v3069 = vpack.c.b16 %v2197, %v2189
        %v3070 = vpack.c.b16 %v2206, %v2198
        %v3071 = vpack.c.b16 %v2207, %v2199
        %v3072 = vpack.c.b16 %v2208, %v2200
        %v3073 = vpack.c.b16 %v2209, %v2201
        %v3074 = vpack.c.b16 %v2210, %v2202
        %v3075 = vpack.c.b16 %v2211, %v2203
        %v3076 = vpack.c.b16 %v2212, %v2204
        %v3077 = vpack.c.b16 %v2213, %v2205
        %v3078 = vpack.c.b16 %v2222, %v2214
        %v3079 = vpack.c.b16 %v2223, %v2215
        %v3080 = vpack.c.b16 %v2224, %v2216
        %v3081 = vpack.c.b16 %v2225, %v2217
        %v3082 = vpack.c.b16 %v2226, %v2218
        %v3083 = vpack.c.b16 %v2227, %v2219
        %v3084 = vpack.c.b16 %v2228, %v2220
        %v3085 = vpack.c.b16 %v2229, %v2221
        %v3086 = vpack.c.b16 %v2238, %v2230
        %v3087 = vpack.c.b16 %v2239, %v2231
        %v3088 = vpack.c.b16 %v2240, %v2232
        %v3089 = vpack.c.b16 %v2241, %v2233
        %v3090 = vpack.c.b16 %v2242, %v2234
        %v3091 = vpack.c.b16 %v2243, %v2235
        %v3092 = vpack.c.b16 %v2244, %v2236
        %v3093 = vpack.c.b16 %v2245, %v2237
        %v3094 = vpack.c.b16 %v2254, %v2246
        %v3095 = vpack.c.b16 %v2255, %v2247
        %v3096 = vpack.c.b16 %v2256, %v2248
        %v3097 = vpack.c.b16 %v2257, %v2249
        %v3098 = vpack.c.b16 %v2258, %v2250
        %v3099 = vpack.c.b16 %v2259, %v2251
        %v3100 = vpack.c.b16 %v2260, %v2252
        %v3101 = vpack.c.b16 %v2261, %v2253
        %v3102 = vpack.c.b16 %v2270, %v2262
        %v3103 = vpack.c.b16 %v2271, %v2263
        %v3104 = vpack.c.b16 %v2272, %v2264
        %v3105 = vpack.c.b16 %v2273, %v2265
        %v3106 = vpack.c.b16 %v2274, %v2266
        %v3107 = vpack.c.b16 %v2275, %v2267
        %v3108 = vpack.c.b16 %v2276, %v2268
        %v3109 = vpack.c.b16 %v2277, %v2269
        %v3110 = vpack.c.b16 %v2286, %v2278
        %v3111 = vpack.c.b16 %v2287, %v2279
        %v3112 = vpack.c.b16 %v2288, %v2280
        %v3113 = vpack.c.b16 %v2289, %v2281
        %v3114 = vpack.c.b16 %v2290, %v2282
        %v3115 = vpack.c.b16 %v2291, %v2283
        %v3116 = vpack.c.b16 %v2292, %v2284
        %v3117 = vpack.c.b16 %v2293, %v2285
        %v3118 = vpack.c.b16 %v2302, %v2294
        %v3119 = vpack.c.b16 %v2303, %v2295
        %v3120 = vpack.c.b16 %v2304, %v2296
        %v3121 = vpack.c.b16 %v2305, %v2297
        %v3122 = vpack.c.b16 %v2306, %v2298
        %v3123 = vpack.c.b16 %v2307, %v2299
        %v3124 = vpack.c.b16 %v2308, %v2300
        %v3125 = vpack.c.b16 %v2309, %v2301
        %v3126 = vpack.c.b16 %v2318, %v2310
        %v3127 = vpack.c.b16 %v2319, %v2311
        %v3128 = vpack.c.b16 %v2320, %v2312
        %v3129 = vpack.c.b16 %v2321, %v2313
        %v3130 = vpack.c.b16 %v2322, %v2314
        %v3131 = vpack.c.b16 %v2323, %v2315
        %v3132 = vpack.c.b16 %v2324, %v2316
        %v3133 = vpack.c.b16 %v2325, %v2317
        %v3134 = vpack.c.b16 %v2334, %v2326
        %v3135 = vpack.c.b16 %v2335, %v2327
        %v3136 = vpack.c.b16 %v2336, %v2328
        %v3137 = vpack.c.b16 %v2337, %v2329
        %v3138 = vpack.c.b16 %v2338, %v2330
        %v3139 = vpack.c.b16 %v2339, %v2331
        %v3140 = vpack.c.b16 %v2340, %v2332
        %v3141 = vpack.c.b16 %v2341, %v2333
        %v3142 = vpack.c.b16 %v2350, %v2342
        %v3143 = vpack.c.b16 %v2351, %v2343
        %v3144 = vpack.c.b16 %v2352, %v2344
        %v3145 = vpack.c.b16 %v2353, %v2345
        %v3146 = vpack.c.b16 %v2354, %v2346
        %v3147 = vpack.c.b16 %v2355, %v2347
        %v3148 = vpack.c.b16 %v2356, %v2348
        %v3149 = vpack.c.b16 %v2357, %v2349
        %v3150 = vpack.c.b16 %v2366, %v2358
        %v3151 = vpack.c.b16 %v2367, %v2359
        %v3152 = vpack.c.b16 %v2368, %v2360
        %v3153 = vpack.c.b16 %v2369, %v2361
        %v3154 = vpack.c.b16 %v2370, %v2362
        %v3155 = vpack.c.b16 %v2371, %v2363
        %v3156 = vpack.c.b16 %v2372, %v2364
        %v3157 = vpack.c.b16 %v2373, %v2365
        %v3158 = vpack.c.b16 %v2382, %v2374
        %v3159 = vpack.c.b16 %v2383, %v2375
        %v3160 = vpack.c.b16 %v2384, %v2376
        %v3161 = vpack.c.b16 %v2385, %v2377
        %v3162 = vpack.c.b16 %v2386, %v2378
        %v3163 = vpack.c.b16 %v2387, %v2379
        %v3164 = vpack.c.b16 %v2388, %v2380
        %v3165 = vpack.c.b16 %v2389, %v2381
        %v3166 = vpack.c.b16 %v2398, %v2390
        %v3167 = vpack.c.b16 %v2399, %v2391
        %v3168 = vpack.c.b16 %v2400, %v2392
        %v3169 = vpack.c.b16 %v2401, %v2393
        %v3170 = vpack.c.b16 %v2402, %v2394
        %v3171 = vpack.c.b16 %v2403, %v2395
        %v3172 = vpack.c.b16 %v2404, %v2396
        %v3173 = vpack.c.b16 %v2405, %v2397
        %v3174 = vpack.c.b16 %v2414, %v2406
        %v3175 = vpack.c.b16 %v2415, %v2407
        %v3176 = vpack.c.b16 %v2416, %v2408
        %v3177 = vpack.c.b16 %v2417, %v2409
        %v3178 = vpack.c.b16 %v2418, %v2410
        %v3179 = vpack.c.b16 %v2419, %v2411
        %v3180 = vpack.c.b16 %v2420, %v2412
        %v3181 = vpack.c.b16 %v2421, %v2413
        %v3182 = vpack.c.b16 %v2430, %v2422
        %v3183 = vpack.c.b16 %v2431, %v2423
        %v3184 = vpack.c.b16 %v2432, %v2424
        %v3185 = vpack.c.b16 %v2433, %v2425
        %v3186 = vpack.c.b16 %v2434, %v2426
        %v3187 = vpack.c.b16 %v2435, %v2427
        %v3188 = vpack.c.b16 %v2436, %v2428
        %v3189 = vpack.c.b16 %v2437, %v2429
        %v3190 = vpack.c.b16 %v2446, %v2438
        %v3191 = vpack.c.b16 %v2447, %v2439
        %v3192 = vpack.c.b16 %v2448, %v2440
        %v3193 = vpack.c.b16 %v2449, %v2441
        %v3194 = vpack.c.b16 %v2450, %v2442
        %v3195 = vpack.c.b16 %v2451, %v2443
        %v3196 = vpack.c.b16 %v2452, %v2444
        %v3197 = vpack.c.b16 %v2453, %v2445
        %v3198 = vpack.c.b16 %v2462, %v2454
        %v3199 = vpack.c.b16 %v2463, %v2455
        %v3200 = vpack.c.b16 %v2464, %v2456
        %v3201 = vpack.c.b16 %v2465, %v2457
        %v3202 = vpack.c.b16 %v2466, %v2458
        %v3203 = vpack.c.b16 %v2467, %v2459
        %v3204 = vpack.c.b16 %v2468, %v2460
        %v3205 = vpack.c.b16 %v2469, %v2461
        %v3206 = vpack.c.b16 %v2478, %v2470
        %v3207 = vpack.c.b16 %v2479, %v2471
        %v3208 = vpack.c.b16 %v2480, %v2472
        %v3209 = vpack.c.b16 %v2481, %v2473
        %v3210 = vpack.c.b16 %v2482, %v2474
        %v3211 = vpack.c.b16 %v2483, %v2475
        %v3212 = vpack.c.b16 %v2484, %v2476
        %v3213 = vpack.c.b16 %v2485, %v2477
        %v3214 = vpack.c.b16 %v2494, %v2486
        %v3215 = vpack.c.b16 %v2495, %v2487
        %v3216 = vpack.c.b16 %v2496, %v2488
        %v3217 = vpack.c.b16 %v2497, %v2489
        %v3218 = vpack.c.b16 %v2498, %v2490
        %v3219 = vpack.c.b16 %v2499, %v2491
        %v3220 = vpack.c.b16 %v2500, %v2492
        %v3221 = vpack.c.b16 %v2501, %v2493
        %v3222 = vpack.c.b16 %v2510, %v2502
        %v3223 = vpack.c.b16 %v2511, %v2503
        %v3224 = vpack.c.b16 %v2512, %v2504
        %v3225 = vpack.c.b16 %v2513, %v2505
        %v3226 = vpack.c.b16 %v2514, %v2506
        %v3227 = vpack.c.b16 %v2515, %v2507
        %v3228 = vpack.c.b16 %v2516, %v2508
        %v3229 = vpack.c.b16 %v2517, %v2509
        %v3230 = vpack.c.b16 %v2526, %v2518
        %v3231 = vpack.c.b16 %v2527, %v2519
        %v3232 = vpack.c.b16 %v2528, %v2520
        %v3233 = vpack.c.b16 %v2529, %v2521
        %v3234 = vpack.c.b16 %v2530, %v2522
        %v3235 = vpack.c.b16 %v2531, %v2523
        %v3236 = vpack.c.b16 %v2532, %v2524
        %v3237 = vpack.c.b16 %v2533, %v2525
        %v3238 = vpack.c.b16 %v2542, %v2534
        %v3239 = vpack.c.b16 %v2543, %v2535
        %v3240 = vpack.c.b16 %v2544, %v2536
        %v3241 = vpack.c.b16 %v2545, %v2537
        %v3242 = vpack.c.b16 %v2546, %v2538
        %v3243 = vpack.c.b16 %v2547, %v2539
        %v3244 = vpack.c.b16 %v2548, %v2540
        %v3245 = vpack.c.b16 %v2549, %v2541
        %v3246 = vpack.c.b16 %v2558, %v2550
        %v3247 = vpack.c.b16 %v2559, %v2551
        %v3248 = vpack.c.b16 %v2560, %v2552
        %v3249 = vpack.c.b16 %v2561, %v2553
        %v3250 = vpack.c.b16 %v2562, %v2554
        %v3251 = vpack.c.b16 %v2563, %v2555
        %v3252 = vpack.c.b16 %v2564, %v2556
        %v3253 = vpack.c.b16 %v2565, %v2557
        %v3254 = vpack.c.b16 %v2574, %v2566
        %v3255 = vpack.c.b16 %v2575, %v2567
        %v3256 = vpack.c.b16 %v2576, %v2568
        %v3257 = vpack.c.b16 %v2577, %v2569
        %v3258 = vpack.c.b16 %v2578, %v2570
        %v3259 = vpack.c.b16 %v2579, %v2571
        %v3260 = vpack.c.b16 %v2580, %v2572
        %v3261 = vpack.c.b16 %v2581, %v2573
        %v3262 = vpack.c.b16 %v2590, %v2582
        %v3263 = vpack.c.b16 %v2591, %v2583
        %v3264 = vpack.c.b16 %v2592, %v2584
        %v3265 = vpack.c.b16 %v2593, %v2585
        %v3266 = vpack.c.b16 %v2594, %v2586
        %v3267 = vpack.c.b16 %v2595, %v2587
        %v3268 = vpack.c.b16 %v2596, %v2588
        %v3269 = vpack.c.b16 %v2597, %v2589
        %v3270 = vpack.c.b16 %v2606, %v2598
        %v3271 = vpack.c.b16 %v2607, %v2599
        %v3272 = vpack.c.b16 %v2608, %v2600
        %v3273 = vpack.c.b16 %v2609, %v2601
        %v3274 = vpack.c.b16 %v2610, %v2602
        %v3275 = vpack.c.b16 %v2611, %v2603
        %v3276 = vpack.c.b16 %v2612, %v2604
        %v3277 = vpack.c.b16 %v2613, %v2605
        %v3278 = vpack.c.b16 %v2622, %v2614
        %v3279 = vpack.c.b16 %v2623, %v2615
        %v3280 = vpack.c.b16 %v2624, %v2616
        %v3281 = vpack.c.b16 %v2625, %v2617
        %v3282 = vpack.c.b16 %v2626, %v2618
        %v3283 = vpack.c.b16 %v2627, %v2619
        %v3284 = vpack.c.b16 %v2628, %v2620
        %v3285 = vpack.c.b16 %v2629, %v2621
        %v3286 = vpack.c.b16 %v2638, %v2630
        %v3287 = vpack.c.b16 %v2639, %v2631
        %v3288 = vpack.c.b16 %v2640, %v2632
        %v3289 = vpack.c.b16 %v2641, %v2633
        %v3290 = vpack.c.b16 %v2642, %v2634
        %v3291 = vpack.c.b16 %v2643, %v2635
        %v3292 = vpack.c.b16 %v2644, %v2636
        %v3293 = vpack.c.b16 %v2645, %v2637
        %v3294 = vpack.c.b16 %v2654, %v2646
        %v3295 = vpack.c.b16 %v2655, %v2647
        %v3296 = vpack.c.b16 %v2656, %v2648
        %v3297 = vpack.c.b16 %v2657, %v2649
        %v3298 = vpack.c.b16 %v2658, %v2650
        %v3299 = vpack.c.b16 %v2659, %v2651
        %v3300 = vpack.c.b16 %v2660, %v2652
        %v3301 = vpack.c.b16 %v2661, %v2653
        %v3302 = vpack.c.b16 %v2670, %v2662
        %v3303 = vpack.c.b16 %v2671, %v2663
        %v3304 = vpack.c.b16 %v2672, %v2664
        %v3305 = vpack.c.b16 %v2673, %v2665
        %v3306 = vpack.c.b16 %v2674, %v2666
        %v3307 = vpack.c.b16 %v2675, %v2667
        %v3308 = vpack.c.b16 %v2676, %v2668
        %v3309 = vpack.c.b16 %v2677, %v2669
        %v3310 = vpack.c.b16 %v2686, %v2678
        %v3311 = vpack.c.b16 %v2687, %v2679
        %v3312 = vpack.c.b16 %v2688, %v2680
        %v3313 = vpack.c.b16 %v2689, %v2681
        %v3314 = vpack.c.b16 %v2690, %v2682
        %v3315 = vpack.c.b16 %v2691, %v2683
        %v3316 = vpack.c.b16 %v2692, %v2684
        %v3317 = vpack.c.b16 %v2693, %v2685
        %v3318 = vpack.c.b16 %v2702, %v2694
        %v3319 = vpack.c.b16 %v2703, %v2695
        %v3320 = vpack.c.b16 %v2704, %v2696
        %v3321 = vpack.c.b16 %v2705, %v2697
        %v3322 = vpack.c.b16 %v2706, %v2698
        %v3323 = vpack.c.b16 %v2707, %v2699
        %v3324 = vpack.c.b16 %v2708, %v2700
        %v3325 = vpack.c.b16 %v2709, %v2701
        %v3326 = vpack.c.b16 %v2718, %v2710
        %v3327 = vpack.c.b16 %v2719, %v2711
        %v3328 = vpack.c.b16 %v2720, %v2712
        %v3329 = vpack.c.b16 %v2721, %v2713
        %v3330 = vpack.c.b16 %v2722, %v2714
        %v3331 = vpack.c.b16 %v2723, %v2715
        %v3332 = vpack.c.b16 %v2724, %v2716
        %v3333 = vpack.c.b16 %v2725, %v2717
        %v3334 = vpack.c.b16 %v2734, %v2726
        %v3335 = vpack.c.b16 %v2735, %v2727
        %v3336 = vpack.c.b16 %v2736, %v2728
        %v3337 = vpack.c.b16 %v2737, %v2729
        %v3338 = vpack.c.b16 %v2738, %v2730
        %v3339 = vpack.c.b16 %v2739, %v2731
        %v3340 = vpack.c.b16 %v2740, %v2732
        %v3341 = vpack.c.b16 %v2741, %v2733
        %v3342 = vpack.c.b16 %v2750, %v2742
        %v3343 = vpack.c.b16 %v2751, %v2743
        %v3344 = vpack.c.b16 %v2752, %v2744
        %v3345 = vpack.c.b16 %v2753, %v2745
        %v3346 = vpack.c.b16 %v2754, %v2746
        %v3347 = vpack.c.b16 %v2755, %v2747
        %v3348 = vpack.c.b16 %v2756, %v2748
        %v3349 = vpack.c.b16 %v2757, %v2749
        %v3350 = vpack.c.b16 %v2766, %v2758
        %v3351 = vpack.c.b16 %v2767, %v2759
        %v3352 = vpack.c.b16 %v2768, %v2760
        %v3353 = vpack.c.b16 %v2769, %v2761
        %v3354 = vpack.c.b16 %v2770, %v2762
        %v3355 = vpack.c.b16 %v2771, %v2763
        %v3356 = vpack.c.b16 %v2772, %v2764
        %v3357 = vpack.c.b16 %v2773, %v2765
        %v3358 = vpack.c.b16 %v2782, %v2774
        %v3359 = vpack.c.b16 %v2783, %v2775
        %v3360 = vpack.c.b16 %v2784, %v2776
        %v3361 = vpack.c.b16 %v2785, %v2777
        %v3362 = vpack.c.b16 %v2786, %v2778
        %v3363 = vpack.c.b16 %v2787, %v2779
        %v3364 = vpack.c.b16 %v2788, %v2780
        %v3365 = vpack.c.b16 %v2789, %v2781
        %3942 = vmatpush.bf16.msra.mxu0 %v2846
        %3943 = vmatpush.bf16.msra.mxu0 %v2838
        %3944 = vmatpush.bf16.msra.mxu0 %v2830
        %3945 = vmatpush.bf16.msra.mxu0 %v2822
        %3946 = vmatpush.bf16.msra.mxu0 %v2814
        %3947 = vmatpush.bf16.msra.mxu0 %v2806
        %3948 = vmatpush.bf16.msra.mxu0 %v2798
        %3949 = vmatpush.bf16.msra.mxu0 %v2790
        %3950 = vmatmul.bf16.gmra.mxu0 %v396
        %v3951 = vpop.f32.mrf.mxu0
        %v3952 = vadd.f32 %v1046, %v3951
        %v3953 = vpop.f32.mrf.mxu0
        %v3954 = vadd.f32 %v1046, %v3953
        %3955 = vmatmul.bf16.gmra.mxu0 %v405
        %v3956 = vpop.f32.mrf.mxu0
        %v3957 = vadd.f32 %v1046, %v3956
        %v3958 = vpop.f32.mrf.mxu0
        %v3959 = vadd.f32 %v1046, %v3958
        %3960 = vmatmul.bf16.gmra.mxu0 %v414
        %v3961 = vpop.f32.mrf.mxu0
        %v3962 = vadd.f32 %v1046, %v3961
        %v3963 = vpop.f32.mrf.mxu0
        %v3964 = vadd.f32 %v1046, %v3963
        %3965 = vmatmul.bf16.gmra.mxu0 %v423
        %v3966 = vpop.f32.mrf.mxu0
        %v3967 = vadd.f32 %v1046, %v3966
        %v3968 = vpop.f32.mrf.mxu0
        %v3969 = vadd.f32 %v1046, %v3968
        %3970 = vmatmul.bf16.gmra.mxu0 %v432
        %v3971 = vpop.f32.mrf.mxu0
        %v3972 = vadd.f32 %v1046, %v3971
        %v3973 = vpop.f32.mrf.mxu0
        %v3974 = vadd.f32 %v1046, %v3973
        %3975 = vmatmul.bf16.gmra.mxu0 %v441
        %v3976 = vpop.f32.mrf.mxu0
        %v3977 = vadd.f32 %v1046, %v3976
        %v3978 = vpop.f32.mrf.mxu0
        %v3979 = vadd.f32 %v1046, %v3978
        %3980 = vmatmul.bf16.gmra.mxu0 %v450
        %v3981 = vpop.f32.mrf.mxu0
        %v3982 = vadd.f32 %v1046, %v3981
        %v3983 = vpop.f32.mrf.mxu0
        %v3984 = vadd.f32 %v1046, %v3983
        %3985 = vmatmul.bf16.gmra.mxu0 %v459
        %v3986 = vpop.f32.mrf.mxu0
        %v3987 = vadd.f32 %v1046, %v3986
        %v3988 = vpop.f32.mrf.mxu0
        %v3989 = vadd.f32 %v1046, %v3988
        %3990 = vdwg.mxu0
        %3991 = vmatpush.bf16.msra.mxu0 %v2910
        %3992 = vmatpush.bf16.msra.mxu0 %v2902
        %3993 = vmatpush.bf16.msra.mxu0 %v2894
        %3994 = vmatpush.bf16.msra.mxu0 %v2886
        %3995 = vmatpush.bf16.msra.mxu0 %v2878
        %3996 = vmatpush.bf16.msra.mxu0 %v2870
        %3997 = vmatpush.bf16.msra.mxu0 %v2862
        %3998 = vmatpush.bf16.msra.mxu0 %v2854
        %3999 = vmatmul.bf16.gmra.mxu0 %v397
        %v4000 = vpop.f32.mrf.mxu0
        %v4001 = vadd.f32 %v3952, %v4000
        %v4002 = vpop.f32.mrf.mxu0
        %v4003 = vadd.f32 %v3954, %v4002
        %4004 = vmatmul.bf16.gmra.mxu0 %v406
        %v4005 = vpop.f32.mrf.mxu0
        %v4006 = vadd.f32 %v3957, %v4005
        %v4007 = vpop.f32.mrf.mxu0
        %v4008 = vadd.f32 %v3959, %v4007
        %4009 = vmatmul.bf16.gmra.mxu0 %v415
        %v4010 = vpop.f32.mrf.mxu0
        %v4011 = vadd.f32 %v3962, %v4010
        %v4012 = vpop.f32.mrf.mxu0
        %v4013 = vadd.f32 %v3964, %v4012
        %4014 = vmatmul.bf16.gmra.mxu0 %v424
        %v4015 = vpop.f32.mrf.mxu0
        %v4016 = vadd.f32 %v3967, %v4015
        %v4017 = vpop.f32.mrf.mxu0
        %v4018 = vadd.f32 %v3969, %v4017
        %4019 = vmatmul.bf16.gmra.mxu0 %v433
        %v4020 = vpop.f32.mrf.mxu0
        %v4021 = vadd.f32 %v3972, %v4020
        %v4022 = vpop.f32.mrf.mxu0
        %v4023 = vadd.f32 %v3974, %v4022
        %4024 = vmatmul.bf16.gmra.mxu0 %v442
        %v4025 = vpop.f32.mrf.mxu0
        %v4026 = vadd.f32 %v3977, %v4025
        %v4027 = vpop.f32.mrf.mxu0
        %v4028 = vadd.f32 %v3979, %v4027
        %4029 = vmatmul.bf16.gmra.mxu0 %v451
        %v4030 = vpop.f32.mrf.mxu0
        %v4031 = vadd.f32 %v3982, %v4030
        %v4032 = vpop.f32.mrf.mxu0
        %v4033 = vadd.f32 %v3984, %v4032
        %4034 = vmatmul.bf16.gmra.mxu0 %v460
        %v4035 = vpop.f32.mrf.mxu0
        %v4036 = vadd.f32 %v3987, %v4035
        %v4037 = vpop.f32.mrf.mxu0
        %v4038 = vadd.f32 %v3989, %v4037
        %4039 = vdwg.mxu0
        %4040 = vmatpush.bf16.msra.mxu0 %v2974
        %4041 = vmatpush.bf16.msra.mxu0 %v2966
        %4042 = vmatpush.bf16.msra.mxu0 %v2958
        %4043 = vmatpush.bf16.msra.mxu0 %v2950
        %4044 = vmatpush.bf16.msra.mxu0 %v2942
        %4045 = vmatpush.bf16.msra.mxu0 %v2934
        %4046 = vmatpush.bf16.msra.mxu0 %v2926
        %4047 = vmatpush.bf16.msra.mxu0 %v2918
        %4048 = vmatmul.bf16.gmra.mxu0 %v398
        %v4049 = vpop.f32.mrf.mxu0
        %v4050 = vadd.f32 %v4001, %v4049
        %v4051 = vpop.f32.mrf.mxu0
        %v4052 = vadd.f32 %v4003, %v4051
        %4053 = vmatmul.bf16.gmra.mxu0 %v407
        %v4054 = vpop.f32.mrf.mxu0
        %v4055 = vadd.f32 %v4006, %v4054
        %v4056 = vpop.f32.mrf.mxu0
        %v4057 = vadd.f32 %v4008, %v4056
        %4058 = vmatmul.bf16.gmra.mxu0 %v416
        %v4059 = vpop.f32.mrf.mxu0
        %v4060 = vadd.f32 %v4011, %v4059
        %v4061 = vpop.f32.mrf.mxu0
        %v4062 = vadd.f32 %v4013, %v4061
        %4063 = vmatmul.bf16.gmra.mxu0 %v425
        %v4064 = vpop.f32.mrf.mxu0
        %v4065 = vadd.f32 %v4016, %v4064
        %v4066 = vpop.f32.mrf.mxu0
        %v4067 = vadd.f32 %v4018, %v4066
        %4068 = vmatmul.bf16.gmra.mxu0 %v434
        %v4069 = vpop.f32.mrf.mxu0
        %v4070 = vadd.f32 %v4021, %v4069
        %v4071 = vpop.f32.mrf.mxu0
        %v4072 = vadd.f32 %v4023, %v4071
        %4073 = vmatmul.bf16.gmra.mxu0 %v443
        %v4074 = vpop.f32.mrf.mxu0
        %v4075 = vadd.f32 %v4026, %v4074
        %v4076 = vpop.f32.mrf.mxu0
        %v4077 = vadd.f32 %v4028, %v4076
        %4078 = vmatmul.bf16.gmra.mxu0 %v452
        %v4079 = vpop.f32.mrf.mxu0
        %v4080 = vadd.f32 %v4031, %v4079
        %v4081 = vpop.f32.mrf.mxu0
        %v4082 = vadd.f32 %v4033, %v4081
        %4083 = vmatmul.bf16.gmra.mxu0 %v461
        %v4084 = vpop.f32.mrf.mxu0
        %v4085 = vadd.f32 %v4036, %v4084
        %v4086 = vpop.f32.mrf.mxu0
        %v4087 = vadd.f32 %v4038, %v4086
        %4088 = vdwg.mxu0
        %4089 = vmatpush.bf16.msra.mxu0 %v3038
        %4090 = vmatpush.bf16.msra.mxu0 %v3030
        %4091 = vmatpush.bf16.msra.mxu0 %v3022
        %4092 = vmatpush.bf16.msra.mxu0 %v3014
        %4093 = vmatpush.bf16.msra.mxu0 %v3006
        %4094 = vmatpush.bf16.msra.mxu0 %v2998
        %4095 = vmatpush.bf16.msra.mxu0 %v2990
        %4096 = vmatpush.bf16.msra.mxu0 %v2982
        %4097 = vmatmul.bf16.gmra.mxu0 %v399
        %v4098 = vpop.f32.mrf.mxu0
        %v4099 = vadd.f32 %v4050, %v4098
        %v4100 = vpop.f32.mrf.mxu0
        %v4101 = vadd.f32 %v4052, %v4100
        %4102 = vmatmul.bf16.gmra.mxu0 %v408
        %v4103 = vpop.f32.mrf.mxu0
        %v4104 = vadd.f32 %v4055, %v4103
        %v4105 = vpop.f32.mrf.mxu0
        %v4106 = vadd.f32 %v4057, %v4105
        %4107 = vmatmul.bf16.gmra.mxu0 %v417
        %v4108 = vpop.f32.mrf.mxu0
        %v4109 = vadd.f32 %v4060, %v4108
        %v4110 = vpop.f32.mrf.mxu0
        %v4111 = vadd.f32 %v4062, %v4110
        %4112 = vmatmul.bf16.gmra.mxu0 %v426
        %v4113 = vpop.f32.mrf.mxu0
        %v4114 = vadd.f32 %v4065, %v4113
        %v4115 = vpop.f32.mrf.mxu0
        %v4116 = vadd.f32 %v4067, %v4115
        %4117 = vmatmul.bf16.gmra.mxu0 %v435
        %v4118 = vpop.f32.mrf.mxu0
        %v4119 = vadd.f32 %v4070, %v4118
        %v4120 = vpop.f32.mrf.mxu0
        %v4121 = vadd.f32 %v4072, %v4120
        %4122 = vmatmul.bf16.gmra.mxu0 %v444
        %v4123 = vpop.f32.mrf.mxu0
        %v4124 = vadd.f32 %v4075, %v4123
        %v4125 = vpop.f32.mrf.mxu0
        %v4126 = vadd.f32 %v4077, %v4125
        %4127 = vmatmul.bf16.gmra.mxu0 %v453
        %v4128 = vpop.f32.mrf.mxu0
        %v4129 = vadd.f32 %v4080, %v4128
        %v4130 = vpop.f32.mrf.mxu0
        %v4131 = vadd.f32 %v4082, %v4130
        %4132 = vmatmul.bf16.gmra.mxu0 %v462
        %v4133 = vpop.f32.mrf.mxu0
        %v4134 = vadd.f32 %v4085, %v4133
        %v4135 = vpop.f32.mrf.mxu0
        %v4136 = vadd.f32 %v4087, %v4135
        %4137 = vdwg.mxu0
        %4138 = vmatpush.bf16.msra.mxu0 %v3102
        %4139 = vmatpush.bf16.msra.mxu0 %v3094
        %4140 = vmatpush.bf16.msra.mxu0 %v3086
        %4141 = vmatpush.bf16.msra.mxu0 %v3078
        %4142 = vmatpush.bf16.msra.mxu0 %v3070
        %4143 = vmatpush.bf16.msra.mxu0 %v3062
        %4144 = vmatpush.bf16.msra.mxu0 %v3054
        %4145 = vmatpush.bf16.msra.mxu0 %v3046
        %4146 = vmatmul.bf16.gmra.mxu0 %v400
        %v4147 = vpop.f32.mrf.mxu0
        %v4148 = vadd.f32 %v4099, %v4147
        %v4149 = vpop.f32.mrf.mxu0
        %v4150 = vadd.f32 %v4101, %v4149
        %4151 = vmatmul.bf16.gmra.mxu0 %v409
        %v4152 = vpop.f32.mrf.mxu0
        %v4153 = vadd.f32 %v4104, %v4152
        %v4154 = vpop.f32.mrf.mxu0
        %v4155 = vadd.f32 %v4106, %v4154
        %4156 = vmatmul.bf16.gmra.mxu0 %v418
        %v4157 = vpop.f32.mrf.mxu0
        %v4158 = vadd.f32 %v4109, %v4157
        %v4159 = vpop.f32.mrf.mxu0
        %v4160 = vadd.f32 %v4111, %v4159
        %4161 = vmatmul.bf16.gmra.mxu0 %v427
        %v4162 = vpop.f32.mrf.mxu0
        %v4163 = vadd.f32 %v4114, %v4162
        %v4164 = vpop.f32.mrf.mxu0
        %v4165 = vadd.f32 %v4116, %v4164
        %4166 = vmatmul.bf16.gmra.mxu0 %v436
        %v4167 = vpop.f32.mrf.mxu0
        %v4168 = vadd.f32 %v4119, %v4167
        %v4169 = vpop.f32.mrf.mxu0
        %v4170 = vadd.f32 %v4121, %v4169
        %4171 = vmatmul.bf16.gmra.mxu0 %v445
        %v4172 = vpop.f32.mrf.mxu0
        %v4173 = vadd.f32 %v4124, %v4172
        %v4174 = vpop.f32.mrf.mxu0
        %v4175 = vadd.f32 %v4126, %v4174
        %4176 = vmatmul.bf16.gmra.mxu0 %v454
        %v4177 = vpop.f32.mrf.mxu0
        %v4178 = vadd.f32 %v4129, %v4177
        %v4179 = vpop.f32.mrf.mxu0
        %v4180 = vadd.f32 %v4131, %v4179
        %4181 = vmatmul.bf16.gmra.mxu0 %v463
        %v4182 = vpop.f32.mrf.mxu0
        %v4183 = vadd.f32 %v4134, %v4182
        %v4184 = vpop.f32.mrf.mxu0
        %v4185 = vadd.f32 %v4136, %v4184
        %4186 = vdwg.mxu0
        %4187 = vmatpush.bf16.msra.mxu0 %v3166
        %4188 = vmatpush.bf16.msra.mxu0 %v3158
        %4189 = vmatpush.bf16.msra.mxu0 %v3150
        %4190 = vmatpush.bf16.msra.mxu0 %v3142
        %4191 = vmatpush.bf16.msra.mxu0 %v3134
        %4192 = vmatpush.bf16.msra.mxu0 %v3126
        %4193 = vmatpush.bf16.msra.mxu0 %v3118
        %4194 = vmatpush.bf16.msra.mxu0 %v3110
        %4195 = vmatmul.bf16.gmra.mxu0 %v401
        %v4196 = vpop.f32.mrf.mxu0
        %v4197 = vadd.f32 %v4148, %v4196
        %v4198 = vpop.f32.mrf.mxu0
        %v4199 = vadd.f32 %v4150, %v4198
        %4200 = vmatmul.bf16.gmra.mxu0 %v410
        %v4201 = vpop.f32.mrf.mxu0
        %v4202 = vadd.f32 %v4153, %v4201
        %v4203 = vpop.f32.mrf.mxu0
        %v4204 = vadd.f32 %v4155, %v4203
        %4205 = vmatmul.bf16.gmra.mxu0 %v419
        %v4206 = vpop.f32.mrf.mxu0
        %v4207 = vadd.f32 %v4158, %v4206
        %v4208 = vpop.f32.mrf.mxu0
        %v4209 = vadd.f32 %v4160, %v4208
        %4210 = vmatmul.bf16.gmra.mxu0 %v428
        %v4211 = vpop.f32.mrf.mxu0
        %v4212 = vadd.f32 %v4163, %v4211
        %v4213 = vpop.f32.mrf.mxu0
        %v4214 = vadd.f32 %v4165, %v4213
        %4215 = vmatmul.bf16.gmra.mxu0 %v437
        %v4216 = vpop.f32.mrf.mxu0
        %v4217 = vadd.f32 %v4168, %v4216
        %v4218 = vpop.f32.mrf.mxu0
        %v4219 = vadd.f32 %v4170, %v4218
        %4220 = vmatmul.bf16.gmra.mxu0 %v446
        %v4221 = vpop.f32.mrf.mxu0
        %v4222 = vadd.f32 %v4173, %v4221
        %v4223 = vpop.f32.mrf.mxu0
        %v4224 = vadd.f32 %v4175, %v4223
        %4225 = vmatmul.bf16.gmra.mxu0 %v455
        %v4226 = vpop.f32.mrf.mxu0
        %v4227 = vadd.f32 %v4178, %v4226
        %v4228 = vpop.f32.mrf.mxu0
        %v4229 = vadd.f32 %v4180, %v4228
        %4230 = vmatmul.bf16.gmra.mxu0 %v464
        %v4231 = vpop.f32.mrf.mxu0
        %v4232 = vadd.f32 %v4183, %v4231
        %v4233 = vpop.f32.mrf.mxu0
        %v4234 = vadd.f32 %v4185, %v4233
        %4235 = vdwg.mxu0
        %4236 = vmatpush.bf16.msra.mxu0 %v3230
        %4237 = vmatpush.bf16.msra.mxu0 %v3222
        %4238 = vmatpush.bf16.msra.mxu0 %v3214
        %4239 = vmatpush.bf16.msra.mxu0 %v3206
        %4240 = vmatpush.bf16.msra.mxu0 %v3198
        %4241 = vmatpush.bf16.msra.mxu0 %v3190
        %4242 = vmatpush.bf16.msra.mxu0 %v3182
        %4243 = vmatpush.bf16.msra.mxu0 %v3174
        %4244 = vmatmul.bf16.gmra.mxu0 %v402
        %v4245 = vpop.f32.mrf.mxu0
        %v4246 = vadd.f32 %v4197, %v4245
        %v4247 = vpop.f32.mrf.mxu0
        %v4248 = vadd.f32 %v4199, %v4247
        %4249 = vmatmul.bf16.gmra.mxu0 %v411
        %v4250 = vpop.f32.mrf.mxu0
        %v4251 = vadd.f32 %v4202, %v4250
        %v4252 = vpop.f32.mrf.mxu0
        %v4253 = vadd.f32 %v4204, %v4252
        %4254 = vmatmul.bf16.gmra.mxu0 %v420
        %v4255 = vpop.f32.mrf.mxu0
        %v4256 = vadd.f32 %v4207, %v4255
        %v4257 = vpop.f32.mrf.mxu0
        %v4258 = vadd.f32 %v4209, %v4257
        %4259 = vmatmul.bf16.gmra.mxu0 %v429
        %v4260 = vpop.f32.mrf.mxu0
        %v4261 = vadd.f32 %v4212, %v4260
        %v4262 = vpop.f32.mrf.mxu0
        %v4263 = vadd.f32 %v4214, %v4262
        %4264 = vmatmul.bf16.gmra.mxu0 %v438
        %v4265 = vpop.f32.mrf.mxu0
        %v4266 = vadd.f32 %v4217, %v4265
        %v4267 = vpop.f32.mrf.mxu0
        %v4268 = vadd.f32 %v4219, %v4267
        %4269 = vmatmul.bf16.gmra.mxu0 %v447
        %v4270 = vpop.f32.mrf.mxu0
        %v4271 = vadd.f32 %v4222, %v4270
        %v4272 = vpop.f32.mrf.mxu0
        %v4273 = vadd.f32 %v4224, %v4272
        %4274 = vmatmul.bf16.gmra.mxu0 %v456
        %v4275 = vpop.f32.mrf.mxu0
        %v4276 = vadd.f32 %v4227, %v4275
        %v4277 = vpop.f32.mrf.mxu0
        %v4278 = vadd.f32 %v4229, %v4277
        %4279 = vmatmul.bf16.gmra.mxu0 %v465
        %v4280 = vpop.f32.mrf.mxu0
        %v4281 = vadd.f32 %v4232, %v4280
        %v4282 = vpop.f32.mrf.mxu0
        %v4283 = vadd.f32 %v4234, %v4282
        %4284 = vdwg.mxu0
        %4285 = vmatpush.bf16.msra.mxu0 %v3294
        %4286 = vmatpush.bf16.msra.mxu0 %v3286
        %4287 = vmatpush.bf16.msra.mxu0 %v3278
        %4288 = vmatpush.bf16.msra.mxu0 %v3270
        %4289 = vmatpush.bf16.msra.mxu0 %v3262
        %4290 = vmatpush.bf16.msra.mxu0 %v3254
        %4291 = vmatpush.bf16.msra.mxu0 %v3246
        %4292 = vmatpush.bf16.msra.mxu0 %v3238
        %4293 = vmatmul.bf16.gmra.mxu0 %v403
        %v4294 = vpop.f32.mrf.mxu0
        %v4295 = vadd.f32 %v4246, %v4294
        %v4296 = vpop.f32.mrf.mxu0
        %v4297 = vadd.f32 %v4248, %v4296
        %4298 = vmatmul.bf16.gmra.mxu0 %v412
        %v4299 = vpop.f32.mrf.mxu0
        %v4300 = vadd.f32 %v4251, %v4299
        %v4301 = vpop.f32.mrf.mxu0
        %v4302 = vadd.f32 %v4253, %v4301
        %4303 = vmatmul.bf16.gmra.mxu0 %v421
        %v4304 = vpop.f32.mrf.mxu0
        %v4305 = vadd.f32 %v4256, %v4304
        %v4306 = vpop.f32.mrf.mxu0
        %v4307 = vadd.f32 %v4258, %v4306
        %4308 = vmatmul.bf16.gmra.mxu0 %v430
        %v4309 = vpop.f32.mrf.mxu0
        %v4310 = vadd.f32 %v4261, %v4309
        %v4311 = vpop.f32.mrf.mxu0
        %v4312 = vadd.f32 %v4263, %v4311
        %4313 = vmatmul.bf16.gmra.mxu0 %v439
        %v4314 = vpop.f32.mrf.mxu0
        %v4315 = vadd.f32 %v4266, %v4314
        %v4316 = vpop.f32.mrf.mxu0
        %v4317 = vadd.f32 %v4268, %v4316
        %4318 = vmatmul.bf16.gmra.mxu0 %v448
        %v4319 = vpop.f32.mrf.mxu0
        %v4320 = vadd.f32 %v4271, %v4319
        %v4321 = vpop.f32.mrf.mxu0
        %v4322 = vadd.f32 %v4273, %v4321
        %4323 = vmatmul.bf16.gmra.mxu0 %v457
        %v4324 = vpop.f32.mrf.mxu0
        %v4325 = vadd.f32 %v4276, %v4324
        %v4326 = vpop.f32.mrf.mxu0
        %v4327 = vadd.f32 %v4278, %v4326
        %4328 = vmatmul.bf16.gmra.mxu0 %v466
        %v4329 = vpop.f32.mrf.mxu0
        %v4330 = vadd.f32 %v4281, %v4329
        %v4331 = vpop.f32.mrf.mxu0
        %v4332 = vadd.f32 %v4283, %v4331
        %4333 = vdwg.mxu0
        %4334 = vmatpush.bf16.msra.mxu0 %v3358
        %4335 = vmatpush.bf16.msra.mxu0 %v3350
        %4336 = vmatpush.bf16.msra.mxu0 %v3342
        %4337 = vmatpush.bf16.msra.mxu0 %v3334
        %4338 = vmatpush.bf16.msra.mxu0 %v3326
        %4339 = vmatpush.bf16.msra.mxu0 %v3318
        %4340 = vmatpush.bf16.msra.mxu0 %v3310
        %4341 = vmatpush.bf16.msra.mxu0 %v3302
        %4342 = vmatmul.bf16.gmra.mxu0 %v404
        %v4343 = vpop.f32.mrf.mxu0
        %v4344 = vadd.f32 %v4295, %v4343
        %v4345 = vpop.f32.mrf.mxu0
        %v4346 = vadd.f32 %v4297, %v4345
        %4347 = vmatmul.bf16.gmra.mxu0 %v413
        %v4348 = vpop.f32.mrf.mxu0
        %v4349 = vadd.f32 %v4300, %v4348
        %v4350 = vpop.f32.mrf.mxu0
        %v4351 = vadd.f32 %v4302, %v4350
        %4352 = vmatmul.bf16.gmra.mxu0 %v422
        %v4353 = vpop.f32.mrf.mxu0
        %v4354 = vadd.f32 %v4305, %v4353
        %v4355 = vpop.f32.mrf.mxu0
        %v4356 = vadd.f32 %v4307, %v4355
        %4357 = vmatmul.bf16.gmra.mxu0 %v431
        %v4358 = vpop.f32.mrf.mxu0
        %v4359 = vadd.f32 %v4310, %v4358
        %v4360 = vpop.f32.mrf.mxu0
        %v4361 = vadd.f32 %v4312, %v4360
        %4362 = vmatmul.bf16.gmra.mxu0 %v440
        %v4363 = vpop.f32.mrf.mxu0
        %v4364 = vadd.f32 %v4315, %v4363
        %v4365 = vpop.f32.mrf.mxu0
        %v4366 = vadd.f32 %v4317, %v4365
        %4367 = vmatmul.bf16.gmra.mxu0 %v449
        %v4368 = vpop.f32.mrf.mxu0
        %v4369 = vadd.f32 %v4320, %v4368
        %v4370 = vpop.f32.mrf.mxu0
        %v4371 = vadd.f32 %v4322, %v4370
        %4372 = vmatmul.bf16.gmra.mxu0 %v458
        %v4373 = vpop.f32.mrf.mxu0
        %v4374 = vadd.f32 %v4325, %v4373
        %v4375 = vpop.f32.mrf.mxu0
        %v4376 = vadd.f32 %v4327, %v4375
        %4377 = vmatmul.bf16.gmra.mxu0 %v467
        %v4378 = vpop.f32.mrf.mxu0
        %v4379 = vadd.f32 %v4330, %v4378
        %v4380 = vpop.f32.mrf.mxu0
        %v4381 = vadd.f32 %v4332, %v4380
        %4382 = vdwg.mxu0
        %4383 = vmatpush.bf16.msra.mxu0 %v2847
        %4384 = vmatpush.bf16.msra.mxu0 %v2839
        %4385 = vmatpush.bf16.msra.mxu0 %v2831
        %4386 = vmatpush.bf16.msra.mxu0 %v2823
        %4387 = vmatpush.bf16.msra.mxu0 %v2815
        %4388 = vmatpush.bf16.msra.mxu0 %v2807
        %4389 = vmatpush.bf16.msra.mxu0 %v2799
        %4390 = vmatpush.bf16.msra.mxu0 %v2791
        %4391 = vmatmul.bf16.gmra.mxu0 %v396
        %v4392 = vpop.f32.mrf.mxu0
        %v4393 = vadd.f32 %v1047, %v4392
        %v4394 = vpop.f32.mrf.mxu0
        %v4395 = vadd.f32 %v1047, %v4394
        %4396 = vmatmul.bf16.gmra.mxu0 %v405
        %v4397 = vpop.f32.mrf.mxu0
        %v4398 = vadd.f32 %v1047, %v4397
        %v4399 = vpop.f32.mrf.mxu0
        %v4400 = vadd.f32 %v1047, %v4399
        %4401 = vmatmul.bf16.gmra.mxu0 %v414
        %v4402 = vpop.f32.mrf.mxu0
        %v4403 = vadd.f32 %v1047, %v4402
        %v4404 = vpop.f32.mrf.mxu0
        %v4405 = vadd.f32 %v1047, %v4404
        %4406 = vmatmul.bf16.gmra.mxu0 %v423
        %v4407 = vpop.f32.mrf.mxu0
        %v4408 = vadd.f32 %v1047, %v4407
        %v4409 = vpop.f32.mrf.mxu0
        %v4410 = vadd.f32 %v1047, %v4409
        %4411 = vmatmul.bf16.gmra.mxu0 %v432
        %v4412 = vpop.f32.mrf.mxu0
        %v4413 = vadd.f32 %v1047, %v4412
        %v4414 = vpop.f32.mrf.mxu0
        %v4415 = vadd.f32 %v1047, %v4414
        %4416 = vmatmul.bf16.gmra.mxu0 %v441
        %v4417 = vpop.f32.mrf.mxu0
        %v4418 = vadd.f32 %v1047, %v4417
        %v4419 = vpop.f32.mrf.mxu0
        %v4420 = vadd.f32 %v1047, %v4419
        %4421 = vmatmul.bf16.gmra.mxu0 %v450
        %v4422 = vpop.f32.mrf.mxu0
        %v4423 = vadd.f32 %v1047, %v4422
        %v4424 = vpop.f32.mrf.mxu0
        %v4425 = vadd.f32 %v1047, %v4424
        %4426 = vmatmul.bf16.gmra.mxu0 %v459
        %v4427 = vpop.f32.mrf.mxu0
        %v4428 = vadd.f32 %v1047, %v4427
        %v4429 = vpop.f32.mrf.mxu0
        %v4430 = vadd.f32 %v1047, %v4429
        %4431 = vdwg.mxu0
        %4432 = vmatpush.bf16.msra.mxu0 %v2911
        %4433 = vmatpush.bf16.msra.mxu0 %v2903
        %4434 = vmatpush.bf16.msra.mxu0 %v2895
        %4435 = vmatpush.bf16.msra.mxu0 %v2887
        %4436 = vmatpush.bf16.msra.mxu0 %v2879
        %4437 = vmatpush.bf16.msra.mxu0 %v2871
        %4438 = vmatpush.bf16.msra.mxu0 %v2863
        %4439 = vmatpush.bf16.msra.mxu0 %v2855
        %4440 = vmatmul.bf16.gmra.mxu0 %v397
        %v4441 = vpop.f32.mrf.mxu0
        %v4442 = vadd.f32 %v4393, %v4441
        %v4443 = vpop.f32.mrf.mxu0
        %v4444 = vadd.f32 %v4395, %v4443
        %4445 = vmatmul.bf16.gmra.mxu0 %v406
        %v4446 = vpop.f32.mrf.mxu0
        %v4447 = vadd.f32 %v4398, %v4446
        %v4448 = vpop.f32.mrf.mxu0
        %v4449 = vadd.f32 %v4400, %v4448
        %4450 = vmatmul.bf16.gmra.mxu0 %v415
        %v4451 = vpop.f32.mrf.mxu0
        %v4452 = vadd.f32 %v4403, %v4451
        %v4453 = vpop.f32.mrf.mxu0
        %v4454 = vadd.f32 %v4405, %v4453
        %4455 = vmatmul.bf16.gmra.mxu0 %v424
        %v4456 = vpop.f32.mrf.mxu0
        %v4457 = vadd.f32 %v4408, %v4456
        %v4458 = vpop.f32.mrf.mxu0
        %v4459 = vadd.f32 %v4410, %v4458
        %4460 = vmatmul.bf16.gmra.mxu0 %v433
        %v4461 = vpop.f32.mrf.mxu0
        %v4462 = vadd.f32 %v4413, %v4461
        %v4463 = vpop.f32.mrf.mxu0
        %v4464 = vadd.f32 %v4415, %v4463
        %4465 = vmatmul.bf16.gmra.mxu0 %v442
        %v4466 = vpop.f32.mrf.mxu0
        %v4467 = vadd.f32 %v4418, %v4466
        %v4468 = vpop.f32.mrf.mxu0
        %v4469 = vadd.f32 %v4420, %v4468
        %4470 = vmatmul.bf16.gmra.mxu0 %v451
        %v4471 = vpop.f32.mrf.mxu0
        %v4472 = vadd.f32 %v4423, %v4471
        %v4473 = vpop.f32.mrf.mxu0
        %v4474 = vadd.f32 %v4425, %v4473
        %4475 = vmatmul.bf16.gmra.mxu0 %v460
        %v4476 = vpop.f32.mrf.mxu0
        %v4477 = vadd.f32 %v4428, %v4476
        %v4478 = vpop.f32.mrf.mxu0
        %v4479 = vadd.f32 %v4430, %v4478
        %4480 = vdwg.mxu0
        %4481 = vmatpush.bf16.msra.mxu0 %v2975
        %4482 = vmatpush.bf16.msra.mxu0 %v2967
        %4483 = vmatpush.bf16.msra.mxu0 %v2959
        %4484 = vmatpush.bf16.msra.mxu0 %v2951
        %4485 = vmatpush.bf16.msra.mxu0 %v2943
        %4486 = vmatpush.bf16.msra.mxu0 %v2935
        %4487 = vmatpush.bf16.msra.mxu0 %v2927
        %4488 = vmatpush.bf16.msra.mxu0 %v2919
        %4489 = vmatmul.bf16.gmra.mxu0 %v398
        %v4490 = vpop.f32.mrf.mxu0
        %v4491 = vadd.f32 %v4442, %v4490
        %v4492 = vpop.f32.mrf.mxu0
        %v4493 = vadd.f32 %v4444, %v4492
        %4494 = vmatmul.bf16.gmra.mxu0 %v407
        %v4495 = vpop.f32.mrf.mxu0
        %v4496 = vadd.f32 %v4447, %v4495
        %v4497 = vpop.f32.mrf.mxu0
        %v4498 = vadd.f32 %v4449, %v4497
        %4499 = vmatmul.bf16.gmra.mxu0 %v416
        %v4500 = vpop.f32.mrf.mxu0
        %v4501 = vadd.f32 %v4452, %v4500
        %v4502 = vpop.f32.mrf.mxu0
        %v4503 = vadd.f32 %v4454, %v4502
        %4504 = vmatmul.bf16.gmra.mxu0 %v425
        %v4505 = vpop.f32.mrf.mxu0
        %v4506 = vadd.f32 %v4457, %v4505
        %v4507 = vpop.f32.mrf.mxu0
        %v4508 = vadd.f32 %v4459, %v4507
        %4509 = vmatmul.bf16.gmra.mxu0 %v434
        %v4510 = vpop.f32.mrf.mxu0
        %v4511 = vadd.f32 %v4462, %v4510
        %v4512 = vpop.f32.mrf.mxu0
        %v4513 = vadd.f32 %v4464, %v4512
        %4514 = vmatmul.bf16.gmra.mxu0 %v443
        %v4515 = vpop.f32.mrf.mxu0
        %v4516 = vadd.f32 %v4467, %v4515
        %v4517 = vpop.f32.mrf.mxu0
        %v4518 = vadd.f32 %v4469, %v4517
        %4519 = vmatmul.bf16.gmra.mxu0 %v452
        %v4520 = vpop.f32.mrf.mxu0
        %v4521 = vadd.f32 %v4472, %v4520
        %v4522 = vpop.f32.mrf.mxu0
        %v4523 = vadd.f32 %v4474, %v4522
        %4524 = vmatmul.bf16.gmra.mxu0 %v461
        %v4525 = vpop.f32.mrf.mxu0
        %v4526 = vadd.f32 %v4477, %v4525
        %v4527 = vpop.f32.mrf.mxu0
        %v4528 = vadd.f32 %v4479, %v4527
        %4529 = vdwg.mxu0
        %4530 = vmatpush.bf16.msra.mxu0 %v3039
        %4531 = vmatpush.bf16.msra.mxu0 %v3031
        %4532 = vmatpush.bf16.msra.mxu0 %v3023
        %4533 = vmatpush.bf16.msra.mxu0 %v3015
        %4534 = vmatpush.bf16.msra.mxu0 %v3007
        %4535 = vmatpush.bf16.msra.mxu0 %v2999
        %4536 = vmatpush.bf16.msra.mxu0 %v2991
        %4537 = vmatpush.bf16.msra.mxu0 %v2983
        %4538 = vmatmul.bf16.gmra.mxu0 %v399
        %v4539 = vpop.f32.mrf.mxu0
        %v4540 = vadd.f32 %v4491, %v4539
        %v4541 = vpop.f32.mrf.mxu0
        %v4542 = vadd.f32 %v4493, %v4541
        %4543 = vmatmul.bf16.gmra.mxu0 %v408
        %v4544 = vpop.f32.mrf.mxu0
        %v4545 = vadd.f32 %v4496, %v4544
        %v4546 = vpop.f32.mrf.mxu0
        %v4547 = vadd.f32 %v4498, %v4546
        %4548 = vmatmul.bf16.gmra.mxu0 %v417
        %v4549 = vpop.f32.mrf.mxu0
        %v4550 = vadd.f32 %v4501, %v4549
        %v4551 = vpop.f32.mrf.mxu0
        %v4552 = vadd.f32 %v4503, %v4551
        %4553 = vmatmul.bf16.gmra.mxu0 %v426
        %v4554 = vpop.f32.mrf.mxu0
        %v4555 = vadd.f32 %v4506, %v4554
        %v4556 = vpop.f32.mrf.mxu0
        %v4557 = vadd.f32 %v4508, %v4556
        %4558 = vmatmul.bf16.gmra.mxu0 %v435
        %v4559 = vpop.f32.mrf.mxu0
        %v4560 = vadd.f32 %v4511, %v4559
        %v4561 = vpop.f32.mrf.mxu0
        %v4562 = vadd.f32 %v4513, %v4561
        %4563 = vmatmul.bf16.gmra.mxu0 %v444
        %v4564 = vpop.f32.mrf.mxu0
        %v4565 = vadd.f32 %v4516, %v4564
        %v4566 = vpop.f32.mrf.mxu0
        %v4567 = vadd.f32 %v4518, %v4566
        %4568 = vmatmul.bf16.gmra.mxu0 %v453
        %v4569 = vpop.f32.mrf.mxu0
        %v4570 = vadd.f32 %v4521, %v4569
        %v4571 = vpop.f32.mrf.mxu0
        %v4572 = vadd.f32 %v4523, %v4571
        %4573 = vmatmul.bf16.gmra.mxu0 %v462
        %v4574 = vpop.f32.mrf.mxu0
        %v4575 = vadd.f32 %v4526, %v4574
        %v4576 = vpop.f32.mrf.mxu0
        %v4577 = vadd.f32 %v4528, %v4576
        %4578 = vdwg.mxu0
        %4579 = vmatpush.bf16.msra.mxu0 %v3103
        %4580 = vmatpush.bf16.msra.mxu0 %v3095
        %4581 = vmatpush.bf16.msra.mxu0 %v3087
        %4582 = vmatpush.bf16.msra.mxu0 %v3079
        %4583 = vmatpush.bf16.msra.mxu0 %v3071
        %4584 = vmatpush.bf16.msra.mxu0 %v3063
        %4585 = vmatpush.bf16.msra.mxu0 %v3055
        %4586 = vmatpush.bf16.msra.mxu0 %v3047
        %4587 = vmatmul.bf16.gmra.mxu0 %v400
        %v4588 = vpop.f32.mrf.mxu0
        %v4589 = vadd.f32 %v4540, %v4588
        %v4590 = vpop.f32.mrf.mxu0
        %v4591 = vadd.f32 %v4542, %v4590
        %4592 = vmatmul.bf16.gmra.mxu0 %v409
        %v4593 = vpop.f32.mrf.mxu0
        %v4594 = vadd.f32 %v4545, %v4593
        %v4595 = vpop.f32.mrf.mxu0
        %v4596 = vadd.f32 %v4547, %v4595
        %4597 = vmatmul.bf16.gmra.mxu0 %v418
        %v4598 = vpop.f32.mrf.mxu0
        %v4599 = vadd.f32 %v4550, %v4598
        %v4600 = vpop.f32.mrf.mxu0
        %v4601 = vadd.f32 %v4552, %v4600
        %4602 = vmatmul.bf16.gmra.mxu0 %v427
        %v4603 = vpop.f32.mrf.mxu0
        %v4604 = vadd.f32 %v4555, %v4603
        %v4605 = vpop.f32.mrf.mxu0
        %v4606 = vadd.f32 %v4557, %v4605
        %4607 = vmatmul.bf16.gmra.mxu0 %v436
        %v4608 = vpop.f32.mrf.mxu0
        %v4609 = vadd.f32 %v4560, %v4608
        %v4610 = vpop.f32.mrf.mxu0
        %v4611 = vadd.f32 %v4562, %v4610
        %4612 = vmatmul.bf16.gmra.mxu0 %v445
        %v4613 = vpop.f32.mrf.mxu0
        %v4614 = vadd.f32 %v4565, %v4613
        %v4615 = vpop.f32.mrf.mxu0
        %v4616 = vadd.f32 %v4567, %v4615
        %4617 = vmatmul.bf16.gmra.mxu0 %v454
        %v4618 = vpop.f32.mrf.mxu0
        %v4619 = vadd.f32 %v4570, %v4618
        %v4620 = vpop.f32.mrf.mxu0
        %v4621 = vadd.f32 %v4572, %v4620
        %4622 = vmatmul.bf16.gmra.mxu0 %v463
        %v4623 = vpop.f32.mrf.mxu0
        %v4624 = vadd.f32 %v4575, %v4623
        %v4625 = vpop.f32.mrf.mxu0
        %v4626 = vadd.f32 %v4577, %v4625
        %4627 = vdwg.mxu0
        %4628 = vmatpush.bf16.msra.mxu0 %v3167
        %4629 = vmatpush.bf16.msra.mxu0 %v3159
        %4630 = vmatpush.bf16.msra.mxu0 %v3151
        %4631 = vmatpush.bf16.msra.mxu0 %v3143
        %4632 = vmatpush.bf16.msra.mxu0 %v3135
        %4633 = vmatpush.bf16.msra.mxu0 %v3127
        %4634 = vmatpush.bf16.msra.mxu0 %v3119
        %4635 = vmatpush.bf16.msra.mxu0 %v3111
        %4636 = vmatmul.bf16.gmra.mxu0 %v401
        %v4637 = vpop.f32.mrf.mxu0
        %v4638 = vadd.f32 %v4589, %v4637
        %v4639 = vpop.f32.mrf.mxu0
        %v4640 = vadd.f32 %v4591, %v4639
        %4641 = vmatmul.bf16.gmra.mxu0 %v410
        %v4642 = vpop.f32.mrf.mxu0
        %v4643 = vadd.f32 %v4594, %v4642
        %v4644 = vpop.f32.mrf.mxu0
        %v4645 = vadd.f32 %v4596, %v4644
        %4646 = vmatmul.bf16.gmra.mxu0 %v419
        %v4647 = vpop.f32.mrf.mxu0
        %v4648 = vadd.f32 %v4599, %v4647
        %v4649 = vpop.f32.mrf.mxu0
        %v4650 = vadd.f32 %v4601, %v4649
        %4651 = vmatmul.bf16.gmra.mxu0 %v428
        %v4652 = vpop.f32.mrf.mxu0
        %v4653 = vadd.f32 %v4604, %v4652
        %v4654 = vpop.f32.mrf.mxu0
        %v4655 = vadd.f32 %v4606, %v4654
        %4656 = vmatmul.bf16.gmra.mxu0 %v437
        %v4657 = vpop.f32.mrf.mxu0
        %v4658 = vadd.f32 %v4609, %v4657
        %v4659 = vpop.f32.mrf.mxu0
        %v4660 = vadd.f32 %v4611, %v4659
        %4661 = vmatmul.bf16.gmra.mxu0 %v446
        %v4662 = vpop.f32.mrf.mxu0
        %v4663 = vadd.f32 %v4614, %v4662
        %v4664 = vpop.f32.mrf.mxu0
        %v4665 = vadd.f32 %v4616, %v4664
        %4666 = vmatmul.bf16.gmra.mxu0 %v455
        %v4667 = vpop.f32.mrf.mxu0
        %v4668 = vadd.f32 %v4619, %v4667
        %v4669 = vpop.f32.mrf.mxu0
        %v4670 = vadd.f32 %v4621, %v4669
        %4671 = vmatmul.bf16.gmra.mxu0 %v464
        %v4672 = vpop.f32.mrf.mxu0
        %v4673 = vadd.f32 %v4624, %v4672
        %v4674 = vpop.f32.mrf.mxu0
        %v4675 = vadd.f32 %v4626, %v4674
        %4676 = vdwg.mxu0
        %4677 = vmatpush.bf16.msra.mxu0 %v3231
        %4678 = vmatpush.bf16.msra.mxu0 %v3223
        %4679 = vmatpush.bf16.msra.mxu0 %v3215
        %4680 = vmatpush.bf16.msra.mxu0 %v3207
        %4681 = vmatpush.bf16.msra.mxu0 %v3199
        %4682 = vmatpush.bf16.msra.mxu0 %v3191
        %4683 = vmatpush.bf16.msra.mxu0 %v3183
        %4684 = vmatpush.bf16.msra.mxu0 %v3175
        %4685 = vmatmul.bf16.gmra.mxu0 %v402
        %v4686 = vpop.f32.mrf.mxu0
        %v4687 = vadd.f32 %v4638, %v4686
        %v4688 = vpop.f32.mrf.mxu0
        %v4689 = vadd.f32 %v4640, %v4688
        %4690 = vmatmul.bf16.gmra.mxu0 %v411
        %v4691 = vpop.f32.mrf.mxu0
        %v4692 = vadd.f32 %v4643, %v4691
        %v4693 = vpop.f32.mrf.mxu0
        %v4694 = vadd.f32 %v4645, %v4693
        %4695 = vmatmul.bf16.gmra.mxu0 %v420
        %v4696 = vpop.f32.mrf.mxu0
        %v4697 = vadd.f32 %v4648, %v4696
        %v4698 = vpop.f32.mrf.mxu0
        %v4699 = vadd.f32 %v4650, %v4698
        %4700 = vmatmul.bf16.gmra.mxu0 %v429
        %v4701 = vpop.f32.mrf.mxu0
        %v4702 = vadd.f32 %v4653, %v4701
        %v4703 = vpop.f32.mrf.mxu0
        %v4704 = vadd.f32 %v4655, %v4703
        %4705 = vmatmul.bf16.gmra.mxu0 %v438
        %v4706 = vpop.f32.mrf.mxu0
        %v4707 = vadd.f32 %v4658, %v4706
        %v4708 = vpop.f32.mrf.mxu0
        %v4709 = vadd.f32 %v4660, %v4708
        %4710 = vmatmul.bf16.gmra.mxu0 %v447
        %v4711 = vpop.f32.mrf.mxu0
        %v4712 = vadd.f32 %v4663, %v4711
        %v4713 = vpop.f32.mrf.mxu0
        %v4714 = vadd.f32 %v4665, %v4713
        %4715 = vmatmul.bf16.gmra.mxu0 %v456
        %v4716 = vpop.f32.mrf.mxu0
        %v4717 = vadd.f32 %v4668, %v4716
        %v4718 = vpop.f32.mrf.mxu0
        %v4719 = vadd.f32 %v4670, %v4718
        %4720 = vmatmul.bf16.gmra.mxu0 %v465
        %v4721 = vpop.f32.mrf.mxu0
        %v4722 = vadd.f32 %v4673, %v4721
        %v4723 = vpop.f32.mrf.mxu0
        %v4724 = vadd.f32 %v4675, %v4723
        %4725 = vdwg.mxu0
        %4726 = vmatpush.bf16.msra.mxu0 %v3295
        %4727 = vmatpush.bf16.msra.mxu0 %v3287
        %4728 = vmatpush.bf16.msra.mxu0 %v3279
        %4729 = vmatpush.bf16.msra.mxu0 %v3271
        %4730 = vmatpush.bf16.msra.mxu0 %v3263
        %4731 = vmatpush.bf16.msra.mxu0 %v3255
        %4732 = vmatpush.bf16.msra.mxu0 %v3247
        %4733 = vmatpush.bf16.msra.mxu0 %v3239
        %4734 = vmatmul.bf16.gmra.mxu0 %v403
        %v4735 = vpop.f32.mrf.mxu0
        %v4736 = vadd.f32 %v4687, %v4735
        %v4737 = vpop.f32.mrf.mxu0
        %v4738 = vadd.f32 %v4689, %v4737
        %4739 = vmatmul.bf16.gmra.mxu0 %v412
        %v4740 = vpop.f32.mrf.mxu0
        %v4741 = vadd.f32 %v4692, %v4740
        %v4742 = vpop.f32.mrf.mxu0
        %v4743 = vadd.f32 %v4694, %v4742
        %4744 = vmatmul.bf16.gmra.mxu0 %v421
        %v4745 = vpop.f32.mrf.mxu0
        %v4746 = vadd.f32 %v4697, %v4745
        %v4747 = vpop.f32.mrf.mxu0
        %v4748 = vadd.f32 %v4699, %v4747
        %4749 = vmatmul.bf16.gmra.mxu0 %v430
        %v4750 = vpop.f32.mrf.mxu0
        %v4751 = vadd.f32 %v4702, %v4750
        %v4752 = vpop.f32.mrf.mxu0
        %v4753 = vadd.f32 %v4704, %v4752
        %4754 = vmatmul.bf16.gmra.mxu0 %v439
        %v4755 = vpop.f32.mrf.mxu0
        %v4756 = vadd.f32 %v4707, %v4755
        %v4757 = vpop.f32.mrf.mxu0
        %v4758 = vadd.f32 %v4709, %v4757
        %4759 = vmatmul.bf16.gmra.mxu0 %v448
        %v4760 = vpop.f32.mrf.mxu0
        %v4761 = vadd.f32 %v4712, %v4760
        %v4762 = vpop.f32.mrf.mxu0
        %v4763 = vadd.f32 %v4714, %v4762
        %4764 = vmatmul.bf16.gmra.mxu0 %v457
        %v4765 = vpop.f32.mrf.mxu0
        %v4766 = vadd.f32 %v4717, %v4765
        %v4767 = vpop.f32.mrf.mxu0
        %v4768 = vadd.f32 %v4719, %v4767
        %4769 = vmatmul.bf16.gmra.mxu0 %v466
        %v4770 = vpop.f32.mrf.mxu0
        %v4771 = vadd.f32 %v4722, %v4770
        %v4772 = vpop.f32.mrf.mxu0
        %v4773 = vadd.f32 %v4724, %v4772
        %4774 = vdwg.mxu0
        %4775 = vmatpush.bf16.msra.mxu0 %v3359
        %4776 = vmatpush.bf16.msra.mxu0 %v3351
        %4777 = vmatpush.bf16.msra.mxu0 %v3343
        %4778 = vmatpush.bf16.msra.mxu0 %v3335
        %4779 = vmatpush.bf16.msra.mxu0 %v3327
        %4780 = vmatpush.bf16.msra.mxu0 %v3319
        %4781 = vmatpush.bf16.msra.mxu0 %v3311
        %4782 = vmatpush.bf16.msra.mxu0 %v3303
        %4783 = vmatmul.bf16.gmra.mxu0 %v404
        %v4784 = vpop.f32.mrf.mxu0
        %v4785 = vadd.f32 %v4736, %v4784
        %v4786 = vpop.f32.mrf.mxu0
        %v4787 = vadd.f32 %v4738, %v4786
        %4788 = vmatmul.bf16.gmra.mxu0 %v413
        %v4789 = vpop.f32.mrf.mxu0
        %v4790 = vadd.f32 %v4741, %v4789
        %v4791 = vpop.f32.mrf.mxu0
        %v4792 = vadd.f32 %v4743, %v4791
        %4793 = vmatmul.bf16.gmra.mxu0 %v422
        %v4794 = vpop.f32.mrf.mxu0
        %v4795 = vadd.f32 %v4746, %v4794
        %v4796 = vpop.f32.mrf.mxu0
        %v4797 = vadd.f32 %v4748, %v4796
        %4798 = vmatmul.bf16.gmra.mxu0 %v431
        %v4799 = vpop.f32.mrf.mxu0
        %v4800 = vadd.f32 %v4751, %v4799
        %v4801 = vpop.f32.mrf.mxu0
        %v4802 = vadd.f32 %v4753, %v4801
        %4803 = vmatmul.bf16.gmra.mxu0 %v440
        %v4804 = vpop.f32.mrf.mxu0
        %v4805 = vadd.f32 %v4756, %v4804
        %v4806 = vpop.f32.mrf.mxu0
        %v4807 = vadd.f32 %v4758, %v4806
        %4808 = vmatmul.bf16.gmra.mxu0 %v449
        %v4809 = vpop.f32.mrf.mxu0
        %v4810 = vadd.f32 %v4761, %v4809
        %v4811 = vpop.f32.mrf.mxu0
        %v4812 = vadd.f32 %v4763, %v4811
        %4813 = vmatmul.bf16.gmra.mxu0 %v458
        %v4814 = vpop.f32.mrf.mxu0
        %v4815 = vadd.f32 %v4766, %v4814
        %v4816 = vpop.f32.mrf.mxu0
        %v4817 = vadd.f32 %v4768, %v4816
        %4818 = vmatmul.bf16.gmra.mxu0 %v467
        %v4819 = vpop.f32.mrf.mxu0
        %v4820 = vadd.f32 %v4771, %v4819
        %v4821 = vpop.f32.mrf.mxu0
        %v4822 = vadd.f32 %v4773, %v4821
        %4823 = vdwg.mxu0
        %4824 = vmatpush.bf16.msra.mxu0 %v2848
        %4825 = vmatpush.bf16.msra.mxu0 %v2840
        %4826 = vmatpush.bf16.msra.mxu0 %v2832
        %4827 = vmatpush.bf16.msra.mxu0 %v2824
        %4828 = vmatpush.bf16.msra.mxu0 %v2816
        %4829 = vmatpush.bf16.msra.mxu0 %v2808
        %4830 = vmatpush.bf16.msra.mxu0 %v2800
        %4831 = vmatpush.bf16.msra.mxu0 %v2792
        %4832 = vmatmul.bf16.gmra.mxu0 %v396
        %v4833 = vpop.f32.mrf.mxu0
        %v4834 = vadd.f32 %v1048, %v4833
        %v4835 = vpop.f32.mrf.mxu0
        %v4836 = vadd.f32 %v1048, %v4835
        %4837 = vmatmul.bf16.gmra.mxu0 %v405
        %v4838 = vpop.f32.mrf.mxu0
        %v4839 = vadd.f32 %v1048, %v4838
        %v4840 = vpop.f32.mrf.mxu0
        %v4841 = vadd.f32 %v1048, %v4840
        %4842 = vmatmul.bf16.gmra.mxu0 %v414
        %v4843 = vpop.f32.mrf.mxu0
        %v4844 = vadd.f32 %v1048, %v4843
        %v4845 = vpop.f32.mrf.mxu0
        %v4846 = vadd.f32 %v1048, %v4845
        %4847 = vmatmul.bf16.gmra.mxu0 %v423
        %v4848 = vpop.f32.mrf.mxu0
        %v4849 = vadd.f32 %v1048, %v4848
        %v4850 = vpop.f32.mrf.mxu0
        %v4851 = vadd.f32 %v1048, %v4850
        %4852 = vmatmul.bf16.gmra.mxu0 %v432
        %v4853 = vpop.f32.mrf.mxu0
        %v4854 = vadd.f32 %v1048, %v4853
        %v4855 = vpop.f32.mrf.mxu0
        %v4856 = vadd.f32 %v1048, %v4855
        %4857 = vmatmul.bf16.gmra.mxu0 %v441
        %v4858 = vpop.f32.mrf.mxu0
        %v4859 = vadd.f32 %v1048, %v4858
        %v4860 = vpop.f32.mrf.mxu0
        %v4861 = vadd.f32 %v1048, %v4860
        %4862 = vmatmul.bf16.gmra.mxu0 %v450
        %v4863 = vpop.f32.mrf.mxu0
        %v4864 = vadd.f32 %v1048, %v4863
        %v4865 = vpop.f32.mrf.mxu0
        %v4866 = vadd.f32 %v1048, %v4865
        %4867 = vmatmul.bf16.gmra.mxu0 %v459
        %v4868 = vpop.f32.mrf.mxu0
        %v4869 = vadd.f32 %v1048, %v4868
        %v4870 = vpop.f32.mrf.mxu0
        %v4871 = vadd.f32 %v1048, %v4870
        %4872 = vdwg.mxu0
        %4873 = vmatpush.bf16.msra.mxu0 %v2912
        %4874 = vmatpush.bf16.msra.mxu0 %v2904
        %4875 = vmatpush.bf16.msra.mxu0 %v2896
        %4876 = vmatpush.bf16.msra.mxu0 %v2888
        %4877 = vmatpush.bf16.msra.mxu0 %v2880
        %4878 = vmatpush.bf16.msra.mxu0 %v2872
        %4879 = vmatpush.bf16.msra.mxu0 %v2864
        %4880 = vmatpush.bf16.msra.mxu0 %v2856
        %4881 = vmatmul.bf16.gmra.mxu0 %v397
        %v4882 = vpop.f32.mrf.mxu0
        %v4883 = vadd.f32 %v4834, %v4882
        %v4884 = vpop.f32.mrf.mxu0
        %v4885 = vadd.f32 %v4836, %v4884
        %4886 = vmatmul.bf16.gmra.mxu0 %v406
        %v4887 = vpop.f32.mrf.mxu0
        %v4888 = vadd.f32 %v4839, %v4887
        %v4889 = vpop.f32.mrf.mxu0
        %v4890 = vadd.f32 %v4841, %v4889
        %4891 = vmatmul.bf16.gmra.mxu0 %v415
        %v4892 = vpop.f32.mrf.mxu0
        %v4893 = vadd.f32 %v4844, %v4892
        %v4894 = vpop.f32.mrf.mxu0
        %v4895 = vadd.f32 %v4846, %v4894
        %4896 = vmatmul.bf16.gmra.mxu0 %v424
        %v4897 = vpop.f32.mrf.mxu0
        %v4898 = vadd.f32 %v4849, %v4897
        %v4899 = vpop.f32.mrf.mxu0
        %v4900 = vadd.f32 %v4851, %v4899
        %4901 = vmatmul.bf16.gmra.mxu0 %v433
        %v4902 = vpop.f32.mrf.mxu0
        %v4903 = vadd.f32 %v4854, %v4902
        %v4904 = vpop.f32.mrf.mxu0
        %v4905 = vadd.f32 %v4856, %v4904
        %4906 = vmatmul.bf16.gmra.mxu0 %v442
        %v4907 = vpop.f32.mrf.mxu0
        %v4908 = vadd.f32 %v4859, %v4907
        %v4909 = vpop.f32.mrf.mxu0
        %v4910 = vadd.f32 %v4861, %v4909
        %4911 = vmatmul.bf16.gmra.mxu0 %v451
        %v4912 = vpop.f32.mrf.mxu0
        %v4913 = vadd.f32 %v4864, %v4912
        %v4914 = vpop.f32.mrf.mxu0
        %v4915 = vadd.f32 %v4866, %v4914
        %4916 = vmatmul.bf16.gmra.mxu0 %v460
        %v4917 = vpop.f32.mrf.mxu0
        %v4918 = vadd.f32 %v4869, %v4917
        %v4919 = vpop.f32.mrf.mxu0
        %v4920 = vadd.f32 %v4871, %v4919
        %4921 = vdwg.mxu0
        %4922 = vmatpush.bf16.msra.mxu0 %v2976
        %4923 = vmatpush.bf16.msra.mxu0 %v2968
        %4924 = vmatpush.bf16.msra.mxu0 %v2960
        %4925 = vmatpush.bf16.msra.mxu0 %v2952
        %4926 = vmatpush.bf16.msra.mxu0 %v2944
        %4927 = vmatpush.bf16.msra.mxu0 %v2936
        %4928 = vmatpush.bf16.msra.mxu0 %v2928
        %4929 = vmatpush.bf16.msra.mxu0 %v2920
        %4930 = vmatmul.bf16.gmra.mxu0 %v398
        %v4931 = vpop.f32.mrf.mxu0
        %v4932 = vadd.f32 %v4883, %v4931
        %v4933 = vpop.f32.mrf.mxu0
        %v4934 = vadd.f32 %v4885, %v4933
        %4935 = vmatmul.bf16.gmra.mxu0 %v407
        %v4936 = vpop.f32.mrf.mxu0
        %v4937 = vadd.f32 %v4888, %v4936
        %v4938 = vpop.f32.mrf.mxu0
        %v4939 = vadd.f32 %v4890, %v4938
        %4940 = vmatmul.bf16.gmra.mxu0 %v416
        %v4941 = vpop.f32.mrf.mxu0
        %v4942 = vadd.f32 %v4893, %v4941
        %v4943 = vpop.f32.mrf.mxu0
        %v4944 = vadd.f32 %v4895, %v4943
        %4945 = vmatmul.bf16.gmra.mxu0 %v425
        %v4946 = vpop.f32.mrf.mxu0
        %v4947 = vadd.f32 %v4898, %v4946
        %v4948 = vpop.f32.mrf.mxu0
        %v4949 = vadd.f32 %v4900, %v4948
        %4950 = vmatmul.bf16.gmra.mxu0 %v434
        %v4951 = vpop.f32.mrf.mxu0
        %v4952 = vadd.f32 %v4903, %v4951
        %v4953 = vpop.f32.mrf.mxu0
        %v4954 = vadd.f32 %v4905, %v4953
        %4955 = vmatmul.bf16.gmra.mxu0 %v443
        %v4956 = vpop.f32.mrf.mxu0
        %v4957 = vadd.f32 %v4908, %v4956
        %v4958 = vpop.f32.mrf.mxu0
        %v4959 = vadd.f32 %v4910, %v4958
        %4960 = vmatmul.bf16.gmra.mxu0 %v452
        %v4961 = vpop.f32.mrf.mxu0
        %v4962 = vadd.f32 %v4913, %v4961
        %v4963 = vpop.f32.mrf.mxu0
        %v4964 = vadd.f32 %v4915, %v4963
        %4965 = vmatmul.bf16.gmra.mxu0 %v461
        %v4966 = vpop.f32.mrf.mxu0
        %v4967 = vadd.f32 %v4918, %v4966
        %v4968 = vpop.f32.mrf.mxu0
        %v4969 = vadd.f32 %v4920, %v4968
        %4970 = vdwg.mxu0
        %4971 = vmatpush.bf16.msra.mxu0 %v3040
        %4972 = vmatpush.bf16.msra.mxu0 %v3032
        %4973 = vmatpush.bf16.msra.mxu0 %v3024
        %4974 = vmatpush.bf16.msra.mxu0 %v3016
        %4975 = vmatpush.bf16.msra.mxu0 %v3008
        %4976 = vmatpush.bf16.msra.mxu0 %v3000
        %4977 = vmatpush.bf16.msra.mxu0 %v2992
        %4978 = vmatpush.bf16.msra.mxu0 %v2984
        %4979 = vmatmul.bf16.gmra.mxu0 %v399
        %v4980 = vpop.f32.mrf.mxu0
        %v4981 = vadd.f32 %v4932, %v4980
        %v4982 = vpop.f32.mrf.mxu0
        %v4983 = vadd.f32 %v4934, %v4982
        %4984 = vmatmul.bf16.gmra.mxu0 %v408
        %v4985 = vpop.f32.mrf.mxu0
        %v4986 = vadd.f32 %v4937, %v4985
        %v4987 = vpop.f32.mrf.mxu0
        %v4988 = vadd.f32 %v4939, %v4987
        %4989 = vmatmul.bf16.gmra.mxu0 %v417
        %v4990 = vpop.f32.mrf.mxu0
        %v4991 = vadd.f32 %v4942, %v4990
        %v4992 = vpop.f32.mrf.mxu0
        %v4993 = vadd.f32 %v4944, %v4992
        %4994 = vmatmul.bf16.gmra.mxu0 %v426
        %v4995 = vpop.f32.mrf.mxu0
        %v4996 = vadd.f32 %v4947, %v4995
        %v4997 = vpop.f32.mrf.mxu0
        %v4998 = vadd.f32 %v4949, %v4997
        %4999 = vmatmul.bf16.gmra.mxu0 %v435
        %v5000 = vpop.f32.mrf.mxu0
        %v5001 = vadd.f32 %v4952, %v5000
        %v5002 = vpop.f32.mrf.mxu0
        %v5003 = vadd.f32 %v4954, %v5002
        %5004 = vmatmul.bf16.gmra.mxu0 %v444
        %v5005 = vpop.f32.mrf.mxu0
        %v5006 = vadd.f32 %v4957, %v5005
        %v5007 = vpop.f32.mrf.mxu0
        %v5008 = vadd.f32 %v4959, %v5007
        %5009 = vmatmul.bf16.gmra.mxu0 %v453
        %v5010 = vpop.f32.mrf.mxu0
        %v5011 = vadd.f32 %v4962, %v5010
        %v5012 = vpop.f32.mrf.mxu0
        %v5013 = vadd.f32 %v4964, %v5012
        %5014 = vmatmul.bf16.gmra.mxu0 %v462
        %v5015 = vpop.f32.mrf.mxu0
        %v5016 = vadd.f32 %v4967, %v5015
        %v5017 = vpop.f32.mrf.mxu0
        %v5018 = vadd.f32 %v4969, %v5017
        %5019 = vdwg.mxu0
        %5020 = vmatpush.bf16.msra.mxu0 %v3104
        %5021 = vmatpush.bf16.msra.mxu0 %v3096
        %5022 = vmatpush.bf16.msra.mxu0 %v3088
        %5023 = vmatpush.bf16.msra.mxu0 %v3080
        %5024 = vmatpush.bf16.msra.mxu0 %v3072
        %5025 = vmatpush.bf16.msra.mxu0 %v3064
        %5026 = vmatpush.bf16.msra.mxu0 %v3056
        %5027 = vmatpush.bf16.msra.mxu0 %v3048
        %5028 = vmatmul.bf16.gmra.mxu0 %v400
        %v5029 = vpop.f32.mrf.mxu0
        %v5030 = vadd.f32 %v4981, %v5029
        %v5031 = vpop.f32.mrf.mxu0
        %v5032 = vadd.f32 %v4983, %v5031
        %5033 = vmatmul.bf16.gmra.mxu0 %v409
        %v5034 = vpop.f32.mrf.mxu0
        %v5035 = vadd.f32 %v4986, %v5034
        %v5036 = vpop.f32.mrf.mxu0
        %v5037 = vadd.f32 %v4988, %v5036
        %5038 = vmatmul.bf16.gmra.mxu0 %v418
        %v5039 = vpop.f32.mrf.mxu0
        %v5040 = vadd.f32 %v4991, %v5039
        %v5041 = vpop.f32.mrf.mxu0
        %v5042 = vadd.f32 %v4993, %v5041
        %5043 = vmatmul.bf16.gmra.mxu0 %v427
        %v5044 = vpop.f32.mrf.mxu0
        %v5045 = vadd.f32 %v4996, %v5044
        %v5046 = vpop.f32.mrf.mxu0
        %v5047 = vadd.f32 %v4998, %v5046
        %5048 = vmatmul.bf16.gmra.mxu0 %v436
        %v5049 = vpop.f32.mrf.mxu0
        %v5050 = vadd.f32 %v5001, %v5049
        %v5051 = vpop.f32.mrf.mxu0
        %v5052 = vadd.f32 %v5003, %v5051
        %5053 = vmatmul.bf16.gmra.mxu0 %v445
        %v5054 = vpop.f32.mrf.mxu0
        %v5055 = vadd.f32 %v5006, %v5054
        %v5056 = vpop.f32.mrf.mxu0
        %v5057 = vadd.f32 %v5008, %v5056
        %5058 = vmatmul.bf16.gmra.mxu0 %v454
        %v5059 = vpop.f32.mrf.mxu0
        %v5060 = vadd.f32 %v5011, %v5059
        %v5061 = vpop.f32.mrf.mxu0
        %v5062 = vadd.f32 %v5013, %v5061
        %5063 = vmatmul.bf16.gmra.mxu0 %v463
        %v5064 = vpop.f32.mrf.mxu0
        %v5065 = vadd.f32 %v5016, %v5064
        %v5066 = vpop.f32.mrf.mxu0
        %v5067 = vadd.f32 %v5018, %v5066
        %5068 = vdwg.mxu0
        %5069 = vmatpush.bf16.msra.mxu0 %v3168
        %5070 = vmatpush.bf16.msra.mxu0 %v3160
        %5071 = vmatpush.bf16.msra.mxu0 %v3152
        %5072 = vmatpush.bf16.msra.mxu0 %v3144
        %5073 = vmatpush.bf16.msra.mxu0 %v3136
        %5074 = vmatpush.bf16.msra.mxu0 %v3128
        %5075 = vmatpush.bf16.msra.mxu0 %v3120
        %5076 = vmatpush.bf16.msra.mxu0 %v3112
        %5077 = vmatmul.bf16.gmra.mxu0 %v401
        %v5078 = vpop.f32.mrf.mxu0
        %v5079 = vadd.f32 %v5030, %v5078
        %v5080 = vpop.f32.mrf.mxu0
        %v5081 = vadd.f32 %v5032, %v5080
        %5082 = vmatmul.bf16.gmra.mxu0 %v410
        %v5083 = vpop.f32.mrf.mxu0
        %v5084 = vadd.f32 %v5035, %v5083
        %v5085 = vpop.f32.mrf.mxu0
        %v5086 = vadd.f32 %v5037, %v5085
        %5087 = vmatmul.bf16.gmra.mxu0 %v419
        %v5088 = vpop.f32.mrf.mxu0
        %v5089 = vadd.f32 %v5040, %v5088
        %v5090 = vpop.f32.mrf.mxu0
        %v5091 = vadd.f32 %v5042, %v5090
        %5092 = vmatmul.bf16.gmra.mxu0 %v428
        %v5093 = vpop.f32.mrf.mxu0
        %v5094 = vadd.f32 %v5045, %v5093
        %v5095 = vpop.f32.mrf.mxu0
        %v5096 = vadd.f32 %v5047, %v5095
        %5097 = vmatmul.bf16.gmra.mxu0 %v437
        %v5098 = vpop.f32.mrf.mxu0
        %v5099 = vadd.f32 %v5050, %v5098
        %v5100 = vpop.f32.mrf.mxu0
        %v5101 = vadd.f32 %v5052, %v5100
        %5102 = vmatmul.bf16.gmra.mxu0 %v446
        %v5103 = vpop.f32.mrf.mxu0
        %v5104 = vadd.f32 %v5055, %v5103
        %v5105 = vpop.f32.mrf.mxu0
        %v5106 = vadd.f32 %v5057, %v5105
        %5107 = vmatmul.bf16.gmra.mxu0 %v455
        %v5108 = vpop.f32.mrf.mxu0
        %v5109 = vadd.f32 %v5060, %v5108
        %v5110 = vpop.f32.mrf.mxu0
        %v5111 = vadd.f32 %v5062, %v5110
        %5112 = vmatmul.bf16.gmra.mxu0 %v464
        %v5113 = vpop.f32.mrf.mxu0
        %v5114 = vadd.f32 %v5065, %v5113
        %v5115 = vpop.f32.mrf.mxu0
        %v5116 = vadd.f32 %v5067, %v5115
        %5117 = vdwg.mxu0
        %5118 = vmatpush.bf16.msra.mxu0 %v3232
        %5119 = vmatpush.bf16.msra.mxu0 %v3224
        %5120 = vmatpush.bf16.msra.mxu0 %v3216
        %5121 = vmatpush.bf16.msra.mxu0 %v3208
        %5122 = vmatpush.bf16.msra.mxu0 %v3200
        %5123 = vmatpush.bf16.msra.mxu0 %v3192
        %5124 = vmatpush.bf16.msra.mxu0 %v3184
        %5125 = vmatpush.bf16.msra.mxu0 %v3176
        %5126 = vmatmul.bf16.gmra.mxu0 %v402
        %v5127 = vpop.f32.mrf.mxu0
        %v5128 = vadd.f32 %v5079, %v5127
        %v5129 = vpop.f32.mrf.mxu0
        %v5130 = vadd.f32 %v5081, %v5129
        %5131 = vmatmul.bf16.gmra.mxu0 %v411
        %v5132 = vpop.f32.mrf.mxu0
        %v5133 = vadd.f32 %v5084, %v5132
        %v5134 = vpop.f32.mrf.mxu0
        %v5135 = vadd.f32 %v5086, %v5134
        %5136 = vmatmul.bf16.gmra.mxu0 %v420
        %v5137 = vpop.f32.mrf.mxu0
        %v5138 = vadd.f32 %v5089, %v5137
        %v5139 = vpop.f32.mrf.mxu0
        %v5140 = vadd.f32 %v5091, %v5139
        %5141 = vmatmul.bf16.gmra.mxu0 %v429
        %v5142 = vpop.f32.mrf.mxu0
        %v5143 = vadd.f32 %v5094, %v5142
        %v5144 = vpop.f32.mrf.mxu0
        %v5145 = vadd.f32 %v5096, %v5144
        %5146 = vmatmul.bf16.gmra.mxu0 %v438
        %v5147 = vpop.f32.mrf.mxu0
        %v5148 = vadd.f32 %v5099, %v5147
        %v5149 = vpop.f32.mrf.mxu0
        %v5150 = vadd.f32 %v5101, %v5149
        %5151 = vmatmul.bf16.gmra.mxu0 %v447
        %v5152 = vpop.f32.mrf.mxu0
        %v5153 = vadd.f32 %v5104, %v5152
        %v5154 = vpop.f32.mrf.mxu0
        %v5155 = vadd.f32 %v5106, %v5154
        %5156 = vmatmul.bf16.gmra.mxu0 %v456
        %v5157 = vpop.f32.mrf.mxu0
        %v5158 = vadd.f32 %v5109, %v5157
        %v5159 = vpop.f32.mrf.mxu0
        %v5160 = vadd.f32 %v5111, %v5159
        %5161 = vmatmul.bf16.gmra.mxu0 %v465
        %v5162 = vpop.f32.mrf.mxu0
        %v5163 = vadd.f32 %v5114, %v5162
        %v5164 = vpop.f32.mrf.mxu0
        %v5165 = vadd.f32 %v5116, %v5164
        %5166 = vdwg.mxu0
        %5167 = vmatpush.bf16.msra.mxu0 %v3296
        %5168 = vmatpush.bf16.msra.mxu0 %v3288
        %5169 = vmatpush.bf16.msra.mxu0 %v3280
        %5170 = vmatpush.bf16.msra.mxu0 %v3272
        %5171 = vmatpush.bf16.msra.mxu0 %v3264
        %5172 = vmatpush.bf16.msra.mxu0 %v3256
        %5173 = vmatpush.bf16.msra.mxu0 %v3248
        %5174 = vmatpush.bf16.msra.mxu0 %v3240
        %5175 = vmatmul.bf16.gmra.mxu0 %v403
        %v5176 = vpop.f32.mrf.mxu0
        %v5177 = vadd.f32 %v5128, %v5176
        %v5178 = vpop.f32.mrf.mxu0
        %v5179 = vadd.f32 %v5130, %v5178
        %5180 = vmatmul.bf16.gmra.mxu0 %v412
        %v5181 = vpop.f32.mrf.mxu0
        %v5182 = vadd.f32 %v5133, %v5181
        %v5183 = vpop.f32.mrf.mxu0
        %v5184 = vadd.f32 %v5135, %v5183
        %5185 = vmatmul.bf16.gmra.mxu0 %v421
        %v5186 = vpop.f32.mrf.mxu0
        %v5187 = vadd.f32 %v5138, %v5186
        %v5188 = vpop.f32.mrf.mxu0
        %v5189 = vadd.f32 %v5140, %v5188
        %5190 = vmatmul.bf16.gmra.mxu0 %v430
        %v5191 = vpop.f32.mrf.mxu0
        %v5192 = vadd.f32 %v5143, %v5191
        %v5193 = vpop.f32.mrf.mxu0
        %v5194 = vadd.f32 %v5145, %v5193
        %5195 = vmatmul.bf16.gmra.mxu0 %v439
        %v5196 = vpop.f32.mrf.mxu0
        %v5197 = vadd.f32 %v5148, %v5196
        %v5198 = vpop.f32.mrf.mxu0
        %v5199 = vadd.f32 %v5150, %v5198
        %5200 = vmatmul.bf16.gmra.mxu0 %v448
        %v5201 = vpop.f32.mrf.mxu0
        %v5202 = vadd.f32 %v5153, %v5201
        %v5203 = vpop.f32.mrf.mxu0
        %v5204 = vadd.f32 %v5155, %v5203
        %5205 = vmatmul.bf16.gmra.mxu0 %v457
        %v5206 = vpop.f32.mrf.mxu0
        %v5207 = vadd.f32 %v5158, %v5206
        %v5208 = vpop.f32.mrf.mxu0
        %v5209 = vadd.f32 %v5160, %v5208
        %5210 = vmatmul.bf16.gmra.mxu0 %v466
        %v5211 = vpop.f32.mrf.mxu0
        %v5212 = vadd.f32 %v5163, %v5211
        %v5213 = vpop.f32.mrf.mxu0
        %v5214 = vadd.f32 %v5165, %v5213
        %5215 = vdwg.mxu0
        %5216 = vmatpush.bf16.msra.mxu0 %v3360
        %5217 = vmatpush.bf16.msra.mxu0 %v3352
        %5218 = vmatpush.bf16.msra.mxu0 %v3344
        %5219 = vmatpush.bf16.msra.mxu0 %v3336
        %5220 = vmatpush.bf16.msra.mxu0 %v3328
        %5221 = vmatpush.bf16.msra.mxu0 %v3320
        %5222 = vmatpush.bf16.msra.mxu0 %v3312
        %5223 = vmatpush.bf16.msra.mxu0 %v3304
        %5224 = vmatmul.bf16.gmra.mxu0 %v404
        %v5225 = vpop.f32.mrf.mxu0
        %v5226 = vadd.f32 %v5177, %v5225
        %v5227 = vpop.f32.mrf.mxu0
        %v5228 = vadd.f32 %v5179, %v5227
        %5229 = vmatmul.bf16.gmra.mxu0 %v413
        %v5230 = vpop.f32.mrf.mxu0
        %v5231 = vadd.f32 %v5182, %v5230
        %v5232 = vpop.f32.mrf.mxu0
        %v5233 = vadd.f32 %v5184, %v5232
        %5234 = vmatmul.bf16.gmra.mxu0 %v422
        %v5235 = vpop.f32.mrf.mxu0
        %v5236 = vadd.f32 %v5187, %v5235
        %v5237 = vpop.f32.mrf.mxu0
        %v5238 = vadd.f32 %v5189, %v5237
        %5239 = vmatmul.bf16.gmra.mxu0 %v431
        %v5240 = vpop.f32.mrf.mxu0
        %v5241 = vadd.f32 %v5192, %v5240
        %v5242 = vpop.f32.mrf.mxu0
        %v5243 = vadd.f32 %v5194, %v5242
        %5244 = vmatmul.bf16.gmra.mxu0 %v440
        %v5245 = vpop.f32.mrf.mxu0
        %v5246 = vadd.f32 %v5197, %v5245
        %v5247 = vpop.f32.mrf.mxu0
        %v5248 = vadd.f32 %v5199, %v5247
        %5249 = vmatmul.bf16.gmra.mxu0 %v449
        %v5250 = vpop.f32.mrf.mxu0
        %v5251 = vadd.f32 %v5202, %v5250
        %v5252 = vpop.f32.mrf.mxu0
        %v5253 = vadd.f32 %v5204, %v5252
        %5254 = vmatmul.bf16.gmra.mxu0 %v458
        %v5255 = vpop.f32.mrf.mxu0
        %v5256 = vadd.f32 %v5207, %v5255
        %v5257 = vpop.f32.mrf.mxu0
        %v5258 = vadd.f32 %v5209, %v5257
        %5259 = vmatmul.bf16.gmra.mxu0 %v467
        %v5260 = vpop.f32.mrf.mxu0
        %v5261 = vadd.f32 %v5212, %v5260
        %v5262 = vpop.f32.mrf.mxu0
        %v5263 = vadd.f32 %v5214, %v5262
        %5264 = vdwg.mxu0
        %5265 = vmatpush.bf16.msra.mxu0 %v2849
        %5266 = vmatpush.bf16.msra.mxu0 %v2841
        %5267 = vmatpush.bf16.msra.mxu0 %v2833
        %5268 = vmatpush.bf16.msra.mxu0 %v2825
        %5269 = vmatpush.bf16.msra.mxu0 %v2817
        %5270 = vmatpush.bf16.msra.mxu0 %v2809
        %5271 = vmatpush.bf16.msra.mxu0 %v2801
        %5272 = vmatpush.bf16.msra.mxu0 %v2793
        %5273 = vmatmul.bf16.gmra.mxu0 %v396
        %v5274 = vpop.f32.mrf.mxu0
        %v5275 = vadd.f32 %v1049, %v5274
        %v5276 = vpop.f32.mrf.mxu0
        %v5277 = vadd.f32 %v1049, %v5276
        %5278 = vmatmul.bf16.gmra.mxu0 %v405
        %v5279 = vpop.f32.mrf.mxu0
        %v5280 = vadd.f32 %v1049, %v5279
        %v5281 = vpop.f32.mrf.mxu0
        %v5282 = vadd.f32 %v1049, %v5281
        %5283 = vmatmul.bf16.gmra.mxu0 %v414
        %v5284 = vpop.f32.mrf.mxu0
        %v5285 = vadd.f32 %v1049, %v5284
        %v5286 = vpop.f32.mrf.mxu0
        %v5287 = vadd.f32 %v1049, %v5286
        %5288 = vmatmul.bf16.gmra.mxu0 %v423
        %v5289 = vpop.f32.mrf.mxu0
        %v5290 = vadd.f32 %v1049, %v5289
        %v5291 = vpop.f32.mrf.mxu0
        %v5292 = vadd.f32 %v1049, %v5291
        %5293 = vmatmul.bf16.gmra.mxu0 %v432
        %v5294 = vpop.f32.mrf.mxu0
        %v5295 = vadd.f32 %v1049, %v5294
        %v5296 = vpop.f32.mrf.mxu0
        %v5297 = vadd.f32 %v1049, %v5296
        %5298 = vmatmul.bf16.gmra.mxu0 %v441
        %v5299 = vpop.f32.mrf.mxu0
        %v5300 = vadd.f32 %v1049, %v5299
        %v5301 = vpop.f32.mrf.mxu0
        %v5302 = vadd.f32 %v1049, %v5301
        %5303 = vmatmul.bf16.gmra.mxu0 %v450
        %v5304 = vpop.f32.mrf.mxu0
        %v5305 = vadd.f32 %v1049, %v5304
        %v5306 = vpop.f32.mrf.mxu0
        %v5307 = vadd.f32 %v1049, %v5306
        %5308 = vmatmul.bf16.gmra.mxu0 %v459
        %v5309 = vpop.f32.mrf.mxu0
        %v5310 = vadd.f32 %v1049, %v5309
        %v5311 = vpop.f32.mrf.mxu0
        %v5312 = vadd.f32 %v1049, %v5311
        %5313 = vdwg.mxu0
        %5314 = vmatpush.bf16.msra.mxu0 %v2913
        %5315 = vmatpush.bf16.msra.mxu0 %v2905
        %5316 = vmatpush.bf16.msra.mxu0 %v2897
        %5317 = vmatpush.bf16.msra.mxu0 %v2889
        %5318 = vmatpush.bf16.msra.mxu0 %v2881
        %5319 = vmatpush.bf16.msra.mxu0 %v2873
        %5320 = vmatpush.bf16.msra.mxu0 %v2865
        %5321 = vmatpush.bf16.msra.mxu0 %v2857
        %5322 = vmatmul.bf16.gmra.mxu0 %v397
        %v5323 = vpop.f32.mrf.mxu0
        %v5324 = vadd.f32 %v5275, %v5323
        %v5325 = vpop.f32.mrf.mxu0
        %v5326 = vadd.f32 %v5277, %v5325
        %5327 = vmatmul.bf16.gmra.mxu0 %v406
        %v5328 = vpop.f32.mrf.mxu0
        %v5329 = vadd.f32 %v5280, %v5328
        %v5330 = vpop.f32.mrf.mxu0
        %v5331 = vadd.f32 %v5282, %v5330
        %5332 = vmatmul.bf16.gmra.mxu0 %v415
        %v5333 = vpop.f32.mrf.mxu0
        %v5334 = vadd.f32 %v5285, %v5333
        %v5335 = vpop.f32.mrf.mxu0
        %v5336 = vadd.f32 %v5287, %v5335
        %5337 = vmatmul.bf16.gmra.mxu0 %v424
        %v5338 = vpop.f32.mrf.mxu0
        %v5339 = vadd.f32 %v5290, %v5338
        %v5340 = vpop.f32.mrf.mxu0
        %v5341 = vadd.f32 %v5292, %v5340
        %5342 = vmatmul.bf16.gmra.mxu0 %v433
        %v5343 = vpop.f32.mrf.mxu0
        %v5344 = vadd.f32 %v5295, %v5343
        %v5345 = vpop.f32.mrf.mxu0
        %v5346 = vadd.f32 %v5297, %v5345
        %5347 = vmatmul.bf16.gmra.mxu0 %v442
        %v5348 = vpop.f32.mrf.mxu0
        %v5349 = vadd.f32 %v5300, %v5348
        %v5350 = vpop.f32.mrf.mxu0
        %v5351 = vadd.f32 %v5302, %v5350
        %5352 = vmatmul.bf16.gmra.mxu0 %v451
        %v5353 = vpop.f32.mrf.mxu0
        %v5354 = vadd.f32 %v5305, %v5353
        %v5355 = vpop.f32.mrf.mxu0
        %v5356 = vadd.f32 %v5307, %v5355
        %5357 = vmatmul.bf16.gmra.mxu0 %v460
        %v5358 = vpop.f32.mrf.mxu0
        %v5359 = vadd.f32 %v5310, %v5358
        %v5360 = vpop.f32.mrf.mxu0
        %v5361 = vadd.f32 %v5312, %v5360
        %5362 = vdwg.mxu0
        %5363 = vmatpush.bf16.msra.mxu0 %v2977
        %5364 = vmatpush.bf16.msra.mxu0 %v2969
        %5365 = vmatpush.bf16.msra.mxu0 %v2961
        %5366 = vmatpush.bf16.msra.mxu0 %v2953
        %5367 = vmatpush.bf16.msra.mxu0 %v2945
        %5368 = vmatpush.bf16.msra.mxu0 %v2937
        %5369 = vmatpush.bf16.msra.mxu0 %v2929
        %5370 = vmatpush.bf16.msra.mxu0 %v2921
        %5371 = vmatmul.bf16.gmra.mxu0 %v398
        %v5372 = vpop.f32.mrf.mxu0
        %v5373 = vadd.f32 %v5324, %v5372
        %v5374 = vpop.f32.mrf.mxu0
        %v5375 = vadd.f32 %v5326, %v5374
        %5376 = vmatmul.bf16.gmra.mxu0 %v407
        %v5377 = vpop.f32.mrf.mxu0
        %v5378 = vadd.f32 %v5329, %v5377
        %v5379 = vpop.f32.mrf.mxu0
        %v5380 = vadd.f32 %v5331, %v5379
        %5381 = vmatmul.bf16.gmra.mxu0 %v416
        %v5382 = vpop.f32.mrf.mxu0
        %v5383 = vadd.f32 %v5334, %v5382
        %v5384 = vpop.f32.mrf.mxu0
        %v5385 = vadd.f32 %v5336, %v5384
        %5386 = vmatmul.bf16.gmra.mxu0 %v425
        %v5387 = vpop.f32.mrf.mxu0
        %v5388 = vadd.f32 %v5339, %v5387
        %v5389 = vpop.f32.mrf.mxu0
        %v5390 = vadd.f32 %v5341, %v5389
        %5391 = vmatmul.bf16.gmra.mxu0 %v434
        %v5392 = vpop.f32.mrf.mxu0
        %v5393 = vadd.f32 %v5344, %v5392
        %v5394 = vpop.f32.mrf.mxu0
        %v5395 = vadd.f32 %v5346, %v5394
        %5396 = vmatmul.bf16.gmra.mxu0 %v443
        %v5397 = vpop.f32.mrf.mxu0
        %v5398 = vadd.f32 %v5349, %v5397
        %v5399 = vpop.f32.mrf.mxu0
        %v5400 = vadd.f32 %v5351, %v5399
        %5401 = vmatmul.bf16.gmra.mxu0 %v452
        %v5402 = vpop.f32.mrf.mxu0
        %v5403 = vadd.f32 %v5354, %v5402
        %v5404 = vpop.f32.mrf.mxu0
        %v5405 = vadd.f32 %v5356, %v5404
        %5406 = vmatmul.bf16.gmra.mxu0 %v461
        %v5407 = vpop.f32.mrf.mxu0
        %v5408 = vadd.f32 %v5359, %v5407
        %v5409 = vpop.f32.mrf.mxu0
        %v5410 = vadd.f32 %v5361, %v5409
        %5411 = vdwg.mxu0
        %5412 = vmatpush.bf16.msra.mxu0 %v3041
        %5413 = vmatpush.bf16.msra.mxu0 %v3033
        %5414 = vmatpush.bf16.msra.mxu0 %v3025
        %5415 = vmatpush.bf16.msra.mxu0 %v3017
        %5416 = vmatpush.bf16.msra.mxu0 %v3009
        %5417 = vmatpush.bf16.msra.mxu0 %v3001
        %5418 = vmatpush.bf16.msra.mxu0 %v2993
        %5419 = vmatpush.bf16.msra.mxu0 %v2985
        %5420 = vmatmul.bf16.gmra.mxu0 %v399
        %v5421 = vpop.f32.mrf.mxu0
        %v5422 = vadd.f32 %v5373, %v5421
        %v5423 = vpop.f32.mrf.mxu0
        %v5424 = vadd.f32 %v5375, %v5423
        %5425 = vmatmul.bf16.gmra.mxu0 %v408
        %v5426 = vpop.f32.mrf.mxu0
        %v5427 = vadd.f32 %v5378, %v5426
        %v5428 = vpop.f32.mrf.mxu0
        %v5429 = vadd.f32 %v5380, %v5428
        %5430 = vmatmul.bf16.gmra.mxu0 %v417
        %v5431 = vpop.f32.mrf.mxu0
        %v5432 = vadd.f32 %v5383, %v5431
        %v5433 = vpop.f32.mrf.mxu0
        %v5434 = vadd.f32 %v5385, %v5433
        %5435 = vmatmul.bf16.gmra.mxu0 %v426
        %v5436 = vpop.f32.mrf.mxu0
        %v5437 = vadd.f32 %v5388, %v5436
        %v5438 = vpop.f32.mrf.mxu0
        %v5439 = vadd.f32 %v5390, %v5438
        %5440 = vmatmul.bf16.gmra.mxu0 %v435
        %v5441 = vpop.f32.mrf.mxu0
        %v5442 = vadd.f32 %v5393, %v5441
        %v5443 = vpop.f32.mrf.mxu0
        %v5444 = vadd.f32 %v5395, %v5443
        %5445 = vmatmul.bf16.gmra.mxu0 %v444
        %v5446 = vpop.f32.mrf.mxu0
        %v5447 = vadd.f32 %v5398, %v5446
        %v5448 = vpop.f32.mrf.mxu0
        %v5449 = vadd.f32 %v5400, %v5448
        %5450 = vmatmul.bf16.gmra.mxu0 %v453
        %v5451 = vpop.f32.mrf.mxu0
        %v5452 = vadd.f32 %v5403, %v5451
        %v5453 = vpop.f32.mrf.mxu0
        %v5454 = vadd.f32 %v5405, %v5453
        %5455 = vmatmul.bf16.gmra.mxu0 %v462
        %v5456 = vpop.f32.mrf.mxu0
        %v5457 = vadd.f32 %v5408, %v5456
        %v5458 = vpop.f32.mrf.mxu0
        %v5459 = vadd.f32 %v5410, %v5458
        %5460 = vdwg.mxu0
        %5461 = vmatpush.bf16.msra.mxu0 %v3105
        %5462 = vmatpush.bf16.msra.mxu0 %v3097
        %5463 = vmatpush.bf16.msra.mxu0 %v3089
        %5464 = vmatpush.bf16.msra.mxu0 %v3081
        %5465 = vmatpush.bf16.msra.mxu0 %v3073
        %5466 = vmatpush.bf16.msra.mxu0 %v3065
        %5467 = vmatpush.bf16.msra.mxu0 %v3057
        %5468 = vmatpush.bf16.msra.mxu0 %v3049
        %5469 = vmatmul.bf16.gmra.mxu0 %v400
        %v5470 = vpop.f32.mrf.mxu0
        %v5471 = vadd.f32 %v5422, %v5470
        %v5472 = vpop.f32.mrf.mxu0
        %v5473 = vadd.f32 %v5424, %v5472
        %5474 = vmatmul.bf16.gmra.mxu0 %v409
        %v5475 = vpop.f32.mrf.mxu0
        %v5476 = vadd.f32 %v5427, %v5475
        %v5477 = vpop.f32.mrf.mxu0
        %v5478 = vadd.f32 %v5429, %v5477
        %5479 = vmatmul.bf16.gmra.mxu0 %v418
        %v5480 = vpop.f32.mrf.mxu0
        %v5481 = vadd.f32 %v5432, %v5480
        %v5482 = vpop.f32.mrf.mxu0
        %v5483 = vadd.f32 %v5434, %v5482
        %5484 = vmatmul.bf16.gmra.mxu0 %v427
        %v5485 = vpop.f32.mrf.mxu0
        %v5486 = vadd.f32 %v5437, %v5485
        %v5487 = vpop.f32.mrf.mxu0
        %v5488 = vadd.f32 %v5439, %v5487
        %5489 = vmatmul.bf16.gmra.mxu0 %v436
        %v5490 = vpop.f32.mrf.mxu0
        %v5491 = vadd.f32 %v5442, %v5490
        %v5492 = vpop.f32.mrf.mxu0
        %v5493 = vadd.f32 %v5444, %v5492
        %5494 = vmatmul.bf16.gmra.mxu0 %v445
        %v5495 = vpop.f32.mrf.mxu0
        %v5496 = vadd.f32 %v5447, %v5495
        %v5497 = vpop.f32.mrf.mxu0
        %v5498 = vadd.f32 %v5449, %v5497
        %5499 = vmatmul.bf16.gmra.mxu0 %v454
        %v5500 = vpop.f32.mrf.mxu0
        %v5501 = vadd.f32 %v5452, %v5500
        %v5502 = vpop.f32.mrf.mxu0
        %v5503 = vadd.f32 %v5454, %v5502
        %5504 = vmatmul.bf16.gmra.mxu0 %v463
        %v5505 = vpop.f32.mrf.mxu0
        %v5506 = vadd.f32 %v5457, %v5505
        %v5507 = vpop.f32.mrf.mxu0
        %v5508 = vadd.f32 %v5459, %v5507
        %5509 = vdwg.mxu0
        %5510 = vmatpush.bf16.msra.mxu0 %v3169
        %5511 = vmatpush.bf16.msra.mxu0 %v3161
        %5512 = vmatpush.bf16.msra.mxu0 %v3153
        %5513 = vmatpush.bf16.msra.mxu0 %v3145
        %5514 = vmatpush.bf16.msra.mxu0 %v3137
        %5515 = vmatpush.bf16.msra.mxu0 %v3129
        %5516 = vmatpush.bf16.msra.mxu0 %v3121
        %5517 = vmatpush.bf16.msra.mxu0 %v3113
        %5518 = vmatmul.bf16.gmra.mxu0 %v401
        %v5519 = vpop.f32.mrf.mxu0
        %v5520 = vadd.f32 %v5471, %v5519
        %v5521 = vpop.f32.mrf.mxu0
        %v5522 = vadd.f32 %v5473, %v5521
        %5523 = vmatmul.bf16.gmra.mxu0 %v410
        %v5524 = vpop.f32.mrf.mxu0
        %v5525 = vadd.f32 %v5476, %v5524
        %v5526 = vpop.f32.mrf.mxu0
        %v5527 = vadd.f32 %v5478, %v5526
        %5528 = vmatmul.bf16.gmra.mxu0 %v419
        %v5529 = vpop.f32.mrf.mxu0
        %v5530 = vadd.f32 %v5481, %v5529
        %v5531 = vpop.f32.mrf.mxu0
        %v5532 = vadd.f32 %v5483, %v5531
        %5533 = vmatmul.bf16.gmra.mxu0 %v428
        %v5534 = vpop.f32.mrf.mxu0
        %v5535 = vadd.f32 %v5486, %v5534
        %v5536 = vpop.f32.mrf.mxu0
        %v5537 = vadd.f32 %v5488, %v5536
        %5538 = vmatmul.bf16.gmra.mxu0 %v437
        %v5539 = vpop.f32.mrf.mxu0
        %v5540 = vadd.f32 %v5491, %v5539
        %v5541 = vpop.f32.mrf.mxu0
        %v5542 = vadd.f32 %v5493, %v5541
        %5543 = vmatmul.bf16.gmra.mxu0 %v446
        %v5544 = vpop.f32.mrf.mxu0
        %v5545 = vadd.f32 %v5496, %v5544
        %v5546 = vpop.f32.mrf.mxu0
        %v5547 = vadd.f32 %v5498, %v5546
        %5548 = vmatmul.bf16.gmra.mxu0 %v455
        %v5549 = vpop.f32.mrf.mxu0
        %v5550 = vadd.f32 %v5501, %v5549
        %v5551 = vpop.f32.mrf.mxu0
        %v5552 = vadd.f32 %v5503, %v5551
        %5553 = vmatmul.bf16.gmra.mxu0 %v464
        %v5554 = vpop.f32.mrf.mxu0
        %v5555 = vadd.f32 %v5506, %v5554
        %v5556 = vpop.f32.mrf.mxu0
        %v5557 = vadd.f32 %v5508, %v5556
        %5558 = vdwg.mxu0
        %5559 = vmatpush.bf16.msra.mxu0 %v3233
        %5560 = vmatpush.bf16.msra.mxu0 %v3225
        %5561 = vmatpush.bf16.msra.mxu0 %v3217
        %5562 = vmatpush.bf16.msra.mxu0 %v3209
        %5563 = vmatpush.bf16.msra.mxu0 %v3201
        %5564 = vmatpush.bf16.msra.mxu0 %v3193
        %5565 = vmatpush.bf16.msra.mxu0 %v3185
        %5566 = vmatpush.bf16.msra.mxu0 %v3177
        %5567 = vmatmul.bf16.gmra.mxu0 %v402
        %v5568 = vpop.f32.mrf.mxu0
        %v5569 = vadd.f32 %v5520, %v5568
        %v5570 = vpop.f32.mrf.mxu0
        %v5571 = vadd.f32 %v5522, %v5570
        %5572 = vmatmul.bf16.gmra.mxu0 %v411
        %v5573 = vpop.f32.mrf.mxu0
        %v5574 = vadd.f32 %v5525, %v5573
        %v5575 = vpop.f32.mrf.mxu0
        %v5576 = vadd.f32 %v5527, %v5575
        %5577 = vmatmul.bf16.gmra.mxu0 %v420
        %v5578 = vpop.f32.mrf.mxu0
        %v5579 = vadd.f32 %v5530, %v5578
        %v5580 = vpop.f32.mrf.mxu0
        %v5581 = vadd.f32 %v5532, %v5580
        %5582 = vmatmul.bf16.gmra.mxu0 %v429
        %v5583 = vpop.f32.mrf.mxu0
        %v5584 = vadd.f32 %v5535, %v5583
        %v5585 = vpop.f32.mrf.mxu0
        %v5586 = vadd.f32 %v5537, %v5585
        %5587 = vmatmul.bf16.gmra.mxu0 %v438
        %v5588 = vpop.f32.mrf.mxu0
        %v5589 = vadd.f32 %v5540, %v5588
        %v5590 = vpop.f32.mrf.mxu0
        %v5591 = vadd.f32 %v5542, %v5590
        %5592 = vmatmul.bf16.gmra.mxu0 %v447
        %v5593 = vpop.f32.mrf.mxu0
        %v5594 = vadd.f32 %v5545, %v5593
        %v5595 = vpop.f32.mrf.mxu0
        %v5596 = vadd.f32 %v5547, %v5595
        %5597 = vmatmul.bf16.gmra.mxu0 %v456
        %v5598 = vpop.f32.mrf.mxu0
        %v5599 = vadd.f32 %v5550, %v5598
        %v5600 = vpop.f32.mrf.mxu0
        %v5601 = vadd.f32 %v5552, %v5600
        %5602 = vmatmul.bf16.gmra.mxu0 %v465
        %v5603 = vpop.f32.mrf.mxu0
        %v5604 = vadd.f32 %v5555, %v5603
        %v5605 = vpop.f32.mrf.mxu0
        %v5606 = vadd.f32 %v5557, %v5605
        %5607 = vdwg.mxu0
        %5608 = vmatpush.bf16.msra.mxu0 %v3297
        %5609 = vmatpush.bf16.msra.mxu0 %v3289
        %5610 = vmatpush.bf16.msra.mxu0 %v3281
        %5611 = vmatpush.bf16.msra.mxu0 %v3273
        %5612 = vmatpush.bf16.msra.mxu0 %v3265
        %5613 = vmatpush.bf16.msra.mxu0 %v3257
        %5614 = vmatpush.bf16.msra.mxu0 %v3249
        %5615 = vmatpush.bf16.msra.mxu0 %v3241
        %5616 = vmatmul.bf16.gmra.mxu0 %v403
        %v5617 = vpop.f32.mrf.mxu0
        %v5618 = vadd.f32 %v5569, %v5617
        %v5619 = vpop.f32.mrf.mxu0
        %v5620 = vadd.f32 %v5571, %v5619
        %5621 = vmatmul.bf16.gmra.mxu0 %v412
        %v5622 = vpop.f32.mrf.mxu0
        %v5623 = vadd.f32 %v5574, %v5622
        %v5624 = vpop.f32.mrf.mxu0
        %v5625 = vadd.f32 %v5576, %v5624
        %5626 = vmatmul.bf16.gmra.mxu0 %v421
        %v5627 = vpop.f32.mrf.mxu0
        %v5628 = vadd.f32 %v5579, %v5627
        %v5629 = vpop.f32.mrf.mxu0
        %v5630 = vadd.f32 %v5581, %v5629
        %5631 = vmatmul.bf16.gmra.mxu0 %v430
        %v5632 = vpop.f32.mrf.mxu0
        %v5633 = vadd.f32 %v5584, %v5632
        %v5634 = vpop.f32.mrf.mxu0
        %v5635 = vadd.f32 %v5586, %v5634
        %5636 = vmatmul.bf16.gmra.mxu0 %v439
        %v5637 = vpop.f32.mrf.mxu0
        %v5638 = vadd.f32 %v5589, %v5637
        %v5639 = vpop.f32.mrf.mxu0
        %v5640 = vadd.f32 %v5591, %v5639
        %5641 = vmatmul.bf16.gmra.mxu0 %v448
        %v5642 = vpop.f32.mrf.mxu0
        %v5643 = vadd.f32 %v5594, %v5642
        %v5644 = vpop.f32.mrf.mxu0
        %v5645 = vadd.f32 %v5596, %v5644
        %5646 = vmatmul.bf16.gmra.mxu0 %v457
        %v5647 = vpop.f32.mrf.mxu0
        %v5648 = vadd.f32 %v5599, %v5647
        %v5649 = vpop.f32.mrf.mxu0
        %v5650 = vadd.f32 %v5601, %v5649
        %5651 = vmatmul.bf16.gmra.mxu0 %v466
        %v5652 = vpop.f32.mrf.mxu0
        %v5653 = vadd.f32 %v5604, %v5652
        %v5654 = vpop.f32.mrf.mxu0
        %v5655 = vadd.f32 %v5606, %v5654
        %5656 = vdwg.mxu0
        %5657 = vmatpush.bf16.msra.mxu0 %v3361
        %5658 = vmatpush.bf16.msra.mxu0 %v3353
        %5659 = vmatpush.bf16.msra.mxu0 %v3345
        %5660 = vmatpush.bf16.msra.mxu0 %v3337
        %5661 = vmatpush.bf16.msra.mxu0 %v3329
        %5662 = vmatpush.bf16.msra.mxu0 %v3321
        %5663 = vmatpush.bf16.msra.mxu0 %v3313
        %5664 = vmatpush.bf16.msra.mxu0 %v3305
        %5665 = vmatmul.bf16.gmra.mxu0 %v404
        %v5666 = vpop.f32.mrf.mxu0
        %v5667 = vadd.f32 %v5618, %v5666
        %v5668 = vpop.f32.mrf.mxu0
        %v5669 = vadd.f32 %v5620, %v5668
        %5670 = vmatmul.bf16.gmra.mxu0 %v413
        %v5671 = vpop.f32.mrf.mxu0
        %v5672 = vadd.f32 %v5623, %v5671
        %v5673 = vpop.f32.mrf.mxu0
        %v5674 = vadd.f32 %v5625, %v5673
        %5675 = vmatmul.bf16.gmra.mxu0 %v422
        %v5676 = vpop.f32.mrf.mxu0
        %v5677 = vadd.f32 %v5628, %v5676
        %v5678 = vpop.f32.mrf.mxu0
        %v5679 = vadd.f32 %v5630, %v5678
        %5680 = vmatmul.bf16.gmra.mxu0 %v431
        %v5681 = vpop.f32.mrf.mxu0
        %v5682 = vadd.f32 %v5633, %v5681
        %v5683 = vpop.f32.mrf.mxu0
        %v5684 = vadd.f32 %v5635, %v5683
        %5685 = vmatmul.bf16.gmra.mxu0 %v440
        %v5686 = vpop.f32.mrf.mxu0
        %v5687 = vadd.f32 %v5638, %v5686
        %v5688 = vpop.f32.mrf.mxu0
        %v5689 = vadd.f32 %v5640, %v5688
        %5690 = vmatmul.bf16.gmra.mxu0 %v449
        %v5691 = vpop.f32.mrf.mxu0
        %v5692 = vadd.f32 %v5643, %v5691
        %v5693 = vpop.f32.mrf.mxu0
        %v5694 = vadd.f32 %v5645, %v5693
        %5695 = vmatmul.bf16.gmra.mxu0 %v458
        %v5696 = vpop.f32.mrf.mxu0
        %v5697 = vadd.f32 %v5648, %v5696
        %v5698 = vpop.f32.mrf.mxu0
        %v5699 = vadd.f32 %v5650, %v5698
        %5700 = vmatmul.bf16.gmra.mxu0 %v467
        %v5701 = vpop.f32.mrf.mxu0
        %v5702 = vadd.f32 %v5653, %v5701
        %v5703 = vpop.f32.mrf.mxu0
        %v5704 = vadd.f32 %v5655, %v5703
        %5705 = vdwg.mxu0
        %5706 = vmatpush.bf16.msra.mxu0 %v2850
        %5707 = vmatpush.bf16.msra.mxu0 %v2842
        %5708 = vmatpush.bf16.msra.mxu0 %v2834
        %5709 = vmatpush.bf16.msra.mxu0 %v2826
        %5710 = vmatpush.bf16.msra.mxu0 %v2818
        %5711 = vmatpush.bf16.msra.mxu0 %v2810
        %5712 = vmatpush.bf16.msra.mxu0 %v2802
        %5713 = vmatpush.bf16.msra.mxu0 %v2794
        %5714 = vmatmul.bf16.gmra.mxu0 %v396
        %v5715 = vpop.f32.mrf.mxu0
        %v5716 = vadd.f32 %v1050, %v5715
        %v5717 = vpop.f32.mrf.mxu0
        %v5718 = vadd.f32 %v1050, %v5717
        %5719 = vmatmul.bf16.gmra.mxu0 %v405
        %v5720 = vpop.f32.mrf.mxu0
        %v5721 = vadd.f32 %v1050, %v5720
        %v5722 = vpop.f32.mrf.mxu0
        %v5723 = vadd.f32 %v1050, %v5722
        %5724 = vmatmul.bf16.gmra.mxu0 %v414
        %v5725 = vpop.f32.mrf.mxu0
        %v5726 = vadd.f32 %v1050, %v5725
        %v5727 = vpop.f32.mrf.mxu0
        %v5728 = vadd.f32 %v1050, %v5727
        %5729 = vmatmul.bf16.gmra.mxu0 %v423
        %v5730 = vpop.f32.mrf.mxu0
        %v5731 = vadd.f32 %v1050, %v5730
        %v5732 = vpop.f32.mrf.mxu0
        %v5733 = vadd.f32 %v1050, %v5732
        %5734 = vmatmul.bf16.gmra.mxu0 %v432
        %v5735 = vpop.f32.mrf.mxu0
        %v5736 = vadd.f32 %v1050, %v5735
        %v5737 = vpop.f32.mrf.mxu0
        %v5738 = vadd.f32 %v1050, %v5737
        %5739 = vmatmul.bf16.gmra.mxu0 %v441
        %v5740 = vpop.f32.mrf.mxu0
        %v5741 = vadd.f32 %v1050, %v5740
        %v5742 = vpop.f32.mrf.mxu0
        %v5743 = vadd.f32 %v1050, %v5742
        %5744 = vmatmul.bf16.gmra.mxu0 %v450
        %v5745 = vpop.f32.mrf.mxu0
        %v5746 = vadd.f32 %v1050, %v5745
        %v5747 = vpop.f32.mrf.mxu0
        %v5748 = vadd.f32 %v1050, %v5747
        %5749 = vmatmul.bf16.gmra.mxu0 %v459
        %v5750 = vpop.f32.mrf.mxu0
        %v5751 = vadd.f32 %v1050, %v5750
        %v5752 = vpop.f32.mrf.mxu0
        %v5753 = vadd.f32 %v1050, %v5752
        %5754 = vdwg.mxu0
        %5755 = vmatpush.bf16.msra.mxu0 %v2914
        %5756 = vmatpush.bf16.msra.mxu0 %v2906
        %5757 = vmatpush.bf16.msra.mxu0 %v2898
        %5758 = vmatpush.bf16.msra.mxu0 %v2890
        %5759 = vmatpush.bf16.msra.mxu0 %v2882
        %5760 = vmatpush.bf16.msra.mxu0 %v2874
        %5761 = vmatpush.bf16.msra.mxu0 %v2866
        %5762 = vmatpush.bf16.msra.mxu0 %v2858
        %5763 = vmatmul.bf16.gmra.mxu0 %v397
        %v5764 = vpop.f32.mrf.mxu0
        %v5765 = vadd.f32 %v5716, %v5764
        %v5766 = vpop.f32.mrf.mxu0
        %v5767 = vadd.f32 %v5718, %v5766
        %5768 = vmatmul.bf16.gmra.mxu0 %v406
        %v5769 = vpop.f32.mrf.mxu0
        %v5770 = vadd.f32 %v5721, %v5769
        %v5771 = vpop.f32.mrf.mxu0
        %v5772 = vadd.f32 %v5723, %v5771
        %5773 = vmatmul.bf16.gmra.mxu0 %v415
        %v5774 = vpop.f32.mrf.mxu0
        %v5775 = vadd.f32 %v5726, %v5774
        %v5776 = vpop.f32.mrf.mxu0
        %v5777 = vadd.f32 %v5728, %v5776
        %5778 = vmatmul.bf16.gmra.mxu0 %v424
        %v5779 = vpop.f32.mrf.mxu0
        %v5780 = vadd.f32 %v5731, %v5779
        %v5781 = vpop.f32.mrf.mxu0
        %v5782 = vadd.f32 %v5733, %v5781
        %5783 = vmatmul.bf16.gmra.mxu0 %v433
        %v5784 = vpop.f32.mrf.mxu0
        %v5785 = vadd.f32 %v5736, %v5784
        %v5786 = vpop.f32.mrf.mxu0
        %v5787 = vadd.f32 %v5738, %v5786
        %5788 = vmatmul.bf16.gmra.mxu0 %v442
        %v5789 = vpop.f32.mrf.mxu0
        %v5790 = vadd.f32 %v5741, %v5789
        %v5791 = vpop.f32.mrf.mxu0
        %v5792 = vadd.f32 %v5743, %v5791
        %5793 = vmatmul.bf16.gmra.mxu0 %v451
        %v5794 = vpop.f32.mrf.mxu0
        %v5795 = vadd.f32 %v5746, %v5794
        %v5796 = vpop.f32.mrf.mxu0
        %v5797 = vadd.f32 %v5748, %v5796
        %5798 = vmatmul.bf16.gmra.mxu0 %v460
        %v5799 = vpop.f32.mrf.mxu0
        %v5800 = vadd.f32 %v5751, %v5799
        %v5801 = vpop.f32.mrf.mxu0
        %v5802 = vadd.f32 %v5753, %v5801
        %5803 = vdwg.mxu0
        %5804 = vmatpush.bf16.msra.mxu0 %v2978
        %5805 = vmatpush.bf16.msra.mxu0 %v2970
        %5806 = vmatpush.bf16.msra.mxu0 %v2962
        %5807 = vmatpush.bf16.msra.mxu0 %v2954
        %5808 = vmatpush.bf16.msra.mxu0 %v2946
        %5809 = vmatpush.bf16.msra.mxu0 %v2938
        %5810 = vmatpush.bf16.msra.mxu0 %v2930
        %5811 = vmatpush.bf16.msra.mxu0 %v2922
        %5812 = vmatmul.bf16.gmra.mxu0 %v398
        %v5813 = vpop.f32.mrf.mxu0
        %v5814 = vadd.f32 %v5765, %v5813
        %v5815 = vpop.f32.mrf.mxu0
        %v5816 = vadd.f32 %v5767, %v5815
        %5817 = vmatmul.bf16.gmra.mxu0 %v407
        %v5818 = vpop.f32.mrf.mxu0
        %v5819 = vadd.f32 %v5770, %v5818
        %v5820 = vpop.f32.mrf.mxu0
        %v5821 = vadd.f32 %v5772, %v5820
        %5822 = vmatmul.bf16.gmra.mxu0 %v416
        %v5823 = vpop.f32.mrf.mxu0
        %v5824 = vadd.f32 %v5775, %v5823
        %v5825 = vpop.f32.mrf.mxu0
        %v5826 = vadd.f32 %v5777, %v5825
        %5827 = vmatmul.bf16.gmra.mxu0 %v425
        %v5828 = vpop.f32.mrf.mxu0
        %v5829 = vadd.f32 %v5780, %v5828
        %v5830 = vpop.f32.mrf.mxu0
        %v5831 = vadd.f32 %v5782, %v5830
        %5832 = vmatmul.bf16.gmra.mxu0 %v434
        %v5833 = vpop.f32.mrf.mxu0
        %v5834 = vadd.f32 %v5785, %v5833
        %v5835 = vpop.f32.mrf.mxu0
        %v5836 = vadd.f32 %v5787, %v5835
        %5837 = vmatmul.bf16.gmra.mxu0 %v443
        %v5838 = vpop.f32.mrf.mxu0
        %v5839 = vadd.f32 %v5790, %v5838
        %v5840 = vpop.f32.mrf.mxu0
        %v5841 = vadd.f32 %v5792, %v5840
        %5842 = vmatmul.bf16.gmra.mxu0 %v452
        %v5843 = vpop.f32.mrf.mxu0
        %v5844 = vadd.f32 %v5795, %v5843
        %v5845 = vpop.f32.mrf.mxu0
        %v5846 = vadd.f32 %v5797, %v5845
        %5847 = vmatmul.bf16.gmra.mxu0 %v461
        %v5848 = vpop.f32.mrf.mxu0
        %v5849 = vadd.f32 %v5800, %v5848
        %v5850 = vpop.f32.mrf.mxu0
        %v5851 = vadd.f32 %v5802, %v5850
        %5852 = vdwg.mxu0
        %5853 = vmatpush.bf16.msra.mxu0 %v3042
        %5854 = vmatpush.bf16.msra.mxu0 %v3034
        %5855 = vmatpush.bf16.msra.mxu0 %v3026
        %5856 = vmatpush.bf16.msra.mxu0 %v3018
        %5857 = vmatpush.bf16.msra.mxu0 %v3010
        %5858 = vmatpush.bf16.msra.mxu0 %v3002
        %5859 = vmatpush.bf16.msra.mxu0 %v2994
        %5860 = vmatpush.bf16.msra.mxu0 %v2986
        %5861 = vmatmul.bf16.gmra.mxu0 %v399
        %v5862 = vpop.f32.mrf.mxu0
        %v5863 = vadd.f32 %v5814, %v5862
        %v5864 = vpop.f32.mrf.mxu0
        %v5865 = vadd.f32 %v5816, %v5864
        %5866 = vmatmul.bf16.gmra.mxu0 %v408
        %v5867 = vpop.f32.mrf.mxu0
        %v5868 = vadd.f32 %v5819, %v5867
        %v5869 = vpop.f32.mrf.mxu0
        %v5870 = vadd.f32 %v5821, %v5869
        %5871 = vmatmul.bf16.gmra.mxu0 %v417
        %v5872 = vpop.f32.mrf.mxu0
        %v5873 = vadd.f32 %v5824, %v5872
        %v5874 = vpop.f32.mrf.mxu0
        %v5875 = vadd.f32 %v5826, %v5874
        %5876 = vmatmul.bf16.gmra.mxu0 %v426
        %v5877 = vpop.f32.mrf.mxu0
        %v5878 = vadd.f32 %v5829, %v5877
        %v5879 = vpop.f32.mrf.mxu0
        %v5880 = vadd.f32 %v5831, %v5879
        %5881 = vmatmul.bf16.gmra.mxu0 %v435
        %v5882 = vpop.f32.mrf.mxu0
        %v5883 = vadd.f32 %v5834, %v5882
        %v5884 = vpop.f32.mrf.mxu0
        %v5885 = vadd.f32 %v5836, %v5884
        %5886 = vmatmul.bf16.gmra.mxu0 %v444
        %v5887 = vpop.f32.mrf.mxu0
        %v5888 = vadd.f32 %v5839, %v5887
        %v5889 = vpop.f32.mrf.mxu0
        %v5890 = vadd.f32 %v5841, %v5889
        %5891 = vmatmul.bf16.gmra.mxu0 %v453
        %v5892 = vpop.f32.mrf.mxu0
        %v5893 = vadd.f32 %v5844, %v5892
        %v5894 = vpop.f32.mrf.mxu0
        %v5895 = vadd.f32 %v5846, %v5894
        %5896 = vmatmul.bf16.gmra.mxu0 %v462
        %v5897 = vpop.f32.mrf.mxu0
        %v5898 = vadd.f32 %v5849, %v5897
        %v5899 = vpop.f32.mrf.mxu0
        %v5900 = vadd.f32 %v5851, %v5899
        %5901 = vdwg.mxu0
        %5902 = vmatpush.bf16.msra.mxu0 %v3106
        %5903 = vmatpush.bf16.msra.mxu0 %v3098
        %5904 = vmatpush.bf16.msra.mxu0 %v3090
        %5905 = vmatpush.bf16.msra.mxu0 %v3082
        %5906 = vmatpush.bf16.msra.mxu0 %v3074
        %5907 = vmatpush.bf16.msra.mxu0 %v3066
        %5908 = vmatpush.bf16.msra.mxu0 %v3058
        %5909 = vmatpush.bf16.msra.mxu0 %v3050
        %5910 = vmatmul.bf16.gmra.mxu0 %v400
        %v5911 = vpop.f32.mrf.mxu0
        %v5912 = vadd.f32 %v5863, %v5911
        %v5913 = vpop.f32.mrf.mxu0
        %v5914 = vadd.f32 %v5865, %v5913
        %5915 = vmatmul.bf16.gmra.mxu0 %v409
        %v5916 = vpop.f32.mrf.mxu0
        %v5917 = vadd.f32 %v5868, %v5916
        %v5918 = vpop.f32.mrf.mxu0
        %v5919 = vadd.f32 %v5870, %v5918
        %5920 = vmatmul.bf16.gmra.mxu0 %v418
        %v5921 = vpop.f32.mrf.mxu0
        %v5922 = vadd.f32 %v5873, %v5921
        %v5923 = vpop.f32.mrf.mxu0
        %v5924 = vadd.f32 %v5875, %v5923
        %5925 = vmatmul.bf16.gmra.mxu0 %v427
        %v5926 = vpop.f32.mrf.mxu0
        %v5927 = vadd.f32 %v5878, %v5926
        %v5928 = vpop.f32.mrf.mxu0
        %v5929 = vadd.f32 %v5880, %v5928
        %5930 = vmatmul.bf16.gmra.mxu0 %v436
        %v5931 = vpop.f32.mrf.mxu0
        %v5932 = vadd.f32 %v5883, %v5931
        %v5933 = vpop.f32.mrf.mxu0
        %v5934 = vadd.f32 %v5885, %v5933
        %5935 = vmatmul.bf16.gmra.mxu0 %v445
        %v5936 = vpop.f32.mrf.mxu0
        %v5937 = vadd.f32 %v5888, %v5936
        %v5938 = vpop.f32.mrf.mxu0
        %v5939 = vadd.f32 %v5890, %v5938
        %5940 = vmatmul.bf16.gmra.mxu0 %v454
        %v5941 = vpop.f32.mrf.mxu0
        %v5942 = vadd.f32 %v5893, %v5941
        %v5943 = vpop.f32.mrf.mxu0
        %v5944 = vadd.f32 %v5895, %v5943
        %5945 = vmatmul.bf16.gmra.mxu0 %v463
        %v5946 = vpop.f32.mrf.mxu0
        %v5947 = vadd.f32 %v5898, %v5946
        %v5948 = vpop.f32.mrf.mxu0
        %v5949 = vadd.f32 %v5900, %v5948
        %5950 = vdwg.mxu0
        %5951 = vmatpush.bf16.msra.mxu0 %v3170
        %5952 = vmatpush.bf16.msra.mxu0 %v3162
        %5953 = vmatpush.bf16.msra.mxu0 %v3154
        %5954 = vmatpush.bf16.msra.mxu0 %v3146
        %5955 = vmatpush.bf16.msra.mxu0 %v3138
        %5956 = vmatpush.bf16.msra.mxu0 %v3130
        %5957 = vmatpush.bf16.msra.mxu0 %v3122
        %5958 = vmatpush.bf16.msra.mxu0 %v3114
        %5959 = vmatmul.bf16.gmra.mxu0 %v401
        %v5960 = vpop.f32.mrf.mxu0
        %v5961 = vadd.f32 %v5912, %v5960
        %v5962 = vpop.f32.mrf.mxu0
        %v5963 = vadd.f32 %v5914, %v5962
        %5964 = vmatmul.bf16.gmra.mxu0 %v410
        %v5965 = vpop.f32.mrf.mxu0
        %v5966 = vadd.f32 %v5917, %v5965
        %v5967 = vpop.f32.mrf.mxu0
        %v5968 = vadd.f32 %v5919, %v5967
        %5969 = vmatmul.bf16.gmra.mxu0 %v419
        %v5970 = vpop.f32.mrf.mxu0
        %v5971 = vadd.f32 %v5922, %v5970
        %v5972 = vpop.f32.mrf.mxu0
        %v5973 = vadd.f32 %v5924, %v5972
        %5974 = vmatmul.bf16.gmra.mxu0 %v428
        %v5975 = vpop.f32.mrf.mxu0
        %v5976 = vadd.f32 %v5927, %v5975
        %v5977 = vpop.f32.mrf.mxu0
        %v5978 = vadd.f32 %v5929, %v5977
        %5979 = vmatmul.bf16.gmra.mxu0 %v437
        %v5980 = vpop.f32.mrf.mxu0
        %v5981 = vadd.f32 %v5932, %v5980
        %v5982 = vpop.f32.mrf.mxu0
        %v5983 = vadd.f32 %v5934, %v5982
        %5984 = vmatmul.bf16.gmra.mxu0 %v446
        %v5985 = vpop.f32.mrf.mxu0
        %v5986 = vadd.f32 %v5937, %v5985
        %v5987 = vpop.f32.mrf.mxu0
        %v5988 = vadd.f32 %v5939, %v5987
        %5989 = vmatmul.bf16.gmra.mxu0 %v455
        %v5990 = vpop.f32.mrf.mxu0
        %v5991 = vadd.f32 %v5942, %v5990
        %v5992 = vpop.f32.mrf.mxu0
        %v5993 = vadd.f32 %v5944, %v5992
        %5994 = vmatmul.bf16.gmra.mxu0 %v464
        %v5995 = vpop.f32.mrf.mxu0
        %v5996 = vadd.f32 %v5947, %v5995
        %v5997 = vpop.f32.mrf.mxu0
        %v5998 = vadd.f32 %v5949, %v5997
        %5999 = vdwg.mxu0
        %6000 = vmatpush.bf16.msra.mxu0 %v3234
        %6001 = vmatpush.bf16.msra.mxu0 %v3226
        %6002 = vmatpush.bf16.msra.mxu0 %v3218
        %6003 = vmatpush.bf16.msra.mxu0 %v3210
        %6004 = vmatpush.bf16.msra.mxu0 %v3202
        %6005 = vmatpush.bf16.msra.mxu0 %v3194
        %6006 = vmatpush.bf16.msra.mxu0 %v3186
        %6007 = vmatpush.bf16.msra.mxu0 %v3178
        %6008 = vmatmul.bf16.gmra.mxu0 %v402
        %v6009 = vpop.f32.mrf.mxu0
        %v6010 = vadd.f32 %v5961, %v6009
        %v6011 = vpop.f32.mrf.mxu0
        %v6012 = vadd.f32 %v5963, %v6011
        %6013 = vmatmul.bf16.gmra.mxu0 %v411
        %v6014 = vpop.f32.mrf.mxu0
        %v6015 = vadd.f32 %v5966, %v6014
        %v6016 = vpop.f32.mrf.mxu0
        %v6017 = vadd.f32 %v5968, %v6016
        %6018 = vmatmul.bf16.gmra.mxu0 %v420
        %v6019 = vpop.f32.mrf.mxu0
        %v6020 = vadd.f32 %v5971, %v6019
        %v6021 = vpop.f32.mrf.mxu0
        %v6022 = vadd.f32 %v5973, %v6021
        %6023 = vmatmul.bf16.gmra.mxu0 %v429
        %v6024 = vpop.f32.mrf.mxu0
        %v6025 = vadd.f32 %v5976, %v6024
        %v6026 = vpop.f32.mrf.mxu0
        %v6027 = vadd.f32 %v5978, %v6026
        %6028 = vmatmul.bf16.gmra.mxu0 %v438
        %v6029 = vpop.f32.mrf.mxu0
        %v6030 = vadd.f32 %v5981, %v6029
        %v6031 = vpop.f32.mrf.mxu0
        %v6032 = vadd.f32 %v5983, %v6031
        %6033 = vmatmul.bf16.gmra.mxu0 %v447
        %v6034 = vpop.f32.mrf.mxu0
        %v6035 = vadd.f32 %v5986, %v6034
        %v6036 = vpop.f32.mrf.mxu0
        %v6037 = vadd.f32 %v5988, %v6036
        %6038 = vmatmul.bf16.gmra.mxu0 %v456
        %v6039 = vpop.f32.mrf.mxu0
        %v6040 = vadd.f32 %v5991, %v6039
        %v6041 = vpop.f32.mrf.mxu0
        %v6042 = vadd.f32 %v5993, %v6041
        %6043 = vmatmul.bf16.gmra.mxu0 %v465
        %v6044 = vpop.f32.mrf.mxu0
        %v6045 = vadd.f32 %v5996, %v6044
        %v6046 = vpop.f32.mrf.mxu0
        %v6047 = vadd.f32 %v5998, %v6046
        %6048 = vdwg.mxu0
        %6049 = vmatpush.bf16.msra.mxu0 %v3298
        %6050 = vmatpush.bf16.msra.mxu0 %v3290
        %6051 = vmatpush.bf16.msra.mxu0 %v3282
        %6052 = vmatpush.bf16.msra.mxu0 %v3274
        %6053 = vmatpush.bf16.msra.mxu0 %v3266
        %6054 = vmatpush.bf16.msra.mxu0 %v3258
        %6055 = vmatpush.bf16.msra.mxu0 %v3250
        %6056 = vmatpush.bf16.msra.mxu0 %v3242
        %6057 = vmatmul.bf16.gmra.mxu0 %v403
        %v6058 = vpop.f32.mrf.mxu0
        %v6059 = vadd.f32 %v6010, %v6058
        %v6060 = vpop.f32.mrf.mxu0
        %v6061 = vadd.f32 %v6012, %v6060
        %6062 = vmatmul.bf16.gmra.mxu0 %v412
        %v6063 = vpop.f32.mrf.mxu0
        %v6064 = vadd.f32 %v6015, %v6063
        %v6065 = vpop.f32.mrf.mxu0
        %v6066 = vadd.f32 %v6017, %v6065
        %6067 = vmatmul.bf16.gmra.mxu0 %v421
        %v6068 = vpop.f32.mrf.mxu0
        %v6069 = vadd.f32 %v6020, %v6068
        %v6070 = vpop.f32.mrf.mxu0
        %v6071 = vadd.f32 %v6022, %v6070
        %6072 = vmatmul.bf16.gmra.mxu0 %v430
        %v6073 = vpop.f32.mrf.mxu0
        %v6074 = vadd.f32 %v6025, %v6073
        %v6075 = vpop.f32.mrf.mxu0
        %v6076 = vadd.f32 %v6027, %v6075
        %6077 = vmatmul.bf16.gmra.mxu0 %v439
        %v6078 = vpop.f32.mrf.mxu0
        %v6079 = vadd.f32 %v6030, %v6078
        %v6080 = vpop.f32.mrf.mxu0
        %v6081 = vadd.f32 %v6032, %v6080
        %6082 = vmatmul.bf16.gmra.mxu0 %v448
        %v6083 = vpop.f32.mrf.mxu0
        %v6084 = vadd.f32 %v6035, %v6083
        %v6085 = vpop.f32.mrf.mxu0
        %v6086 = vadd.f32 %v6037, %v6085
        %6087 = vmatmul.bf16.gmra.mxu0 %v457
        %v6088 = vpop.f32.mrf.mxu0
        %v6089 = vadd.f32 %v6040, %v6088
        %v6090 = vpop.f32.mrf.mxu0
        %v6091 = vadd.f32 %v6042, %v6090
        %6092 = vmatmul.bf16.gmra.mxu0 %v466
        %v6093 = vpop.f32.mrf.mxu0
        %v6094 = vadd.f32 %v6045, %v6093
        %v6095 = vpop.f32.mrf.mxu0
        %v6096 = vadd.f32 %v6047, %v6095
        %6097 = vdwg.mxu0
        %6098 = vmatpush.bf16.msra.mxu0 %v3362
        %6099 = vmatpush.bf16.msra.mxu0 %v3354
        %6100 = vmatpush.bf16.msra.mxu0 %v3346
        %6101 = vmatpush.bf16.msra.mxu0 %v3338
        %6102 = vmatpush.bf16.msra.mxu0 %v3330
        %6103 = vmatpush.bf16.msra.mxu0 %v3322
        %6104 = vmatpush.bf16.msra.mxu0 %v3314
        %6105 = vmatpush.bf16.msra.mxu0 %v3306
        %6106 = vmatmul.bf16.gmra.mxu0 %v404
        %v6107 = vpop.f32.mrf.mxu0
        %v6108 = vadd.f32 %v6059, %v6107
        %v6109 = vpop.f32.mrf.mxu0
        %v6110 = vadd.f32 %v6061, %v6109
        %6111 = vmatmul.bf16.gmra.mxu0 %v413
        %v6112 = vpop.f32.mrf.mxu0
        %v6113 = vadd.f32 %v6064, %v6112
        %v6114 = vpop.f32.mrf.mxu0
        %v6115 = vadd.f32 %v6066, %v6114
        %6116 = vmatmul.bf16.gmra.mxu0 %v422
        %v6117 = vpop.f32.mrf.mxu0
        %v6118 = vadd.f32 %v6069, %v6117
        %v6119 = vpop.f32.mrf.mxu0
        %v6120 = vadd.f32 %v6071, %v6119
        %6121 = vmatmul.bf16.gmra.mxu0 %v431
        %v6122 = vpop.f32.mrf.mxu0
        %v6123 = vadd.f32 %v6074, %v6122
        %v6124 = vpop.f32.mrf.mxu0
        %v6125 = vadd.f32 %v6076, %v6124
        %6126 = vmatmul.bf16.gmra.mxu0 %v440
        %v6127 = vpop.f32.mrf.mxu0
        %v6128 = vadd.f32 %v6079, %v6127
        %v6129 = vpop.f32.mrf.mxu0
        %v6130 = vadd.f32 %v6081, %v6129
        %6131 = vmatmul.bf16.gmra.mxu0 %v449
        %v6132 = vpop.f32.mrf.mxu0
        %v6133 = vadd.f32 %v6084, %v6132
        %v6134 = vpop.f32.mrf.mxu0
        %v6135 = vadd.f32 %v6086, %v6134
        %6136 = vmatmul.bf16.gmra.mxu0 %v458
        %v6137 = vpop.f32.mrf.mxu0
        %v6138 = vadd.f32 %v6089, %v6137
        %v6139 = vpop.f32.mrf.mxu0
        %v6140 = vadd.f32 %v6091, %v6139
        %6141 = vmatmul.bf16.gmra.mxu0 %v467
        %v6142 = vpop.f32.mrf.mxu0
        %v6143 = vadd.f32 %v6094, %v6142
        %v6144 = vpop.f32.mrf.mxu0
        %v6145 = vadd.f32 %v6096, %v6144
        %6146 = vdwg.mxu0
        %6147 = vmatpush.bf16.msra.mxu0 %v2851
        %6148 = vmatpush.bf16.msra.mxu0 %v2843
        %6149 = vmatpush.bf16.msra.mxu0 %v2835
        %6150 = vmatpush.bf16.msra.mxu0 %v2827
        %6151 = vmatpush.bf16.msra.mxu0 %v2819
        %6152 = vmatpush.bf16.msra.mxu0 %v2811
        %6153 = vmatpush.bf16.msra.mxu0 %v2803
        %6154 = vmatpush.bf16.msra.mxu0 %v2795
        %6155 = vmatmul.bf16.gmra.mxu0 %v396
        %v6156 = vpop.f32.mrf.mxu0
        %v6157 = vadd.f32 %v1051, %v6156
        %v6158 = vpop.f32.mrf.mxu0
        %v6159 = vadd.f32 %v1051, %v6158
        %6160 = vmatmul.bf16.gmra.mxu0 %v405
        %v6161 = vpop.f32.mrf.mxu0
        %v6162 = vadd.f32 %v1051, %v6161
        %v6163 = vpop.f32.mrf.mxu0
        %v6164 = vadd.f32 %v1051, %v6163
        %6165 = vmatmul.bf16.gmra.mxu0 %v414
        %v6166 = vpop.f32.mrf.mxu0
        %v6167 = vadd.f32 %v1051, %v6166
        %v6168 = vpop.f32.mrf.mxu0
        %v6169 = vadd.f32 %v1051, %v6168
        %6170 = vmatmul.bf16.gmra.mxu0 %v423
        %v6171 = vpop.f32.mrf.mxu0
        %v6172 = vadd.f32 %v1051, %v6171
        %v6173 = vpop.f32.mrf.mxu0
        %v6174 = vadd.f32 %v1051, %v6173
        %6175 = vmatmul.bf16.gmra.mxu0 %v432
        %v6176 = vpop.f32.mrf.mxu0
        %v6177 = vadd.f32 %v1051, %v6176
        %v6178 = vpop.f32.mrf.mxu0
        %v6179 = vadd.f32 %v1051, %v6178
        %6180 = vmatmul.bf16.gmra.mxu0 %v441
        %v6181 = vpop.f32.mrf.mxu0
        %v6182 = vadd.f32 %v1051, %v6181
        %v6183 = vpop.f32.mrf.mxu0
        %v6184 = vadd.f32 %v1051, %v6183
        %6185 = vmatmul.bf16.gmra.mxu0 %v450
        %v6186 = vpop.f32.mrf.mxu0
        %v6187 = vadd.f32 %v1051, %v6186
        %v6188 = vpop.f32.mrf.mxu0
        %v6189 = vadd.f32 %v1051, %v6188
        %6190 = vmatmul.bf16.gmra.mxu0 %v459
        %v6191 = vpop.f32.mrf.mxu0
        %v6192 = vadd.f32 %v1051, %v6191
        %v6193 = vpop.f32.mrf.mxu0
        %v6194 = vadd.f32 %v1051, %v6193
        %6195 = vdwg.mxu0
        %6196 = vmatpush.bf16.msra.mxu0 %v2915
        %6197 = vmatpush.bf16.msra.mxu0 %v2907
        %6198 = vmatpush.bf16.msra.mxu0 %v2899
        %6199 = vmatpush.bf16.msra.mxu0 %v2891
        %6200 = vmatpush.bf16.msra.mxu0 %v2883
        %6201 = vmatpush.bf16.msra.mxu0 %v2875
        %6202 = vmatpush.bf16.msra.mxu0 %v2867
        %6203 = vmatpush.bf16.msra.mxu0 %v2859
        %6204 = vmatmul.bf16.gmra.mxu0 %v397
        %v6205 = vpop.f32.mrf.mxu0
        %v6206 = vadd.f32 %v6157, %v6205
        %v6207 = vpop.f32.mrf.mxu0
        %v6208 = vadd.f32 %v6159, %v6207
        %6209 = vmatmul.bf16.gmra.mxu0 %v406
        %v6210 = vpop.f32.mrf.mxu0
        %v6211 = vadd.f32 %v6162, %v6210
        %v6212 = vpop.f32.mrf.mxu0
        %v6213 = vadd.f32 %v6164, %v6212
        %6214 = vmatmul.bf16.gmra.mxu0 %v415
        %v6215 = vpop.f32.mrf.mxu0
        %v6216 = vadd.f32 %v6167, %v6215
        %v6217 = vpop.f32.mrf.mxu0
        %v6218 = vadd.f32 %v6169, %v6217
        %6219 = vmatmul.bf16.gmra.mxu0 %v424
        %v6220 = vpop.f32.mrf.mxu0
        %v6221 = vadd.f32 %v6172, %v6220
        %v6222 = vpop.f32.mrf.mxu0
        %v6223 = vadd.f32 %v6174, %v6222
        %6224 = vmatmul.bf16.gmra.mxu0 %v433
        %v6225 = vpop.f32.mrf.mxu0
        %v6226 = vadd.f32 %v6177, %v6225
        %v6227 = vpop.f32.mrf.mxu0
        %v6228 = vadd.f32 %v6179, %v6227
        %6229 = vmatmul.bf16.gmra.mxu0 %v442
        %v6230 = vpop.f32.mrf.mxu0
        %v6231 = vadd.f32 %v6182, %v6230
        %v6232 = vpop.f32.mrf.mxu0
        %v6233 = vadd.f32 %v6184, %v6232
        %6234 = vmatmul.bf16.gmra.mxu0 %v451
        %v6235 = vpop.f32.mrf.mxu0
        %v6236 = vadd.f32 %v6187, %v6235
        %v6237 = vpop.f32.mrf.mxu0
        %v6238 = vadd.f32 %v6189, %v6237
        %6239 = vmatmul.bf16.gmra.mxu0 %v460
        %v6240 = vpop.f32.mrf.mxu0
        %v6241 = vadd.f32 %v6192, %v6240
        %v6242 = vpop.f32.mrf.mxu0
        %v6243 = vadd.f32 %v6194, %v6242
        %6244 = vdwg.mxu0
        %6245 = vmatpush.bf16.msra.mxu0 %v2979
        %6246 = vmatpush.bf16.msra.mxu0 %v2971
        %6247 = vmatpush.bf16.msra.mxu0 %v2963
        %6248 = vmatpush.bf16.msra.mxu0 %v2955
        %6249 = vmatpush.bf16.msra.mxu0 %v2947
        %6250 = vmatpush.bf16.msra.mxu0 %v2939
        %6251 = vmatpush.bf16.msra.mxu0 %v2931
        %6252 = vmatpush.bf16.msra.mxu0 %v2923
        %6253 = vmatmul.bf16.gmra.mxu0 %v398
        %v6254 = vpop.f32.mrf.mxu0
        %v6255 = vadd.f32 %v6206, %v6254
        %v6256 = vpop.f32.mrf.mxu0
        %v6257 = vadd.f32 %v6208, %v6256
        %6258 = vmatmul.bf16.gmra.mxu0 %v407
        %v6259 = vpop.f32.mrf.mxu0
        %v6260 = vadd.f32 %v6211, %v6259
        %v6261 = vpop.f32.mrf.mxu0
        %v6262 = vadd.f32 %v6213, %v6261
        %6263 = vmatmul.bf16.gmra.mxu0 %v416
        %v6264 = vpop.f32.mrf.mxu0
        %v6265 = vadd.f32 %v6216, %v6264
        %v6266 = vpop.f32.mrf.mxu0
        %v6267 = vadd.f32 %v6218, %v6266
        %6268 = vmatmul.bf16.gmra.mxu0 %v425
        %v6269 = vpop.f32.mrf.mxu0
        %v6270 = vadd.f32 %v6221, %v6269
        %v6271 = vpop.f32.mrf.mxu0
        %v6272 = vadd.f32 %v6223, %v6271
        %6273 = vmatmul.bf16.gmra.mxu0 %v434
        %v6274 = vpop.f32.mrf.mxu0
        %v6275 = vadd.f32 %v6226, %v6274
        %v6276 = vpop.f32.mrf.mxu0
        %v6277 = vadd.f32 %v6228, %v6276
        %6278 = vmatmul.bf16.gmra.mxu0 %v443
        %v6279 = vpop.f32.mrf.mxu0
        %v6280 = vadd.f32 %v6231, %v6279
        %v6281 = vpop.f32.mrf.mxu0
        %v6282 = vadd.f32 %v6233, %v6281
        %6283 = vmatmul.bf16.gmra.mxu0 %v452
        %v6284 = vpop.f32.mrf.mxu0
        %v6285 = vadd.f32 %v6236, %v6284
        %v6286 = vpop.f32.mrf.mxu0
        %v6287 = vadd.f32 %v6238, %v6286
        %6288 = vmatmul.bf16.gmra.mxu0 %v461
        %v6289 = vpop.f32.mrf.mxu0
        %v6290 = vadd.f32 %v6241, %v6289
        %v6291 = vpop.f32.mrf.mxu0
        %v6292 = vadd.f32 %v6243, %v6291
        %6293 = vdwg.mxu0
        %6294 = vmatpush.bf16.msra.mxu0 %v3043
        %6295 = vmatpush.bf16.msra.mxu0 %v3035
        %6296 = vmatpush.bf16.msra.mxu0 %v3027
        %6297 = vmatpush.bf16.msra.mxu0 %v3019
        %6298 = vmatpush.bf16.msra.mxu0 %v3011
        %6299 = vmatpush.bf16.msra.mxu0 %v3003
        %6300 = vmatpush.bf16.msra.mxu0 %v2995
        %6301 = vmatpush.bf16.msra.mxu0 %v2987
        %6302 = vmatmul.bf16.gmra.mxu0 %v399
        %v6303 = vpop.f32.mrf.mxu0
        %v6304 = vadd.f32 %v6255, %v6303
        %v6305 = vpop.f32.mrf.mxu0
        %v6306 = vadd.f32 %v6257, %v6305
        %6307 = vmatmul.bf16.gmra.mxu0 %v408
        %v6308 = vpop.f32.mrf.mxu0
        %v6309 = vadd.f32 %v6260, %v6308
        %v6310 = vpop.f32.mrf.mxu0
        %v6311 = vadd.f32 %v6262, %v6310
        %6312 = vmatmul.bf16.gmra.mxu0 %v417
        %v6313 = vpop.f32.mrf.mxu0
        %v6314 = vadd.f32 %v6265, %v6313
        %v6315 = vpop.f32.mrf.mxu0
        %v6316 = vadd.f32 %v6267, %v6315
        %6317 = vmatmul.bf16.gmra.mxu0 %v426
        %v6318 = vpop.f32.mrf.mxu0
        %v6319 = vadd.f32 %v6270, %v6318
        %v6320 = vpop.f32.mrf.mxu0
        %v6321 = vadd.f32 %v6272, %v6320
        %6322 = vmatmul.bf16.gmra.mxu0 %v435
        %v6323 = vpop.f32.mrf.mxu0
        %v6324 = vadd.f32 %v6275, %v6323
        %v6325 = vpop.f32.mrf.mxu0
        %v6326 = vadd.f32 %v6277, %v6325
        %6327 = vmatmul.bf16.gmra.mxu0 %v444
        %v6328 = vpop.f32.mrf.mxu0
        %v6329 = vadd.f32 %v6280, %v6328
        %v6330 = vpop.f32.mrf.mxu0
        %v6331 = vadd.f32 %v6282, %v6330
        %6332 = vmatmul.bf16.gmra.mxu0 %v453
        %v6333 = vpop.f32.mrf.mxu0
        %v6334 = vadd.f32 %v6285, %v6333
        %v6335 = vpop.f32.mrf.mxu0
        %v6336 = vadd.f32 %v6287, %v6335
        %6337 = vmatmul.bf16.gmra.mxu0 %v462
        %v6338 = vpop.f32.mrf.mxu0
        %v6339 = vadd.f32 %v6290, %v6338
        %v6340 = vpop.f32.mrf.mxu0
        %v6341 = vadd.f32 %v6292, %v6340
        %6342 = vdwg.mxu0
        %6343 = vmatpush.bf16.msra.mxu0 %v3107
        %6344 = vmatpush.bf16.msra.mxu0 %v3099
        %6345 = vmatpush.bf16.msra.mxu0 %v3091
        %6346 = vmatpush.bf16.msra.mxu0 %v3083
        %6347 = vmatpush.bf16.msra.mxu0 %v3075
        %6348 = vmatpush.bf16.msra.mxu0 %v3067
        %6349 = vmatpush.bf16.msra.mxu0 %v3059
        %6350 = vmatpush.bf16.msra.mxu0 %v3051
        %6351 = vmatmul.bf16.gmra.mxu0 %v400
        %v6352 = vpop.f32.mrf.mxu0
        %v6353 = vadd.f32 %v6304, %v6352
        %v6354 = vpop.f32.mrf.mxu0
        %v6355 = vadd.f32 %v6306, %v6354
        %6356 = vmatmul.bf16.gmra.mxu0 %v409
        %v6357 = vpop.f32.mrf.mxu0
        %v6358 = vadd.f32 %v6309, %v6357
        %v6359 = vpop.f32.mrf.mxu0
        %v6360 = vadd.f32 %v6311, %v6359
        %6361 = vmatmul.bf16.gmra.mxu0 %v418
        %v6362 = vpop.f32.mrf.mxu0
        %v6363 = vadd.f32 %v6314, %v6362
        %v6364 = vpop.f32.mrf.mxu0
        %v6365 = vadd.f32 %v6316, %v6364
        %6366 = vmatmul.bf16.gmra.mxu0 %v427
        %v6367 = vpop.f32.mrf.mxu0
        %v6368 = vadd.f32 %v6319, %v6367
        %v6369 = vpop.f32.mrf.mxu0
        %v6370 = vadd.f32 %v6321, %v6369
        %6371 = vmatmul.bf16.gmra.mxu0 %v436
        %v6372 = vpop.f32.mrf.mxu0
        %v6373 = vadd.f32 %v6324, %v6372
        %v6374 = vpop.f32.mrf.mxu0
        %v6375 = vadd.f32 %v6326, %v6374
        %6376 = vmatmul.bf16.gmra.mxu0 %v445
        %v6377 = vpop.f32.mrf.mxu0
        %v6378 = vadd.f32 %v6329, %v6377
        %v6379 = vpop.f32.mrf.mxu0
        %v6380 = vadd.f32 %v6331, %v6379
        %6381 = vmatmul.bf16.gmra.mxu0 %v454
        %v6382 = vpop.f32.mrf.mxu0
        %v6383 = vadd.f32 %v6334, %v6382
        %v6384 = vpop.f32.mrf.mxu0
        %v6385 = vadd.f32 %v6336, %v6384
        %6386 = vmatmul.bf16.gmra.mxu0 %v463
        %v6387 = vpop.f32.mrf.mxu0
        %v6388 = vadd.f32 %v6339, %v6387
        %v6389 = vpop.f32.mrf.mxu0
        %v6390 = vadd.f32 %v6341, %v6389
        %6391 = vdwg.mxu0
        %6392 = vmatpush.bf16.msra.mxu0 %v3171
        %6393 = vmatpush.bf16.msra.mxu0 %v3163
        %6394 = vmatpush.bf16.msra.mxu0 %v3155
        %6395 = vmatpush.bf16.msra.mxu0 %v3147
        %6396 = vmatpush.bf16.msra.mxu0 %v3139
        %6397 = vmatpush.bf16.msra.mxu0 %v3131
        %6398 = vmatpush.bf16.msra.mxu0 %v3123
        %6399 = vmatpush.bf16.msra.mxu0 %v3115
        %6400 = vmatmul.bf16.gmra.mxu0 %v401
        %v6401 = vpop.f32.mrf.mxu0
        %v6402 = vadd.f32 %v6353, %v6401
        %v6403 = vpop.f32.mrf.mxu0
        %v6404 = vadd.f32 %v6355, %v6403
        %6405 = vmatmul.bf16.gmra.mxu0 %v410
        %v6406 = vpop.f32.mrf.mxu0
        %v6407 = vadd.f32 %v6358, %v6406
        %v6408 = vpop.f32.mrf.mxu0
        %v6409 = vadd.f32 %v6360, %v6408
        %6410 = vmatmul.bf16.gmra.mxu0 %v419
        %v6411 = vpop.f32.mrf.mxu0
        %v6412 = vadd.f32 %v6363, %v6411
        %v6413 = vpop.f32.mrf.mxu0
        %v6414 = vadd.f32 %v6365, %v6413
        %6415 = vmatmul.bf16.gmra.mxu0 %v428
        %v6416 = vpop.f32.mrf.mxu0
        %v6417 = vadd.f32 %v6368, %v6416
        %v6418 = vpop.f32.mrf.mxu0
        %v6419 = vadd.f32 %v6370, %v6418
        %6420 = vmatmul.bf16.gmra.mxu0 %v437
        %v6421 = vpop.f32.mrf.mxu0
        %v6422 = vadd.f32 %v6373, %v6421
        %v6423 = vpop.f32.mrf.mxu0
        %v6424 = vadd.f32 %v6375, %v6423
        %6425 = vmatmul.bf16.gmra.mxu0 %v446
        %v6426 = vpop.f32.mrf.mxu0
        %v6427 = vadd.f32 %v6378, %v6426
        %v6428 = vpop.f32.mrf.mxu0
        %v6429 = vadd.f32 %v6380, %v6428
        %6430 = vmatmul.bf16.gmra.mxu0 %v455
        %v6431 = vpop.f32.mrf.mxu0
        %v6432 = vadd.f32 %v6383, %v6431
        %v6433 = vpop.f32.mrf.mxu0
        %v6434 = vadd.f32 %v6385, %v6433
        %6435 = vmatmul.bf16.gmra.mxu0 %v464
        %v6436 = vpop.f32.mrf.mxu0
        %v6437 = vadd.f32 %v6388, %v6436
        %v6438 = vpop.f32.mrf.mxu0
        %v6439 = vadd.f32 %v6390, %v6438
        %6440 = vdwg.mxu0
        %6441 = vmatpush.bf16.msra.mxu0 %v3235
        %6442 = vmatpush.bf16.msra.mxu0 %v3227
        %6443 = vmatpush.bf16.msra.mxu0 %v3219
        %6444 = vmatpush.bf16.msra.mxu0 %v3211
        %6445 = vmatpush.bf16.msra.mxu0 %v3203
        %6446 = vmatpush.bf16.msra.mxu0 %v3195
        %6447 = vmatpush.bf16.msra.mxu0 %v3187
        %6448 = vmatpush.bf16.msra.mxu0 %v3179
        %6449 = vmatmul.bf16.gmra.mxu0 %v402
        %v6450 = vpop.f32.mrf.mxu0
        %v6451 = vadd.f32 %v6402, %v6450
        %v6452 = vpop.f32.mrf.mxu0
        %v6453 = vadd.f32 %v6404, %v6452
        %6454 = vmatmul.bf16.gmra.mxu0 %v411
        %v6455 = vpop.f32.mrf.mxu0
        %v6456 = vadd.f32 %v6407, %v6455
        %v6457 = vpop.f32.mrf.mxu0
        %v6458 = vadd.f32 %v6409, %v6457
        %6459 = vmatmul.bf16.gmra.mxu0 %v420
        %v6460 = vpop.f32.mrf.mxu0
        %v6461 = vadd.f32 %v6412, %v6460
        %v6462 = vpop.f32.mrf.mxu0
        %v6463 = vadd.f32 %v6414, %v6462
        %6464 = vmatmul.bf16.gmra.mxu0 %v429
        %v6465 = vpop.f32.mrf.mxu0
        %v6466 = vadd.f32 %v6417, %v6465
        %v6467 = vpop.f32.mrf.mxu0
        %v6468 = vadd.f32 %v6419, %v6467
        %6469 = vmatmul.bf16.gmra.mxu0 %v438
        %v6470 = vpop.f32.mrf.mxu0
        %v6471 = vadd.f32 %v6422, %v6470
        %v6472 = vpop.f32.mrf.mxu0
        %v6473 = vadd.f32 %v6424, %v6472
        %6474 = vmatmul.bf16.gmra.mxu0 %v447
        %v6475 = vpop.f32.mrf.mxu0
        %v6476 = vadd.f32 %v6427, %v6475
        %v6477 = vpop.f32.mrf.mxu0
        %v6478 = vadd.f32 %v6429, %v6477
        %6479 = vmatmul.bf16.gmra.mxu0 %v456
        %v6480 = vpop.f32.mrf.mxu0
        %v6481 = vadd.f32 %v6432, %v6480
        %v6482 = vpop.f32.mrf.mxu0
        %v6483 = vadd.f32 %v6434, %v6482
        %6484 = vmatmul.bf16.gmra.mxu0 %v465
        %v6485 = vpop.f32.mrf.mxu0
        %v6486 = vadd.f32 %v6437, %v6485
        %v6487 = vpop.f32.mrf.mxu0
        %v6488 = vadd.f32 %v6439, %v6487
        %6489 = vdwg.mxu0
        %6490 = vmatpush.bf16.msra.mxu0 %v3299
        %6491 = vmatpush.bf16.msra.mxu0 %v3291
        %6492 = vmatpush.bf16.msra.mxu0 %v3283
        %6493 = vmatpush.bf16.msra.mxu0 %v3275
        %6494 = vmatpush.bf16.msra.mxu0 %v3267
        %6495 = vmatpush.bf16.msra.mxu0 %v3259
        %6496 = vmatpush.bf16.msra.mxu0 %v3251
        %6497 = vmatpush.bf16.msra.mxu0 %v3243
        %6498 = vmatmul.bf16.gmra.mxu0 %v403
        %v6499 = vpop.f32.mrf.mxu0
        %v6500 = vadd.f32 %v6451, %v6499
        %v6501 = vpop.f32.mrf.mxu0
        %v6502 = vadd.f32 %v6453, %v6501
        %6503 = vmatmul.bf16.gmra.mxu0 %v412
        %v6504 = vpop.f32.mrf.mxu0
        %v6505 = vadd.f32 %v6456, %v6504
        %v6506 = vpop.f32.mrf.mxu0
        %v6507 = vadd.f32 %v6458, %v6506
        %6508 = vmatmul.bf16.gmra.mxu0 %v421
        %v6509 = vpop.f32.mrf.mxu0
        %v6510 = vadd.f32 %v6461, %v6509
        %v6511 = vpop.f32.mrf.mxu0
        %v6512 = vadd.f32 %v6463, %v6511
        %6513 = vmatmul.bf16.gmra.mxu0 %v430
        %v6514 = vpop.f32.mrf.mxu0
        %v6515 = vadd.f32 %v6466, %v6514
        %v6516 = vpop.f32.mrf.mxu0
        %v6517 = vadd.f32 %v6468, %v6516
        %6518 = vmatmul.bf16.gmra.mxu0 %v439
        %v6519 = vpop.f32.mrf.mxu0
        %v6520 = vadd.f32 %v6471, %v6519
        %v6521 = vpop.f32.mrf.mxu0
        %v6522 = vadd.f32 %v6473, %v6521
        %6523 = vmatmul.bf16.gmra.mxu0 %v448
        %v6524 = vpop.f32.mrf.mxu0
        %v6525 = vadd.f32 %v6476, %v6524
        %v6526 = vpop.f32.mrf.mxu0
        %v6527 = vadd.f32 %v6478, %v6526
        %6528 = vmatmul.bf16.gmra.mxu0 %v457
        %v6529 = vpop.f32.mrf.mxu0
        %v6530 = vadd.f32 %v6481, %v6529
        %v6531 = vpop.f32.mrf.mxu0
        %v6532 = vadd.f32 %v6483, %v6531
        %6533 = vmatmul.bf16.gmra.mxu0 %v466
        %v6534 = vpop.f32.mrf.mxu0
        %v6535 = vadd.f32 %v6486, %v6534
        %v6536 = vpop.f32.mrf.mxu0
        %v6537 = vadd.f32 %v6488, %v6536
        %6538 = vdwg.mxu0
        %6539 = vmatpush.bf16.msra.mxu0 %v3363
        %6540 = vmatpush.bf16.msra.mxu0 %v3355
        %6541 = vmatpush.bf16.msra.mxu0 %v3347
        %6542 = vmatpush.bf16.msra.mxu0 %v3339
        %6543 = vmatpush.bf16.msra.mxu0 %v3331
        %6544 = vmatpush.bf16.msra.mxu0 %v3323
        %6545 = vmatpush.bf16.msra.mxu0 %v3315
        %6546 = vmatpush.bf16.msra.mxu0 %v3307
        %6547 = vmatmul.bf16.gmra.mxu0 %v404
        %v6548 = vpop.f32.mrf.mxu0
        %v6549 = vadd.f32 %v6500, %v6548
        %v6550 = vpop.f32.mrf.mxu0
        %v6551 = vadd.f32 %v6502, %v6550
        %6552 = vmatmul.bf16.gmra.mxu0 %v413
        %v6553 = vpop.f32.mrf.mxu0
        %v6554 = vadd.f32 %v6505, %v6553
        %v6555 = vpop.f32.mrf.mxu0
        %v6556 = vadd.f32 %v6507, %v6555
        %6557 = vmatmul.bf16.gmra.mxu0 %v422
        %v6558 = vpop.f32.mrf.mxu0
        %v6559 = vadd.f32 %v6510, %v6558
        %v6560 = vpop.f32.mrf.mxu0
        %v6561 = vadd.f32 %v6512, %v6560
        %6562 = vmatmul.bf16.gmra.mxu0 %v431
        %v6563 = vpop.f32.mrf.mxu0
        %v6564 = vadd.f32 %v6515, %v6563
        %v6565 = vpop.f32.mrf.mxu0
        %v6566 = vadd.f32 %v6517, %v6565
        %6567 = vmatmul.bf16.gmra.mxu0 %v440
        %v6568 = vpop.f32.mrf.mxu0
        %v6569 = vadd.f32 %v6520, %v6568
        %v6570 = vpop.f32.mrf.mxu0
        %v6571 = vadd.f32 %v6522, %v6570
        %6572 = vmatmul.bf16.gmra.mxu0 %v449
        %v6573 = vpop.f32.mrf.mxu0
        %v6574 = vadd.f32 %v6525, %v6573
        %v6575 = vpop.f32.mrf.mxu0
        %v6576 = vadd.f32 %v6527, %v6575
        %6577 = vmatmul.bf16.gmra.mxu0 %v458
        %v6578 = vpop.f32.mrf.mxu0
        %v6579 = vadd.f32 %v6530, %v6578
        %v6580 = vpop.f32.mrf.mxu0
        %v6581 = vadd.f32 %v6532, %v6580
        %6582 = vmatmul.bf16.gmra.mxu0 %v467
        %v6583 = vpop.f32.mrf.mxu0
        %v6584 = vadd.f32 %v6535, %v6583
        %v6585 = vpop.f32.mrf.mxu0
        %v6586 = vadd.f32 %v6537, %v6585
        %6587 = vdwg.mxu0
        %6588 = vmatpush.bf16.msra.mxu0 %v2852
        %6589 = vmatpush.bf16.msra.mxu0 %v2844
        %6590 = vmatpush.bf16.msra.mxu0 %v2836
        %6591 = vmatpush.bf16.msra.mxu0 %v2828
        %6592 = vmatpush.bf16.msra.mxu0 %v2820
        %6593 = vmatpush.bf16.msra.mxu0 %v2812
        %6594 = vmatpush.bf16.msra.mxu0 %v2804
        %6595 = vmatpush.bf16.msra.mxu0 %v2796
        %6596 = vmatmul.bf16.gmra.mxu0 %v396
        %v6597 = vpop.f32.mrf.mxu0
        %v6598 = vadd.f32 %v1052, %v6597
        %v6599 = vpop.f32.mrf.mxu0
        %v6600 = vadd.f32 %v1052, %v6599
        %6601 = vmatmul.bf16.gmra.mxu0 %v405
        %v6602 = vpop.f32.mrf.mxu0
        %v6603 = vadd.f32 %v1052, %v6602
        %v6604 = vpop.f32.mrf.mxu0
        %v6605 = vadd.f32 %v1052, %v6604
        %6606 = vmatmul.bf16.gmra.mxu0 %v414
        %v6607 = vpop.f32.mrf.mxu0
        %v6608 = vadd.f32 %v1052, %v6607
        %v6609 = vpop.f32.mrf.mxu0
        %v6610 = vadd.f32 %v1052, %v6609
        %6611 = vmatmul.bf16.gmra.mxu0 %v423
        %v6612 = vpop.f32.mrf.mxu0
        %v6613 = vadd.f32 %v1052, %v6612
        %v6614 = vpop.f32.mrf.mxu0
        %v6615 = vadd.f32 %v1052, %v6614
        %6616 = vmatmul.bf16.gmra.mxu0 %v432
        %v6617 = vpop.f32.mrf.mxu0
        %v6618 = vadd.f32 %v1052, %v6617
        %v6619 = vpop.f32.mrf.mxu0
        %v6620 = vadd.f32 %v1052, %v6619
        %6621 = vmatmul.bf16.gmra.mxu0 %v441
        %v6622 = vpop.f32.mrf.mxu0
        %v6623 = vadd.f32 %v1052, %v6622
        %v6624 = vpop.f32.mrf.mxu0
        %v6625 = vadd.f32 %v1052, %v6624
        %6626 = vmatmul.bf16.gmra.mxu0 %v450
        %v6627 = vpop.f32.mrf.mxu0
        %v6628 = vadd.f32 %v1052, %v6627
        %v6629 = vpop.f32.mrf.mxu0
        %v6630 = vadd.f32 %v1052, %v6629
        %6631 = vmatmul.bf16.gmra.mxu0 %v459
        %v6632 = vpop.f32.mrf.mxu0
        %v6633 = vadd.f32 %v1052, %v6632
        %v6634 = vpop.f32.mrf.mxu0
        %v6635 = vadd.f32 %v1052, %v6634
        %6636 = vdwg.mxu0
        %6637 = vmatpush.bf16.msra.mxu0 %v2916
        %6638 = vmatpush.bf16.msra.mxu0 %v2908
        %6639 = vmatpush.bf16.msra.mxu0 %v2900
        %6640 = vmatpush.bf16.msra.mxu0 %v2892
        %6641 = vmatpush.bf16.msra.mxu0 %v2884
        %6642 = vmatpush.bf16.msra.mxu0 %v2876
        %6643 = vmatpush.bf16.msra.mxu0 %v2868
        %6644 = vmatpush.bf16.msra.mxu0 %v2860
        %6645 = vmatmul.bf16.gmra.mxu0 %v397
        %v6646 = vpop.f32.mrf.mxu0
        %v6647 = vadd.f32 %v6598, %v6646
        %v6648 = vpop.f32.mrf.mxu0
        %v6649 = vadd.f32 %v6600, %v6648
        %6650 = vmatmul.bf16.gmra.mxu0 %v406
        %v6651 = vpop.f32.mrf.mxu0
        %v6652 = vadd.f32 %v6603, %v6651
        %v6653 = vpop.f32.mrf.mxu0
        %v6654 = vadd.f32 %v6605, %v6653
        %6655 = vmatmul.bf16.gmra.mxu0 %v415
        %v6656 = vpop.f32.mrf.mxu0
        %v6657 = vadd.f32 %v6608, %v6656
        %v6658 = vpop.f32.mrf.mxu0
        %v6659 = vadd.f32 %v6610, %v6658
        %6660 = vmatmul.bf16.gmra.mxu0 %v424
        %v6661 = vpop.f32.mrf.mxu0
        %v6662 = vadd.f32 %v6613, %v6661
        %v6663 = vpop.f32.mrf.mxu0
        %v6664 = vadd.f32 %v6615, %v6663
        %6665 = vmatmul.bf16.gmra.mxu0 %v433
        %v6666 = vpop.f32.mrf.mxu0
        %v6667 = vadd.f32 %v6618, %v6666
        %v6668 = vpop.f32.mrf.mxu0
        %v6669 = vadd.f32 %v6620, %v6668
        %6670 = vmatmul.bf16.gmra.mxu0 %v442
        %v6671 = vpop.f32.mrf.mxu0
        %v6672 = vadd.f32 %v6623, %v6671
        %v6673 = vpop.f32.mrf.mxu0
        %v6674 = vadd.f32 %v6625, %v6673
        %6675 = vmatmul.bf16.gmra.mxu0 %v451
        %v6676 = vpop.f32.mrf.mxu0
        %v6677 = vadd.f32 %v6628, %v6676
        %v6678 = vpop.f32.mrf.mxu0
        %v6679 = vadd.f32 %v6630, %v6678
        %6680 = vmatmul.bf16.gmra.mxu0 %v460
        %v6681 = vpop.f32.mrf.mxu0
        %v6682 = vadd.f32 %v6633, %v6681
        %v6683 = vpop.f32.mrf.mxu0
        %v6684 = vadd.f32 %v6635, %v6683
        %6685 = vdwg.mxu0
        %6686 = vmatpush.bf16.msra.mxu0 %v2980
        %6687 = vmatpush.bf16.msra.mxu0 %v2972
        %6688 = vmatpush.bf16.msra.mxu0 %v2964
        %6689 = vmatpush.bf16.msra.mxu0 %v2956
        %6690 = vmatpush.bf16.msra.mxu0 %v2948
        %6691 = vmatpush.bf16.msra.mxu0 %v2940
        %6692 = vmatpush.bf16.msra.mxu0 %v2932
        %6693 = vmatpush.bf16.msra.mxu0 %v2924
        %6694 = vmatmul.bf16.gmra.mxu0 %v398
        %v6695 = vpop.f32.mrf.mxu0
        %v6696 = vadd.f32 %v6647, %v6695
        %v6697 = vpop.f32.mrf.mxu0
        %v6698 = vadd.f32 %v6649, %v6697
        %6699 = vmatmul.bf16.gmra.mxu0 %v407
        %v6700 = vpop.f32.mrf.mxu0
        %v6701 = vadd.f32 %v6652, %v6700
        %v6702 = vpop.f32.mrf.mxu0
        %v6703 = vadd.f32 %v6654, %v6702
        %6704 = vmatmul.bf16.gmra.mxu0 %v416
        %v6705 = vpop.f32.mrf.mxu0
        %v6706 = vadd.f32 %v6657, %v6705
        %v6707 = vpop.f32.mrf.mxu0
        %v6708 = vadd.f32 %v6659, %v6707
        %6709 = vmatmul.bf16.gmra.mxu0 %v425
        %v6710 = vpop.f32.mrf.mxu0
        %v6711 = vadd.f32 %v6662, %v6710
        %v6712 = vpop.f32.mrf.mxu0
        %v6713 = vadd.f32 %v6664, %v6712
        %6714 = vmatmul.bf16.gmra.mxu0 %v434
        %v6715 = vpop.f32.mrf.mxu0
        %v6716 = vadd.f32 %v6667, %v6715
        %v6717 = vpop.f32.mrf.mxu0
        %v6718 = vadd.f32 %v6669, %v6717
        %6719 = vmatmul.bf16.gmra.mxu0 %v443
        %v6720 = vpop.f32.mrf.mxu0
        %v6721 = vadd.f32 %v6672, %v6720
        %v6722 = vpop.f32.mrf.mxu0
        %v6723 = vadd.f32 %v6674, %v6722
        %6724 = vmatmul.bf16.gmra.mxu0 %v452
        %v6725 = vpop.f32.mrf.mxu0
        %v6726 = vadd.f32 %v6677, %v6725
        %v6727 = vpop.f32.mrf.mxu0
        %v6728 = vadd.f32 %v6679, %v6727
        %6729 = vmatmul.bf16.gmra.mxu0 %v461
        %v6730 = vpop.f32.mrf.mxu0
        %v6731 = vadd.f32 %v6682, %v6730
        %v6732 = vpop.f32.mrf.mxu0
        %v6733 = vadd.f32 %v6684, %v6732
        %6734 = vdwg.mxu0
        %6735 = vmatpush.bf16.msra.mxu0 %v3044
        %6736 = vmatpush.bf16.msra.mxu0 %v3036
        %6737 = vmatpush.bf16.msra.mxu0 %v3028
        %6738 = vmatpush.bf16.msra.mxu0 %v3020
        %6739 = vmatpush.bf16.msra.mxu0 %v3012
        %6740 = vmatpush.bf16.msra.mxu0 %v3004
        %6741 = vmatpush.bf16.msra.mxu0 %v2996
        %6742 = vmatpush.bf16.msra.mxu0 %v2988
        %6743 = vmatmul.bf16.gmra.mxu0 %v399
        %v6744 = vpop.f32.mrf.mxu0
        %v6745 = vadd.f32 %v6696, %v6744
        %v6746 = vpop.f32.mrf.mxu0
        %v6747 = vadd.f32 %v6698, %v6746
        %6748 = vmatmul.bf16.gmra.mxu0 %v408
        %v6749 = vpop.f32.mrf.mxu0
        %v6750 = vadd.f32 %v6701, %v6749
        %v6751 = vpop.f32.mrf.mxu0
        %v6752 = vadd.f32 %v6703, %v6751
        %6753 = vmatmul.bf16.gmra.mxu0 %v417
        %v6754 = vpop.f32.mrf.mxu0
        %v6755 = vadd.f32 %v6706, %v6754
        %v6756 = vpop.f32.mrf.mxu0
        %v6757 = vadd.f32 %v6708, %v6756
        %6758 = vmatmul.bf16.gmra.mxu0 %v426
        %v6759 = vpop.f32.mrf.mxu0
        %v6760 = vadd.f32 %v6711, %v6759
        %v6761 = vpop.f32.mrf.mxu0
        %v6762 = vadd.f32 %v6713, %v6761
        %6763 = vmatmul.bf16.gmra.mxu0 %v435
        %v6764 = vpop.f32.mrf.mxu0
        %v6765 = vadd.f32 %v6716, %v6764
        %v6766 = vpop.f32.mrf.mxu0
        %v6767 = vadd.f32 %v6718, %v6766
        %6768 = vmatmul.bf16.gmra.mxu0 %v444
        %v6769 = vpop.f32.mrf.mxu0
        %v6770 = vadd.f32 %v6721, %v6769
        %v6771 = vpop.f32.mrf.mxu0
        %v6772 = vadd.f32 %v6723, %v6771
        %6773 = vmatmul.bf16.gmra.mxu0 %v453
        %v6774 = vpop.f32.mrf.mxu0
        %v6775 = vadd.f32 %v6726, %v6774
        %v6776 = vpop.f32.mrf.mxu0
        %v6777 = vadd.f32 %v6728, %v6776
        %6778 = vmatmul.bf16.gmra.mxu0 %v462
        %v6779 = vpop.f32.mrf.mxu0
        %v6780 = vadd.f32 %v6731, %v6779
        %v6781 = vpop.f32.mrf.mxu0
        %v6782 = vadd.f32 %v6733, %v6781
        %6783 = vdwg.mxu0
        %6784 = vmatpush.bf16.msra.mxu0 %v3108
        %6785 = vmatpush.bf16.msra.mxu0 %v3100
        %6786 = vmatpush.bf16.msra.mxu0 %v3092
        %6787 = vmatpush.bf16.msra.mxu0 %v3084
        %6788 = vmatpush.bf16.msra.mxu0 %v3076
        %6789 = vmatpush.bf16.msra.mxu0 %v3068
        %6790 = vmatpush.bf16.msra.mxu0 %v3060
        %6791 = vmatpush.bf16.msra.mxu0 %v3052
        %6792 = vmatmul.bf16.gmra.mxu0 %v400
        %v6793 = vpop.f32.mrf.mxu0
        %v6794 = vadd.f32 %v6745, %v6793
        %v6795 = vpop.f32.mrf.mxu0
        %v6796 = vadd.f32 %v6747, %v6795
        %6797 = vmatmul.bf16.gmra.mxu0 %v409
        %v6798 = vpop.f32.mrf.mxu0
        %v6799 = vadd.f32 %v6750, %v6798
        %v6800 = vpop.f32.mrf.mxu0
        %v6801 = vadd.f32 %v6752, %v6800
        %6802 = vmatmul.bf16.gmra.mxu0 %v418
        %v6803 = vpop.f32.mrf.mxu0
        %v6804 = vadd.f32 %v6755, %v6803
        %v6805 = vpop.f32.mrf.mxu0
        %v6806 = vadd.f32 %v6757, %v6805
        %6807 = vmatmul.bf16.gmra.mxu0 %v427
        %v6808 = vpop.f32.mrf.mxu0
        %v6809 = vadd.f32 %v6760, %v6808
        %v6810 = vpop.f32.mrf.mxu0
        %v6811 = vadd.f32 %v6762, %v6810
        %6812 = vmatmul.bf16.gmra.mxu0 %v436
        %v6813 = vpop.f32.mrf.mxu0
        %v6814 = vadd.f32 %v6765, %v6813
        %v6815 = vpop.f32.mrf.mxu0
        %v6816 = vadd.f32 %v6767, %v6815
        %6817 = vmatmul.bf16.gmra.mxu0 %v445
        %v6818 = vpop.f32.mrf.mxu0
        %v6819 = vadd.f32 %v6770, %v6818
        %v6820 = vpop.f32.mrf.mxu0
        %v6821 = vadd.f32 %v6772, %v6820
        %6822 = vmatmul.bf16.gmra.mxu0 %v454
        %v6823 = vpop.f32.mrf.mxu0
        %v6824 = vadd.f32 %v6775, %v6823
        %v6825 = vpop.f32.mrf.mxu0
        %v6826 = vadd.f32 %v6777, %v6825
        %6827 = vmatmul.bf16.gmra.mxu0 %v463
        %v6828 = vpop.f32.mrf.mxu0
        %v6829 = vadd.f32 %v6780, %v6828
        %v6830 = vpop.f32.mrf.mxu0
        %v6831 = vadd.f32 %v6782, %v6830
        %6832 = vdwg.mxu0
        %6833 = vmatpush.bf16.msra.mxu0 %v3172
        %6834 = vmatpush.bf16.msra.mxu0 %v3164
        %6835 = vmatpush.bf16.msra.mxu0 %v3156
        %6836 = vmatpush.bf16.msra.mxu0 %v3148
        %6837 = vmatpush.bf16.msra.mxu0 %v3140
        %6838 = vmatpush.bf16.msra.mxu0 %v3132
        %6839 = vmatpush.bf16.msra.mxu0 %v3124
        %6840 = vmatpush.bf16.msra.mxu0 %v3116
        %6841 = vmatmul.bf16.gmra.mxu0 %v401
        %v6842 = vpop.f32.mrf.mxu0
        %v6843 = vadd.f32 %v6794, %v6842
        %v6844 = vpop.f32.mrf.mxu0
        %v6845 = vadd.f32 %v6796, %v6844
        %6846 = vmatmul.bf16.gmra.mxu0 %v410
        %v6847 = vpop.f32.mrf.mxu0
        %v6848 = vadd.f32 %v6799, %v6847
        %v6849 = vpop.f32.mrf.mxu0
        %v6850 = vadd.f32 %v6801, %v6849
        %6851 = vmatmul.bf16.gmra.mxu0 %v419
        %v6852 = vpop.f32.mrf.mxu0
        %v6853 = vadd.f32 %v6804, %v6852
        %v6854 = vpop.f32.mrf.mxu0
        %v6855 = vadd.f32 %v6806, %v6854
        %6856 = vmatmul.bf16.gmra.mxu0 %v428
        %v6857 = vpop.f32.mrf.mxu0
        %v6858 = vadd.f32 %v6809, %v6857
        %v6859 = vpop.f32.mrf.mxu0
        %v6860 = vadd.f32 %v6811, %v6859
        %6861 = vmatmul.bf16.gmra.mxu0 %v437
        %v6862 = vpop.f32.mrf.mxu0
        %v6863 = vadd.f32 %v6814, %v6862
        %v6864 = vpop.f32.mrf.mxu0
        %v6865 = vadd.f32 %v6816, %v6864
        %6866 = vmatmul.bf16.gmra.mxu0 %v446
        %v6867 = vpop.f32.mrf.mxu0
        %v6868 = vadd.f32 %v6819, %v6867
        %v6869 = vpop.f32.mrf.mxu0
        %v6870 = vadd.f32 %v6821, %v6869
        %6871 = vmatmul.bf16.gmra.mxu0 %v455
        %v6872 = vpop.f32.mrf.mxu0
        %v6873 = vadd.f32 %v6824, %v6872
        %v6874 = vpop.f32.mrf.mxu0
        %v6875 = vadd.f32 %v6826, %v6874
        %6876 = vmatmul.bf16.gmra.mxu0 %v464
        %v6877 = vpop.f32.mrf.mxu0
        %v6878 = vadd.f32 %v6829, %v6877
        %v6879 = vpop.f32.mrf.mxu0
        %v6880 = vadd.f32 %v6831, %v6879
        %6881 = vdwg.mxu0
        %6882 = vmatpush.bf16.msra.mxu0 %v3236
        %6883 = vmatpush.bf16.msra.mxu0 %v3228
        %6884 = vmatpush.bf16.msra.mxu0 %v3220
        %6885 = vmatpush.bf16.msra.mxu0 %v3212
        %6886 = vmatpush.bf16.msra.mxu0 %v3204
        %6887 = vmatpush.bf16.msra.mxu0 %v3196
        %6888 = vmatpush.bf16.msra.mxu0 %v3188
        %6889 = vmatpush.bf16.msra.mxu0 %v3180
        %6890 = vmatmul.bf16.gmra.mxu0 %v402
        %v6891 = vpop.f32.mrf.mxu0
        %v6892 = vadd.f32 %v6843, %v6891
        %v6893 = vpop.f32.mrf.mxu0
        %v6894 = vadd.f32 %v6845, %v6893
        %6895 = vmatmul.bf16.gmra.mxu0 %v411
        %v6896 = vpop.f32.mrf.mxu0
        %v6897 = vadd.f32 %v6848, %v6896
        %v6898 = vpop.f32.mrf.mxu0
        %v6899 = vadd.f32 %v6850, %v6898
        %6900 = vmatmul.bf16.gmra.mxu0 %v420
        %v6901 = vpop.f32.mrf.mxu0
        %v6902 = vadd.f32 %v6853, %v6901
        %v6903 = vpop.f32.mrf.mxu0
        %v6904 = vadd.f32 %v6855, %v6903
        %6905 = vmatmul.bf16.gmra.mxu0 %v429
        %v6906 = vpop.f32.mrf.mxu0
        %v6907 = vadd.f32 %v6858, %v6906
        %v6908 = vpop.f32.mrf.mxu0
        %v6909 = vadd.f32 %v6860, %v6908
        %6910 = vmatmul.bf16.gmra.mxu0 %v438
        %v6911 = vpop.f32.mrf.mxu0
        %v6912 = vadd.f32 %v6863, %v6911
        %v6913 = vpop.f32.mrf.mxu0
        %v6914 = vadd.f32 %v6865, %v6913
        %6915 = vmatmul.bf16.gmra.mxu0 %v447
        %v6916 = vpop.f32.mrf.mxu0
        %v6917 = vadd.f32 %v6868, %v6916
        %v6918 = vpop.f32.mrf.mxu0
        %v6919 = vadd.f32 %v6870, %v6918
        %6920 = vmatmul.bf16.gmra.mxu0 %v456
        %v6921 = vpop.f32.mrf.mxu0
        %v6922 = vadd.f32 %v6873, %v6921
        %v6923 = vpop.f32.mrf.mxu0
        %v6924 = vadd.f32 %v6875, %v6923
        %6925 = vmatmul.bf16.gmra.mxu0 %v465
        %v6926 = vpop.f32.mrf.mxu0
        %v6927 = vadd.f32 %v6878, %v6926
        %v6928 = vpop.f32.mrf.mxu0
        %v6929 = vadd.f32 %v6880, %v6928
        %6930 = vdwg.mxu0
        %6931 = vmatpush.bf16.msra.mxu0 %v3300
        %6932 = vmatpush.bf16.msra.mxu0 %v3292
        %6933 = vmatpush.bf16.msra.mxu0 %v3284
        %6934 = vmatpush.bf16.msra.mxu0 %v3276
        %6935 = vmatpush.bf16.msra.mxu0 %v3268
        %6936 = vmatpush.bf16.msra.mxu0 %v3260
        %6937 = vmatpush.bf16.msra.mxu0 %v3252
        %6938 = vmatpush.bf16.msra.mxu0 %v3244
        %6939 = vmatmul.bf16.gmra.mxu0 %v403
        %v6940 = vpop.f32.mrf.mxu0
        %v6941 = vadd.f32 %v6892, %v6940
        %v6942 = vpop.f32.mrf.mxu0
        %v6943 = vadd.f32 %v6894, %v6942
        %6944 = vmatmul.bf16.gmra.mxu0 %v412
        %v6945 = vpop.f32.mrf.mxu0
        %v6946 = vadd.f32 %v6897, %v6945
        %v6947 = vpop.f32.mrf.mxu0
        %v6948 = vadd.f32 %v6899, %v6947
        %6949 = vmatmul.bf16.gmra.mxu0 %v421
        %v6950 = vpop.f32.mrf.mxu0
        %v6951 = vadd.f32 %v6902, %v6950
        %v6952 = vpop.f32.mrf.mxu0
        %v6953 = vadd.f32 %v6904, %v6952
        %6954 = vmatmul.bf16.gmra.mxu0 %v430
        %v6955 = vpop.f32.mrf.mxu0
        %v6956 = vadd.f32 %v6907, %v6955
        %v6957 = vpop.f32.mrf.mxu0
        %v6958 = vadd.f32 %v6909, %v6957
        %6959 = vmatmul.bf16.gmra.mxu0 %v439
        %v6960 = vpop.f32.mrf.mxu0
        %v6961 = vadd.f32 %v6912, %v6960
        %v6962 = vpop.f32.mrf.mxu0
        %v6963 = vadd.f32 %v6914, %v6962
        %6964 = vmatmul.bf16.gmra.mxu0 %v448
        %v6965 = vpop.f32.mrf.mxu0
        %v6966 = vadd.f32 %v6917, %v6965
        %v6967 = vpop.f32.mrf.mxu0
        %v6968 = vadd.f32 %v6919, %v6967
        %6969 = vmatmul.bf16.gmra.mxu0 %v457
        %v6970 = vpop.f32.mrf.mxu0
        %v6971 = vadd.f32 %v6922, %v6970
        %v6972 = vpop.f32.mrf.mxu0
        %v6973 = vadd.f32 %v6924, %v6972
        %6974 = vmatmul.bf16.gmra.mxu0 %v466
        %v6975 = vpop.f32.mrf.mxu0
        %v6976 = vadd.f32 %v6927, %v6975
        %v6977 = vpop.f32.mrf.mxu0
        %v6978 = vadd.f32 %v6929, %v6977
        %6979 = vdwg.mxu0
        %6980 = vmatpush.bf16.msra.mxu0 %v3364
        %6981 = vmatpush.bf16.msra.mxu0 %v3356
        %6982 = vmatpush.bf16.msra.mxu0 %v3348
        %6983 = vmatpush.bf16.msra.mxu0 %v3340
        %6984 = vmatpush.bf16.msra.mxu0 %v3332
        %6985 = vmatpush.bf16.msra.mxu0 %v3324
        %6986 = vmatpush.bf16.msra.mxu0 %v3316
        %6987 = vmatpush.bf16.msra.mxu0 %v3308
        %6988 = vmatmul.bf16.gmra.mxu0 %v404
        %v6989 = vpop.f32.mrf.mxu0
        %v6990 = vadd.f32 %v6941, %v6989
        %v6991 = vpop.f32.mrf.mxu0
        %v6992 = vadd.f32 %v6943, %v6991
        %6993 = vmatmul.bf16.gmra.mxu0 %v413
        %v6994 = vpop.f32.mrf.mxu0
        %v6995 = vadd.f32 %v6946, %v6994
        %v6996 = vpop.f32.mrf.mxu0
        %v6997 = vadd.f32 %v6948, %v6996
        %6998 = vmatmul.bf16.gmra.mxu0 %v422
        %v6999 = vpop.f32.mrf.mxu0
        %v7000 = vadd.f32 %v6951, %v6999
        %v7001 = vpop.f32.mrf.mxu0
        %v7002 = vadd.f32 %v6953, %v7001
        %7003 = vmatmul.bf16.gmra.mxu0 %v431
        %v7004 = vpop.f32.mrf.mxu0
        %v7005 = vadd.f32 %v6956, %v7004
        %v7006 = vpop.f32.mrf.mxu0
        %v7007 = vadd.f32 %v6958, %v7006
        %7008 = vmatmul.bf16.gmra.mxu0 %v440
        %v7009 = vpop.f32.mrf.mxu0
        %v7010 = vadd.f32 %v6961, %v7009
        %v7011 = vpop.f32.mrf.mxu0
        %v7012 = vadd.f32 %v6963, %v7011
        %7013 = vmatmul.bf16.gmra.mxu0 %v449
        %v7014 = vpop.f32.mrf.mxu0
        %v7015 = vadd.f32 %v6966, %v7014
        %v7016 = vpop.f32.mrf.mxu0
        %v7017 = vadd.f32 %v6968, %v7016
        %7018 = vmatmul.bf16.gmra.mxu0 %v458
        %v7019 = vpop.f32.mrf.mxu0
        %v7020 = vadd.f32 %v6971, %v7019
        %v7021 = vpop.f32.mrf.mxu0
        %v7022 = vadd.f32 %v6973, %v7021
        %7023 = vmatmul.bf16.gmra.mxu0 %v467
        %v7024 = vpop.f32.mrf.mxu0
        %v7025 = vadd.f32 %v6976, %v7024
        %v7026 = vpop.f32.mrf.mxu0
        %v7027 = vadd.f32 %v6978, %v7026
        %7028 = vdwg.mxu0
        %7029 = vmatpush.bf16.msra.mxu0 %v2853
        %7030 = vmatpush.bf16.msra.mxu0 %v2845
        %7031 = vmatpush.bf16.msra.mxu0 %v2837
        %7032 = vmatpush.bf16.msra.mxu0 %v2829
        %7033 = vmatpush.bf16.msra.mxu0 %v2821
        %7034 = vmatpush.bf16.msra.mxu0 %v2813
        %7035 = vmatpush.bf16.msra.mxu0 %v2805
        %7036 = vmatpush.bf16.msra.mxu0 %v2797
        %7037 = vmatmul.bf16.gmra.mxu0 %v396
        %v7038 = vpop.f32.mrf.mxu0
        %v7039 = vadd.f32 %v1053, %v7038
        %v7040 = vpop.f32.mrf.mxu0
        %v7041 = vadd.f32 %v1053, %v7040
        %7042 = vmatmul.bf16.gmra.mxu0 %v405
        %v7043 = vpop.f32.mrf.mxu0
        %v7044 = vadd.f32 %v1053, %v7043
        %v7045 = vpop.f32.mrf.mxu0
        %v7046 = vadd.f32 %v1053, %v7045
        %7047 = vmatmul.bf16.gmra.mxu0 %v414
        %v7048 = vpop.f32.mrf.mxu0
        %v7049 = vadd.f32 %v1053, %v7048
        %v7050 = vpop.f32.mrf.mxu0
        %v7051 = vadd.f32 %v1053, %v7050
        %7052 = vmatmul.bf16.gmra.mxu0 %v423
        %v7053 = vpop.f32.mrf.mxu0
        %v7054 = vadd.f32 %v1053, %v7053
        %v7055 = vpop.f32.mrf.mxu0
        %v7056 = vadd.f32 %v1053, %v7055
        %7057 = vmatmul.bf16.gmra.mxu0 %v432
        %v7058 = vpop.f32.mrf.mxu0
        %v7059 = vadd.f32 %v1053, %v7058
        %v7060 = vpop.f32.mrf.mxu0
        %v7061 = vadd.f32 %v1053, %v7060
        %7062 = vmatmul.bf16.gmra.mxu0 %v441
        %v7063 = vpop.f32.mrf.mxu0
        %v7064 = vadd.f32 %v1053, %v7063
        %v7065 = vpop.f32.mrf.mxu0
        %v7066 = vadd.f32 %v1053, %v7065
        %7067 = vmatmul.bf16.gmra.mxu0 %v450
        %v7068 = vpop.f32.mrf.mxu0
        %v7069 = vadd.f32 %v1053, %v7068
        %v7070 = vpop.f32.mrf.mxu0
        %v7071 = vadd.f32 %v1053, %v7070
        %7072 = vmatmul.bf16.gmra.mxu0 %v459
        %v7073 = vpop.f32.mrf.mxu0
        %v7074 = vadd.f32 %v1053, %v7073
        %v7075 = vpop.f32.mrf.mxu0
        %v7076 = vadd.f32 %v1053, %v7075
        %7077 = vdwg.mxu0
        %7078 = vmatpush.bf16.msra.mxu0 %v2917
        %7079 = vmatpush.bf16.msra.mxu0 %v2909
        %7080 = vmatpush.bf16.msra.mxu0 %v2901
        %7081 = vmatpush.bf16.msra.mxu0 %v2893
        %7082 = vmatpush.bf16.msra.mxu0 %v2885
        %7083 = vmatpush.bf16.msra.mxu0 %v2877
        %7084 = vmatpush.bf16.msra.mxu0 %v2869
        %7085 = vmatpush.bf16.msra.mxu0 %v2861
        %7086 = vmatmul.bf16.gmra.mxu0 %v397
        %v7087 = vpop.f32.mrf.mxu0
        %v7088 = vadd.f32 %v7039, %v7087
        %v7089 = vpop.f32.mrf.mxu0
        %v7090 = vadd.f32 %v7041, %v7089
        %7091 = vmatmul.bf16.gmra.mxu0 %v406
        %v7092 = vpop.f32.mrf.mxu0
        %v7093 = vadd.f32 %v7044, %v7092
        %v7094 = vpop.f32.mrf.mxu0
        %v7095 = vadd.f32 %v7046, %v7094
        %7096 = vmatmul.bf16.gmra.mxu0 %v415
        %v7097 = vpop.f32.mrf.mxu0
        %v7098 = vadd.f32 %v7049, %v7097
        %v7099 = vpop.f32.mrf.mxu0
        %v7100 = vadd.f32 %v7051, %v7099
        %7101 = vmatmul.bf16.gmra.mxu0 %v424
        %v7102 = vpop.f32.mrf.mxu0
        %v7103 = vadd.f32 %v7054, %v7102
        %v7104 = vpop.f32.mrf.mxu0
        %v7105 = vadd.f32 %v7056, %v7104
        %7106 = vmatmul.bf16.gmra.mxu0 %v433
        %v7107 = vpop.f32.mrf.mxu0
        %v7108 = vadd.f32 %v7059, %v7107
        %v7109 = vpop.f32.mrf.mxu0
        %v7110 = vadd.f32 %v7061, %v7109
        %7111 = vmatmul.bf16.gmra.mxu0 %v442
        %v7112 = vpop.f32.mrf.mxu0
        %v7113 = vadd.f32 %v7064, %v7112
        %v7114 = vpop.f32.mrf.mxu0
        %v7115 = vadd.f32 %v7066, %v7114
        %7116 = vmatmul.bf16.gmra.mxu0 %v451
        %v7117 = vpop.f32.mrf.mxu0
        %v7118 = vadd.f32 %v7069, %v7117
        %v7119 = vpop.f32.mrf.mxu0
        %v7120 = vadd.f32 %v7071, %v7119
        %7121 = vmatmul.bf16.gmra.mxu0 %v460
        %v7122 = vpop.f32.mrf.mxu0
        %v7123 = vadd.f32 %v7074, %v7122
        %v7124 = vpop.f32.mrf.mxu0
        %v7125 = vadd.f32 %v7076, %v7124
        %7126 = vdwg.mxu0
        %7127 = vmatpush.bf16.msra.mxu0 %v2981
        %7128 = vmatpush.bf16.msra.mxu0 %v2973
        %7129 = vmatpush.bf16.msra.mxu0 %v2965
        %7130 = vmatpush.bf16.msra.mxu0 %v2957
        %7131 = vmatpush.bf16.msra.mxu0 %v2949
        %7132 = vmatpush.bf16.msra.mxu0 %v2941
        %7133 = vmatpush.bf16.msra.mxu0 %v2933
        %7134 = vmatpush.bf16.msra.mxu0 %v2925
        %7135 = vmatmul.bf16.gmra.mxu0 %v398
        %v7136 = vpop.f32.mrf.mxu0
        %v7137 = vadd.f32 %v7088, %v7136
        %v7138 = vpop.f32.mrf.mxu0
        %v7139 = vadd.f32 %v7090, %v7138
        %7140 = vmatmul.bf16.gmra.mxu0 %v407
        %v7141 = vpop.f32.mrf.mxu0
        %v7142 = vadd.f32 %v7093, %v7141
        %v7143 = vpop.f32.mrf.mxu0
        %v7144 = vadd.f32 %v7095, %v7143
        %7145 = vmatmul.bf16.gmra.mxu0 %v416
        %v7146 = vpop.f32.mrf.mxu0
        %v7147 = vadd.f32 %v7098, %v7146
        %v7148 = vpop.f32.mrf.mxu0
        %v7149 = vadd.f32 %v7100, %v7148
        %7150 = vmatmul.bf16.gmra.mxu0 %v425
        %v7151 = vpop.f32.mrf.mxu0
        %v7152 = vadd.f32 %v7103, %v7151
        %v7153 = vpop.f32.mrf.mxu0
        %v7154 = vadd.f32 %v7105, %v7153
        %7155 = vmatmul.bf16.gmra.mxu0 %v434
        %v7156 = vpop.f32.mrf.mxu0
        %v7157 = vadd.f32 %v7108, %v7156
        %v7158 = vpop.f32.mrf.mxu0
        %v7159 = vadd.f32 %v7110, %v7158
        %7160 = vmatmul.bf16.gmra.mxu0 %v443
        %v7161 = vpop.f32.mrf.mxu0
        %v7162 = vadd.f32 %v7113, %v7161
        %v7163 = vpop.f32.mrf.mxu0
        %v7164 = vadd.f32 %v7115, %v7163
        %7165 = vmatmul.bf16.gmra.mxu0 %v452
        %v7166 = vpop.f32.mrf.mxu0
        %v7167 = vadd.f32 %v7118, %v7166
        %v7168 = vpop.f32.mrf.mxu0
        %v7169 = vadd.f32 %v7120, %v7168
        %7170 = vmatmul.bf16.gmra.mxu0 %v461
        %v7171 = vpop.f32.mrf.mxu0
        %v7172 = vadd.f32 %v7123, %v7171
        %v7173 = vpop.f32.mrf.mxu0
        %v7174 = vadd.f32 %v7125, %v7173
        %7175 = vdwg.mxu0
        %7176 = vmatpush.bf16.msra.mxu0 %v3045
        %7177 = vmatpush.bf16.msra.mxu0 %v3037
        %7178 = vmatpush.bf16.msra.mxu0 %v3029
        %7179 = vmatpush.bf16.msra.mxu0 %v3021
        %7180 = vmatpush.bf16.msra.mxu0 %v3013
        %7181 = vmatpush.bf16.msra.mxu0 %v3005
        %7182 = vmatpush.bf16.msra.mxu0 %v2997
        %7183 = vmatpush.bf16.msra.mxu0 %v2989
        %7184 = vmatmul.bf16.gmra.mxu0 %v399
        %v7185 = vpop.f32.mrf.mxu0
        %v7186 = vadd.f32 %v7137, %v7185
        %v7187 = vpop.f32.mrf.mxu0
        %v7188 = vadd.f32 %v7139, %v7187
        %7189 = vmatmul.bf16.gmra.mxu0 %v408
        %v7190 = vpop.f32.mrf.mxu0
        %v7191 = vadd.f32 %v7142, %v7190
        %v7192 = vpop.f32.mrf.mxu0
        %v7193 = vadd.f32 %v7144, %v7192
        %7194 = vmatmul.bf16.gmra.mxu0 %v417
        %v7195 = vpop.f32.mrf.mxu0
        %v7196 = vadd.f32 %v7147, %v7195
        %v7197 = vpop.f32.mrf.mxu0
        %v7198 = vadd.f32 %v7149, %v7197
        %7199 = vmatmul.bf16.gmra.mxu0 %v426
        %v7200 = vpop.f32.mrf.mxu0
        %v7201 = vadd.f32 %v7152, %v7200
        %v7202 = vpop.f32.mrf.mxu0
        %v7203 = vadd.f32 %v7154, %v7202
        %7204 = vmatmul.bf16.gmra.mxu0 %v435
        %v7205 = vpop.f32.mrf.mxu0
        %v7206 = vadd.f32 %v7157, %v7205
        %v7207 = vpop.f32.mrf.mxu0
        %v7208 = vadd.f32 %v7159, %v7207
        %7209 = vmatmul.bf16.gmra.mxu0 %v444
        %v7210 = vpop.f32.mrf.mxu0
        %v7211 = vadd.f32 %v7162, %v7210
        %v7212 = vpop.f32.mrf.mxu0
        %v7213 = vadd.f32 %v7164, %v7212
        %7214 = vmatmul.bf16.gmra.mxu0 %v453
        %v7215 = vpop.f32.mrf.mxu0
        %v7216 = vadd.f32 %v7167, %v7215
        %v7217 = vpop.f32.mrf.mxu0
        %v7218 = vadd.f32 %v7169, %v7217
        %7219 = vmatmul.bf16.gmra.mxu0 %v462
        %v7220 = vpop.f32.mrf.mxu0
        %v7221 = vadd.f32 %v7172, %v7220
        %v7222 = vpop.f32.mrf.mxu0
        %v7223 = vadd.f32 %v7174, %v7222
        %7224 = vdwg.mxu0
        %7225 = vmatpush.bf16.msra.mxu0 %v3109
        %7226 = vmatpush.bf16.msra.mxu0 %v3101
        %7227 = vmatpush.bf16.msra.mxu0 %v3093
        %7228 = vmatpush.bf16.msra.mxu0 %v3085
        %7229 = vmatpush.bf16.msra.mxu0 %v3077
        %7230 = vmatpush.bf16.msra.mxu0 %v3069
        %7231 = vmatpush.bf16.msra.mxu0 %v3061
        %7232 = vmatpush.bf16.msra.mxu0 %v3053
        %7233 = vmatmul.bf16.gmra.mxu0 %v400
        %v7234 = vpop.f32.mrf.mxu0
        %v7235 = vadd.f32 %v7186, %v7234
        %v7236 = vpop.f32.mrf.mxu0
        %v7237 = vadd.f32 %v7188, %v7236
        %7238 = vmatmul.bf16.gmra.mxu0 %v409
        %v7239 = vpop.f32.mrf.mxu0
        %v7240 = vadd.f32 %v7191, %v7239
        %v7241 = vpop.f32.mrf.mxu0
        %v7242 = vadd.f32 %v7193, %v7241
        %7243 = vmatmul.bf16.gmra.mxu0 %v418
        %v7244 = vpop.f32.mrf.mxu0
        %v7245 = vadd.f32 %v7196, %v7244
        %v7246 = vpop.f32.mrf.mxu0
        %v7247 = vadd.f32 %v7198, %v7246
        %7248 = vmatmul.bf16.gmra.mxu0 %v427
        %v7249 = vpop.f32.mrf.mxu0
        %v7250 = vadd.f32 %v7201, %v7249
        %v7251 = vpop.f32.mrf.mxu0
        %v7252 = vadd.f32 %v7203, %v7251
        %7253 = vmatmul.bf16.gmra.mxu0 %v436
        %v7254 = vpop.f32.mrf.mxu0
        %v7255 = vadd.f32 %v7206, %v7254
        %v7256 = vpop.f32.mrf.mxu0
        %v7257 = vadd.f32 %v7208, %v7256
        %7258 = vmatmul.bf16.gmra.mxu0 %v445
        %v7259 = vpop.f32.mrf.mxu0
        %v7260 = vadd.f32 %v7211, %v7259
        %v7261 = vpop.f32.mrf.mxu0
        %v7262 = vadd.f32 %v7213, %v7261
        %7263 = vmatmul.bf16.gmra.mxu0 %v454
        %v7264 = vpop.f32.mrf.mxu0
        %v7265 = vadd.f32 %v7216, %v7264
        %v7266 = vpop.f32.mrf.mxu0
        %v7267 = vadd.f32 %v7218, %v7266
        %7268 = vmatmul.bf16.gmra.mxu0 %v463
        %v7269 = vpop.f32.mrf.mxu0
        %v7270 = vadd.f32 %v7221, %v7269
        %v7271 = vpop.f32.mrf.mxu0
        %v7272 = vadd.f32 %v7223, %v7271
        %7273 = vdwg.mxu0
        %7274 = vmatpush.bf16.msra.mxu0 %v3173
        %7275 = vmatpush.bf16.msra.mxu0 %v3165
        %7276 = vmatpush.bf16.msra.mxu0 %v3157
        %7277 = vmatpush.bf16.msra.mxu0 %v3149
        %7278 = vmatpush.bf16.msra.mxu0 %v3141
        %7279 = vmatpush.bf16.msra.mxu0 %v3133
        %7280 = vmatpush.bf16.msra.mxu0 %v3125
        %7281 = vmatpush.bf16.msra.mxu0 %v3117
        %7282 = vmatmul.bf16.gmra.mxu0 %v401
        %v7283 = vpop.f32.mrf.mxu0
        %v7284 = vadd.f32 %v7235, %v7283
        %v7285 = vpop.f32.mrf.mxu0
        %v7286 = vadd.f32 %v7237, %v7285
        %7287 = vmatmul.bf16.gmra.mxu0 %v410
        %v7288 = vpop.f32.mrf.mxu0
        %v7289 = vadd.f32 %v7240, %v7288
        %v7290 = vpop.f32.mrf.mxu0
        %v7291 = vadd.f32 %v7242, %v7290
        %7292 = vmatmul.bf16.gmra.mxu0 %v419
        %v7293 = vpop.f32.mrf.mxu0
        %v7294 = vadd.f32 %v7245, %v7293
        %v7295 = vpop.f32.mrf.mxu0
        %v7296 = vadd.f32 %v7247, %v7295
        %7297 = vmatmul.bf16.gmra.mxu0 %v428
        %v7298 = vpop.f32.mrf.mxu0
        %v7299 = vadd.f32 %v7250, %v7298
        %v7300 = vpop.f32.mrf.mxu0
        %v7301 = vadd.f32 %v7252, %v7300
        %7302 = vmatmul.bf16.gmra.mxu0 %v437
        %v7303 = vpop.f32.mrf.mxu0
        %v7304 = vadd.f32 %v7255, %v7303
        %v7305 = vpop.f32.mrf.mxu0
        %v7306 = vadd.f32 %v7257, %v7305
        %7307 = vmatmul.bf16.gmra.mxu0 %v446
        %v7308 = vpop.f32.mrf.mxu0
        %v7309 = vadd.f32 %v7260, %v7308
        %v7310 = vpop.f32.mrf.mxu0
        %v7311 = vadd.f32 %v7262, %v7310
        %7312 = vmatmul.bf16.gmra.mxu0 %v455
        %v7313 = vpop.f32.mrf.mxu0
        %v7314 = vadd.f32 %v7265, %v7313
        %v7315 = vpop.f32.mrf.mxu0
        %v7316 = vadd.f32 %v7267, %v7315
        %7317 = vmatmul.bf16.gmra.mxu0 %v464
        %v7318 = vpop.f32.mrf.mxu0
        %v7319 = vadd.f32 %v7270, %v7318
        %v7320 = vpop.f32.mrf.mxu0
        %v7321 = vadd.f32 %v7272, %v7320
        %7322 = vdwg.mxu0
        %7323 = vmatpush.bf16.msra.mxu0 %v3237
        %7324 = vmatpush.bf16.msra.mxu0 %v3229
        %7325 = vmatpush.bf16.msra.mxu0 %v3221
        %7326 = vmatpush.bf16.msra.mxu0 %v3213
        %7327 = vmatpush.bf16.msra.mxu0 %v3205
        %7328 = vmatpush.bf16.msra.mxu0 %v3197
        %7329 = vmatpush.bf16.msra.mxu0 %v3189
        %7330 = vmatpush.bf16.msra.mxu0 %v3181
        %7331 = vmatmul.bf16.gmra.mxu0 %v402
        %v7332 = vpop.f32.mrf.mxu0
        %v7333 = vadd.f32 %v7284, %v7332
        %v7334 = vpop.f32.mrf.mxu0
        %v7335 = vadd.f32 %v7286, %v7334
        %7336 = vmatmul.bf16.gmra.mxu0 %v411
        %v7337 = vpop.f32.mrf.mxu0
        %v7338 = vadd.f32 %v7289, %v7337
        %v7339 = vpop.f32.mrf.mxu0
        %v7340 = vadd.f32 %v7291, %v7339
        %7341 = vmatmul.bf16.gmra.mxu0 %v420
        %v7342 = vpop.f32.mrf.mxu0
        %v7343 = vadd.f32 %v7294, %v7342
        %v7344 = vpop.f32.mrf.mxu0
        %v7345 = vadd.f32 %v7296, %v7344
        %7346 = vmatmul.bf16.gmra.mxu0 %v429
        %v7347 = vpop.f32.mrf.mxu0
        %v7348 = vadd.f32 %v7299, %v7347
        %v7349 = vpop.f32.mrf.mxu0
        %v7350 = vadd.f32 %v7301, %v7349
        %7351 = vmatmul.bf16.gmra.mxu0 %v438
        %v7352 = vpop.f32.mrf.mxu0
        %v7353 = vadd.f32 %v7304, %v7352
        %v7354 = vpop.f32.mrf.mxu0
        %v7355 = vadd.f32 %v7306, %v7354
        %7356 = vmatmul.bf16.gmra.mxu0 %v447
        %v7357 = vpop.f32.mrf.mxu0
        %v7358 = vadd.f32 %v7309, %v7357
        %v7359 = vpop.f32.mrf.mxu0
        %v7360 = vadd.f32 %v7311, %v7359
        %7361 = vmatmul.bf16.gmra.mxu0 %v456
        %v7362 = vpop.f32.mrf.mxu0
        %v7363 = vadd.f32 %v7314, %v7362
        %v7364 = vpop.f32.mrf.mxu0
        %v7365 = vadd.f32 %v7316, %v7364
        %7366 = vmatmul.bf16.gmra.mxu0 %v465
        %v7367 = vpop.f32.mrf.mxu0
        %v7368 = vadd.f32 %v7319, %v7367
        %v7369 = vpop.f32.mrf.mxu0
        %v7370 = vadd.f32 %v7321, %v7369
        %7371 = vdwg.mxu0
        %7372 = vmatpush.bf16.msra.mxu0 %v3301
        %7373 = vmatpush.bf16.msra.mxu0 %v3293
        %7374 = vmatpush.bf16.msra.mxu0 %v3285
        %7375 = vmatpush.bf16.msra.mxu0 %v3277
        %7376 = vmatpush.bf16.msra.mxu0 %v3269
        %7377 = vmatpush.bf16.msra.mxu0 %v3261
        %7378 = vmatpush.bf16.msra.mxu0 %v3253
        %7379 = vmatpush.bf16.msra.mxu0 %v3245
        %7380 = vmatmul.bf16.gmra.mxu0 %v403
        %v7381 = vpop.f32.mrf.mxu0
        %v7382 = vadd.f32 %v7333, %v7381
        %v7383 = vpop.f32.mrf.mxu0
        %v7384 = vadd.f32 %v7335, %v7383
        %7385 = vmatmul.bf16.gmra.mxu0 %v412
        %v7386 = vpop.f32.mrf.mxu0
        %v7387 = vadd.f32 %v7338, %v7386
        %v7388 = vpop.f32.mrf.mxu0
        %v7389 = vadd.f32 %v7340, %v7388
        %7390 = vmatmul.bf16.gmra.mxu0 %v421
        %v7391 = vpop.f32.mrf.mxu0
        %v7392 = vadd.f32 %v7343, %v7391
        %v7393 = vpop.f32.mrf.mxu0
        %v7394 = vadd.f32 %v7345, %v7393
        %7395 = vmatmul.bf16.gmra.mxu0 %v430
        %v7396 = vpop.f32.mrf.mxu0
        %v7397 = vadd.f32 %v7348, %v7396
        %v7398 = vpop.f32.mrf.mxu0
        %v7399 = vadd.f32 %v7350, %v7398
        %7400 = vmatmul.bf16.gmra.mxu0 %v439
        %v7401 = vpop.f32.mrf.mxu0
        %v7402 = vadd.f32 %v7353, %v7401
        %v7403 = vpop.f32.mrf.mxu0
        %v7404 = vadd.f32 %v7355, %v7403
        %7405 = vmatmul.bf16.gmra.mxu0 %v448
        %v7406 = vpop.f32.mrf.mxu0
        %v7407 = vadd.f32 %v7358, %v7406
        %v7408 = vpop.f32.mrf.mxu0
        %v7409 = vadd.f32 %v7360, %v7408
        %7410 = vmatmul.bf16.gmra.mxu0 %v457
        %v7411 = vpop.f32.mrf.mxu0
        %v7412 = vadd.f32 %v7363, %v7411
        %v7413 = vpop.f32.mrf.mxu0
        %v7414 = vadd.f32 %v7365, %v7413
        %7415 = vmatmul.bf16.gmra.mxu0 %v466
        %v7416 = vpop.f32.mrf.mxu0
        %v7417 = vadd.f32 %v7368, %v7416
        %v7418 = vpop.f32.mrf.mxu0
        %v7419 = vadd.f32 %v7370, %v7418
        %7420 = vdwg.mxu0
        %7421 = vmatpush.bf16.msra.mxu0 %v3365
        %7422 = vmatpush.bf16.msra.mxu0 %v3357
        %7423 = vmatpush.bf16.msra.mxu0 %v3349
        %7424 = vmatpush.bf16.msra.mxu0 %v3341
        %7425 = vmatpush.bf16.msra.mxu0 %v3333
        %7426 = vmatpush.bf16.msra.mxu0 %v3325
        %7427 = vmatpush.bf16.msra.mxu0 %v3317
        %7428 = vmatpush.bf16.msra.mxu0 %v3309
        %7429 = vmatmul.bf16.gmra.mxu0 %v404
        %v7430 = vpop.f32.mrf.mxu0
        %v7431 = vadd.f32 %v7382, %v7430
        %v7432 = vpop.f32.mrf.mxu0
        %v7433 = vadd.f32 %v7384, %v7432
        %7434 = vmatmul.bf16.gmra.mxu0 %v413
        %v7435 = vpop.f32.mrf.mxu0
        %v7436 = vadd.f32 %v7387, %v7435
        %v7437 = vpop.f32.mrf.mxu0
        %v7438 = vadd.f32 %v7389, %v7437
        %7439 = vmatmul.bf16.gmra.mxu0 %v422
        %v7440 = vpop.f32.mrf.mxu0
        %v7441 = vadd.f32 %v7392, %v7440
        %v7442 = vpop.f32.mrf.mxu0
        %v7443 = vadd.f32 %v7394, %v7442
        %7444 = vmatmul.bf16.gmra.mxu0 %v431
        %v7445 = vpop.f32.mrf.mxu0
        %v7446 = vadd.f32 %v7397, %v7445
        %v7447 = vpop.f32.mrf.mxu0
        %v7448 = vadd.f32 %v7399, %v7447
        %7449 = vmatmul.bf16.gmra.mxu0 %v440
        %v7450 = vpop.f32.mrf.mxu0
        %v7451 = vadd.f32 %v7402, %v7450
        %v7452 = vpop.f32.mrf.mxu0
        %v7453 = vadd.f32 %v7404, %v7452
        %7454 = vmatmul.bf16.gmra.mxu0 %v449
        %v7455 = vpop.f32.mrf.mxu0
        %v7456 = vadd.f32 %v7407, %v7455
        %v7457 = vpop.f32.mrf.mxu0
        %v7458 = vadd.f32 %v7409, %v7457
        %7459 = vmatmul.bf16.gmra.mxu0 %v458
        %v7460 = vpop.f32.mrf.mxu0
        %v7461 = vadd.f32 %v7412, %v7460
        %v7462 = vpop.f32.mrf.mxu0
        %v7463 = vadd.f32 %v7414, %v7462
        %7464 = vmatmul.bf16.gmra.mxu0 %v467
        %v7465 = vpop.f32.mrf.mxu0
        %v7466 = vadd.f32 %v7417, %v7465
        %v7467 = vpop.f32.mrf.mxu0
        %v7468 = vadd.f32 %v7419, %v7467
        %7469 = vdwg.mxu0
        %v7470 = vpack.c.bf16 %v4785, %v4344
        %v7471 = vpack.c.bf16 %v5667, %v5226
        %v7472 = vpack.c.bf16 %v6549, %v6108
        %v7473 = vpack.c.bf16 %v7431, %v6990
        %v7474 = vpack.c.bf16 %v4787, %v4346
        %v7475 = vpack.c.bf16 %v5669, %v5228
        %v7476 = vpack.c.bf16 %v6551, %v6110
        %v7477 = vpack.c.bf16 %v7433, %v6992
        %v7478 = vpack.c.bf16 %v4790, %v4349
        %v7479 = vpack.c.bf16 %v5672, %v5231
        %v7480 = vpack.c.bf16 %v6554, %v6113
        %v7481 = vpack.c.bf16 %v7436, %v6995
        %v7482 = vpack.c.bf16 %v4792, %v4351
        %v7483 = vpack.c.bf16 %v5674, %v5233
        %v7484 = vpack.c.bf16 %v6556, %v6115
        %v7485 = vpack.c.bf16 %v7438, %v6997
        %v7486 = vpack.c.bf16 %v4795, %v4354
        %v7487 = vpack.c.bf16 %v5677, %v5236
        %v7488 = vpack.c.bf16 %v6559, %v6118
        %v7489 = vpack.c.bf16 %v7441, %v7000
        %v7490 = vpack.c.bf16 %v4797, %v4356
        %v7491 = vpack.c.bf16 %v5679, %v5238
        %v7492 = vpack.c.bf16 %v6561, %v6120
        %v7493 = vpack.c.bf16 %v7443, %v7002
        %v7494 = vpack.c.bf16 %v4800, %v4359
        %v7495 = vpack.c.bf16 %v5682, %v5241
        %v7496 = vpack.c.bf16 %v6564, %v6123
        %v7497 = vpack.c.bf16 %v7446, %v7005
        %v7498 = vpack.c.bf16 %v4802, %v4361
        %v7499 = vpack.c.bf16 %v5684, %v5243
        %v7500 = vpack.c.bf16 %v6566, %v6125
        %v7501 = vpack.c.bf16 %v7448, %v7007
        %v7502 = vpack.c.bf16 %v4805, %v4364
        %v7503 = vpack.c.bf16 %v5687, %v5246
        %v7504 = vpack.c.bf16 %v6569, %v6128
        %v7505 = vpack.c.bf16 %v7451, %v7010
        %v7506 = vpack.c.bf16 %v4807, %v4366
        %v7507 = vpack.c.bf16 %v5689, %v5248
        %v7508 = vpack.c.bf16 %v6571, %v6130
        %v7509 = vpack.c.bf16 %v7453, %v7012
        %v7510 = vpack.c.bf16 %v4810, %v4369
        %v7511 = vpack.c.bf16 %v5692, %v5251
        %v7512 = vpack.c.bf16 %v6574, %v6133
        %v7513 = vpack.c.bf16 %v7456, %v7015
        %v7514 = vpack.c.bf16 %v4812, %v4371
        %v7515 = vpack.c.bf16 %v5694, %v5253
        %v7516 = vpack.c.bf16 %v6576, %v6135
        %v7517 = vpack.c.bf16 %v7458, %v7017
        %v7518 = vpack.c.bf16 %v4815, %v4374
        %v7519 = vpack.c.bf16 %v5697, %v5256
        %v7520 = vpack.c.bf16 %v6579, %v6138
        %v7521 = vpack.c.bf16 %v7461, %v7020
        %v7522 = vpack.c.bf16 %v4817, %v4376
        %v7523 = vpack.c.bf16 %v5699, %v5258
        %v7524 = vpack.c.bf16 %v6581, %v6140
        %v7525 = vpack.c.bf16 %v7463, %v7022
        %v7526 = vpack.c.bf16 %v4820, %v4379
        %v7527 = vpack.c.bf16 %v5702, %v5261
        %v7528 = vpack.c.bf16 %v6584, %v6143
        %v7529 = vpack.c.bf16 %v7466, %v7025
        %v7530 = vpack.c.bf16 %v4822, %v4381
        %v7531 = vpack.c.bf16 %v5704, %v5263
        %v7532 = vpack.c.bf16 %v6586, %v6145
        %v7533 = vpack.c.bf16 %v7468, %v7027
        %7534 = vst [vmem:[%s245] sm:$0xff] %v7470
        %7535 = vst [vmem:[%s245 + $0x8] sm:$0xff] %v7471
        %7536 = vst [vmem:[%s245 + $0x10] sm:$0xff] %v7472
        %7537 = vst [vmem:[%s245 + $0x18] sm:$0xff] %v7473
        %7538 = vst [vmem:[%s245 + $0x20] sm:$0xff] %v7474
        %7539 = vst [vmem:[%s245 + $0x28] sm:$0xff] %v7475
        %7540 = vst [vmem:[%s245 + $0x30] sm:$0xff] %v7476
        %7541 = vst [vmem:[%s245 + $0x38] sm:$0xff] %v7477
        %7542 = vst [vmem:[%s245 + $0x40] sm:$0xff] %v7478
        %7543 = vst [vmem:[%s245 + $0x48] sm:$0xff] %v7479
        %7544 = vst [vmem:[%s245 + $0x50] sm:$0xff] %v7480
        %7545 = vst [vmem:[%s245 + $0x58] sm:$0xff] %v7481
        %7546 = vst [vmem:[%s245 + $0x60] sm:$0xff] %v7482
        %7547 = vst [vmem:[%s245 + $0x68] sm:$0xff] %v7483
        %7548 = vst [vmem:[%s245 + $0x70] sm:$0xff] %v7484
        %7549 = vst [vmem:[%s245 + $0x78] sm:$0xff] %v7485
        %7550 = vst [vmem:[%s245 + $0x80] sm:$0xff] %v7486
        %7551 = vst [vmem:[%s245 + $0x88] sm:$0xff] %v7487
        %7552 = vst [vmem:[%s245 + $0x90] sm:$0xff] %v7488
        %7553 = vst [vmem:[%s245 + $0x98] sm:$0xff] %v7489
        %7554 = vst [vmem:[%s245 + $0xa0] sm:$0xff] %v7490
        %7555 = vst [vmem:[%s245 + $0xa8] sm:$0xff] %v7491
        %7556 = vst [vmem:[%s245 + $0xb0] sm:$0xff] %v7492
        %7557 = vst [vmem:[%s245 + $0xb8] sm:$0xff] %v7493
        %7558 = vst [vmem:[%s245 + $0xc0] sm:$0xff] %v7494
        %7559 = vst [vmem:[%s245 + $0xc8] sm:$0xff] %v7495
        %7560 = vst [vmem:[%s245 + $0xd0] sm:$0xff] %v7496
        %7561 = vst [vmem:[%s245 + $0xd8] sm:$0xff] %v7497
        %7562 = vst [vmem:[%s245 + $0xe0] sm:$0xff] %v7498
        %7563 = vst [vmem:[%s245 + $0xe8] sm:$0xff] %v7499
        %7564 = vst [vmem:[%s245 + $0xf0] sm:$0xff] %v7500
        %7565 = vst [vmem:[%s245 + $0xf8] sm:$0xff] %v7501
        %7566 = vst [vmem:[%s245 + $0x100] sm:$0xff] %v7502
        %7567 = vst [vmem:[%s245 + $0x108] sm:$0xff] %v7503
        %7568 = vst [vmem:[%s245 + $0x110] sm:$0xff] %v7504
        %7569 = vst [vmem:[%s245 + $0x118] sm:$0xff] %v7505
        %7570 = vst [vmem:[%s245 + $0x120] sm:$0xff] %v7506
        %7571 = vst [vmem:[%s245 + $0x128] sm:$0xff] %v7507
        %7572 = vst [vmem:[%s245 + $0x130] sm:$0xff] %v7508
        %7573 = vst [vmem:[%s245 + $0x138] sm:$0xff] %v7509
        %7574 = vst [vmem:[%s245 + $0x140] sm:$0xff] %v7510
        %7575 = vst [vmem:[%s245 + $0x148] sm:$0xff] %v7511
        %7576 = vst [vmem:[%s245 + $0x150] sm:$0xff] %v7512
        %7577 = vst [vmem:[%s245 + $0x158] sm:$0xff] %v7513
        %7578 = vst [vmem:[%s245 + $0x160] sm:$0xff] %v7514
        %7579 = vst [vmem:[%s245 + $0x168] sm:$0xff] %v7515
        %7580 = vst [vmem:[%s245 + $0x170] sm:$0xff] %v7516
        %7581 = vst [vmem:[%s245 + $0x178] sm:$0xff] %v7517
        %7582 = vst [vmem:[%s245 + $0x180] sm:$0xff] %v7518
        %7583 = vst [vmem:[%s245 + $0x188] sm:$0xff] %v7519
        %7584 = vst [vmem:[%s245 + $0x190] sm:$0xff] %v7520
        %7585 = vst [vmem:[%s245 + $0x198] sm:$0xff] %v7521
        %7586 = vst [vmem:[%s245 + $0x1a0] sm:$0xff] %v7522
        %7587 = vst [vmem:[%s245 + $0x1a8] sm:$0xff] %v7523
        %7588 = vst [vmem:[%s245 + $0x1b0] sm:$0xff] %v7524
        %7589 = vst [vmem:[%s245 + $0x1b8] sm:$0xff] %v7525
        %7590 = vst [vmem:[%s245 + $0x1c0] sm:$0xff] %v7526
        %7591 = vst [vmem:[%s245 + $0x1c8] sm:$0xff] %v7527
        %7592 = vst [vmem:[%s245 + $0x1d0] sm:$0xff] %v7528
        %7593 = vst [vmem:[%s245 + $0x1d8] sm:$0xff] %v7529
        %7594 = vst [vmem:[%s245 + $0x1e0] sm:$0xff] %v7530
        %7595 = vst [vmem:[%s245 + $0x1e8] sm:$0xff] %v7531
        %7596 = vst [vmem:[%s245 + $0x1f0] sm:$0xff] %v7532
        %7597 = vst [vmem:[%s245 + $0x1f8] sm:$0xff] %v7533
        %s7598 = sand.u32 %s117, 1
        %s7599 = scalar_lea.sflag [#allocation4], %s7598
        %s7600 = sand.u32 %s117, 1
        %s7601 = smul.addr %s7600, 512
        %s7602 = scalar_lea.vmem [#allocation8], %s7601
        // Predicated region
        $region45: #{tpu_custom_call.1} parent=31 // pred_check
          %p7603 = pneg %p127
        $region46: #{tpu_custom_call.1} parent=31 // pred_check_branch
          %7605 = sbr.rel (%p7603) target = $region48
        $region47: #{tpu_custom_call.1} parent=31 // pred_region
          %s7606 = sadd.s32 %s25, %s26
          %s7607 = smul.u32 16, %s7606
          %7609 = vsyncadd %s7599, 0
          %s7610 = smul.addr %s7607, 8
          %s7611 = smul.addr %s7610, 4
          %s7612 = scalar_lea.hbm %s3, %s7611
          %s7613 = sshll.u32 %s7602, 4
          %s7614 = int_to_ptr.vmem [resolvable:$true] %s7613
          %s7615 = sshll.u32 %s7612, 4
          %s7616 = int_to_ptr.hbm [resolvable:$true] %s7615
          %7621 = dma.vmem_to_hbm [thread:$0]  %s7614, 8192, %s7616, %s7599, 512, 512, 32
        $region48: #{tpu_custom_call.1} parent=31 // pred_fallthru
          _
      $region32: #{tpu_custom_call.1} parent=5 // pred_fallthru
        _
      %p7622 = scmp.le.s32.totalorder 2, %s16
      // Predicated region
      $region49: #{tpu_custom_call.1} parent=5 // pred_check
        %p7623 = pneg %p7622
      $region50: #{tpu_custom_call.1} parent=5 // pred_check_branch
        %7625 = sbr.rel (%p7623) target = $region52
      $region51: #{tpu_custom_call.1} parent=5 // pred_region
        %s7626 = ssub.s32 %s16, 2
        // Predicated region
        $region53: #{tpu_custom_call.1} parent=51 // pred_check
          %p7627 = pneg %p133
        $region54: #{tpu_custom_call.1} parent=51 // pred_check_branch
          %7629 = sbr.rel (%p7627) target = $region56
        $region55: #{tpu_custom_call.1} parent=51 // pred_region
          %s7630 = sand.u32 %s118, 1
          %s7631 = scalar_lea.sflag [#allocation4], %s7630
          %s7632 = sand.u32 %s118, 1
          %s7633 = smul.addr %s7632, 512
          %s7634 = scalar_lea.vmem [#allocation8], %s7633
          %7636 = dma.done %s7631, 8192
        $region56: #{tpu_custom_call.1} parent=51 // pred_fallthru
          _
      $region52: #{tpu_custom_call.1} parent=5 // pred_fallthru
        _
    $region6: #{tpu_custom_call.1} parent=1 // loop_footer
      %s20 = sadd.s32 1, %s16
    $region7: #{tpu_custom_call.1} parent=1 // loop_footer_branch
      %15 = sbr.rel target = $region3
    $region8: #{tpu_custom_call.1} parent=1 // loop_exit
      _
    %7637 = vsyncpa [#allocation3], 1
    %s7638 = scalar_lea.sflag [#allocation3], 1
    %7639 = vsyncpa %s7638, 1
    %7640 = vsyncpa [#allocation6], 1
    %7641 = vsyncpa [#allocation4], 1
    %s7642 = scalar_lea.sflag [#allocation4], 1
    %7643 = vsyncpa %s7642, 1

</llo_original>
